<compile_context>
chip_gen: v6e
topology: v6e:2x2x1
jax: 0.10.0
libtpu: 0.0.40
codegen_flags: <defaults>
</compile_context>

<pallas_src>
import functools

import jax
import jax.numpy as jnp
from jax import lax
from jax.experimental import pallas as pl
from jax.experimental.pallas import tpu as pltpu


# Layer config: (Cout, Cin, kh, kw, stride, pad) — fixed instantiation of the
# external CONFIG-driven stack, for a 16x16 spatial input.
_LAYERS = [
    (8, 4, 3, 3, 2, 1),
    (16, 8, 3, 3, 2, 1),
    (32, 16, 3, 3, 2, 1),
    (32, 32, 2, 2, 1, 0),
]
_EMBED = 32


# ------------------------------ fused kernel ---------------------------------

def _encoder_kernel(p1_ref, w1_ref, w2_ref, w3_ref, w4_ref, b_ref, o_ref,
                    a1_ref, a2_ref, p2_ref, p3_ref, p4_ref, *, n_batch):
    """Entire encoder forward pass on VMEM-resident data.

    p1_ref : (N*8*8, 36)   layer-1 im2col patches (built once at the boundary)
    wX_ref : (K_l, Cout_l) conv weights flattened with K ordered (kh, kw, cin)
    b_ref  : (4, 32)       per-layer biases, row l = bias_l zero-padded to 32
    o_ref  : (N, 32)       final embedding (only HBM write of the kernel)
    a1_ref : (N*10*10, 8)  zero-padded layer-1 activation, rows=(n,h,w), lanes=C
    a2_ref : (N*6*6, 16)   zero-padded layer-2 activation
    p2_ref : (N*16, 72)    layer-2 im2col patch matrix
    p3_ref : (N*4, 144)    layer-3 im2col patch matrix
    p4_ref : (N, 128)      layer-4 patches (flattened 2x2x32 window)
    """
    N = n_batch
    f32 = jnp.float32

    # ---- layer 1: 16x16x4 -> 8x8x8  (k=3, s=2, p=1) --------------------------
    h1 = jnp.dot(p1_ref[...], w1_ref[...], preferred_element_type=f32)
    h1 = jnp.maximum(h1 + b_ref[0:1, 0:8], 0.0)          # (N*64, 8), rows = (n, oh, ow)

    # Scatter into the zero-padded (N, 10, 10, 8) buffer stored as (N*100, 8).
    a1_ref[...] = jnp.zeros_like(a1_ref)
    for n in range(N):
        for h in range(8):
            dst = (n * 10 + h + 1) * 10 + 1
            src = (n * 8 + h) * 8
            a1_ref[dst:dst + 8, :] = h1[src:src + 8, :]

    # ---- layer 2: 8x8x8 -> 4x4x16  (k=3, s=2, p=1) ---------------------------
    # im2col: one (1, 8) static ref->ref copy per (output position, kernel tap).
    for n in range(N):
        for oh in range(4):
            for ow in range(4):
                row = (n * 4 + oh) * 4 + ow
                for i in range(3):
                    src = (n * 10 + 2 * oh + i) * 10 + 2 * ow
                    for j in range(3):
                        k0 = (i * 3 + j) * 8
                        p2_ref[row:row + 1, k0:k0 + 8] = a1_ref[src + j:src + j + 1, :]
    h2 = jnp.dot(p2_ref[...], w2_ref[...], preferred_element_type=f32)
    h2 = jnp.maximum(h2 + b_ref[1:2, 0:16], 0.0)         # (N*16, 16)

    a2_ref[...] = jnp.zeros_like(a2_ref)
    for n in range(N):
        for h in range(4):
            dst = (n * 6 + h + 1) * 6 + 1
            src = (n * 4 + h) * 4
            a2_ref[dst:dst + 4, :] = h2[src:src + 4, :]

    # ---- layer 3: 4x4x16 -> 2x2x32  (k=3, s=2, p=1) --------------------------
    for n in range(N):
        for oh in range(2):
            for ow in range(2):
                row = (n * 2 + oh) * 2 + ow
                for i in range(3):
                    src = (n * 6 + 2 * oh + i) * 6 + 2 * ow
                    for j in range(3):
                        k0 = (i * 3 + j) * 16
                        p3_ref[row:row + 1, k0:k0 + 16] = a2_ref[src + j:src + j + 1, :]
    h3 = jnp.dot(p3_ref[...], w3_ref[...], preferred_element_type=f32)
    h3 = jnp.maximum(h3 + b_ref[2:3, 0:32], 0.0)         # (N*4, 32), rows = (n, h, w) over 2x2

    # ---- layer 4: 2x2x32 -> 1x1x32  (k=2, s=1, p=0) == flatten each window ---
    for n in range(N):
        for r in range(4):                                # r = i*2 + j
            p4_ref[n:n + 1, r * 32:(r + 1) * 32] = h3[n * 4 + r:n * 4 + r + 1, :]
    h4 = jnp.dot(p4_ref[...], w4_ref[...], preferred_element_type=f32)
    o_ref[...] = jnp.maximum(h4 + b_ref[3:4, 0:32], 0.0)  # (N, 32) embedding


# ---------------------------- wrapper (boundary) -------------------------------

def _prep_weight(w):
    """OIHW conv weight -> (kh*kw*Cin, Cout) matrix, K ordered (kh, kw, cin)."""
    cout, cin, kh, kw = w.shape
    return jnp.transpose(w, (2, 3, 1, 0)).reshape(kh * kw * cin, cout)


def _im2col_input(x, kh, kw, stride, pad):
    """One-time boundary im2col of the raw NCHW input; K ordered (kh, kw, cin)."""
    N, C, H, W = x.shape
    xp = jnp.pad(x, ((0, 0), (0, 0), (pad, pad), (pad, pad)))
    Ho = (H + 2 * pad - kh) // stride + 1
    Wo = (W + 2 * pad - kw) // stride + 1
    cols = []
    for i in range(kh):
        for j in range(kw):
            cols.append(xp[:, :, i:i + stride * Ho:stride, j:j + stride * Wo:stride])
    cols = jnp.stack(cols, axis=1)               # (N, kh*kw, C, Ho, Wo)
    cols = cols.transpose(0, 3, 4, 1, 2)         # (N, Ho, Wo, kh*kw, C)
    return cols.reshape(N * Ho * Wo, kh * kw * C)


@jax.jit
def convolutional_encoder(x, params):
    """Forward pass: fused conv+ReLU stack -> (N, 32) embedding."""
    assert x.shape[1:] == (4, 16, 16), x.shape
    N = x.shape[0]
    (w1, b1), (w2, b2), (w3, b3), (w4, b4) = params

    p1 = _im2col_input(x, 3, 3, 2, 1)                       # (N*64, 36)
    w_mats = [_prep_weight(w) for w in (w1, w2, w3, w4)]    # (36,8) (72,16) (144,32) (128,32)
    bias = jnp.zeros((4, _EMBED), jnp.float32)
    bias = (bias.at[0, :8].set(b1).at[1, :16].set(b2)
                .at[2, :32].set(b3).at[3, :32].set(b4))

    flops = 2 * N * (64 * 36 * 8 + 16 * 72 * 16 + 4 * 144 * 32 + 1 * 128 * 32)
    bytes_accessed = 4 * (p1.size + sum(w.size for w in w_mats)
                          + bias.size + N * _EMBED)

    kernel = functools.partial(_encoder_kernel, n_batch=N)
    return pl.pallas_call(
        kernel,
        out_shape=jax.ShapeDtypeStruct((N, _EMBED), jnp.float32),
        scratch_shapes=[
            pltpu.VMEM((N * 10 * 10, 8), jnp.float32),    # padded layer-1 activation
            pltpu.VMEM((N * 6 * 6, 16), jnp.float32),     # padded layer-2 activation
            pltpu.VMEM((N * 4 * 4, 72), jnp.float32),     # layer-2 patch matrix
            pltpu.VMEM((N * 2 * 2, 144), jnp.float32),    # layer-3 patch matrix
            pltpu.VMEM((N, 128), jnp.float32),            # layer-4 patch matrix
        ],
        cost_estimate=pl.CostEstimate(flops=flops, transcendentals=0,
                                      bytes_accessed=bytes_accessed),
    )(p1, *w_mats, bias)


# ------------------------------- params / ref ---------------------------------

def init_params(key):
    params = []
    for (cout, cin, kh, kw, _, _) in _LAYERS:
        key, k_w, k_b = jax.random.split(key, 3)
        fan_in = cin * kh * kw
        w = jax.random.normal(k_w, (cout, cin, kh, kw), jnp.float32) / jnp.sqrt(fan_in)
        b = jax.random.normal(k_b, (cout,), jnp.float32) * 0.01
        params.append((w, b))
    return params


def _reference(x, params):
    """Pure-JAX (XLA conv) reference, used only for correctness verification."""
    h = x
    for (w, b), (_, _, _, _, stride, pad) in zip(params, _LAYERS):
        y = lax.conv_general_dilated(
            h, w, (stride, stride), [(pad, pad), (pad, pad)],
            dimension_numbers=("NCHW", "OIHW", "NCHW"))
        h = jnp.maximum(y + b[None, :, None, None], 0.0)
    return h.reshape(h.shape[0], -1)


if __name__ == "__main__":
    key = jax.random.PRNGKey(0)
    key, xkey = jax.random.split(key)
    x = jax.random.normal(xkey, (2, 4, 16, 16), jnp.float32)   # NCHW, like PyTorch

    params = init_params(key)

    out = jax.block_until_ready(convolutional_encoder(x, params))
    ref = _reference(x, params)

    assert out.shape == (2, _EMBED), out.shape
    assert jnp.allclose(out, ref, atol=1e-3, rtol=1e-3), (
        float(jnp.max(jnp.abs(out - ref))))

    # TODO(synk): CONFIG-driven layer parsing (parse_config) has no kernel-side
    # analog; the layer stack above is a fixed, deterministic instantiation.
    print("KERNEL_OK")
</pallas_src>

<mosaic_0001>
module attributes {stable_mosaic.version = 11 : i64} {
  func.func @_encoder_kernel(%arg0: memref<128x36xf32, #tpu.memory_space<vmem>>, %arg1: memref<36x8xf32, #tpu.memory_space<vmem>>, %arg2: memref<72x16xf32, #tpu.memory_space<vmem>>, %arg3: memref<144x32xf32, #tpu.memory_space<vmem>>, %arg4: memref<128x32xf32, #tpu.memory_space<vmem>>, %arg5: memref<4x32xf32, #tpu.memory_space<vmem>>, %arg6: memref<2x32xf32, #tpu.memory_space<vmem>>, %arg7: memref<200x8xf32, #tpu.memory_space<vmem>>, %arg8: memref<72x16xf32, #tpu.memory_space<vmem>>, %arg9: memref<32x72xf32, #tpu.memory_space<vmem>>, %arg10: memref<8x144xf32, #tpu.memory_space<vmem>>, %arg11: memref<2x128xf32, #tpu.memory_space<vmem>>) attributes {dimension_semantics = [], scalar_prefetch = 0 : i64, scratch_operands = 5 : i64, tpu.core_type = #tpu.core_type<tc>} {
    %c0 = arith.constant 0 : index
    %c0_0 = arith.constant 0 : index
    %0 = vector.load %arg0[%c0, %c0_0] : memref<128x36xf32, #tpu.memory_space<vmem>>, vector<128x36xf32>
    %c0_1 = arith.constant 0 : index
    %c0_2 = arith.constant 0 : index
    %1 = vector.load %arg1[%c0_1, %c0_2] : memref<36x8xf32, #tpu.memory_space<vmem>>, vector<36x8xf32>
    %cst = arith.constant dense<0.000000e+00> : vector<128x8xf32>
    %2 = tpu.matmul %0, %1, %cst {dimension_numbers = #tpu.dot_dimension_numbers<[1], [0], [0], [1], [0, 0, 1, 1], [], []>} : vector<128x36xf32>, vector<36x8xf32>, vector<128x8xf32> -> vector<128x8xf32>
    %c0_3 = arith.constant 0 : index
    %c0_4 = arith.constant 0 : index
    %3 = vector.load %arg5[%c0_3, %c0_4] : memref<4x32xf32, #tpu.memory_space<vmem>>, vector<1x8xf32>
    %4 = vector.broadcast %3 : vector<1x8xf32> to vector<128x8xf32>
    %5 = arith.addf %2, %4 : vector<128x8xf32>
    %cst_5 = arith.constant 0.000000e+00 : f32
    %6 = vector.broadcast %cst_5 : f32 to vector<128x8xf32>
    %7 = arith.maximumf %5, %6 : vector<128x8xf32>
    %cst_6 = arith.constant 0.000000e+00 : f32
    %8 = vector.broadcast %cst_6 : f32 to vector<200x8xf32>
    %c0_7 = arith.constant 0 : index
    %c0_8 = arith.constant 0 : index
    %9 = vector.load %arg7[%c0_7, %c0_8] : memref<200x8xf32, #tpu.memory_space<vmem>>, vector<200x8xf32>
    tpu.vector_store %arg7[%c0_7, %c0_8], %8 {strides = array<i32>} : memref<200x8xf32, #tpu.memory_space<vmem>>, vector<200x8xf32>,
    %10 = vector.extract_strided_slice %7 {offsets = [0, 0], sizes = [8, 8], strides = [1, 1]} : vector<128x8xf32> to vector<8x8xf32>
    %c11 = arith.constant 11 : index
    %c0_9 = arith.constant 0 : index
    %11 = vector.load %arg7[%c11, %c0_9] : memref<200x8xf32, #tpu.memory_space<vmem>>, vector<8x8xf32>
    tpu.vector_store %arg7[%c11, %c0_9], %10 {strides = array<i32>} : memref<200x8xf32, #tpu.memory_space<vmem>>, vector<8x8xf32>,
    %12 = vector.extract_strided_slice %7 {offsets = [8, 0], sizes = [8, 8], strides = [1, 1]} : vector<128x8xf32> to vector<8x8xf32>
    %c21 = arith.constant 21 : index
    %c0_10 = arith.constant 0 : index
    %13 = vector.load %arg7[%c21, %c0_10] : memref<200x8xf32, #tpu.memory_space<vmem>>, vector<8x8xf32>
    tpu.vector_store %arg7[%c21, %c0_10], %12 {strides = array<i32>} : memref<200x8xf32, #tpu.memory_space<vmem>>, vector<8x8xf32>,
    %14 = vector.extract_strided_slice %7 {offsets = [16, 0], sizes = [8, 8], strides = [1, 1]} : vector<128x8xf32> to vector<8x8xf32>
    %c31 = arith.constant 31 : index
    %c0_11 = arith.constant 0 : index
    %15 = vector.load %arg7[%c31, %c0_11] : memref<200x8xf32, #tpu.memory_space<vmem>>, vector<8x8xf32>
    tpu.vector_store %arg7[%c31, %c0_11], %14 {strides = array<i32>} : memref<200x8xf32, #tpu.memory_space<vmem>>, vector<8x8xf32>,
    %16 = vector.extract_strided_slice %7 {offsets = [24, 0], sizes = [8, 8], strides = [1, 1]} : vector<128x8xf32> to vector<8x8xf32>
    %c41 = arith.constant 41 : index
    %c0_12 = arith.constant 0 : index
    %17 = vector.load %arg7[%c41, %c0_12] : memref<200x8xf32, #tpu.memory_space<vmem>>, vector<8x8xf32>
    tpu.vector_store %arg7[%c41, %c0_12], %16 {strides = array<i32>} : memref<200x8xf32, #tpu.memory_space<vmem>>, vector<8x8xf32>,
    %18 = vector.extract_strided_slice %7 {offsets = [32, 0], sizes = [8, 8], strides = [1, 1]} : vector<128x8xf32> to vector<8x8xf32>
    %c51 = arith.constant 51 : index
    %c0_13 = arith.constant 0 : index
    %19 = vector.load %arg7[%c51, %c0_13] : memref<200x8xf32, #tpu.memory_space<vmem>>, vector<8x8xf32>
    tpu.vector_store %arg7[%c51, %c0_13], %18 {strides = array<i32>} : memref<200x8xf32, #tpu.memory_space<vmem>>, vector<8x8xf32>,
    %20 = vector.extract_strided_slice %7 {offsets = [40, 0], sizes = [8, 8], strides = [1, 1]} : vector<128x8xf32> to vector<8x8xf32>
    %c61 = arith.constant 61 : index
    %c0_14 = arith.constant 0 : index
    %21 = vector.load %arg7[%c61, %c0_14] : memref<200x8xf32, #tpu.memory_space<vmem>>, vector<8x8xf32>
    tpu.vector_store %arg7[%c61, %c0_14], %20 {strides = array<i32>} : memref<200x8xf32, #tpu.memory_space<vmem>>, vector<8x8xf32>,
    %22 = vector.extract_strided_slice %7 {offsets = [48, 0], sizes = [8, 8], strides = [1, 1]} : vector<128x8xf32> to vector<8x8xf32>
    %c71 = arith.constant 71 : index
    %c0_15 = arith.constant 0 : index
    %23 = vector.load %arg7[%c71, %c0_15] : memref<200x8xf32, #tpu.memory_space<vmem>>, vector<8x8xf32>
    tpu.vector_store %arg7[%c71, %c0_15], %22 {strides = array<i32>} : memref<200x8xf32, #tpu.memory_space<vmem>>, vector<8x8xf32>,
    %24 = vector.extract_strided_slice %7 {offsets = [56, 0], sizes = [8, 8], strides = [1, 1]} : vector<128x8xf32> to vector<8x8xf32>
    %c81 = arith.constant 81 : index
    %c0_16 = arith.constant 0 : index
    %25 = vector.load %arg7[%c81, %c0_16] : memref<200x8xf32, #tpu.memory_space<vmem>>, vector<8x8xf32>
    tpu.vector_store %arg7[%c81, %c0_16], %24 {strides = array<i32>} : memref<200x8xf32, #tpu.memory_space<vmem>>, vector<8x8xf32>,
    %26 = vector.extract_strided_slice %7 {offsets = [64, 0], sizes = [8, 8], strides = [1, 1]} : vector<128x8xf32> to vector<8x8xf32>
    %c111 = arith.constant 111 : index
    %c0_17 = arith.constant 0 : index
    %27 = vector.load %arg7[%c111, %c0_17] : memref<200x8xf32, #tpu.memory_space<vmem>>, vector<8x8xf32>
    tpu.vector_store %arg7[%c111, %c0_17], %26 {strides = array<i32>} : memref<200x8xf32, #tpu.memory_space<vmem>>, vector<8x8xf32>,
    %28 = vector.extract_strided_slice %7 {offsets = [72, 0], sizes = [8, 8], strides = [1, 1]} : vector<128x8xf32> to vector<8x8xf32>
    %c121 = arith.constant 121 : index
    %c0_18 = arith.constant 0 : index
    %29 = vector.load %arg7[%c121, %c0_18] : memref<200x8xf32, #tpu.memory_space<vmem>>, vector<8x8xf32>
    tpu.vector_store %arg7[%c121, %c0_18], %28 {strides = array<i32>} : memref<200x8xf32, #tpu.memory_space<vmem>>, vector<8x8xf32>,
    %30 = vector.extract_strided_slice %7 {offsets = [80, 0], sizes = [8, 8], strides = [1, 1]} : vector<128x8xf32> to vector<8x8xf32>
    %c131 = arith.constant 131 : index
    %c0_19 = arith.constant 0 : index
    %31 = vector.load %arg7[%c131, %c0_19] : memref<200x8xf32, #tpu.memory_space<vmem>>, vector<8x8xf32>
    tpu.vector_store %arg7[%c131, %c0_19], %30 {strides = array<i32>} : memref<200x8xf32, #tpu.memory_space<vmem>>, vector<8x8xf32>,
    %32 = vector.extract_strided_slice %7 {offsets = [88, 0], sizes = [8, 8], strides = [1, 1]} : vector<128x8xf32> to vector<8x8xf32>
    %c141 = arith.constant 141 : index
    %c0_20 = arith.constant 0 : index
    %33 = vector.load %arg7[%c141, %c0_20] : memref<200x8xf32, #tpu.memory_space<vmem>>, vector<8x8xf32>
    tpu.vector_store %arg7[%c141, %c0_20], %32 {strides = array<i32>} : memref<200x8xf32, #tpu.memory_space<vmem>>, vector<8x8xf32>,
    %34 = vector.extract_strided_slice %7 {offsets = [96, 0], sizes = [8, 8], strides = [1, 1]} : vector<128x8xf32> to vector<8x8xf32>
    %c151 = arith.constant 151 : index
    %c0_21 = arith.constant 0 : index
    %35 = vector.load %arg7[%c151, %c0_21] : memref<200x8xf32, #tpu.memory_space<vmem>>, vector<8x8xf32>
    tpu.vector_store %arg7[%c151, %c0_21], %34 {strides = array<i32>} : memref<200x8xf32, #tpu.memory_space<vmem>>, vector<8x8xf32>,
    %36 = vector.extract_strided_slice %7 {offsets = [104, 0], sizes = [8, 8], strides = [1, 1]} : vector<128x8xf32> to vector<8x8xf32>
    %c161 = arith.constant 161 : index
    %c0_22 = arith.constant 0 : index
    %37 = vector.load %arg7[%c161, %c0_22] : memref<200x8xf32, #tpu.memory_space<vmem>>, vector<8x8xf32>
    tpu.vector_store %arg7[%c161, %c0_22], %36 {strides = array<i32>} : memref<200x8xf32, #tpu.memory_space<vmem>>, vector<8x8xf32>,
    %38 = vector.extract_strided_slice %7 {offsets = [112, 0], sizes = [8, 8], strides = [1, 1]} : vector<128x8xf32> to vector<8x8xf32>
    %c171 = arith.constant 171 : index
    %c0_23 = arith.constant 0 : index
    %39 = vector.load %arg7[%c171, %c0_23] : memref<200x8xf32, #tpu.memory_space<vmem>>, vector<8x8xf32>
    tpu.vector_store %arg7[%c171, %c0_23], %38 {strides = array<i32>} : memref<200x8xf32, #tpu.memory_space<vmem>>, vector<8x8xf32>,
    %40 = vector.extract_strided_slice %7 {offsets = [120, 0], sizes = [8, 8], strides = [1, 1]} : vector<128x8xf32> to vector<8x8xf32>
    %c181 = arith.constant 181 : index
    %c0_24 = arith.constant 0 : index
    %41 = vector.load %arg7[%c181, %c0_24] : memref<200x8xf32, #tpu.memory_space<vmem>>, vector<8x8xf32>
    tpu.vector_store %arg7[%c181, %c0_24], %40 {strides = array<i32>} : memref<200x8xf32, #tpu.memory_space<vmem>>, vector<8x8xf32>,
    %c0_25 = arith.constant 0 : index
    %c0_26 = arith.constant 0 : index
    %42 = vector.load %arg7[%c0_25, %c0_26] : memref<200x8xf32, #tpu.memory_space<vmem>>, vector<1x8xf32>
    %c0_27 = arith.constant 0 : index
    %c0_28 = arith.constant 0 : index
    %43 = vector.load %arg9[%c0_27, %c0_28] : memref<32x72xf32, #tpu.memory_space<vmem>>, vector<1x8xf32>
    tpu.vector_store %arg9[%c0_27, %c0_28], %42 {strides = array<i32>} : memref<32x72xf32, #tpu.memory_space<vmem>>, vector<1x8xf32>,
    %c1 = arith.constant 1 : index
    %c0_29 = arith.constant 0 : index
    %44 = vector.load %arg7[%c1, %c0_29] : memref<200x8xf32, #tpu.memory_space<vmem>>, vector<1x8xf32>
    %c0_30 = arith.constant 0 : index
    %c8 = arith.constant 8 : index
    %45 = vector.load %arg9[%c0_30, %c8] : memref<32x72xf32, #tpu.memory_space<vmem>>, vector<1x8xf32>
    tpu.vector_store %arg9[%c0_30, %c8], %44 {strides = array<i32>} : memref<32x72xf32, #tpu.memory_space<vmem>>, vector<1x8xf32>,
    %c2 = arith.constant 2 : index
    %c0_31 = arith.constant 0 : index
    %46 = vector.load %arg7[%c2, %c0_31] : memref<200x8xf32, #tpu.memory_space<vmem>>, vector<1x8xf32>
    %c0_32 = arith.constant 0 : index
    %c16 = arith.constant 16 : index
    %47 = vector.load %arg9[%c0_32, %c16] : memref<32x72xf32, #tpu.memory_space<vmem>>, vector<1x8xf32>
    tpu.vector_store %arg9[%c0_32, %c16], %46 {strides = array<i32>} : memref<32x72xf32, #tpu.memory_space<vmem>>, vector<1x8xf32>,
    %c10 = arith.constant 10 : index
    %c0_33 = arith.constant 0 : index
    %48 = vector.load %arg7[%c10, %c0_33] : memref<200x8xf32, #tpu.memory_space<vmem>>, vector<1x8xf32>
    %c0_34 = arith.constant 0 : index
    %c24 = arith.constant 24 : index
    %49 = vector.load %arg9[%c0_34, %c24] : memref<32x72xf32, #tpu.memory_space<vmem>>, vector<1x8xf32>
    tpu.vector_store %arg9[%c0_34, %c24], %48 {strides = array<i32>} : memref<32x72xf32, #tpu.memory_space<vmem>>, vector<1x8xf32>,
    %c11_35 = arith.constant 11 : index
    %c0_36 = arith.constant 0 : index
    %50 = vector.load %arg7[%c11_35, %c0_36] : memref<200x8xf32, #tpu.memory_space<vmem>>, vector<1x8xf32>
    %c0_37 = arith.constant 0 : index
    %c32 = arith.constant 32 : index
    %51 = vector.load %arg9[%c0_37, %c32] : memref<32x72xf32, #tpu.memory_space<vmem>>, vector<1x8xf32>
    tpu.vector_store %arg9[%c0_37, %c32], %50 {strides = array<i32>} : memref<32x72xf32, #tpu.memory_space<vmem>>, vector<1x8xf32>,
    %c12 = arith.constant 12 : index
    %c0_38 = arith.constant 0 : index
    %52 = vector.load %arg7[%c12, %c0_38] : memref<200x8xf32, #tpu.memory_space<vmem>>, vector<1x8xf32>
    %c0_39 = arith.constant 0 : index
    %c40 = arith.constant 40 : index
    %53 = vector.load %arg9[%c0_39, %c40] : memref<32x72xf32, #tpu.memory_space<vmem>>, vector<1x8xf32>
    tpu.vector_store %arg9[%c0_39, %c40], %52 {strides = array<i32>} : memref<32x72xf32, #tpu.memory_space<vmem>>, vector<1x8xf32>,
    %c20 = arith.constant 20 : index
    %c0_40 = arith.constant 0 : index
    %54 = vector.load %arg7[%c20, %c0_40] : memref<200x8xf32, #tpu.memory_space<vmem>>, vector<1x8xf32>
    %c0_41 = arith.constant 0 : index
    %c48 = arith.constant 48 : index
    %55 = vector.load %arg9[%c0_41, %c48] : memref<32x72xf32, #tpu.memory_space<vmem>>, vector<1x8xf32>
    tpu.vector_store %arg9[%c0_41, %c48], %54 {strides = array<i32>} : memref<32x72xf32, #tpu.memory_space<vmem>>, vector<1x8xf32>,
    %c21_42 = arith.constant 21 : index
    %c0_43 = arith.constant 0 : index
    %56 = vector.load %arg7[%c21_42, %c0_43] : memref<200x8xf32, #tpu.memory_space<vmem>>, vector<1x8xf32>
    %c0_44 = arith.constant 0 : index
    %c56 = arith.constant 56 : index
    %57 = vector.load %arg9[%c0_44, %c56] : memref<32x72xf32, #tpu.memory_space<vmem>>, vector<1x8xf32>
    tpu.vector_store %arg9[%c0_44, %c56], %56 {strides = array<i32>} : memref<32x72xf32, #tpu.memory_space<vmem>>, vector<1x8xf32>,
    %c22 = arith.constant 22 : index
    %c0_45 = arith.constant 0 : index
    %58 = vector.load %arg7[%c22, %c0_45] : memref<200x8xf32, #tpu.memory_space<vmem>>, vector<1x8xf32>
    %c0_46 = arith.constant 0 : index
    %c64 = arith.constant 64 : index
    %59 = vector.load %arg9[%c0_46, %c64] : memref<32x72xf32, #tpu.memory_space<vmem>>, vector<1x8xf32>
    tpu.vector_store %arg9[%c0_46, %c64], %58 {strides = array<i32>} : memref<32x72xf32, #tpu.memory_space<vmem>>, vector<1x8xf32>,
    %c2_47 = arith.constant 2 : index
    %c0_48 = arith.constant 0 : index
    %60 = vector.load %arg7[%c2_47, %c0_48] : memref<200x8xf32, #tpu.memory_space<vmem>>, vector<1x8xf32>
    %c1_49 = arith.constant 1 : index
    %c0_50 = arith.constant 0 : index
    %61 = vector.load %arg9[%c1_49, %c0_50] : memref<32x72xf32, #tpu.memory_space<vmem>>, vector<1x8xf32>
    tpu.vector_store %arg9[%c1_49, %c0_50], %60 {strides = array<i32>} : memref<32x72xf32, #tpu.memory_space<vmem>>, vector<1x8xf32>,
    %c3 = arith.constant 3 : index
    %c0_51 = arith.constant 0 : index
    %62 = vector.load %arg7[%c3, %c0_51] : memref<200x8xf32, #tpu.memory_space<vmem>>, vector<1x8xf32>
    %c1_52 = arith.constant 1 : index
    %c8_53 = arith.constant 8 : index
    %63 = vector.load %arg9[%c1_52, %c8_53] : memref<32x72xf32, #tpu.memory_space<vmem>>, vector<1x8xf32>
    tpu.vector_store %arg9[%c1_52, %c8_53], %62 {strides = array<i32>} : memref<32x72xf32, #tpu.memory_space<vmem>>, vector<1x8xf32>,
    %c4 = arith.constant 4 : index
    %c0_54 = arith.constant 0 : index
    %64 = vector.load %arg7[%c4, %c0_54] : memref<200x8xf32, #tpu.memory_space<vmem>>, vector<1x8xf32>
    %c1_55 = arith.constant 1 : index
    %c16_56 = arith.constant 16 : index
    %65 = vector.load %arg9[%c1_55, %c16_56] : memref<32x72xf32, #tpu.memory_space<vmem>>, vector<1x8xf32>
    tpu.vector_store %arg9[%c1_55, %c16_56], %64 {strides = array<i32>} : memref<32x72xf32, #tpu.memory_space<vmem>>, vector<1x8xf32>,
    %c12_57 = arith.constant 12 : index
    %c0_58 = arith.constant 0 : index
    %66 = vector.load %arg7[%c12_57, %c0_58] : memref<200x8xf32, #tpu.memory_space<vmem>>, vector<1x8xf32>
    %c1_59 = arith.constant 1 : index
    %c24_60 = arith.constant 24 : index
    %67 = vector.load %arg9[%c1_59, %c24_60] : memref<32x72xf32, #tpu.memory_space<vmem>>, vector<1x8xf32>
    tpu.vector_store %arg9[%c1_59, %c24_60], %66 {strides = array<i32>} : memref<32x72xf32, #tpu.memory_space<vmem>>, vector<1x8xf32>,
    %c13 = arith.constant 13 : index
    %c0_61 = arith.constant 0 : index
    %68 = vector.load %arg7[%c13, %c0_61] : memref<200x8xf32, #tpu.memory_space<vmem>>, vector<1x8xf32>
    %c1_62 = arith.constant 1 : index
    %c32_63 = arith.constant 32 : index
    %69 = vector.load %arg9[%c1_62, %c32_63] : memref<32x72xf32, #tpu.memory_space<vmem>>, vector<1x8xf32>
    tpu.vector_store %arg9[%c1_62, %c32_63], %68 {strides = array<i32>} : memref<32x72xf32, #tpu.memory_space<vmem>>, vector<1x8xf32>,
    %c14 = arith.constant 14 : index
    %c0_64 = arith.constant 0 : index
    %70 = vector.load %arg7[%c14, %c0_64] : memref<200x8xf32, #tpu.memory_space<vmem>>, vector<1x8xf32>
    %c1_65 = arith.constant 1 : index
    %c40_66 = arith.constant 40 : index
    %71 = vector.load %arg9[%c1_65, %c40_66] : memref<32x72xf32, #tpu.memory_space<vmem>>, vector<1x8xf32>
    tpu.vector_store %arg9[%c1_65, %c40_66], %70 {strides = array<i32>} : memref<32x72xf32, #tpu.memory_space<vmem>>, vector<1x8xf32>,
    %c22_67 = arith.constant 22 : index
    %c0_68 = arith.constant 0 : index
    %72 = vector.load %arg7[%c22_67, %c0_68] : memref<200x8xf32, #tpu.memory_space<vmem>>, vector<1x8xf32>
    %c1_69 = arith.constant 1 : index
    %c48_70 = arith.constant 48 : index
    %73 = vector.load %arg9[%c1_69, %c48_70] : memref<32x72xf32, #tpu.memory_space<vmem>>, vector<1x8xf32>
    tpu.vector_store %arg9[%c1_69, %c48_70], %72 {strides = array<i32>} : memref<32x72xf32, #tpu.memory_space<vmem>>, vector<1x8xf32>,
    %c23 = arith.constant 23 : index
    %c0_71 = arith.constant 0 : index
    %74 = vector.load %arg7[%c23, %c0_71] : memref<200x8xf32, #tpu.memory_space<vmem>>, vector<1x8xf32>
    %c1_72 = arith.constant 1 : index
    %c56_73 = arith.constant 56 : index
    %75 = vector.load %arg9[%c1_72, %c56_73] : memref<32x72xf32, #tpu.memory_space<vmem>>, vector<1x8xf32>
    tpu.vector_store %arg9[%c1_72, %c56_73], %74 {strides = array<i32>} : memref<32x72xf32, #tpu.memory_space<vmem>>, vector<1x8xf32>,
    %c24_74 = arith.constant 24 : index
    %c0_75 = arith.constant 0 : index
    %76 = vector.load %arg7[%c24_74, %c0_75] : memref<200x8xf32, #tpu.memory_space<vmem>>, vector<1x8xf32>
    %c1_76 = arith.constant 1 : index
    %c64_77 = arith.constant 64 : index
    %77 = vector.load %arg9[%c1_76, %c64_77] : memref<32x72xf32, #tpu.memory_space<vmem>>, vector<1x8xf32>
    tpu.vector_store %arg9[%c1_76, %c64_77], %76 {strides = array<i32>} : memref<32x72xf32, #tpu.memory_space<vmem>>, vector<1x8xf32>,
    %c4_78 = arith.constant 4 : index
    %c0_79 = arith.constant 0 : index
    %78 = vector.load %arg7[%c4_78, %c0_79] : memref<200x8xf32, #tpu.memory_space<vmem>>, vector<1x8xf32>
    %c2_80 = arith.constant 2 : index
    %c0_81 = arith.constant 0 : index
    %79 = vector.load %arg9[%c2_80, %c0_81] : memref<32x72xf32, #tpu.memory_space<vmem>>, vector<1x8xf32>
    tpu.vector_store %arg9[%c2_80, %c0_81], %78 {strides = array<i32>} : memref<32x72xf32, #tpu.memory_space<vmem>>, vector<1x8xf32>,
    %c5 = arith.constant 5 : index
    %c0_82 = arith.constant 0 : index
    %80 = vector.load %arg7[%c5, %c0_82] : memref<200x8xf32, #tpu.memory_space<vmem>>, vector<1x8xf32>
    %c2_83 = arith.constant 2 : index
    %c8_84 = arith.constant 8 : index
    %81 = vector.load %arg9[%c2_83, %c8_84] : memref<32x72xf32, #tpu.memory_space<vmem>>, vector<1x8xf32>
    tpu.vector_store %arg9[%c2_83, %c8_84], %80 {strides = array<i32>} : memref<32x72xf32, #tpu.memory_space<vmem>>, vector<1x8xf32>,
    %c6 = arith.constant 6 : index
    %c0_85 = arith.constant 0 : index
    %82 = vector.load %arg7[%c6, %c0_85] : memref<200x8xf32, #tpu.memory_space<vmem>>, vector<1x8xf32>
    %c2_86 = arith.constant 2 : index
    %c16_87 = arith.constant 16 : index
    %83 = vector.load %arg9[%c2_86, %c16_87] : memref<32x72xf32, #tpu.memory_space<vmem>>, vector<1x8xf32>
    tpu.vector_store %arg9[%c2_86, %c16_87], %82 {strides = array<i32>} : memref<32x72xf32, #tpu.memory_space<vmem>>, vector<1x8xf32>,
    %c14_88 = arith.constant 14 : index
    %c0_89 = arith.constant 0 : index
    %84 = vector.load %arg7[%c14_88, %c0_89] : memref<200x8xf32, #tpu.memory_space<vmem>>, vector<1x8xf32>
    %c2_90 = arith.constant 2 : index
    %c24_91 = arith.constant 24 : index
    %85 = vector.load %arg9[%c2_90, %c24_91] : memref<32x72xf32, #tpu.memory_space<vmem>>, vector<1x8xf32>
    tpu.vector_store %arg9[%c2_90, %c24_91], %84 {strides = array<i32>} : memref<32x72xf32, #tpu.memory_space<vmem>>, vector<1x8xf32>,
    %c15 = arith.constant 15 : index
    %c0_92 = arith.constant 0 : index
    %86 = vector.load %arg7[%c15, %c0_92] : memref<200x8xf32, #tpu.memory_space<vmem>>, vector<1x8xf32>
    %c2_93 = arith.constant 2 : index
    %c32_94 = arith.constant 32 : index
    %87 = vector.load %arg9[%c2_93, %c32_94] : memref<32x72xf32, #tpu.memory_space<vmem>>, vector<1x8xf32>
    tpu.vector_store %arg9[%c2_93, %c32_94], %86 {strides = array<i32>} : memref<32x72xf32, #tpu.memory_space<vmem>>, vector<1x8xf32>,
    %c16_95 = arith.constant 16 : index
    %c0_96 = arith.constant 0 : index
    %88 = vector.load %arg7[%c16_95, %c0_96] : memref<200x8xf32, #tpu.memory_space<vmem>>, vector<1x8xf32>
    %c2_97 = arith.constant 2 : index
    %c40_98 = arith.constant 40 : index
    %89 = vector.load %arg9[%c2_97, %c40_98] : memref<32x72xf32, #tpu.memory_space<vmem>>, vector<1x8xf32>
    tpu.vector_store %arg9[%c2_97, %c40_98], %88 {strides = array<i32>} : memref<32x72xf32, #tpu.memory_space<vmem>>, vector<1x8xf32>,
    %c24_99 = arith.constant 24 : index
    %c0_100 = arith.constant 0 : index
    %90 = vector.load %arg7[%c24_99, %c0_100] : memref<200x8xf32, #tpu.memory_space<vmem>>, vector<1x8xf32>
    %c2_101 = arith.constant 2 : index
    %c48_102 = arith.constant 48 : index
    %91 = vector.load %arg9[%c2_101, %c48_102] : memref<32x72xf32, #tpu.memory_space<vmem>>, vector<1x8xf32>
    tpu.vector_store %arg9[%c2_101, %c48_102], %90 {strides = array<i32>} : memref<32x72xf32, #tpu.memory_space<vmem>>, vector<1x8xf32>,
    %c25 = arith.constant 25 : index
    %c0_103 = arith.constant 0 : index
    %92 = vector.load %arg7[%c25, %c0_103] : memref<200x8xf32, #tpu.memory_space<vmem>>, vector<1x8xf32>
    %c2_104 = arith.constant 2 : index
    %c56_105 = arith.constant 56 : index
    %93 = vector.load %arg9[%c2_104, %c56_105] : memref<32x72xf32, #tpu.memory_space<vmem>>, vector<1x8xf32>
    tpu.vector_store %arg9[%c2_104, %c56_105], %92 {strides = array<i32>} : memref<32x72xf32, #tpu.memory_space<vmem>>, vector<1x8xf32>,
    %c26 = arith.constant 26 : index
    %c0_106 = arith.constant 0 : index
    %94 = vector.load %arg7[%c26, %c0_106] : memref<200x8xf32, #tpu.memory_space<vmem>>, vector<1x8xf32>
    %c2_107 = arith.constant 2 : index
    %c64_108 = arith.constant 64 : index
    %95 = vector.load %arg9[%c2_107, %c64_108] : memref<32x72xf32, #tpu.memory_space<vmem>>, vector<1x8xf32>
    tpu.vector_store %arg9[%c2_107, %c64_108], %94 {strides = array<i32>} : memref<32x72xf32, #tpu.memory_space<vmem>>, vector<1x8xf32>,
    %c6_109 = arith.constant 6 : index
    %c0_110 = arith.constant 0 : index
    %96 = vector.load %arg7[%c6_109, %c0_110] : memref<200x8xf32, #tpu.memory_space<vmem>>, vector<1x8xf32>
    %c3_111 = arith.constant 3 : index
    %c0_112 = arith.constant 0 : index
    %97 = vector.load %arg9[%c3_111, %c0_112] : memref<32x72xf32, #tpu.memory_space<vmem>>, vector<1x8xf32>
    tpu.vector_store %arg9[%c3_111, %c0_112], %96 {strides = array<i32>} : memref<32x72xf32, #tpu.memory_space<vmem>>, vector<1x8xf32>,
    %c7 = arith.constant 7 : index
    %c0_113 = arith.constant 0 : index
    %98 = vector.load %arg7[%c7, %c0_113] : memref<200x8xf32, #tpu.memory_space<vmem>>, vector<1x8xf32>
    %c3_114 = arith.constant 3 : index
    %c8_115 = arith.constant 8 : index
    %99 = vector.load %arg9[%c3_114, %c8_115] : memref<32x72xf32, #tpu.memory_space<vmem>>, vector<1x8xf32>
    tpu.vector_store %arg9[%c3_114, %c8_115], %98 {strides = array<i32>} : memref<32x72xf32, #tpu.memory_space<vmem>>, vector<1x8xf32>,
    %c8_116 = arith.constant 8 : index
    %c0_117 = arith.constant 0 : index
    %100 = vector.load %arg7[%c8_116, %c0_117] : memref<200x8xf32, #tpu.memory_space<vmem>>, vector<1x8xf32>
    %c3_118 = arith.constant 3 : index
    %c16_119 = arith.constant 16 : index
    %101 = vector.load %arg9[%c3_118, %c16_119] : memref<32x72xf32, #tpu.memory_space<vmem>>, vector<1x8xf32>
    tpu.vector_store %arg9[%c3_118, %c16_119], %100 {strides = array<i32>} : memref<32x72xf32, #tpu.memory_space<vmem>>, vector<1x8xf32>,
    %c16_120 = arith.constant 16 : index
    %c0_121 = arith.constant 0 : index
    %102 = vector.load %arg7[%c16_120, %c0_121] : memref<200x8xf32, #tpu.memory_space<vmem>>, vector<1x8xf32>
    %c3_122 = arith.constant 3 : index
    %c24_123 = arith.constant 24 : index
    %103 = vector.load %arg9[%c3_122, %c24_123] : memref<32x72xf32, #tpu.memory_space<vmem>>, vector<1x8xf32>
    tpu.vector_store %arg9[%c3_122, %c24_123], %102 {strides = array<i32>} : memref<32x72xf32, #tpu.memory_space<vmem>>, vector<1x8xf32>,
    %c17 = arith.constant 17 : index
    %c0_124 = arith.constant 0 : index
    %104 = vector.load %arg7[%c17, %c0_124] : memref<200x8xf32, #tpu.memory_space<vmem>>, vector<1x8xf32>
    %c3_125 = arith.constant 3 : index
    %c32_126 = arith.constant 32 : index
    %105 = vector.load %arg9[%c3_125, %c32_126] : memref<32x72xf32, #tpu.memory_space<vmem>>, vector<1x8xf32>
    tpu.vector_store %arg9[%c3_125, %c32_126], %104 {strides = array<i32>} : memref<32x72xf32, #tpu.memory_space<vmem>>, vector<1x8xf32>,
    %c18 = arith.constant 18 : index
    %c0_127 = arith.constant 0 : index
    %106 = vector.load %arg7[%c18, %c0_127] : memref<200x8xf32, #tpu.memory_space<vmem>>, vector<1x8xf32>
    %c3_128 = arith.constant 3 : index
    %c40_129 = arith.constant 40 : index
    %107 = vector.load %arg9[%c3_128, %c40_129] : memref<32x72xf32, #tpu.memory_space<vmem>>, vector<1x8xf32>
    tpu.vector_store %arg9[%c3_128, %c40_129], %106 {strides = array<i32>} : memref<32x72xf32, #tpu.memory_space<vmem>>, vector<1x8xf32>,
    %c26_130 = arith.constant 26 : index
    %c0_131 = arith.constant 0 : index
    %108 = vector.load %arg7[%c26_130, %c0_131] : memref<200x8xf32, #tpu.memory_space<vmem>>, vector<1x8xf32>
    %c3_132 = arith.constant 3 : index
    %c48_133 = arith.constant 48 : index
    %109 = vector.load %arg9[%c3_132, %c48_133] : memref<32x72xf32, #tpu.memory_space<vmem>>, vector<1x8xf32>
    tpu.vector_store %arg9[%c3_132, %c48_133], %108 {strides = array<i32>} : memref<32x72xf32, #tpu.memory_space<vmem>>, vector<1x8xf32>,
    %c27 = arith.constant 27 : index
    %c0_134 = arith.constant 0 : index
    %110 = vector.load %arg7[%c27, %c0_134] : memref<200x8xf32, #tpu.memory_space<vmem>>, vector<1x8xf32>
    %c3_135 = arith.constant 3 : index
    %c56_136 = arith.constant 56 : index
    %111 = vector.load %arg9[%c3_135, %c56_136] : memref<32x72xf32, #tpu.memory_space<vmem>>, vector<1x8xf32>
    tpu.vector_store %arg9[%c3_135, %c56_136], %110 {strides = array<i32>} : memref<32x72xf32, #tpu.memory_space<vmem>>, vector<1x8xf32>,
    %c28 = arith.constant 28 : index
    %c0_137 = arith.constant 0 : index
    %112 = vector.load %arg7[%c28, %c0_137] : memref<200x8xf32, #tpu.memory_space<vmem>>, vector<1x8xf32>
    %c3_138 = arith.constant 3 : index
    %c64_139 = arith.constant 64 : index
    %113 = vector.load %arg9[%c3_138, %c64_139] : memref<32x72xf32, #tpu.memory_space<vmem>>, vector<1x8xf32>
    tpu.vector_store %arg9[%c3_138, %c64_139], %112 {strides = array<i32>} : memref<32x72xf32, #tpu.memory_space<vmem>>, vector<1x8xf32>,
    %c20_140 = arith.constant 20 : index
    %c0_141 = arith.constant 0 : index
    %114 = vector.load %arg7[%c20_140, %c0_141] : memref<200x8xf32, #tpu.memory_space<vmem>>, vector<1x8xf32>
    %c4_142 = arith.constant 4 : index
    %c0_143 = arith.constant 0 : index
    %115 = vector.load %arg9[%c4_142, %c0_143] : memref<32x72xf32, #tpu.memory_space<vmem>>, vector<1x8xf32>
    tpu.vector_store %arg9[%c4_142, %c0_143], %114 {strides = array<i32>} : memref<32x72xf32, #tpu.memory_space<vmem>>, vector<1x8xf32>,
    %c21_144 = arith.constant 21 : index
    %c0_145 = arith.constant 0 : index
    %116 = vector.load %arg7[%c21_144, %c0_145] : memref<200x8xf32, #tpu.memory_space<vmem>>, vector<1x8xf32>
    %c4_146 = arith.constant 4 : index
    %c8_147 = arith.constant 8 : index
    %117 = vector.load %arg9[%c4_146, %c8_147] : memref<32x72xf32, #tpu.memory_space<vmem>>, vector<1x8xf32>
    tpu.vector_store %arg9[%c4_146, %c8_147], %116 {strides = array<i32>} : memref<32x72xf32, #tpu.memory_space<vmem>>, vector<1x8xf32>,
    %c22_148 = arith.constant 22 : index
    %c0_149 = arith.constant 0 : index
    %118 = vector.load %arg7[%c22_148, %c0_149] : memref<200x8xf32, #tpu.memory_space<vmem>>, vector<1x8xf32>
    %c4_150 = arith.constant 4 : index
    %c16_151 = arith.constant 16 : index
    %119 = vector.load %arg9[%c4_150, %c16_151] : memref<32x72xf32, #tpu.memory_space<vmem>>, vector<1x8xf32>
    tpu.vector_store %arg9[%c4_150, %c16_151], %118 {strides = array<i32>} : memref<32x72xf32, #tpu.memory_space<vmem>>, vector<1x8xf32>,
    %c30 = arith.constant 30 : index
    %c0_152 = arith.constant 0 : index
    %120 = vector.load %arg7[%c30, %c0_152] : memref<200x8xf32, #tpu.memory_space<vmem>>, vector<1x8xf32>
    %c4_153 = arith.constant 4 : index
    %c24_154 = arith.constant 24 : index
    %121 = vector.load %arg9[%c4_153, %c24_154] : memref<32x72xf32, #tpu.memory_space<vmem>>, vector<1x8xf32>
    tpu.vector_store %arg9[%c4_153, %c24_154], %120 {strides = array<i32>} : memref<32x72xf32, #tpu.memory_space<vmem>>, vector<1x8xf32>,
    %c31_155 = arith.constant 31 : index
    %c0_156 = arith.constant 0 : index
    %122 = vector.load %arg7[%c31_155, %c0_156] : memref<200x8xf32, #tpu.memory_space<vmem>>, vector<1x8xf32>
    %c4_157 = arith.constant 4 : index
    %c32_158 = arith.constant 32 : index
    %123 = vector.load %arg9[%c4_157, %c32_158] : memref<32x72xf32, #tpu.memory_space<vmem>>, vector<1x8xf32>
    tpu.vector_store %arg9[%c4_157, %c32_158], %122 {strides = array<i32>} : memref<32x72xf32, #tpu.memory_space<vmem>>, vector<1x8xf32>,
    %c32_159 = arith.constant 32 : index
    %c0_160 = arith.constant 0 : index
    %124 = vector.load %arg7[%c32_159, %c0_160] : memref<200x8xf32, #tpu.memory_space<vmem>>, vector<1x8xf32>
    %c4_161 = arith.constant 4 : index
    %c40_162 = arith.constant 40 : index
    %125 = vector.load %arg9[%c4_161, %c40_162] : memref<32x72xf32, #tpu.memory_space<vmem>>, vector<1x8xf32>
    tpu.vector_store %arg9[%c4_161, %c40_162], %124 {strides = array<i32>} : memref<32x72xf32, #tpu.memory_space<vmem>>, vector<1x8xf32>,
    %c40_163 = arith.constant 40 : index
    %c0_164 = arith.constant 0 : index
    %126 = vector.load %arg7[%c40_163, %c0_164] : memref<200x8xf32, #tpu.memory_space<vmem>>, vector<1x8xf32>
    %c4_165 = arith.constant 4 : index
    %c48_166 = arith.constant 48 : index
    %127 = vector.load %arg9[%c4_165, %c48_166] : memref<32x72xf32, #tpu.memory_space<vmem>>, vector<1x8xf32>
    tpu.vector_store %arg9[%c4_165, %c48_166], %126 {strides = array<i32>} : memref<32x72xf32, #tpu.memory_space<vmem>>, vector<1x8xf32>,
    %c41_167 = arith.constant 41 : index
    %c0_168 = arith.constant 0 : index
    %128 = vector.load %arg7[%c41_167, %c0_168] : memref<200x8xf32, #tpu.memory_space<vmem>>, vector<1x8xf32>
    %c4_169 = arith.constant 4 : index
    %c56_170 = arith.constant 56 : index
    %129 = vector.load %arg9[%c4_169, %c56_170] : memref<32x72xf32, #tpu.memory_space<vmem>>, vector<1x8xf32>
    tpu.vector_store %arg9[%c4_169, %c56_170], %128 {strides = array<i32>} : memref<32x72xf32, #tpu.memory_space<vmem>>, vector<1x8xf32>,
    %c42 = arith.constant 42 : index
    %c0_171 = arith.constant 0 : index
    %130 = vector.load %arg7[%c42, %c0_171] : memref<200x8xf32, #tpu.memory_space<vmem>>, vector<1x8xf32>
    %c4_172 = arith.constant 4 : index
    %c64_173 = arith.constant 64 : index
    %131 = vector.load %arg9[%c4_172, %c64_173] : memref<32x72xf32, #tpu.memory_space<vmem>>, vector<1x8xf32>
    tpu.vector_store %arg9[%c4_172, %c64_173], %130 {strides = array<i32>} : memref<32x72xf32, #tpu.memory_space<vmem>>, vector<1x8xf32>,
    %c22_174 = arith.constant 22 : index
    %c0_175 = arith.constant 0 : index
    %132 = vector.load %arg7[%c22_174, %c0_175] : memref<200x8xf32, #tpu.memory_space<vmem>>, vector<1x8xf32>
    %c5_176 = arith.constant 5 : index
    %c0_177 = arith.constant 0 : index
    %133 = vector.load %arg9[%c5_176, %c0_177] : memref<32x72xf32, #tpu.memory_space<vmem>>, vector<1x8xf32>
    tpu.vector_store %arg9[%c5_176, %c0_177], %132 {strides = array<i32>} : memref<32x72xf32, #tpu.memory_space<vmem>>, vector<1x8xf32>,
    %c23_178 = arith.constant 23 : index
    %c0_179 = arith.constant 0 : index
    %134 = vector.load %arg7[%c23_178, %c0_179] : memref<200x8xf32, #tpu.memory_space<vmem>>, vector<1x8xf32>
    %c5_180 = arith.constant 5 : index
    %c8_181 = arith.constant 8 : index
    %135 = vector.load %arg9[%c5_180, %c8_181] : memref<32x72xf32, #tpu.memory_space<vmem>>, vector<1x8xf32>
    tpu.vector_store %arg9[%c5_180, %c8_181], %134 {strides = array<i32>} : memref<32x72xf32, #tpu.memory_space<vmem>>, vector<1x8xf32>,
    %c24_182 = arith.constant 24 : index
    %c0_183 = arith.constant 0 : index
    %136 = vector.load %arg7[%c24_182, %c0_183] : memref<200x8xf32, #tpu.memory_space<vmem>>, vector<1x8xf32>
    %c5_184 = arith.constant 5 : index
    %c16_185 = arith.constant 16 : index
    %137 = vector.load %arg9[%c5_184, %c16_185] : memref<32x72xf32, #tpu.memory_space<vmem>>, vector<1x8xf32>
    tpu.vector_store %arg9[%c5_184, %c16_185], %136 {strides = array<i32>} : memref<32x72xf32, #tpu.memory_space<vmem>>, vector<1x8xf32>,
    %c32_186 = arith.constant 32 : index
    %c0_187 = arith.constant 0 : index
    %138 = vector.load %arg7[%c32_186, %c0_187] : memref<200x8xf32, #tpu.memory_space<vmem>>, vector<1x8xf32>
    %c5_188 = arith.constant 5 : index
    %c24_189 = arith.constant 24 : index
    %139 = vector.load %arg9[%c5_188, %c24_189] : memref<32x72xf32, #tpu.memory_space<vmem>>, vector<1x8xf32>
    tpu.vector_store %arg9[%c5_188, %c24_189], %138 {strides = array<i32>} : memref<32x72xf32, #tpu.memory_space<vmem>>, vector<1x8xf32>,
    %c33 = arith.constant 33 : index
    %c0_190 = arith.constant 0 : index
    %140 = vector.load %arg7[%c33, %c0_190] : memref<200x8xf32, #tpu.memory_space<vmem>>, vector<1x8xf32>
    %c5_191 = arith.constant 5 : index
    %c32_192 = arith.constant 32 : index
    %141 = vector.load %arg9[%c5_191, %c32_192] : memref<32x72xf32, #tpu.memory_space<vmem>>, vector<1x8xf32>
    tpu.vector_store %arg9[%c5_191, %c32_192], %140 {strides = array<i32>} : memref<32x72xf32, #tpu.memory_space<vmem>>, vector<1x8xf32>,
    %c34 = arith.constant 34 : index
    %c0_193 = arith.constant 0 : index
    %142 = vector.load %arg7[%c34, %c0_193] : memref<200x8xf32, #tpu.memory_space<vmem>>, vector<1x8xf32>
    %c5_194 = arith.constant 5 : index
    %c40_195 = arith.constant 40 : index
    %143 = vector.load %arg9[%c5_194, %c40_195] : memref<32x72xf32, #tpu.memory_space<vmem>>, vector<1x8xf32>
    tpu.vector_store %arg9[%c5_194, %c40_195], %142 {strides = array<i32>} : memref<32x72xf32, #tpu.memory_space<vmem>>, vector<1x8xf32>,
    %c42_196 = arith.constant 42 : index
    %c0_197 = arith.constant 0 : index
    %144 = vector.load %arg7[%c42_196, %c0_197] : memref<200x8xf32, #tpu.memory_space<vmem>>, vector<1x8xf32>
    %c5_198 = arith.constant 5 : index
    %c48_199 = arith.constant 48 : index
    %145 = vector.load %arg9[%c5_198, %c48_199] : memref<32x72xf32, #tpu.memory_space<vmem>>, vector<1x8xf32>
    tpu.vector_store %arg9[%c5_198, %c48_199], %144 {strides = array<i32>} : memref<32x72xf32, #tpu.memory_space<vmem>>, vector<1x8xf32>,
    %c43 = arith.constant 43 : index
    %c0_200 = arith.constant 0 : index
    %146 = vector.load %arg7[%c43, %c0_200] : memref<200x8xf32, #tpu.memory_space<vmem>>, vector<1x8xf32>
    %c5_201 = arith.constant 5 : index
    %c56_202 = arith.constant 56 : index
    %147 = vector.load %arg9[%c5_201, %c56_202] : memref<32x72xf32, #tpu.memory_space<vmem>>, vector<1x8xf32>
    tpu.vector_store %arg9[%c5_201, %c56_202], %146 {strides = array<i32>} : memref<32x72xf32, #tpu.memory_space<vmem>>, vector<1x8xf32>,
    %c44 = arith.constant 44 : index
    %c0_203 = arith.constant 0 : index
    %148 = vector.load %arg7[%c44, %c0_203] : memref<200x8xf32, #tpu.memory_space<vmem>>, vector<1x8xf32>
    %c5_204 = arith.constant 5 : index
    %c64_205 = arith.constant 64 : index
    %149 = vector.load %arg9[%c5_204, %c64_205] : memref<32x72xf32, #tpu.memory_space<vmem>>, vector<1x8xf32>
    tpu.vector_store %arg9[%c5_204, %c64_205], %148 {strides = array<i32>} : memref<32x72xf32, #tpu.memory_space<vmem>>, vector<1x8xf32>,
    %c24_206 = arith.constant 24 : index
    %c0_207 = arith.constant 0 : index
    %150 = vector.load %arg7[%c24_206, %c0_207] : memref<200x8xf32, #tpu.memory_space<vmem>>, vector<1x8xf32>
    %c6_208 = arith.constant 6 : index
    %c0_209 = arith.constant 0 : index
    %151 = vector.load %arg9[%c6_208, %c0_209] : memref<32x72xf32, #tpu.memory_space<vmem>>, vector<1x8xf32>
    tpu.vector_store %arg9[%c6_208, %c0_209], %150 {strides = array<i32>} : memref<32x72xf32, #tpu.memory_space<vmem>>, vector<1x8xf32>,
    %c25_210 = arith.constant 25 : index
    %c0_211 = arith.constant 0 : index
    %152 = vector.load %arg7[%c25_210, %c0_211] : memref<200x8xf32, #tpu.memory_space<vmem>>, vector<1x8xf32>
    %c6_212 = arith.constant 6 : index
    %c8_213 = arith.constant 8 : index
    %153 = vector.load %arg9[%c6_212, %c8_213] : memref<32x72xf32, #tpu.memory_space<vmem>>, vector<1x8xf32>
    tpu.vector_store %arg9[%c6_212, %c8_213], %152 {strides = array<i32>} : memref<32x72xf32, #tpu.memory_space<vmem>>, vector<1x8xf32>,
    %c26_214 = arith.constant 26 : index
    %c0_215 = arith.constant 0 : index
    %154 = vector.load %arg7[%c26_214, %c0_215] : memref<200x8xf32, #tpu.memory_space<vmem>>, vector<1x8xf32>
    %c6_216 = arith.constant 6 : index
    %c16_217 = arith.constant 16 : index
    %155 = vector.load %arg9[%c6_216, %c16_217] : memref<32x72xf32, #tpu.memory_space<vmem>>, vector<1x8xf32>
    tpu.vector_store %arg9[%c6_216, %c16_217], %154 {strides = array<i32>} : memref<32x72xf32, #tpu.memory_space<vmem>>, vector<1x8xf32>,
    %c34_218 = arith.constant 34 : index
    %c0_219 = arith.constant 0 : index
    %156 = vector.load %arg7[%c34_218, %c0_219] : memref<200x8xf32, #tpu.memory_space<vmem>>, vector<1x8xf32>
    %c6_220 = arith.constant 6 : index
    %c24_221 = arith.constant 24 : index
    %157 = vector.load %arg9[%c6_220, %c24_221] : memref<32x72xf32, #tpu.memory_space<vmem>>, vector<1x8xf32>
    tpu.vector_store %arg9[%c6_220, %c24_221], %156 {strides = array<i32>} : memref<32x72xf32, #tpu.memory_space<vmem>>, vector<1x8xf32>,
    %c35 = arith.constant 35 : index
    %c0_222 = arith.constant 0 : index
    %158 = vector.load %arg7[%c35, %c0_222] : memref<200x8xf32, #tpu.memory_space<vmem>>, vector<1x8xf32>
    %c6_223 = arith.constant 6 : index
    %c32_224 = arith.constant 32 : index
    %159 = vector.load %arg9[%c6_223, %c32_224] : memref<32x72xf32, #tpu.memory_space<vmem>>, vector<1x8xf32>
    tpu.vector_store %arg9[%c6_223, %c32_224], %158 {strides = array<i32>} : memref<32x72xf32, #tpu.memory_space<vmem>>, vector<1x8xf32>,
    %c36 = arith.constant 36 : index
    %c0_225 = arith.constant 0 : index
    %160 = vector.load %arg7[%c36, %c0_225] : memref<200x8xf32, #tpu.memory_space<vmem>>, vector<1x8xf32>
    %c6_226 = arith.constant 6 : index
    %c40_227 = arith.constant 40 : index
    %161 = vector.load %arg9[%c6_226, %c40_227] : memref<32x72xf32, #tpu.memory_space<vmem>>, vector<1x8xf32>
    tpu.vector_store %arg9[%c6_226, %c40_227], %160 {strides = array<i32>} : memref<32x72xf32, #tpu.memory_space<vmem>>, vector<1x8xf32>,
    %c44_228 = arith.constant 44 : index
    %c0_229 = arith.constant 0 : index
    %162 = vector.load %arg7[%c44_228, %c0_229] : memref<200x8xf32, #tpu.memory_space<vmem>>, vector<1x8xf32>
    %c6_230 = arith.constant 6 : index
    %c48_231 = arith.constant 48 : index
    %163 = vector.load %arg9[%c6_230, %c48_231] : memref<32x72xf32, #tpu.memory_space<vmem>>, vector<1x8xf32>
    tpu.vector_store %arg9[%c6_230, %c48_231], %162 {strides = array<i32>} : memref<32x72xf32, #tpu.memory_space<vmem>>, vector<1x8xf32>,
    %c45 = arith.constant 45 : index
    %c0_232 = arith.constant 0 : index
    %164 = vector.load %arg7[%c45, %c0_232] : memref<200x8xf32, #tpu.memory_space<vmem>>, vector<1x8xf32>
    %c6_233 = arith.constant 6 : index
    %c56_234 = arith.constant 56 : index
    %165 = vector.load %arg9[%c6_233, %c56_234] : memref<32x72xf32, #tpu.memory_space<vmem>>, vector<1x8xf32>
    tpu.vector_store %arg9[%c6_233, %c56_234], %164 {strides = array<i32>} : memref<32x72xf32, #tpu.memory_space<vmem>>, vector<1x8xf32>,
    %c46 = arith.constant 46 : index
    %c0_235 = arith.constant 0 : index
    %166 = vector.load %arg7[%c46, %c0_235] : memref<200x8xf32, #tpu.memory_space<vmem>>, vector<1x8xf32>
    %c6_236 = arith.constant 6 : index
    %c64_237 = arith.constant 64 : index
    %167 = vector.load %arg9[%c6_236, %c64_237] : memref<32x72xf32, #tpu.memory_space<vmem>>, vector<1x8xf32>
    tpu.vector_store %arg9[%c6_236, %c64_237], %166 {strides = array<i32>} : memref<32x72xf32, #tpu.memory_space<vmem>>, vector<1x8xf32>,
    %c26_238 = arith.constant 26 : index
    %c0_239 = arith.constant 0 : index
    %168 = vector.load %arg7[%c26_238, %c0_239] : memref<200x8xf32, #tpu.memory_space<vmem>>, vector<1x8xf32>
    %c7_240 = arith.constant 7 : index
    %c0_241 = arith.constant 0 : index
    %169 = vector.load %arg9[%c7_240, %c0_241] : memref<32x72xf32, #tpu.memory_space<vmem>>, vector<1x8xf32>
    tpu.vector_store %arg9[%c7_240, %c0_241], %168 {strides = array<i32>} : memref<32x72xf32, #tpu.memory_space<vmem>>, vector<1x8xf32>,
    %c27_242 = arith.constant 27 : index
    %c0_243 = arith.constant 0 : index
    %170 = vector.load %arg7[%c27_242, %c0_243] : memref<200x8xf32, #tpu.memory_space<vmem>>, vector<1x8xf32>
    %c7_244 = arith.constant 7 : index
    %c8_245 = arith.constant 8 : index
    %171 = vector.load %arg9[%c7_244, %c8_245] : memref<32x72xf32, #tpu.memory_space<vmem>>, vector<1x8xf32>
    tpu.vector_store %arg9[%c7_244, %c8_245], %170 {strides = array<i32>} : memref<32x72xf32, #tpu.memory_space<vmem>>, vector<1x8xf32>,
    %c28_246 = arith.constant 28 : index
    %c0_247 = arith.constant 0 : index
    %172 = vector.load %arg7[%c28_246, %c0_247] : memref<200x8xf32, #tpu.memory_space<vmem>>, vector<1x8xf32>
    %c7_248 = arith.constant 7 : index
    %c16_249 = arith.constant 16 : index
    %173 = vector.load %arg9[%c7_248, %c16_249] : memref<32x72xf32, #tpu.memory_space<vmem>>, vector<1x8xf32>
    tpu.vector_store %arg9[%c7_248, %c16_249], %172 {strides = array<i32>} : memref<32x72xf32, #tpu.memory_space<vmem>>, vector<1x8xf32>,
    %c36_250 = arith.constant 36 : index
    %c0_251 = arith.constant 0 : index
    %174 = vector.load %arg7[%c36_250, %c0_251] : memref<200x8xf32, #tpu.memory_space<vmem>>, vector<1x8xf32>
    %c7_252 = arith.constant 7 : index
    %c24_253 = arith.constant 24 : index
    %175 = vector.load %arg9[%c7_252, %c24_253] : memref<32x72xf32, #tpu.memory_space<vmem>>, vector<1x8xf32>
    tpu.vector_store %arg9[%c7_252, %c24_253], %174 {strides = array<i32>} : memref<32x72xf32, #tpu.memory_space<vmem>>, vector<1x8xf32>,
    %c37 = arith.constant 37 : index
    %c0_254 = arith.constant 0 : index
    %176 = vector.load %arg7[%c37, %c0_254] : memref<200x8xf32, #tpu.memory_space<vmem>>, vector<1x8xf32>
    %c7_255 = arith.constant 7 : index
    %c32_256 = arith.constant 32 : index
    %177 = vector.load %arg9[%c7_255, %c32_256] : memref<32x72xf32, #tpu.memory_space<vmem>>, vector<1x8xf32>
    tpu.vector_store %arg9[%c7_255, %c32_256], %176 {strides = array<i32>} : memref<32x72xf32, #tpu.memory_space<vmem>>, vector<1x8xf32>,
    %c38 = arith.constant 38 : index
    %c0_257 = arith.constant 0 : index
    %178 = vector.load %arg7[%c38, %c0_257] : memref<200x8xf32, #tpu.memory_space<vmem>>, vector<1x8xf32>
    %c7_258 = arith.constant 7 : index
    %c40_259 = arith.constant 40 : index
    %179 = vector.load %arg9[%c7_258, %c40_259] : memref<32x72xf32, #tpu.memory_space<vmem>>, vector<1x8xf32>
    tpu.vector_store %arg9[%c7_258, %c40_259], %178 {strides = array<i32>} : memref<32x72xf32, #tpu.memory_space<vmem>>, vector<1x8xf32>,
    %c46_260 = arith.constant 46 : index
    %c0_261 = arith.constant 0 : index
    %180 = vector.load %arg7[%c46_260, %c0_261] : memref<200x8xf32, #tpu.memory_space<vmem>>, vector<1x8xf32>
    %c7_262 = arith.constant 7 : index
    %c48_263 = arith.constant 48 : index
    %181 = vector.load %arg9[%c7_262, %c48_263] : memref<32x72xf32, #tpu.memory_space<vmem>>, vector<1x8xf32>
    tpu.vector_store %arg9[%c7_262, %c48_263], %180 {strides = array<i32>} : memref<32x72xf32, #tpu.memory_space<vmem>>, vector<1x8xf32>,
    %c47 = arith.constant 47 : index
    %c0_264 = arith.constant 0 : index
    %182 = vector.load %arg7[%c47, %c0_264] : memref<200x8xf32, #tpu.memory_space<vmem>>, vector<1x8xf32>
    %c7_265 = arith.constant 7 : index
    %c56_266 = arith.constant 56 : index
    %183 = vector.load %arg9[%c7_265, %c56_266] : memref<32x72xf32, #tpu.memory_space<vmem>>, vector<1x8xf32>
    tpu.vector_store %arg9[%c7_265, %c56_266], %182 {strides = array<i32>} : memref<32x72xf32, #tpu.memory_space<vmem>>, vector<1x8xf32>,
    %c48_267 = arith.constant 48 : index
    %c0_268 = arith.constant 0 : index
    %184 = vector.load %arg7[%c48_267, %c0_268] : memref<200x8xf32, #tpu.memory_space<vmem>>, vector<1x8xf32>
    %c7_269 = arith.constant 7 : index
    %c64_270 = arith.constant 64 : index
    %185 = vector.load %arg9[%c7_269, %c64_270] : memref<32x72xf32, #tpu.memory_space<vmem>>, vector<1x8xf32>
    tpu.vector_store %arg9[%c7_269, %c64_270], %184 {strides = array<i32>} : memref<32x72xf32, #tpu.memory_space<vmem>>, vector<1x8xf32>,
    %c40_271 = arith.constant 40 : index
    %c0_272 = arith.constant 0 : index
    %186 = vector.load %arg7[%c40_271, %c0_272] : memref<200x8xf32, #tpu.memory_space<vmem>>, vector<1x8xf32>
    %c8_273 = arith.constant 8 : index
    %c0_274 = arith.constant 0 : index
    %187 = vector.load %arg9[%c8_273, %c0_274] : memref<32x72xf32, #tpu.memory_space<vmem>>, vector<1x8xf32>
    tpu.vector_store %arg9[%c8_273, %c0_274], %186 {strides = array<i32>} : memref<32x72xf32, #tpu.memory_space<vmem>>, vector<1x8xf32>,
    %c41_275 = arith.constant 41 : index
    %c0_276 = arith.constant 0 : index
    %188 = vector.load %arg7[%c41_275, %c0_276] : memref<200x8xf32, #tpu.memory_space<vmem>>, vector<1x8xf32>
    %c8_277 = arith.constant 8 : index
    %c8_278 = arith.constant 8 : index
    %189 = vector.load %arg9[%c8_277, %c8_278] : memref<32x72xf32, #tpu.memory_space<vmem>>, vector<1x8xf32>
    tpu.vector_store %arg9[%c8_277, %c8_278], %188 {strides = array<i32>} : memref<32x72xf32, #tpu.memory_space<vmem>>, vector<1x8xf32>,
    %c42_279 = arith.constant 42 : index
    %c0_280 = arith.constant 0 : index
    %190 = vector.load %arg7[%c42_279, %c0_280] : memref<200x8xf32, #tpu.memory_space<vmem>>, vector<1x8xf32>
    %c8_281 = arith.constant 8 : index
    %c16_282 = arith.constant 16 : index
    %191 = vector.load %arg9[%c8_281, %c16_282] : memref<32x72xf32, #tpu.memory_space<vmem>>, vector<1x8xf32>
    tpu.vector_store %arg9[%c8_281, %c16_282], %190 {strides = array<i32>} : memref<32x72xf32, #tpu.memory_space<vmem>>, vector<1x8xf32>,
    %c50 = arith.constant 50 : index
    %c0_283 = arith.constant 0 : index
    %192 = vector.load %arg7[%c50, %c0_283] : memref<200x8xf32, #tpu.memory_space<vmem>>, vector<1x8xf32>
    %c8_284 = arith.constant 8 : index
    %c24_285 = arith.constant 24 : index
    %193 = vector.load %arg9[%c8_284, %c24_285] : memref<32x72xf32, #tpu.memory_space<vmem>>, vector<1x8xf32>
    tpu.vector_store %arg9[%c8_284, %c24_285], %192 {strides = array<i32>} : memref<32x72xf32, #tpu.memory_space<vmem>>, vector<1x8xf32>,
    %c51_286 = arith.constant 51 : index
    %c0_287 = arith.constant 0 : index
    %194 = vector.load %arg7[%c51_286, %c0_287] : memref<200x8xf32, #tpu.memory_space<vmem>>, vector<1x8xf32>
    %c8_288 = arith.constant 8 : index
    %c32_289 = arith.constant 32 : index
    %195 = vector.load %arg9[%c8_288, %c32_289] : memref<32x72xf32, #tpu.memory_space<vmem>>, vector<1x8xf32>
    tpu.vector_store %arg9[%c8_288, %c32_289], %194 {strides = array<i32>} : memref<32x72xf32, #tpu.memory_space<vmem>>, vector<1x8xf32>,
    %c52 = arith.constant 52 : index
    %c0_290 = arith.constant 0 : index
    %196 = vector.load %arg7[%c52, %c0_290] : memref<200x8xf32, #tpu.memory_space<vmem>>, vector<1x8xf32>
    %c8_291 = arith.constant 8 : index
    %c40_292 = arith.constant 40 : index
    %197 = vector.load %arg9[%c8_291, %c40_292] : memref<32x72xf32, #tpu.memory_space<vmem>>, vector<1x8xf32>
    tpu.vector_store %arg9[%c8_291, %c40_292], %196 {strides = array<i32>} : memref<32x72xf32, #tpu.memory_space<vmem>>, vector<1x8xf32>,
    %c60 = arith.constant 60 : index
    %c0_293 = arith.constant 0 : index
    %198 = vector.load %arg7[%c60, %c0_293] : memref<200x8xf32, #tpu.memory_space<vmem>>, vector<1x8xf32>
    %c8_294 = arith.constant 8 : index
    %c48_295 = arith.constant 48 : index
    %199 = vector.load %arg9[%c8_294, %c48_295] : memref<32x72xf32, #tpu.memory_space<vmem>>, vector<1x8xf32>
    tpu.vector_store %arg9[%c8_294, %c48_295], %198 {strides = array<i32>} : memref<32x72xf32, #tpu.memory_space<vmem>>, vector<1x8xf32>,
    %c61_296 = arith.constant 61 : index
    %c0_297 = arith.constant 0 : index
    %200 = vector.load %arg7[%c61_296, %c0_297] : memref<200x8xf32, #tpu.memory_space<vmem>>, vector<1x8xf32>
    %c8_298 = arith.constant 8 : index
    %c56_299 = arith.constant 56 : index
    %201 = vector.load %arg9[%c8_298, %c56_299] : memref<32x72xf32, #tpu.memory_space<vmem>>, vector<1x8xf32>
    tpu.vector_store %arg9[%c8_298, %c56_299], %200 {strides = array<i32>} : memref<32x72xf32, #tpu.memory_space<vmem>>, vector<1x8xf32>,
    %c62 = arith.constant 62 : index
    %c0_300 = arith.constant 0 : index
    %202 = vector.load %arg7[%c62, %c0_300] : memref<200x8xf32, #tpu.memory_space<vmem>>, vector<1x8xf32>
    %c8_301 = arith.constant 8 : index
    %c64_302 = arith.constant 64 : index
    %203 = vector.load %arg9[%c8_301, %c64_302] : memref<32x72xf32, #tpu.memory_space<vmem>>, vector<1x8xf32>
    tpu.vector_store %arg9[%c8_301, %c64_302], %202 {strides = array<i32>} : memref<32x72xf32, #tpu.memory_space<vmem>>, vector<1x8xf32>,
    %c42_303 = arith.constant 42 : index
    %c0_304 = arith.constant 0 : index
    %204 = vector.load %arg7[%c42_303, %c0_304] : memref<200x8xf32, #tpu.memory_space<vmem>>, vector<1x8xf32>
    %c9 = arith.constant 9 : index
    %c0_305 = arith.constant 0 : index
    %205 = vector.load %arg9[%c9, %c0_305] : memref<32x72xf32, #tpu.memory_space<vmem>>, vector<1x8xf32>
    tpu.vector_store %arg9[%c9, %c0_305], %204 {strides = array<i32>} : memref<32x72xf32, #tpu.memory_space<vmem>>, vector<1x8xf32>,
    %c43_306 = arith.constant 43 : index
    %c0_307 = arith.constant 0 : index
    %206 = vector.load %arg7[%c43_306, %c0_307] : memref<200x8xf32, #tpu.memory_space<vmem>>, vector<1x8xf32>
    %c9_308 = arith.constant 9 : index
    %c8_309 = arith.constant 8 : index
    %207 = vector.load %arg9[%c9_308, %c8_309] : memref<32x72xf32, #tpu.memory_space<vmem>>, vector<1x8xf32>
    tpu.vector_store %arg9[%c9_308, %c8_309], %206 {strides = array<i32>} : memref<32x72xf32, #tpu.memory_space<vmem>>, vector<1x8xf32>,
    %c44_310 = arith.constant 44 : index
    %c0_311 = arith.constant 0 : index
    %208 = vector.load %arg7[%c44_310, %c0_311] : memref<200x8xf32, #tpu.memory_space<vmem>>, vector<1x8xf32>
    %c9_312 = arith.constant 9 : index
    %c16_313 = arith.constant 16 : index
    %209 = vector.load %arg9[%c9_312, %c16_313] : memref<32x72xf32, #tpu.memory_space<vmem>>, vector<1x8xf32>
    tpu.vector_store %arg9[%c9_312, %c16_313], %208 {strides = array<i32>} : memref<32x72xf32, #tpu.memory_space<vmem>>, vector<1x8xf32>,
    %c52_314 = arith.constant 52 : index
    %c0_315 = arith.constant 0 : index
    %210 = vector.load %arg7[%c52_314, %c0_315] : memref<200x8xf32, #tpu.memory_space<vmem>>, vector<1x8xf32>
    %c9_316 = arith.constant 9 : index
    %c24_317 = arith.constant 24 : index
    %211 = vector.load %arg9[%c9_316, %c24_317] : memref<32x72xf32, #tpu.memory_space<vmem>>, vector<1x8xf32>
    tpu.vector_store %arg9[%c9_316, %c24_317], %210 {strides = array<i32>} : memref<32x72xf32, #tpu.memory_space<vmem>>, vector<1x8xf32>,
    %c53 = arith.constant 53 : index
    %c0_318 = arith.constant 0 : index
    %212 = vector.load %arg7[%c53, %c0_318] : memref<200x8xf32, #tpu.memory_space<vmem>>, vector<1x8xf32>
    %c9_319 = arith.constant 9 : index
    %c32_320 = arith.constant 32 : index
    %213 = vector.load %arg9[%c9_319, %c32_320] : memref<32x72xf32, #tpu.memory_space<vmem>>, vector<1x8xf32>
    tpu.vector_store %arg9[%c9_319, %c32_320], %212 {strides = array<i32>} : memref<32x72xf32, #tpu.memory_space<vmem>>, vector<1x8xf32>,
    %c54 = arith.constant 54 : index
    %c0_321 = arith.constant 0 : index
    %214 = vector.load %arg7[%c54, %c0_321] : memref<200x8xf32, #tpu.memory_space<vmem>>, vector<1x8xf32>
    %c9_322 = arith.constant 9 : index
    %c40_323 = arith.constant 40 : index
    %215 = vector.load %arg9[%c9_322, %c40_323] : memref<32x72xf32, #tpu.memory_space<vmem>>, vector<1x8xf32>
    tpu.vector_store %arg9[%c9_322, %c40_323], %214 {strides = array<i32>} : memref<32x72xf32, #tpu.memory_space<vmem>>, vector<1x8xf32>,
    %c62_324 = arith.constant 62 : index
    %c0_325 = arith.constant 0 : index
    %216 = vector.load %arg7[%c62_324, %c0_325] : memref<200x8xf32, #tpu.memory_space<vmem>>, vector<1x8xf32>
    %c9_326 = arith.constant 9 : index
    %c48_327 = arith.constant 48 : index
    %217 = vector.load %arg9[%c9_326, %c48_327] : memref<32x72xf32, #tpu.memory_space<vmem>>, vector<1x8xf32>
    tpu.vector_store %arg9[%c9_326, %c48_327], %216 {strides = array<i32>} : memref<32x72xf32, #tpu.memory_space<vmem>>, vector<1x8xf32>,
    %c63 = arith.constant 63 : index
    %c0_328 = arith.constant 0 : index
    %218 = vector.load %arg7[%c63, %c0_328] : memref<200x8xf32, #tpu.memory_space<vmem>>, vector<1x8xf32>
    %c9_329 = arith.constant 9 : index
    %c56_330 = arith.constant 56 : index
    %219 = vector.load %arg9[%c9_329, %c56_330] : memref<32x72xf32, #tpu.memory_space<vmem>>, vector<1x8xf32>
    tpu.vector_store %arg9[%c9_329, %c56_330], %218 {strides = array<i32>} : memref<32x72xf32, #tpu.memory_space<vmem>>, vector<1x8xf32>,
    %c64_331 = arith.constant 64 : index
    %c0_332 = arith.constant 0 : index
    %220 = vector.load %arg7[%c64_331, %c0_332] : memref<200x8xf32, #tpu.memory_space<vmem>>, vector<1x8xf32>
    %c9_333 = arith.constant 9 : index
    %c64_334 = arith.constant 64 : index
    %221 = vector.load %arg9[%c9_333, %c64_334] : memref<32x72xf32, #tpu.memory_space<vmem>>, vector<1x8xf32>
    tpu.vector_store %arg9[%c9_333, %c64_334], %220 {strides = array<i32>} : memref<32x72xf32, #tpu.memory_space<vmem>>, vector<1x8xf32>,
    %c44_335 = arith.constant 44 : index
    %c0_336 = arith.constant 0 : index
    %222 = vector.load %arg7[%c44_335, %c0_336] : memref<200x8xf32, #tpu.memory_space<vmem>>, vector<1x8xf32>
    %c10_337 = arith.constant 10 : index
    %c0_338 = arith.constant 0 : index
    %223 = vector.load %arg9[%c10_337, %c0_338] : memref<32x72xf32, #tpu.memory_space<vmem>>, vector<1x8xf32>
    tpu.vector_store %arg9[%c10_337, %c0_338], %222 {strides = array<i32>} : memref<32x72xf32, #tpu.memory_space<vmem>>, vector<1x8xf32>,
    %c45_339 = arith.constant 45 : index
    %c0_340 = arith.constant 0 : index
    %224 = vector.load %arg7[%c45_339, %c0_340] : memref<200x8xf32, #tpu.memory_space<vmem>>, vector<1x8xf32>
    %c10_341 = arith.constant 10 : index
    %c8_342 = arith.constant 8 : index
    %225 = vector.load %arg9[%c10_341, %c8_342] : memref<32x72xf32, #tpu.memory_space<vmem>>, vector<1x8xf32>
    tpu.vector_store %arg9[%c10_341, %c8_342], %224 {strides = array<i32>} : memref<32x72xf32, #tpu.memory_space<vmem>>, vector<1x8xf32>,
    %c46_343 = arith.constant 46 : index
    %c0_344 = arith.constant 0 : index
    %226 = vector.load %arg7[%c46_343, %c0_344] : memref<200x8xf32, #tpu.memory_space<vmem>>, vector<1x8xf32>
    %c10_345 = arith.constant 10 : index
    %c16_346 = arith.constant 16 : index
    %227 = vector.load %arg9[%c10_345, %c16_346] : memref<32x72xf32, #tpu.memory_space<vmem>>, vector<1x8xf32>
    tpu.vector_store %arg9[%c10_345, %c16_346], %226 {strides = array<i32>} : memref<32x72xf32, #tpu.memory_space<vmem>>, vector<1x8xf32>,
    %c54_347 = arith.constant 54 : index
    %c0_348 = arith.constant 0 : index
    %228 = vector.load %arg7[%c54_347, %c0_348] : memref<200x8xf32, #tpu.memory_space<vmem>>, vector<1x8xf32>
    %c10_349 = arith.constant 10 : index
    %c24_350 = arith.constant 24 : index
    %229 = vector.load %arg9[%c10_349, %c24_350] : memref<32x72xf32, #tpu.memory_space<vmem>>, vector<1x8xf32>
    tpu.vector_store %arg9[%c10_349, %c24_350], %228 {strides = array<i32>} : memref<32x72xf32, #tpu.memory_space<vmem>>, vector<1x8xf32>,
    %c55 = arith.constant 55 : index
    %c0_351 = arith.constant 0 : index
    %230 = vector.load %arg7[%c55, %c0_351] : memref<200x8xf32, #tpu.memory_space<vmem>>, vector<1x8xf32>
    %c10_352 = arith.constant 10 : index
    %c32_353 = arith.constant 32 : index
    %231 = vector.load %arg9[%c10_352, %c32_353] : memref<32x72xf32, #tpu.memory_space<vmem>>, vector<1x8xf32>
    tpu.vector_store %arg9[%c10_352, %c32_353], %230 {strides = array<i32>} : memref<32x72xf32, #tpu.memory_space<vmem>>, vector<1x8xf32>,
    %c56_354 = arith.constant 56 : index
    %c0_355 = arith.constant 0 : index
    %232 = vector.load %arg7[%c56_354, %c0_355] : memref<200x8xf32, #tpu.memory_space<vmem>>, vector<1x8xf32>
    %c10_356 = arith.constant 10 : index
    %c40_357 = arith.constant 40 : index
    %233 = vector.load %arg9[%c10_356, %c40_357] : memref<32x72xf32, #tpu.memory_space<vmem>>, vector<1x8xf32>
    tpu.vector_store %arg9[%c10_356, %c40_357], %232 {strides = array<i32>} : memref<32x72xf32, #tpu.memory_space<vmem>>, vector<1x8xf32>,
    %c64_358 = arith.constant 64 : index
    %c0_359 = arith.constant 0 : index
    %234 = vector.load %arg7[%c64_358, %c0_359] : memref<200x8xf32, #tpu.memory_space<vmem>>, vector<1x8xf32>
    %c10_360 = arith.constant 10 : index
    %c48_361 = arith.constant 48 : index
    %235 = vector.load %arg9[%c10_360, %c48_361] : memref<32x72xf32, #tpu.memory_space<vmem>>, vector<1x8xf32>
    tpu.vector_store %arg9[%c10_360, %c48_361], %234 {strides = array<i32>} : memref<32x72xf32, #tpu.memory_space<vmem>>, vector<1x8xf32>,
    %c65 = arith.constant 65 : index
    %c0_362 = arith.constant 0 : index
    %236 = vector.load %arg7[%c65, %c0_362] : memref<200x8xf32, #tpu.memory_space<vmem>>, vector<1x8xf32>
    %c10_363 = arith.constant 10 : index
    %c56_364 = arith.constant 56 : index
    %237 = vector.load %arg9[%c10_363, %c56_364] : memref<32x72xf32, #tpu.memory_space<vmem>>, vector<1x8xf32>
    tpu.vector_store %arg9[%c10_363, %c56_364], %236 {strides = array<i32>} : memref<32x72xf32, #tpu.memory_space<vmem>>, vector<1x8xf32>,
    %c66 = arith.constant 66 : index
    %c0_365 = arith.constant 0 : index
    %238 = vector.load %arg7[%c66, %c0_365] : memref<200x8xf32, #tpu.memory_space<vmem>>, vector<1x8xf32>
    %c10_366 = arith.constant 10 : index
    %c64_367 = arith.constant 64 : index
    %239 = vector.load %arg9[%c10_366, %c64_367] : memref<32x72xf32, #tpu.memory_space<vmem>>, vector<1x8xf32>
    tpu.vector_store %arg9[%c10_366, %c64_367], %238 {strides = array<i32>} : memref<32x72xf32, #tpu.memory_space<vmem>>, vector<1x8xf32>,
    %c46_368 = arith.constant 46 : index
    %c0_369 = arith.constant 0 : index
    %240 = vector.load %arg7[%c46_368, %c0_369] : memref<200x8xf32, #tpu.memory_space<vmem>>, vector<1x8xf32>
    %c11_370 = arith.constant 11 : index
    %c0_371 = arith.constant 0 : index
    %241 = vector.load %arg9[%c11_370, %c0_371] : memref<32x72xf32, #tpu.memory_space<vmem>>, vector<1x8xf32>
    tpu.vector_store %arg9[%c11_370, %c0_371], %240 {strides = array<i32>} : memref<32x72xf32, #tpu.memory_space<vmem>>, vector<1x8xf32>,
    %c47_372 = arith.constant 47 : index
    %c0_373 = arith.constant 0 : index
    %242 = vector.load %arg7[%c47_372, %c0_373] : memref<200x8xf32, #tpu.memory_space<vmem>>, vector<1x8xf32>
    %c11_374 = arith.constant 11 : index
    %c8_375 = arith.constant 8 : index
    %243 = vector.load %arg9[%c11_374, %c8_375] : memref<32x72xf32, #tpu.memory_space<vmem>>, vector<1x8xf32>
    tpu.vector_store %arg9[%c11_374, %c8_375], %242 {strides = array<i32>} : memref<32x72xf32, #tpu.memory_space<vmem>>, vector<1x8xf32>,
    %c48_376 = arith.constant 48 : index
    %c0_377 = arith.constant 0 : index
    %244 = vector.load %arg7[%c48_376, %c0_377] : memref<200x8xf32, #tpu.memory_space<vmem>>, vector<1x8xf32>
    %c11_378 = arith.constant 11 : index
    %c16_379 = arith.constant 16 : index
    %245 = vector.load %arg9[%c11_378, %c16_379] : memref<32x72xf32, #tpu.memory_space<vmem>>, vector<1x8xf32>
    tpu.vector_store %arg9[%c11_378, %c16_379], %244 {strides = array<i32>} : memref<32x72xf32, #tpu.memory_space<vmem>>, vector<1x8xf32>,
    %c56_380 = arith.constant 56 : index
    %c0_381 = arith.constant 0 : index
    %246 = vector.load %arg7[%c56_380, %c0_381] : memref<200x8xf32, #tpu.memory_space<vmem>>, vector<1x8xf32>
    %c11_382 = arith.constant 11 : index
    %c24_383 = arith.constant 24 : index
    %247 = vector.load %arg9[%c11_382, %c24_383] : memref<32x72xf32, #tpu.memory_space<vmem>>, vector<1x8xf32>
    tpu.vector_store %arg9[%c11_382, %c24_383], %246 {strides = array<i32>} : memref<32x72xf32, #tpu.memory_space<vmem>>, vector<1x8xf32>,
    %c57 = arith.constant 57 : index
    %c0_384 = arith.constant 0 : index
    %248 = vector.load %arg7[%c57, %c0_384] : memref<200x8xf32, #tpu.memory_space<vmem>>, vector<1x8xf32>
    %c11_385 = arith.constant 11 : index
    %c32_386 = arith.constant 32 : index
    %249 = vector.load %arg9[%c11_385, %c32_386] : memref<32x72xf32, #tpu.memory_space<vmem>>, vector<1x8xf32>
    tpu.vector_store %arg9[%c11_385, %c32_386], %248 {strides = array<i32>} : memref<32x72xf32, #tpu.memory_space<vmem>>, vector<1x8xf32>,
    %c58 = arith.constant 58 : index
    %c0_387 = arith.constant 0 : index
    %250 = vector.load %arg7[%c58, %c0_387] : memref<200x8xf32, #tpu.memory_space<vmem>>, vector<1x8xf32>
    %c11_388 = arith.constant 11 : index
    %c40_389 = arith.constant 40 : index
    %251 = vector.load %arg9[%c11_388, %c40_389] : memref<32x72xf32, #tpu.memory_space<vmem>>, vector<1x8xf32>
    tpu.vector_store %arg9[%c11_388, %c40_389], %250 {strides = array<i32>} : memref<32x72xf32, #tpu.memory_space<vmem>>, vector<1x8xf32>,
    %c66_390 = arith.constant 66 : index
    %c0_391 = arith.constant 0 : index
    %252 = vector.load %arg7[%c66_390, %c0_391] : memref<200x8xf32, #tpu.memory_space<vmem>>, vector<1x8xf32>
    %c11_392 = arith.constant 11 : index
    %c48_393 = arith.constant 48 : index
    %253 = vector.load %arg9[%c11_392, %c48_393] : memref<32x72xf32, #tpu.memory_space<vmem>>, vector<1x8xf32>
    tpu.vector_store %arg9[%c11_392, %c48_393], %252 {strides = array<i32>} : memref<32x72xf32, #tpu.memory_space<vmem>>, vector<1x8xf32>,
    %c67 = arith.constant 67 : index
    %c0_394 = arith.constant 0 : index
    %254 = vector.load %arg7[%c67, %c0_394] : memref<200x8xf32, #tpu.memory_space<vmem>>, vector<1x8xf32>
    %c11_395 = arith.constant 11 : index
    %c56_396 = arith.constant 56 : index
    %255 = vector.load %arg9[%c11_395, %c56_396] : memref<32x72xf32, #tpu.memory_space<vmem>>, vector<1x8xf32>
    tpu.vector_store %arg9[%c11_395, %c56_396], %254 {strides = array<i32>} : memref<32x72xf32, #tpu.memory_space<vmem>>, vector<1x8xf32>,
    %c68 = arith.constant 68 : index
    %c0_397 = arith.constant 0 : index
    %256 = vector.load %arg7[%c68, %c0_397] : memref<200x8xf32, #tpu.memory_space<vmem>>, vector<1x8xf32>
    %c11_398 = arith.constant 11 : index
    %c64_399 = arith.constant 64 : index
    %257 = vector.load %arg9[%c11_398, %c64_399] : memref<32x72xf32, #tpu.memory_space<vmem>>, vector<1x8xf32>
    tpu.vector_store %arg9[%c11_398, %c64_399], %256 {strides = array<i32>} : memref<32x72xf32, #tpu.memory_space<vmem>>, vector<1x8xf32>,
    %c60_400 = arith.constant 60 : index
    %c0_401 = arith.constant 0 : index
    %258 = vector.load %arg7[%c60_400, %c0_401] : memref<200x8xf32, #tpu.memory_space<vmem>>, vector<1x8xf32>
    %c12_402 = arith.constant 12 : index
    %c0_403 = arith.constant 0 : index
    %259 = vector.load %arg9[%c12_402, %c0_403] : memref<32x72xf32, #tpu.memory_space<vmem>>, vector<1x8xf32>
    tpu.vector_store %arg9[%c12_402, %c0_403], %258 {strides = array<i32>} : memref<32x72xf32, #tpu.memory_space<vmem>>, vector<1x8xf32>,
    %c61_404 = arith.constant 61 : index
    %c0_405 = arith.constant 0 : index
    %260 = vector.load %arg7[%c61_404, %c0_405] : memref<200x8xf32, #tpu.memory_space<vmem>>, vector<1x8xf32>
    %c12_406 = arith.constant 12 : index
    %c8_407 = arith.constant 8 : index
    %261 = vector.load %arg9[%c12_406, %c8_407] : memref<32x72xf32, #tpu.memory_space<vmem>>, vector<1x8xf32>
    tpu.vector_store %arg9[%c12_406, %c8_407], %260 {strides = array<i32>} : memref<32x72xf32, #tpu.memory_space<vmem>>, vector<1x8xf32>,
    %c62_408 = arith.constant 62 : index
    %c0_409 = arith.constant 0 : index
    %262 = vector.load %arg7[%c62_408, %c0_409] : memref<200x8xf32, #tpu.memory_space<vmem>>, vector<1x8xf32>
    %c12_410 = arith.constant 12 : index
    %c16_411 = arith.constant 16 : index
    %263 = vector.load %arg9[%c12_410, %c16_411] : memref<32x72xf32, #tpu.memory_space<vmem>>, vector<1x8xf32>
    tpu.vector_store %arg9[%c12_410, %c16_411], %262 {strides = array<i32>} : memref<32x72xf32, #tpu.memory_space<vmem>>, vector<1x8xf32>,
    %c70 = arith.constant 70 : index
    %c0_412 = arith.constant 0 : index
    %264 = vector.load %arg7[%c70, %c0_412] : memref<200x8xf32, #tpu.memory_space<vmem>>, vector<1x8xf32>
    %c12_413 = arith.constant 12 : index
    %c24_414 = arith.constant 24 : index
    %265 = vector.load %arg9[%c12_413, %c24_414] : memref<32x72xf32, #tpu.memory_space<vmem>>, vector<1x8xf32>
    tpu.vector_store %arg9[%c12_413, %c24_414], %264 {strides = array<i32>} : memref<32x72xf32, #tpu.memory_space<vmem>>, vector<1x8xf32>,
    %c71_415 = arith.constant 71 : index
    %c0_416 = arith.constant 0 : index
    %266 = vector.load %arg7[%c71_415, %c0_416] : memref<200x8xf32, #tpu.memory_space<vmem>>, vector<1x8xf32>
    %c12_417 = arith.constant 12 : index
    %c32_418 = arith.constant 32 : index
    %267 = vector.load %arg9[%c12_417, %c32_418] : memref<32x72xf32, #tpu.memory_space<vmem>>, vector<1x8xf32>
    tpu.vector_store %arg9[%c12_417, %c32_418], %266 {strides = array<i32>} : memref<32x72xf32, #tpu.memory_space<vmem>>, vector<1x8xf32>,
    %c72 = arith.constant 72 : index
    %c0_419 = arith.constant 0 : index
    %268 = vector.load %arg7[%c72, %c0_419] : memref<200x8xf32, #tpu.memory_space<vmem>>, vector<1x8xf32>
    %c12_420 = arith.constant 12 : index
    %c40_421 = arith.constant 40 : index
    %269 = vector.load %arg9[%c12_420, %c40_421] : memref<32x72xf32, #tpu.memory_space<vmem>>, vector<1x8xf32>
    tpu.vector_store %arg9[%c12_420, %c40_421], %268 {strides = array<i32>} : memref<32x72xf32, #tpu.memory_space<vmem>>, vector<1x8xf32>,
    %c80 = arith.constant 80 : index
    %c0_422 = arith.constant 0 : index
    %270 = vector.load %arg7[%c80, %c0_422] : memref<200x8xf32, #tpu.memory_space<vmem>>, vector<1x8xf32>
    %c12_423 = arith.constant 12 : index
    %c48_424 = arith.constant 48 : index
    %271 = vector.load %arg9[%c12_423, %c48_424] : memref<32x72xf32, #tpu.memory_space<vmem>>, vector<1x8xf32>
    tpu.vector_store %arg9[%c12_423, %c48_424], %270 {strides = array<i32>} : memref<32x72xf32, #tpu.memory_space<vmem>>, vector<1x8xf32>,
    %c81_425 = arith.constant 81 : index
    %c0_426 = arith.constant 0 : index
    %272 = vector.load %arg7[%c81_425, %c0_426] : memref<200x8xf32, #tpu.memory_space<vmem>>, vector<1x8xf32>
    %c12_427 = arith.constant 12 : index
    %c56_428 = arith.constant 56 : index
    %273 = vector.load %arg9[%c12_427, %c56_428] : memref<32x72xf32, #tpu.memory_space<vmem>>, vector<1x8xf32>
    tpu.vector_store %arg9[%c12_427, %c56_428], %272 {strides = array<i32>} : memref<32x72xf32, #tpu.memory_space<vmem>>, vector<1x8xf32>,
    %c82 = arith.constant 82 : index
    %c0_429 = arith.constant 0 : index
    %274 = vector.load %arg7[%c82, %c0_429] : memref<200x8xf32, #tpu.memory_space<vmem>>, vector<1x8xf32>
    %c12_430 = arith.constant 12 : index
    %c64_431 = arith.constant 64 : index
    %275 = vector.load %arg9[%c12_430, %c64_431] : memref<32x72xf32, #tpu.memory_space<vmem>>, vector<1x8xf32>
    tpu.vector_store %arg9[%c12_430, %c64_431], %274 {strides = array<i32>} : memref<32x72xf32, #tpu.memory_space<vmem>>, vector<1x8xf32>,
    %c62_432 = arith.constant 62 : index
    %c0_433 = arith.constant 0 : index
    %276 = vector.load %arg7[%c62_432, %c0_433] : memref<200x8xf32, #tpu.memory_space<vmem>>, vector<1x8xf32>
    %c13_434 = arith.constant 13 : index
    %c0_435 = arith.constant 0 : index
    %277 = vector.load %arg9[%c13_434, %c0_435] : memref<32x72xf32, #tpu.memory_space<vmem>>, vector<1x8xf32>
    tpu.vector_store %arg9[%c13_434, %c0_435], %276 {strides = array<i32>} : memref<32x72xf32, #tpu.memory_space<vmem>>, vector<1x8xf32>,
    %c63_436 = arith.constant 63 : index
    %c0_437 = arith.constant 0 : index
    %278 = vector.load %arg7[%c63_436, %c0_437] : memref<200x8xf32, #tpu.memory_space<vmem>>, vector<1x8xf32>
    %c13_438 = arith.constant 13 : index
    %c8_439 = arith.constant 8 : index
    %279 = vector.load %arg9[%c13_438, %c8_439] : memref<32x72xf32, #tpu.memory_space<vmem>>, vector<1x8xf32>
    tpu.vector_store %arg9[%c13_438, %c8_439], %278 {strides = array<i32>} : memref<32x72xf32, #tpu.memory_space<vmem>>, vector<1x8xf32>,
    %c64_440 = arith.constant 64 : index
    %c0_441 = arith.constant 0 : index
    %280 = vector.load %arg7[%c64_440, %c0_441] : memref<200x8xf32, #tpu.memory_space<vmem>>, vector<1x8xf32>
    %c13_442 = arith.constant 13 : index
    %c16_443 = arith.constant 16 : index
    %281 = vector.load %arg9[%c13_442, %c16_443] : memref<32x72xf32, #tpu.memory_space<vmem>>, vector<1x8xf32>
    tpu.vector_store %arg9[%c13_442, %c16_443], %280 {strides = array<i32>} : memref<32x72xf32, #tpu.memory_space<vmem>>, vector<1x8xf32>,
    %c72_444 = arith.constant 72 : index
    %c0_445 = arith.constant 0 : index
    %282 = vector.load %arg7[%c72_444, %c0_445] : memref<200x8xf32, #tpu.memory_space<vmem>>, vector<1x8xf32>
    %c13_446 = arith.constant 13 : index
    %c24_447 = arith.constant 24 : index
    %283 = vector.load %arg9[%c13_446, %c24_447] : memref<32x72xf32, #tpu.memory_space<vmem>>, vector<1x8xf32>
    tpu.vector_store %arg9[%c13_446, %c24_447], %282 {strides = array<i32>} : memref<32x72xf32, #tpu.memory_space<vmem>>, vector<1x8xf32>,
    %c73 = arith.constant 73 : index
    %c0_448 = arith.constant 0 : index
    %284 = vector.load %arg7[%c73, %c0_448] : memref<200x8xf32, #tpu.memory_space<vmem>>, vector<1x8xf32>
    %c13_449 = arith.constant 13 : index
    %c32_450 = arith.constant 32 : index
    %285 = vector.load %arg9[%c13_449, %c32_450] : memref<32x72xf32, #tpu.memory_space<vmem>>, vector<1x8xf32>
    tpu.vector_store %arg9[%c13_449, %c32_450], %284 {strides = array<i32>} : memref<32x72xf32, #tpu.memory_space<vmem>>, vector<1x8xf32>,
    %c74 = arith.constant 74 : index
    %c0_451 = arith.constant 0 : index
    %286 = vector.load %arg7[%c74, %c0_451] : memref<200x8xf32, #tpu.memory_space<vmem>>, vector<1x8xf32>
    %c13_452 = arith.constant 13 : index
    %c40_453 = arith.constant 40 : index
    %287 = vector.load %arg9[%c13_452, %c40_453] : memref<32x72xf32, #tpu.memory_space<vmem>>, vector<1x8xf32>
    tpu.vector_store %arg9[%c13_452, %c40_453], %286 {strides = array<i32>} : memref<32x72xf32, #tpu.memory_space<vmem>>, vector<1x8xf32>,
    %c82_454 = arith.constant 82 : index
    %c0_455 = arith.constant 0 : index
    %288 = vector.load %arg7[%c82_454, %c0_455] : memref<200x8xf32, #tpu.memory_space<vmem>>, vector<1x8xf32>
    %c13_456 = arith.constant 13 : index
    %c48_457 = arith.constant 48 : index
    %289 = vector.load %arg9[%c13_456, %c48_457] : memref<32x72xf32, #tpu.memory_space<vmem>>, vector<1x8xf32>
    tpu.vector_store %arg9[%c13_456, %c48_457], %288 {strides = array<i32>} : memref<32x72xf32, #tpu.memory_space<vmem>>, vector<1x8xf32>,
    %c83 = arith.constant 83 : index
    %c0_458 = arith.constant 0 : index
    %290 = vector.load %arg7[%c83, %c0_458] : memref<200x8xf32, #tpu.memory_space<vmem>>, vector<1x8xf32>
    %c13_459 = arith.constant 13 : index
    %c56_460 = arith.constant 56 : index
    %291 = vector.load %arg9[%c13_459, %c56_460] : memref<32x72xf32, #tpu.memory_space<vmem>>, vector<1x8xf32>
    tpu.vector_store %arg9[%c13_459, %c56_460], %290 {strides = array<i32>} : memref<32x72xf32, #tpu.memory_space<vmem>>, vector<1x8xf32>,
    %c84 = arith.constant 84 : index
    %c0_461 = arith.constant 0 : index
    %292 = vector.load %arg7[%c84, %c0_461] : memref<200x8xf32, #tpu.memory_space<vmem>>, vector<1x8xf32>
    %c13_462 = arith.constant 13 : index
    %c64_463 = arith.constant 64 : index
    %293 = vector.load %arg9[%c13_462, %c64_463] : memref<32x72xf32, #tpu.memory_space<vmem>>, vector<1x8xf32>
    tpu.vector_store %arg9[%c13_462, %c64_463], %292 {strides = array<i32>} : memref<32x72xf32, #tpu.memory_space<vmem>>, vector<1x8xf32>,
    %c64_464 = arith.constant 64 : index
    %c0_465 = arith.constant 0 : index
    %294 = vector.load %arg7[%c64_464, %c0_465] : memref<200x8xf32, #tpu.memory_space<vmem>>, vector<1x8xf32>
    %c14_466 = arith.constant 14 : index
    %c0_467 = arith.constant 0 : index
    %295 = vector.load %arg9[%c14_466, %c0_467] : memref<32x72xf32, #tpu.memory_space<vmem>>, vector<1x8xf32>
    tpu.vector_store %arg9[%c14_466, %c0_467], %294 {strides = array<i32>} : memref<32x72xf32, #tpu.memory_space<vmem>>, vector<1x8xf32>,
    %c65_468 = arith.constant 65 : index
    %c0_469 = arith.constant 0 : index
    %296 = vector.load %arg7[%c65_468, %c0_469] : memref<200x8xf32, #tpu.memory_space<vmem>>, vector<1x8xf32>
    %c14_470 = arith.constant 14 : index
    %c8_471 = arith.constant 8 : index
    %297 = vector.load %arg9[%c14_470, %c8_471] : memref<32x72xf32, #tpu.memory_space<vmem>>, vector<1x8xf32>
    tpu.vector_store %arg9[%c14_470, %c8_471], %296 {strides = array<i32>} : memref<32x72xf32, #tpu.memory_space<vmem>>, vector<1x8xf32>,
    %c66_472 = arith.constant 66 : index
    %c0_473 = arith.constant 0 : index
    %298 = vector.load %arg7[%c66_472, %c0_473] : memref<200x8xf32, #tpu.memory_space<vmem>>, vector<1x8xf32>
    %c14_474 = arith.constant 14 : index
    %c16_475 = arith.constant 16 : index
    %299 = vector.load %arg9[%c14_474, %c16_475] : memref<32x72xf32, #tpu.memory_space<vmem>>, vector<1x8xf32>
    tpu.vector_store %arg9[%c14_474, %c16_475], %298 {strides = array<i32>} : memref<32x72xf32, #tpu.memory_space<vmem>>, vector<1x8xf32>,
    %c74_476 = arith.constant 74 : index
    %c0_477 = arith.constant 0 : index
    %300 = vector.load %arg7[%c74_476, %c0_477] : memref<200x8xf32, #tpu.memory_space<vmem>>, vector<1x8xf32>
    %c14_478 = arith.constant 14 : index
    %c24_479 = arith.constant 24 : index
    %301 = vector.load %arg9[%c14_478, %c24_479] : memref<32x72xf32, #tpu.memory_space<vmem>>, vector<1x8xf32>
    tpu.vector_store %arg9[%c14_478, %c24_479], %300 {strides = array<i32>} : memref<32x72xf32, #tpu.memory_space<vmem>>, vector<1x8xf32>,
    %c75 = arith.constant 75 : index
    %c0_480 = arith.constant 0 : index
    %302 = vector.load %arg7[%c75, %c0_480] : memref<200x8xf32, #tpu.memory_space<vmem>>, vector<1x8xf32>
    %c14_481 = arith.constant 14 : index
    %c32_482 = arith.constant 32 : index
    %303 = vector.load %arg9[%c14_481, %c32_482] : memref<32x72xf32, #tpu.memory_space<vmem>>, vector<1x8xf32>
    tpu.vector_store %arg9[%c14_481, %c32_482], %302 {strides = array<i32>} : memref<32x72xf32, #tpu.memory_space<vmem>>, vector<1x8xf32>,
    %c76 = arith.constant 76 : index
    %c0_483 = arith.constant 0 : index
    %304 = vector.load %arg7[%c76, %c0_483] : memref<200x8xf32, #tpu.memory_space<vmem>>, vector<1x8xf32>
    %c14_484 = arith.constant 14 : index
    %c40_485 = arith.constant 40 : index
    %305 = vector.load %arg9[%c14_484, %c40_485] : memref<32x72xf32, #tpu.memory_space<vmem>>, vector<1x8xf32>
    tpu.vector_store %arg9[%c14_484, %c40_485], %304 {strides = array<i32>} : memref<32x72xf32, #tpu.memory_space<vmem>>, vector<1x8xf32>,
    %c84_486 = arith.constant 84 : index
    %c0_487 = arith.constant 0 : index
    %306 = vector.load %arg7[%c84_486, %c0_487] : memref<200x8xf32, #tpu.memory_space<vmem>>, vector<1x8xf32>
    %c14_488 = arith.constant 14 : index
    %c48_489 = arith.constant 48 : index
    %307 = vector.load %arg9[%c14_488, %c48_489] : memref<32x72xf32, #tpu.memory_space<vmem>>, vector<1x8xf32>
    tpu.vector_store %arg9[%c14_488, %c48_489], %306 {strides = array<i32>} : memref<32x72xf32, #tpu.memory_space<vmem>>, vector<1x8xf32>,
    %c85 = arith.constant 85 : index
    %c0_490 = arith.constant 0 : index
    %308 = vector.load %arg7[%c85, %c0_490] : memref<200x8xf32, #tpu.memory_space<vmem>>, vector<1x8xf32>
    %c14_491 = arith.constant 14 : index
    %c56_492 = arith.constant 56 : index
    %309 = vector.load %arg9[%c14_491, %c56_492] : memref<32x72xf32, #tpu.memory_space<vmem>>, vector<1x8xf32>
    tpu.vector_store %arg9[%c14_491, %c56_492], %308 {strides = array<i32>} : memref<32x72xf32, #tpu.memory_space<vmem>>, vector<1x8xf32>,
    %c86 = arith.constant 86 : index
    %c0_493 = arith.constant 0 : index
    %310 = vector.load %arg7[%c86, %c0_493] : memref<200x8xf32, #tpu.memory_space<vmem>>, vector<1x8xf32>
    %c14_494 = arith.constant 14 : index
    %c64_495 = arith.constant 64 : index
    %311 = vector.load %arg9[%c14_494, %c64_495] : memref<32x72xf32, #tpu.memory_space<vmem>>, vector<1x8xf32>
    tpu.vector_store %arg9[%c14_494, %c64_495], %310 {strides = array<i32>} : memref<32x72xf32, #tpu.memory_space<vmem>>, vector<1x8xf32>,
    %c66_496 = arith.constant 66 : index
    %c0_497 = arith.constant 0 : index
    %312 = vector.load %arg7[%c66_496, %c0_497] : memref<200x8xf32, #tpu.memory_space<vmem>>, vector<1x8xf32>
    %c15_498 = arith.constant 15 : index
    %c0_499 = arith.constant 0 : index
    %313 = vector.load %arg9[%c15_498, %c0_499] : memref<32x72xf32, #tpu.memory_space<vmem>>, vector<1x8xf32>
    tpu.vector_store %arg9[%c15_498, %c0_499], %312 {strides = array<i32>} : memref<32x72xf32, #tpu.memory_space<vmem>>, vector<1x8xf32>,
    %c67_500 = arith.constant 67 : index
    %c0_501 = arith.constant 0 : index
    %314 = vector.load %arg7[%c67_500, %c0_501] : memref<200x8xf32, #tpu.memory_space<vmem>>, vector<1x8xf32>
    %c15_502 = arith.constant 15 : index
    %c8_503 = arith.constant 8 : index
    %315 = vector.load %arg9[%c15_502, %c8_503] : memref<32x72xf32, #tpu.memory_space<vmem>>, vector<1x8xf32>
    tpu.vector_store %arg9[%c15_502, %c8_503], %314 {strides = array<i32>} : memref<32x72xf32, #tpu.memory_space<vmem>>, vector<1x8xf32>,
    %c68_504 = arith.constant 68 : index
    %c0_505 = arith.constant 0 : index
    %316 = vector.load %arg7[%c68_504, %c0_505] : memref<200x8xf32, #tpu.memory_space<vmem>>, vector<1x8xf32>
    %c15_506 = arith.constant 15 : index
    %c16_507 = arith.constant 16 : index
    %317 = vector.load %arg9[%c15_506, %c16_507] : memref<32x72xf32, #tpu.memory_space<vmem>>, vector<1x8xf32>
    tpu.vector_store %arg9[%c15_506, %c16_507], %316 {strides = array<i32>} : memref<32x72xf32, #tpu.memory_space<vmem>>, vector<1x8xf32>,
    %c76_508 = arith.constant 76 : index
    %c0_509 = arith.constant 0 : index
    %318 = vector.load %arg7[%c76_508, %c0_509] : memref<200x8xf32, #tpu.memory_space<vmem>>, vector<1x8xf32>
    %c15_510 = arith.constant 15 : index
    %c24_511 = arith.constant 24 : index
    %319 = vector.load %arg9[%c15_510, %c24_511] : memref<32x72xf32, #tpu.memory_space<vmem>>, vector<1x8xf32>
    tpu.vector_store %arg9[%c15_510, %c24_511], %318 {strides = array<i32>} : memref<32x72xf32, #tpu.memory_space<vmem>>, vector<1x8xf32>,
    %c77 = arith.constant 77 : index
    %c0_512 = arith.constant 0 : index
    %320 = vector.load %arg7[%c77, %c0_512] : memref<200x8xf32, #tpu.memory_space<vmem>>, vector<1x8xf32>
    %c15_513 = arith.constant 15 : index
    %c32_514 = arith.constant 32 : index
    %321 = vector.load %arg9[%c15_513, %c32_514] : memref<32x72xf32, #tpu.memory_space<vmem>>, vector<1x8xf32>
    tpu.vector_store %arg9[%c15_513, %c32_514], %320 {strides = array<i32>} : memref<32x72xf32, #tpu.memory_space<vmem>>, vector<1x8xf32>,
    %c78 = arith.constant 78 : index
    %c0_515 = arith.constant 0 : index
    %322 = vector.load %arg7[%c78, %c0_515] : memref<200x8xf32, #tpu.memory_space<vmem>>, vector<1x8xf32>
    %c15_516 = arith.constant 15 : index
    %c40_517 = arith.constant 40 : index
    %323 = vector.load %arg9[%c15_516, %c40_517] : memref<32x72xf32, #tpu.memory_space<vmem>>, vector<1x8xf32>
    tpu.vector_store %arg9[%c15_516, %c40_517], %322 {strides = array<i32>} : memref<32x72xf32, #tpu.memory_space<vmem>>, vector<1x8xf32>,
    %c86_518 = arith.constant 86 : index
    %c0_519 = arith.constant 0 : index
    %324 = vector.load %arg7[%c86_518, %c0_519] : memref<200x8xf32, #tpu.memory_space<vmem>>, vector<1x8xf32>
    %c15_520 = arith.constant 15 : index
    %c48_521 = arith.constant 48 : index
    %325 = vector.load %arg9[%c15_520, %c48_521] : memref<32x72xf32, #tpu.memory_space<vmem>>, vector<1x8xf32>
    tpu.vector_store %arg9[%c15_520, %c48_521], %324 {strides = array<i32>} : memref<32x72xf32, #tpu.memory_space<vmem>>, vector<1x8xf32>,
    %c87 = arith.constant 87 : index
    %c0_522 = arith.constant 0 : index
    %326 = vector.load %arg7[%c87, %c0_522] : memref<200x8xf32, #tpu.memory_space<vmem>>, vector<1x8xf32>
    %c15_523 = arith.constant 15 : index
    %c56_524 = arith.constant 56 : index
    %327 = vector.load %arg9[%c15_523, %c56_524] : memref<32x72xf32, #tpu.memory_space<vmem>>, vector<1x8xf32>
    tpu.vector_store %arg9[%c15_523, %c56_524], %326 {strides = array<i32>} : memref<32x72xf32, #tpu.memory_space<vmem>>, vector<1x8xf32>,
    %c88 = arith.constant 88 : index
    %c0_525 = arith.constant 0 : index
    %328 = vector.load %arg7[%c88, %c0_525] : memref<200x8xf32, #tpu.memory_space<vmem>>, vector<1x8xf32>
    %c15_526 = arith.constant 15 : index
    %c64_527 = arith.constant 64 : index
    %329 = vector.load %arg9[%c15_526, %c64_527] : memref<32x72xf32, #tpu.memory_space<vmem>>, vector<1x8xf32>
    tpu.vector_store %arg9[%c15_526, %c64_527], %328 {strides = array<i32>} : memref<32x72xf32, #tpu.memory_space<vmem>>, vector<1x8xf32>,
    %c100 = arith.constant 100 : index
    %c0_528 = arith.constant 0 : index
    %330 = vector.load %arg7[%c100, %c0_528] : memref<200x8xf32, #tpu.memory_space<vmem>>, vector<1x8xf32>
    %c16_529 = arith.constant 16 : index
    %c0_530 = arith.constant 0 : index
    %331 = vector.load %arg9[%c16_529, %c0_530] : memref<32x72xf32, #tpu.memory_space<vmem>>, vector<1x8xf32>
    tpu.vector_store %arg9[%c16_529, %c0_530], %330 {strides = array<i32>} : memref<32x72xf32, #tpu.memory_space<vmem>>, vector<1x8xf32>,
    %c101 = arith.constant 101 : index
    %c0_531 = arith.constant 0 : index
    %332 = vector.load %arg7[%c101, %c0_531] : memref<200x8xf32, #tpu.memory_space<vmem>>, vector<1x8xf32>
    %c16_532 = arith.constant 16 : index
    %c8_533 = arith.constant 8 : index
    %333 = vector.load %arg9[%c16_532, %c8_533] : memref<32x72xf32, #tpu.memory_space<vmem>>, vector<1x8xf32>
    tpu.vector_store %arg9[%c16_532, %c8_533], %332 {strides = array<i32>} : memref<32x72xf32, #tpu.memory_space<vmem>>, vector<1x8xf32>,
    %c102 = arith.constant 102 : index
    %c0_534 = arith.constant 0 : index
    %334 = vector.load %arg7[%c102, %c0_534] : memref<200x8xf32, #tpu.memory_space<vmem>>, vector<1x8xf32>
    %c16_535 = arith.constant 16 : index
    %c16_536 = arith.constant 16 : index
    %335 = vector.load %arg9[%c16_535, %c16_536] : memref<32x72xf32, #tpu.memory_space<vmem>>, vector<1x8xf32>
    tpu.vector_store %arg9[%c16_535, %c16_536], %334 {strides = array<i32>} : memref<32x72xf32, #tpu.memory_space<vmem>>, vector<1x8xf32>,
    %c110 = arith.constant 110 : index
    %c0_537 = arith.constant 0 : index
    %336 = vector.load %arg7[%c110, %c0_537] : memref<200x8xf32, #tpu.memory_space<vmem>>, vector<1x8xf32>
    %c16_538 = arith.constant 16 : index
    %c24_539 = arith.constant 24 : index
    %337 = vector.load %arg9[%c16_538, %c24_539] : memref<32x72xf32, #tpu.memory_space<vmem>>, vector<1x8xf32>
    tpu.vector_store %arg9[%c16_538, %c24_539], %336 {strides = array<i32>} : memref<32x72xf32, #tpu.memory_space<vmem>>, vector<1x8xf32>,
    %c111_540 = arith.constant 111 : index
    %c0_541 = arith.constant 0 : index
    %338 = vector.load %arg7[%c111_540, %c0_541] : memref<200x8xf32, #tpu.memory_space<vmem>>, vector<1x8xf32>
    %c16_542 = arith.constant 16 : index
    %c32_543 = arith.constant 32 : index
    %339 = vector.load %arg9[%c16_542, %c32_543] : memref<32x72xf32, #tpu.memory_space<vmem>>, vector<1x8xf32>
    tpu.vector_store %arg9[%c16_542, %c32_543], %338 {strides = array<i32>} : memref<32x72xf32, #tpu.memory_space<vmem>>, vector<1x8xf32>,
    %c112 = arith.constant 112 : index
    %c0_544 = arith.constant 0 : index
    %340 = vector.load %arg7[%c112, %c0_544] : memref<200x8xf32, #tpu.memory_space<vmem>>, vector<1x8xf32>
    %c16_545 = arith.constant 16 : index
    %c40_546 = arith.constant 40 : index
    %341 = vector.load %arg9[%c16_545, %c40_546] : memref<32x72xf32, #tpu.memory_space<vmem>>, vector<1x8xf32>
    tpu.vector_store %arg9[%c16_545, %c40_546], %340 {strides = array<i32>} : memref<32x72xf32, #tpu.memory_space<vmem>>, vector<1x8xf32>,
    %c120 = arith.constant 120 : index
    %c0_547 = arith.constant 0 : index
    %342 = vector.load %arg7[%c120, %c0_547] : memref<200x8xf32, #tpu.memory_space<vmem>>, vector<1x8xf32>
    %c16_548 = arith.constant 16 : index
    %c48_549 = arith.constant 48 : index
    %343 = vector.load %arg9[%c16_548, %c48_549] : memref<32x72xf32, #tpu.memory_space<vmem>>, vector<1x8xf32>
    tpu.vector_store %arg9[%c16_548, %c48_549], %342 {strides = array<i32>} : memref<32x72xf32, #tpu.memory_space<vmem>>, vector<1x8xf32>,
    %c121_550 = arith.constant 121 : index
    %c0_551 = arith.constant 0 : index
    %344 = vector.load %arg7[%c121_550, %c0_551] : memref<200x8xf32, #tpu.memory_space<vmem>>, vector<1x8xf32>
    %c16_552 = arith.constant 16 : index
    %c56_553 = arith.constant 56 : index
    %345 = vector.load %arg9[%c16_552, %c56_553] : memref<32x72xf32, #tpu.memory_space<vmem>>, vector<1x8xf32>
    tpu.vector_store %arg9[%c16_552, %c56_553], %344 {strides = array<i32>} : memref<32x72xf32, #tpu.memory_space<vmem>>, vector<1x8xf32>,
    %c122 = arith.constant 122 : index
    %c0_554 = arith.constant 0 : index
    %346 = vector.load %arg7[%c122, %c0_554] : memref<200x8xf32, #tpu.memory_space<vmem>>, vector<1x8xf32>
    %c16_555 = arith.constant 16 : index
    %c64_556 = arith.constant 64 : index
    %347 = vector.load %arg9[%c16_555, %c64_556] : memref<32x72xf32, #tpu.memory_space<vmem>>, vector<1x8xf32>
    tpu.vector_store %arg9[%c16_555, %c64_556], %346 {strides = array<i32>} : memref<32x72xf32, #tpu.memory_space<vmem>>, vector<1x8xf32>,
    %c102_557 = arith.constant 102 : index
    %c0_558 = arith.constant 0 : index
    %348 = vector.load %arg7[%c102_557, %c0_558] : memref<200x8xf32, #tpu.memory_space<vmem>>, vector<1x8xf32>
    %c17_559 = arith.constant 17 : index
    %c0_560 = arith.constant 0 : index
    %349 = vector.load %arg9[%c17_559, %c0_560] : memref<32x72xf32, #tpu.memory_space<vmem>>, vector<1x8xf32>
    tpu.vector_store %arg9[%c17_559, %c0_560], %348 {strides = array<i32>} : memref<32x72xf32, #tpu.memory_space<vmem>>, vector<1x8xf32>,
    %c103 = arith.constant 103 : index
    %c0_561 = arith.constant 0 : index
    %350 = vector.load %arg7[%c103, %c0_561] : memref<200x8xf32, #tpu.memory_space<vmem>>, vector<1x8xf32>
    %c17_562 = arith.constant 17 : index
    %c8_563 = arith.constant 8 : index
    %351 = vector.load %arg9[%c17_562, %c8_563] : memref<32x72xf32, #tpu.memory_space<vmem>>, vector<1x8xf32>
    tpu.vector_store %arg9[%c17_562, %c8_563], %350 {strides = array<i32>} : memref<32x72xf32, #tpu.memory_space<vmem>>, vector<1x8xf32>,
    %c104 = arith.constant 104 : index
    %c0_564 = arith.constant 0 : index
    %352 = vector.load %arg7[%c104, %c0_564] : memref<200x8xf32, #tpu.memory_space<vmem>>, vector<1x8xf32>
    %c17_565 = arith.constant 17 : index
    %c16_566 = arith.constant 16 : index
    %353 = vector.load %arg9[%c17_565, %c16_566] : memref<32x72xf32, #tpu.memory_space<vmem>>, vector<1x8xf32>
    tpu.vector_store %arg9[%c17_565, %c16_566], %352 {strides = array<i32>} : memref<32x72xf32, #tpu.memory_space<vmem>>, vector<1x8xf32>,
    %c112_567 = arith.constant 112 : index
    %c0_568 = arith.constant 0 : index
    %354 = vector.load %arg7[%c112_567, %c0_568] : memref<200x8xf32, #tpu.memory_space<vmem>>, vector<1x8xf32>
    %c17_569 = arith.constant 17 : index
    %c24_570 = arith.constant 24 : index
    %355 = vector.load %arg9[%c17_569, %c24_570] : memref<32x72xf32, #tpu.memory_space<vmem>>, vector<1x8xf32>
    tpu.vector_store %arg9[%c17_569, %c24_570], %354 {strides = array<i32>} : memref<32x72xf32, #tpu.memory_space<vmem>>, vector<1x8xf32>,
    %c113 = arith.constant 113 : index
    %c0_571 = arith.constant 0 : index
    %356 = vector.load %arg7[%c113, %c0_571] : memref<200x8xf32, #tpu.memory_space<vmem>>, vector<1x8xf32>
    %c17_572 = arith.constant 17 : index
    %c32_573 = arith.constant 32 : index
    %357 = vector.load %arg9[%c17_572, %c32_573] : memref<32x72xf32, #tpu.memory_space<vmem>>, vector<1x8xf32>
    tpu.vector_store %arg9[%c17_572, %c32_573], %356 {strides = array<i32>} : memref<32x72xf32, #tpu.memory_space<vmem>>, vector<1x8xf32>,
    %c114 = arith.constant 114 : index
    %c0_574 = arith.constant 0 : index
    %358 = vector.load %arg7[%c114, %c0_574] : memref<200x8xf32, #tpu.memory_space<vmem>>, vector<1x8xf32>
    %c17_575 = arith.constant 17 : index
    %c40_576 = arith.constant 40 : index
    %359 = vector.load %arg9[%c17_575, %c40_576] : memref<32x72xf32, #tpu.memory_space<vmem>>, vector<1x8xf32>
    tpu.vector_store %arg9[%c17_575, %c40_576], %358 {strides = array<i32>} : memref<32x72xf32, #tpu.memory_space<vmem>>, vector<1x8xf32>,
    %c122_577 = arith.constant 122 : index
    %c0_578 = arith.constant 0 : index
    %360 = vector.load %arg7[%c122_577, %c0_578] : memref<200x8xf32, #tpu.memory_space<vmem>>, vector<1x8xf32>
    %c17_579 = arith.constant 17 : index
    %c48_580 = arith.constant 48 : index
    %361 = vector.load %arg9[%c17_579, %c48_580] : memref<32x72xf32, #tpu.memory_space<vmem>>, vector<1x8xf32>
    tpu.vector_store %arg9[%c17_579, %c48_580], %360 {strides = array<i32>} : memref<32x72xf32, #tpu.memory_space<vmem>>, vector<1x8xf32>,
    %c123 = arith.constant 123 : index
    %c0_581 = arith.constant 0 : index
    %362 = vector.load %arg7[%c123, %c0_581] : memref<200x8xf32, #tpu.memory_space<vmem>>, vector<1x8xf32>
    %c17_582 = arith.constant 17 : index
    %c56_583 = arith.constant 56 : index
    %363 = vector.load %arg9[%c17_582, %c56_583] : memref<32x72xf32, #tpu.memory_space<vmem>>, vector<1x8xf32>
    tpu.vector_store %arg9[%c17_582, %c56_583], %362 {strides = array<i32>} : memref<32x72xf32, #tpu.memory_space<vmem>>, vector<1x8xf32>,
    %c124 = arith.constant 124 : index
    %c0_584 = arith.constant 0 : index
    %364 = vector.load %arg7[%c124, %c0_584] : memref<200x8xf32, #tpu.memory_space<vmem>>, vector<1x8xf32>
    %c17_585 = arith.constant 17 : index
    %c64_586 = arith.constant 64 : index
    %365 = vector.load %arg9[%c17_585, %c64_586] : memref<32x72xf32, #tpu.memory_space<vmem>>, vector<1x8xf32>
    tpu.vector_store %arg9[%c17_585, %c64_586], %364 {strides = array<i32>} : memref<32x72xf32, #tpu.memory_space<vmem>>, vector<1x8xf32>,
    %c104_587 = arith.constant 104 : index
    %c0_588 = arith.constant 0 : index
    %366 = vector.load %arg7[%c104_587, %c0_588] : memref<200x8xf32, #tpu.memory_space<vmem>>, vector<1x8xf32>
    %c18_589 = arith.constant 18 : index
    %c0_590 = arith.constant 0 : index
    %367 = vector.load %arg9[%c18_589, %c0_590] : memref<32x72xf32, #tpu.memory_space<vmem>>, vector<1x8xf32>
    tpu.vector_store %arg9[%c18_589, %c0_590], %366 {strides = array<i32>} : memref<32x72xf32, #tpu.memory_space<vmem>>, vector<1x8xf32>,
    %c105 = arith.constant 105 : index
    %c0_591 = arith.constant 0 : index
    %368 = vector.load %arg7[%c105, %c0_591] : memref<200x8xf32, #tpu.memory_space<vmem>>, vector<1x8xf32>
    %c18_592 = arith.constant 18 : index
    %c8_593 = arith.constant 8 : index
    %369 = vector.load %arg9[%c18_592, %c8_593] : memref<32x72xf32, #tpu.memory_space<vmem>>, vector<1x8xf32>
    tpu.vector_store %arg9[%c18_592, %c8_593], %368 {strides = array<i32>} : memref<32x72xf32, #tpu.memory_space<vmem>>, vector<1x8xf32>,
    %c106 = arith.constant 106 : index
    %c0_594 = arith.constant 0 : index
    %370 = vector.load %arg7[%c106, %c0_594] : memref<200x8xf32, #tpu.memory_space<vmem>>, vector<1x8xf32>
    %c18_595 = arith.constant 18 : index
    %c16_596 = arith.constant 16 : index
    %371 = vector.load %arg9[%c18_595, %c16_596] : memref<32x72xf32, #tpu.memory_space<vmem>>, vector<1x8xf32>
    tpu.vector_store %arg9[%c18_595, %c16_596], %370 {strides = array<i32>} : memref<32x72xf32, #tpu.memory_space<vmem>>, vector<1x8xf32>,
    %c114_597 = arith.constant 114 : index
    %c0_598 = arith.constant 0 : index
    %372 = vector.load %arg7[%c114_597, %c0_598] : memref<200x8xf32, #tpu.memory_space<vmem>>, vector<1x8xf32>
    %c18_599 = arith.constant 18 : index
    %c24_600 = arith.constant 24 : index
    %373 = vector.load %arg9[%c18_599, %c24_600] : memref<32x72xf32, #tpu.memory_space<vmem>>, vector<1x8xf32>
    tpu.vector_store %arg9[%c18_599, %c24_600], %372 {strides = array<i32>} : memref<32x72xf32, #tpu.memory_space<vmem>>, vector<1x8xf32>,
    %c115 = arith.constant 115 : index
    %c0_601 = arith.constant 0 : index
    %374 = vector.load %arg7[%c115, %c0_601] : memref<200x8xf32, #tpu.memory_space<vmem>>, vector<1x8xf32>
    %c18_602 = arith.constant 18 : index
    %c32_603 = arith.constant 32 : index
    %375 = vector.load %arg9[%c18_602, %c32_603] : memref<32x72xf32, #tpu.memory_space<vmem>>, vector<1x8xf32>
    tpu.vector_store %arg9[%c18_602, %c32_603], %374 {strides = array<i32>} : memref<32x72xf32, #tpu.memory_space<vmem>>, vector<1x8xf32>,
    %c116 = arith.constant 116 : index
    %c0_604 = arith.constant 0 : index
    %376 = vector.load %arg7[%c116, %c0_604] : memref<200x8xf32, #tpu.memory_space<vmem>>, vector<1x8xf32>
    %c18_605 = arith.constant 18 : index
    %c40_606 = arith.constant 40 : index
    %377 = vector.load %arg9[%c18_605, %c40_606] : memref<32x72xf32, #tpu.memory_space<vmem>>, vector<1x8xf32>
    tpu.vector_store %arg9[%c18_605, %c40_606], %376 {strides = array<i32>} : memref<32x72xf32, #tpu.memory_space<vmem>>, vector<1x8xf32>,
    %c124_607 = arith.constant 124 : index
    %c0_608 = arith.constant 0 : index
    %378 = vector.load %arg7[%c124_607, %c0_608] : memref<200x8xf32, #tpu.memory_space<vmem>>, vector<1x8xf32>
    %c18_609 = arith.constant 18 : index
    %c48_610 = arith.constant 48 : index
    %379 = vector.load %arg9[%c18_609, %c48_610] : memref<32x72xf32, #tpu.memory_space<vmem>>, vector<1x8xf32>
    tpu.vector_store %arg9[%c18_609, %c48_610], %378 {strides = array<i32>} : memref<32x72xf32, #tpu.memory_space<vmem>>, vector<1x8xf32>,
    %c125 = arith.constant 125 : index
    %c0_611 = arith.constant 0 : index
    %380 = vector.load %arg7[%c125, %c0_611] : memref<200x8xf32, #tpu.memory_space<vmem>>, vector<1x8xf32>
    %c18_612 = arith.constant 18 : index
    %c56_613 = arith.constant 56 : index
    %381 = vector.load %arg9[%c18_612, %c56_613] : memref<32x72xf32, #tpu.memory_space<vmem>>, vector<1x8xf32>
    tpu.vector_store %arg9[%c18_612, %c56_613], %380 {strides = array<i32>} : memref<32x72xf32, #tpu.memory_space<vmem>>, vector<1x8xf32>,
    %c126 = arith.constant 126 : index
    %c0_614 = arith.constant 0 : index
    %382 = vector.load %arg7[%c126, %c0_614] : memref<200x8xf32, #tpu.memory_space<vmem>>, vector<1x8xf32>
    %c18_615 = arith.constant 18 : index
    %c64_616 = arith.constant 64 : index
    %383 = vector.load %arg9[%c18_615, %c64_616] : memref<32x72xf32, #tpu.memory_space<vmem>>, vector<1x8xf32>
    tpu.vector_store %arg9[%c18_615, %c64_616], %382 {strides = array<i32>} : memref<32x72xf32, #tpu.memory_space<vmem>>, vector<1x8xf32>,
    %c106_617 = arith.constant 106 : index
    %c0_618 = arith.constant 0 : index
    %384 = vector.load %arg7[%c106_617, %c0_618] : memref<200x8xf32, #tpu.memory_space<vmem>>, vector<1x8xf32>
    %c19 = arith.constant 19 : index
    %c0_619 = arith.constant 0 : index
    %385 = vector.load %arg9[%c19, %c0_619] : memref<32x72xf32, #tpu.memory_space<vmem>>, vector<1x8xf32>
    tpu.vector_store %arg9[%c19, %c0_619], %384 {strides = array<i32>} : memref<32x72xf32, #tpu.memory_space<vmem>>, vector<1x8xf32>,
    %c107 = arith.constant 107 : index
    %c0_620 = arith.constant 0 : index
    %386 = vector.load %arg7[%c107, %c0_620] : memref<200x8xf32, #tpu.memory_space<vmem>>, vector<1x8xf32>
    %c19_621 = arith.constant 19 : index
    %c8_622 = arith.constant 8 : index
    %387 = vector.load %arg9[%c19_621, %c8_622] : memref<32x72xf32, #tpu.memory_space<vmem>>, vector<1x8xf32>
    tpu.vector_store %arg9[%c19_621, %c8_622], %386 {strides = array<i32>} : memref<32x72xf32, #tpu.memory_space<vmem>>, vector<1x8xf32>,
    %c108 = arith.constant 108 : index
    %c0_623 = arith.constant 0 : index
    %388 = vector.load %arg7[%c108, %c0_623] : memref<200x8xf32, #tpu.memory_space<vmem>>, vector<1x8xf32>
    %c19_624 = arith.constant 19 : index
    %c16_625 = arith.constant 16 : index
    %389 = vector.load %arg9[%c19_624, %c16_625] : memref<32x72xf32, #tpu.memory_space<vmem>>, vector<1x8xf32>
    tpu.vector_store %arg9[%c19_624, %c16_625], %388 {strides = array<i32>} : memref<32x72xf32, #tpu.memory_space<vmem>>, vector<1x8xf32>,
    %c116_626 = arith.constant 116 : index
    %c0_627 = arith.constant 0 : index
    %390 = vector.load %arg7[%c116_626, %c0_627] : memref<200x8xf32, #tpu.memory_space<vmem>>, vector<1x8xf32>
    %c19_628 = arith.constant 19 : index
    %c24_629 = arith.constant 24 : index
    %391 = vector.load %arg9[%c19_628, %c24_629] : memref<32x72xf32, #tpu.memory_space<vmem>>, vector<1x8xf32>
    tpu.vector_store %arg9[%c19_628, %c24_629], %390 {strides = array<i32>} : memref<32x72xf32, #tpu.memory_space<vmem>>, vector<1x8xf32>,
    %c117 = arith.constant 117 : index
    %c0_630 = arith.constant 0 : index
    %392 = vector.load %arg7[%c117, %c0_630] : memref<200x8xf32, #tpu.memory_space<vmem>>, vector<1x8xf32>
    %c19_631 = arith.constant 19 : index
    %c32_632 = arith.constant 32 : index
    %393 = vector.load %arg9[%c19_631, %c32_632] : memref<32x72xf32, #tpu.memory_space<vmem>>, vector<1x8xf32>
    tpu.vector_store %arg9[%c19_631, %c32_632], %392 {strides = array<i32>} : memref<32x72xf32, #tpu.memory_space<vmem>>, vector<1x8xf32>,
    %c118 = arith.constant 118 : index
    %c0_633 = arith.constant 0 : index
    %394 = vector.load %arg7[%c118, %c0_633] : memref<200x8xf32, #tpu.memory_space<vmem>>, vector<1x8xf32>
    %c19_634 = arith.constant 19 : index
    %c40_635 = arith.constant 40 : index
    %395 = vector.load %arg9[%c19_634, %c40_635] : memref<32x72xf32, #tpu.memory_space<vmem>>, vector<1x8xf32>
    tpu.vector_store %arg9[%c19_634, %c40_635], %394 {strides = array<i32>} : memref<32x72xf32, #tpu.memory_space<vmem>>, vector<1x8xf32>,
    %c126_636 = arith.constant 126 : index
    %c0_637 = arith.constant 0 : index
    %396 = vector.load %arg7[%c126_636, %c0_637] : memref<200x8xf32, #tpu.memory_space<vmem>>, vector<1x8xf32>
    %c19_638 = arith.constant 19 : index
    %c48_639 = arith.constant 48 : index
    %397 = vector.load %arg9[%c19_638, %c48_639] : memref<32x72xf32, #tpu.memory_space<vmem>>, vector<1x8xf32>
    tpu.vector_store %arg9[%c19_638, %c48_639], %396 {strides = array<i32>} : memref<32x72xf32, #tpu.memory_space<vmem>>, vector<1x8xf32>,
    %c127 = arith.constant 127 : index
    %c0_640 = arith.constant 0 : index
    %398 = vector.load %arg7[%c127, %c0_640] : memref<200x8xf32, #tpu.memory_space<vmem>>, vector<1x8xf32>
    %c19_641 = arith.constant 19 : index
    %c56_642 = arith.constant 56 : index
    %399 = vector.load %arg9[%c19_641, %c56_642] : memref<32x72xf32, #tpu.memory_space<vmem>>, vector<1x8xf32>
    tpu.vector_store %arg9[%c19_641, %c56_642], %398 {strides = array<i32>} : memref<32x72xf32, #tpu.memory_space<vmem>>, vector<1x8xf32>,
    %c128 = arith.constant 128 : index
    %c0_643 = arith.constant 0 : index
    %400 = vector.load %arg7[%c128, %c0_643] : memref<200x8xf32, #tpu.memory_space<vmem>>, vector<1x8xf32>
    %c19_644 = arith.constant 19 : index
    %c64_645 = arith.constant 64 : index
    %401 = vector.load %arg9[%c19_644, %c64_645] : memref<32x72xf32, #tpu.memory_space<vmem>>, vector<1x8xf32>
    tpu.vector_store %arg9[%c19_644, %c64_645], %400 {strides = array<i32>} : memref<32x72xf32, #tpu.memory_space<vmem>>, vector<1x8xf32>,
    %c120_646 = arith.constant 120 : index
    %c0_647 = arith.constant 0 : index
    %402 = vector.load %arg7[%c120_646, %c0_647] : memref<200x8xf32, #tpu.memory_space<vmem>>, vector<1x8xf32>
    %c20_648 = arith.constant 20 : index
    %c0_649 = arith.constant 0 : index
    %403 = vector.load %arg9[%c20_648, %c0_649] : memref<32x72xf32, #tpu.memory_space<vmem>>, vector<1x8xf32>
    tpu.vector_store %arg9[%c20_648, %c0_649], %402 {strides = array<i32>} : memref<32x72xf32, #tpu.memory_space<vmem>>, vector<1x8xf32>,
    %c121_650 = arith.constant 121 : index
    %c0_651 = arith.constant 0 : index
    %404 = vector.load %arg7[%c121_650, %c0_651] : memref<200x8xf32, #tpu.memory_space<vmem>>, vector<1x8xf32>
    %c20_652 = arith.constant 20 : index
    %c8_653 = arith.constant 8 : index
    %405 = vector.load %arg9[%c20_652, %c8_653] : memref<32x72xf32, #tpu.memory_space<vmem>>, vector<1x8xf32>
    tpu.vector_store %arg9[%c20_652, %c8_653], %404 {strides = array<i32>} : memref<32x72xf32, #tpu.memory_space<vmem>>, vector<1x8xf32>,
    %c122_654 = arith.constant 122 : index
    %c0_655 = arith.constant 0 : index
    %406 = vector.load %arg7[%c122_654, %c0_655] : memref<200x8xf32, #tpu.memory_space<vmem>>, vector<1x8xf32>
    %c20_656 = arith.constant 20 : index
    %c16_657 = arith.constant 16 : index
    %407 = vector.load %arg9[%c20_656, %c16_657] : memref<32x72xf32, #tpu.memory_space<vmem>>, vector<1x8xf32>
    tpu.vector_store %arg9[%c20_656, %c16_657], %406 {strides = array<i32>} : memref<32x72xf32, #tpu.memory_space<vmem>>, vector<1x8xf32>,
    %c130 = arith.constant 130 : index
    %c0_658 = arith.constant 0 : index
    %408 = vector.load %arg7[%c130, %c0_658] : memref<200x8xf32, #tpu.memory_space<vmem>>, vector<1x8xf32>
    %c20_659 = arith.constant 20 : index
    %c24_660 = arith.constant 24 : index
    %409 = vector.load %arg9[%c20_659, %c24_660] : memref<32x72xf32, #tpu.memory_space<vmem>>, vector<1x8xf32>
    tpu.vector_store %arg9[%c20_659, %c24_660], %408 {strides = array<i32>} : memref<32x72xf32, #tpu.memory_space<vmem>>, vector<1x8xf32>,
    %c131_661 = arith.constant 131 : index
    %c0_662 = arith.constant 0 : index
    %410 = vector.load %arg7[%c131_661, %c0_662] : memref<200x8xf32, #tpu.memory_space<vmem>>, vector<1x8xf32>
    %c20_663 = arith.constant 20 : index
    %c32_664 = arith.constant 32 : index
    %411 = vector.load %arg9[%c20_663, %c32_664] : memref<32x72xf32, #tpu.memory_space<vmem>>, vector<1x8xf32>
    tpu.vector_store %arg9[%c20_663, %c32_664], %410 {strides = array<i32>} : memref<32x72xf32, #tpu.memory_space<vmem>>, vector<1x8xf32>,
    %c132 = arith.constant 132 : index
    %c0_665 = arith.constant 0 : index
    %412 = vector.load %arg7[%c132, %c0_665] : memref<200x8xf32, #tpu.memory_space<vmem>>, vector<1x8xf32>
    %c20_666 = arith.constant 20 : index
    %c40_667 = arith.constant 40 : index
    %413 = vector.load %arg9[%c20_666, %c40_667] : memref<32x72xf32, #tpu.memory_space<vmem>>, vector<1x8xf32>
    tpu.vector_store %arg9[%c20_666, %c40_667], %412 {strides = array<i32>} : memref<32x72xf32, #tpu.memory_space<vmem>>, vector<1x8xf32>,
    %c140 = arith.constant 140 : index
    %c0_668 = arith.constant 0 : index
    %414 = vector.load %arg7[%c140, %c0_668] : memref<200x8xf32, #tpu.memory_space<vmem>>, vector<1x8xf32>
    %c20_669 = arith.constant 20 : index
    %c48_670 = arith.constant 48 : index
    %415 = vector.load %arg9[%c20_669, %c48_670] : memref<32x72xf32, #tpu.memory_space<vmem>>, vector<1x8xf32>
    tpu.vector_store %arg9[%c20_669, %c48_670], %414 {strides = array<i32>} : memref<32x72xf32, #tpu.memory_space<vmem>>, vector<1x8xf32>,
    %c141_671 = arith.constant 141 : index
    %c0_672 = arith.constant 0 : index
    %416 = vector.load %arg7[%c141_671, %c0_672] : memref<200x8xf32, #tpu.memory_space<vmem>>, vector<1x8xf32>
    %c20_673 = arith.constant 20 : index
    %c56_674 = arith.constant 56 : index
    %417 = vector.load %arg9[%c20_673, %c56_674] : memref<32x72xf32, #tpu.memory_space<vmem>>, vector<1x8xf32>
    tpu.vector_store %arg9[%c20_673, %c56_674], %416 {strides = array<i32>} : memref<32x72xf32, #tpu.memory_space<vmem>>, vector<1x8xf32>,
    %c142 = arith.constant 142 : index
    %c0_675 = arith.constant 0 : index
    %418 = vector.load %arg7[%c142, %c0_675] : memref<200x8xf32, #tpu.memory_space<vmem>>, vector<1x8xf32>
    %c20_676 = arith.constant 20 : index
    %c64_677 = arith.constant 64 : index
    %419 = vector.load %arg9[%c20_676, %c64_677] : memref<32x72xf32, #tpu.memory_space<vmem>>, vector<1x8xf32>
    tpu.vector_store %arg9[%c20_676, %c64_677], %418 {strides = array<i32>} : memref<32x72xf32, #tpu.memory_space<vmem>>, vector<1x8xf32>,
    %c122_678 = arith.constant 122 : index
    %c0_679 = arith.constant 0 : index
    %420 = vector.load %arg7[%c122_678, %c0_679] : memref<200x8xf32, #tpu.memory_space<vmem>>, vector<1x8xf32>
    %c21_680 = arith.constant 21 : index
    %c0_681 = arith.constant 0 : index
    %421 = vector.load %arg9[%c21_680, %c0_681] : memref<32x72xf32, #tpu.memory_space<vmem>>, vector<1x8xf32>
    tpu.vector_store %arg9[%c21_680, %c0_681], %420 {strides = array<i32>} : memref<32x72xf32, #tpu.memory_space<vmem>>, vector<1x8xf32>,
    %c123_682 = arith.constant 123 : index
    %c0_683 = arith.constant 0 : index
    %422 = vector.load %arg7[%c123_682, %c0_683] : memref<200x8xf32, #tpu.memory_space<vmem>>, vector<1x8xf32>
    %c21_684 = arith.constant 21 : index
    %c8_685 = arith.constant 8 : index
    %423 = vector.load %arg9[%c21_684, %c8_685] : memref<32x72xf32, #tpu.memory_space<vmem>>, vector<1x8xf32>
    tpu.vector_store %arg9[%c21_684, %c8_685], %422 {strides = array<i32>} : memref<32x72xf32, #tpu.memory_space<vmem>>, vector<1x8xf32>,
    %c124_686 = arith.constant 124 : index
    %c0_687 = arith.constant 0 : index
    %424 = vector.load %arg7[%c124_686, %c0_687] : memref<200x8xf32, #tpu.memory_space<vmem>>, vector<1x8xf32>
    %c21_688 = arith.constant 21 : index
    %c16_689 = arith.constant 16 : index
    %425 = vector.load %arg9[%c21_688, %c16_689] : memref<32x72xf32, #tpu.memory_space<vmem>>, vector<1x8xf32>
    tpu.vector_store %arg9[%c21_688, %c16_689], %424 {strides = array<i32>} : memref<32x72xf32, #tpu.memory_space<vmem>>, vector<1x8xf32>,
    %c132_690 = arith.constant 132 : index
    %c0_691 = arith.constant 0 : index
    %426 = vector.load %arg7[%c132_690, %c0_691] : memref<200x8xf32, #tpu.memory_space<vmem>>, vector<1x8xf32>
    %c21_692 = arith.constant 21 : index
    %c24_693 = arith.constant 24 : index
    %427 = vector.load %arg9[%c21_692, %c24_693] : memref<32x72xf32, #tpu.memory_space<vmem>>, vector<1x8xf32>
    tpu.vector_store %arg9[%c21_692, %c24_693], %426 {strides = array<i32>} : memref<32x72xf32, #tpu.memory_space<vmem>>, vector<1x8xf32>,
    %c133 = arith.constant 133 : index
    %c0_694 = arith.constant 0 : index
    %428 = vector.load %arg7[%c133, %c0_694] : memref<200x8xf32, #tpu.memory_space<vmem>>, vector<1x8xf32>
    %c21_695 = arith.constant 21 : index
    %c32_696 = arith.constant 32 : index
    %429 = vector.load %arg9[%c21_695, %c32_696] : memref<32x72xf32, #tpu.memory_space<vmem>>, vector<1x8xf32>
    tpu.vector_store %arg9[%c21_695, %c32_696], %428 {strides = array<i32>} : memref<32x72xf32, #tpu.memory_space<vmem>>, vector<1x8xf32>,
    %c134 = arith.constant 134 : index
    %c0_697 = arith.constant 0 : index
    %430 = vector.load %arg7[%c134, %c0_697] : memref<200x8xf32, #tpu.memory_space<vmem>>, vector<1x8xf32>
    %c21_698 = arith.constant 21 : index
    %c40_699 = arith.constant 40 : index
    %431 = vector.load %arg9[%c21_698, %c40_699] : memref<32x72xf32, #tpu.memory_space<vmem>>, vector<1x8xf32>
    tpu.vector_store %arg9[%c21_698, %c40_699], %430 {strides = array<i32>} : memref<32x72xf32, #tpu.memory_space<vmem>>, vector<1x8xf32>,
    %c142_700 = arith.constant 142 : index
    %c0_701 = arith.constant 0 : index
    %432 = vector.load %arg7[%c142_700, %c0_701] : memref<200x8xf32, #tpu.memory_space<vmem>>, vector<1x8xf32>
    %c21_702 = arith.constant 21 : index
    %c48_703 = arith.constant 48 : index
    %433 = vector.load %arg9[%c21_702, %c48_703] : memref<32x72xf32, #tpu.memory_space<vmem>>, vector<1x8xf32>
    tpu.vector_store %arg9[%c21_702, %c48_703], %432 {strides = array<i32>} : memref<32x72xf32, #tpu.memory_space<vmem>>, vector<1x8xf32>,
    %c143 = arith.constant 143 : index
    %c0_704 = arith.constant 0 : index
    %434 = vector.load %arg7[%c143, %c0_704] : memref<200x8xf32, #tpu.memory_space<vmem>>, vector<1x8xf32>
    %c21_705 = arith.constant 21 : index
    %c56_706 = arith.constant 56 : index
    %435 = vector.load %arg9[%c21_705, %c56_706] : memref<32x72xf32, #tpu.memory_space<vmem>>, vector<1x8xf32>
    tpu.vector_store %arg9[%c21_705, %c56_706], %434 {strides = array<i32>} : memref<32x72xf32, #tpu.memory_space<vmem>>, vector<1x8xf32>,
    %c144 = arith.constant 144 : index
    %c0_707 = arith.constant 0 : index
    %436 = vector.load %arg7[%c144, %c0_707] : memref<200x8xf32, #tpu.memory_space<vmem>>, vector<1x8xf32>
    %c21_708 = arith.constant 21 : index
    %c64_709 = arith.constant 64 : index
    %437 = vector.load %arg9[%c21_708, %c64_709] : memref<32x72xf32, #tpu.memory_space<vmem>>, vector<1x8xf32>
    tpu.vector_store %arg9[%c21_708, %c64_709], %436 {strides = array<i32>} : memref<32x72xf32, #tpu.memory_space<vmem>>, vector<1x8xf32>,
    %c124_710 = arith.constant 124 : index
    %c0_711 = arith.constant 0 : index
    %438 = vector.load %arg7[%c124_710, %c0_711] : memref<200x8xf32, #tpu.memory_space<vmem>>, vector<1x8xf32>
    %c22_712 = arith.constant 22 : index
    %c0_713 = arith.constant 0 : index
    %439 = vector.load %arg9[%c22_712, %c0_713] : memref<32x72xf32, #tpu.memory_space<vmem>>, vector<1x8xf32>
    tpu.vector_store %arg9[%c22_712, %c0_713], %438 {strides = array<i32>} : memref<32x72xf32, #tpu.memory_space<vmem>>, vector<1x8xf32>,
    %c125_714 = arith.constant 125 : index
    %c0_715 = arith.constant 0 : index
    %440 = vector.load %arg7[%c125_714, %c0_715] : memref<200x8xf32, #tpu.memory_space<vmem>>, vector<1x8xf32>
    %c22_716 = arith.constant 22 : index
    %c8_717 = arith.constant 8 : index
    %441 = vector.load %arg9[%c22_716, %c8_717] : memref<32x72xf32, #tpu.memory_space<vmem>>, vector<1x8xf32>
    tpu.vector_store %arg9[%c22_716, %c8_717], %440 {strides = array<i32>} : memref<32x72xf32, #tpu.memory_space<vmem>>, vector<1x8xf32>,
    %c126_718 = arith.constant 126 : index
    %c0_719 = arith.constant 0 : index
    %442 = vector.load %arg7[%c126_718, %c0_719] : memref<200x8xf32, #tpu.memory_space<vmem>>, vector<1x8xf32>
    %c22_720 = arith.constant 22 : index
    %c16_721 = arith.constant 16 : index
    %443 = vector.load %arg9[%c22_720, %c16_721] : memref<32x72xf32, #tpu.memory_space<vmem>>, vector<1x8xf32>
    tpu.vector_store %arg9[%c22_720, %c16_721], %442 {strides = array<i32>} : memref<32x72xf32, #tpu.memory_space<vmem>>, vector<1x8xf32>,
    %c134_722 = arith.constant 134 : index
    %c0_723 = arith.constant 0 : index
    %444 = vector.load %arg7[%c134_722, %c0_723] : memref<200x8xf32, #tpu.memory_space<vmem>>, vector<1x8xf32>
    %c22_724 = arith.constant 22 : index
    %c24_725 = arith.constant 24 : index
    %445 = vector.load %arg9[%c22_724, %c24_725] : memref<32x72xf32, #tpu.memory_space<vmem>>, vector<1x8xf32>
    tpu.vector_store %arg9[%c22_724, %c24_725], %444 {strides = array<i32>} : memref<32x72xf32, #tpu.memory_space<vmem>>, vector<1x8xf32>,
    %c135 = arith.constant 135 : index
    %c0_726 = arith.constant 0 : index
    %446 = vector.load %arg7[%c135, %c0_726] : memref<200x8xf32, #tpu.memory_space<vmem>>, vector<1x8xf32>
    %c22_727 = arith.constant 22 : index
    %c32_728 = arith.constant 32 : index
    %447 = vector.load %arg9[%c22_727, %c32_728] : memref<32x72xf32, #tpu.memory_space<vmem>>, vector<1x8xf32>
    tpu.vector_store %arg9[%c22_727, %c32_728], %446 {strides = array<i32>} : memref<32x72xf32, #tpu.memory_space<vmem>>, vector<1x8xf32>,
    %c136 = arith.constant 136 : index
    %c0_729 = arith.constant 0 : index
    %448 = vector.load %arg7[%c136, %c0_729] : memref<200x8xf32, #tpu.memory_space<vmem>>, vector<1x8xf32>
    %c22_730 = arith.constant 22 : index
    %c40_731 = arith.constant 40 : index
    %449 = vector.load %arg9[%c22_730, %c40_731] : memref<32x72xf32, #tpu.memory_space<vmem>>, vector<1x8xf32>
    tpu.vector_store %arg9[%c22_730, %c40_731], %448 {strides = array<i32>} : memref<32x72xf32, #tpu.memory_space<vmem>>, vector<1x8xf32>,
    %c144_732 = arith.constant 144 : index
    %c0_733 = arith.constant 0 : index
    %450 = vector.load %arg7[%c144_732, %c0_733] : memref<200x8xf32, #tpu.memory_space<vmem>>, vector<1x8xf32>
    %c22_734 = arith.constant 22 : index
    %c48_735 = arith.constant 48 : index
    %451 = vector.load %arg9[%c22_734, %c48_735] : memref<32x72xf32, #tpu.memory_space<vmem>>, vector<1x8xf32>
    tpu.vector_store %arg9[%c22_734, %c48_735], %450 {strides = array<i32>} : memref<32x72xf32, #tpu.memory_space<vmem>>, vector<1x8xf32>,
    %c145 = arith.constant 145 : index
    %c0_736 = arith.constant 0 : index
    %452 = vector.load %arg7[%c145, %c0_736] : memref<200x8xf32, #tpu.memory_space<vmem>>, vector<1x8xf32>
    %c22_737 = arith.constant 22 : index
    %c56_738 = arith.constant 56 : index
    %453 = vector.load %arg9[%c22_737, %c56_738] : memref<32x72xf32, #tpu.memory_space<vmem>>, vector<1x8xf32>
    tpu.vector_store %arg9[%c22_737, %c56_738], %452 {strides = array<i32>} : memref<32x72xf32, #tpu.memory_space<vmem>>, vector<1x8xf32>,
    %c146 = arith.constant 146 : index
    %c0_739 = arith.constant 0 : index
    %454 = vector.load %arg7[%c146, %c0_739] : memref<200x8xf32, #tpu.memory_space<vmem>>, vector<1x8xf32>
    %c22_740 = arith.constant 22 : index
    %c64_741 = arith.constant 64 : index
    %455 = vector.load %arg9[%c22_740, %c64_741] : memref<32x72xf32, #tpu.memory_space<vmem>>, vector<1x8xf32>
    tpu.vector_store %arg9[%c22_740, %c64_741], %454 {strides = array<i32>} : memref<32x72xf32, #tpu.memory_space<vmem>>, vector<1x8xf32>,
    %c126_742 = arith.constant 126 : index
    %c0_743 = arith.constant 0 : index
    %456 = vector.load %arg7[%c126_742, %c0_743] : memref<200x8xf32, #tpu.memory_space<vmem>>, vector<1x8xf32>
    %c23_744 = arith.constant 23 : index
    %c0_745 = arith.constant 0 : index
    %457 = vector.load %arg9[%c23_744, %c0_745] : memref<32x72xf32, #tpu.memory_space<vmem>>, vector<1x8xf32>
    tpu.vector_store %arg9[%c23_744, %c0_745], %456 {strides = array<i32>} : memref<32x72xf32, #tpu.memory_space<vmem>>, vector<1x8xf32>,
    %c127_746 = arith.constant 127 : index
    %c0_747 = arith.constant 0 : index
    %458 = vector.load %arg7[%c127_746, %c0_747] : memref<200x8xf32, #tpu.memory_space<vmem>>, vector<1x8xf32>
    %c23_748 = arith.constant 23 : index
    %c8_749 = arith.constant 8 : index
    %459 = vector.load %arg9[%c23_748, %c8_749] : memref<32x72xf32, #tpu.memory_space<vmem>>, vector<1x8xf32>
    tpu.vector_store %arg9[%c23_748, %c8_749], %458 {strides = array<i32>} : memref<32x72xf32, #tpu.memory_space<vmem>>, vector<1x8xf32>,
    %c128_750 = arith.constant 128 : index
    %c0_751 = arith.constant 0 : index
    %460 = vector.load %arg7[%c128_750, %c0_751] : memref<200x8xf32, #tpu.memory_space<vmem>>, vector<1x8xf32>
    %c23_752 = arith.constant 23 : index
    %c16_753 = arith.constant 16 : index
    %461 = vector.load %arg9[%c23_752, %c16_753] : memref<32x72xf32, #tpu.memory_space<vmem>>, vector<1x8xf32>
    tpu.vector_store %arg9[%c23_752, %c16_753], %460 {strides = array<i32>} : memref<32x72xf32, #tpu.memory_space<vmem>>, vector<1x8xf32>,
    %c136_754 = arith.constant 136 : index
    %c0_755 = arith.constant 0 : index
    %462 = vector.load %arg7[%c136_754, %c0_755] : memref<200x8xf32, #tpu.memory_space<vmem>>, vector<1x8xf32>
    %c23_756 = arith.constant 23 : index
    %c24_757 = arith.constant 24 : index
    %463 = vector.load %arg9[%c23_756, %c24_757] : memref<32x72xf32, #tpu.memory_space<vmem>>, vector<1x8xf32>
    tpu.vector_store %arg9[%c23_756, %c24_757], %462 {strides = array<i32>} : memref<32x72xf32, #tpu.memory_space<vmem>>, vector<1x8xf32>,
    %c137 = arith.constant 137 : index
    %c0_758 = arith.constant 0 : index
    %464 = vector.load %arg7[%c137, %c0_758] : memref<200x8xf32, #tpu.memory_space<vmem>>, vector<1x8xf32>
    %c23_759 = arith.constant 23 : index
    %c32_760 = arith.constant 32 : index
    %465 = vector.load %arg9[%c23_759, %c32_760] : memref<32x72xf32, #tpu.memory_space<vmem>>, vector<1x8xf32>
    tpu.vector_store %arg9[%c23_759, %c32_760], %464 {strides = array<i32>} : memref<32x72xf32, #tpu.memory_space<vmem>>, vector<1x8xf32>,
    %c138 = arith.constant 138 : index
    %c0_761 = arith.constant 0 : index
    %466 = vector.load %arg7[%c138, %c0_761] : memref<200x8xf32, #tpu.memory_space<vmem>>, vector<1x8xf32>
    %c23_762 = arith.constant 23 : index
    %c40_763 = arith.constant 40 : index
    %467 = vector.load %arg9[%c23_762, %c40_763] : memref<32x72xf32, #tpu.memory_space<vmem>>, vector<1x8xf32>
    tpu.vector_store %arg9[%c23_762, %c40_763], %466 {strides = array<i32>} : memref<32x72xf32, #tpu.memory_space<vmem>>, vector<1x8xf32>,
    %c146_764 = arith.constant 146 : index
    %c0_765 = arith.constant 0 : index
    %468 = vector.load %arg7[%c146_764, %c0_765] : memref<200x8xf32, #tpu.memory_space<vmem>>, vector<1x8xf32>
    %c23_766 = arith.constant 23 : index
    %c48_767 = arith.constant 48 : index
    %469 = vector.load %arg9[%c23_766, %c48_767] : memref<32x72xf32, #tpu.memory_space<vmem>>, vector<1x8xf32>
    tpu.vector_store %arg9[%c23_766, %c48_767], %468 {strides = array<i32>} : memref<32x72xf32, #tpu.memory_space<vmem>>, vector<1x8xf32>,
    %c147 = arith.constant 147 : index
    %c0_768 = arith.constant 0 : index
    %470 = vector.load %arg7[%c147, %c0_768] : memref<200x8xf32, #tpu.memory_space<vmem>>, vector<1x8xf32>
    %c23_769 = arith.constant 23 : index
    %c56_770 = arith.constant 56 : index
    %471 = vector.load %arg9[%c23_769, %c56_770] : memref<32x72xf32, #tpu.memory_space<vmem>>, vector<1x8xf32>
    tpu.vector_store %arg9[%c23_769, %c56_770], %470 {strides = array<i32>} : memref<32x72xf32, #tpu.memory_space<vmem>>, vector<1x8xf32>,
    %c148 = arith.constant 148 : index
    %c0_771 = arith.constant 0 : index
    %472 = vector.load %arg7[%c148, %c0_771] : memref<200x8xf32, #tpu.memory_space<vmem>>, vector<1x8xf32>
    %c23_772 = arith.constant 23 : index
    %c64_773 = arith.constant 64 : index
    %473 = vector.load %arg9[%c23_772, %c64_773] : memref<32x72xf32, #tpu.memory_space<vmem>>, vector<1x8xf32>
    tpu.vector_store %arg9[%c23_772, %c64_773], %472 {strides = array<i32>} : memref<32x72xf32, #tpu.memory_space<vmem>>, vector<1x8xf32>,
    %c140_774 = arith.constant 140 : index
    %c0_775 = arith.constant 0 : index
    %474 = vector.load %arg7[%c140_774, %c0_775] : memref<200x8xf32, #tpu.memory_space<vmem>>, vector<1x8xf32>
    %c24_776 = arith.constant 24 : index
    %c0_777 = arith.constant 0 : index
    %475 = vector.load %arg9[%c24_776, %c0_777] : memref<32x72xf32, #tpu.memory_space<vmem>>, vector<1x8xf32>
    tpu.vector_store %arg9[%c24_776, %c0_777], %474 {strides = array<i32>} : memref<32x72xf32, #tpu.memory_space<vmem>>, vector<1x8xf32>,
    %c141_778 = arith.constant 141 : index
    %c0_779 = arith.constant 0 : index
    %476 = vector.load %arg7[%c141_778, %c0_779] : memref<200x8xf32, #tpu.memory_space<vmem>>, vector<1x8xf32>
    %c24_780 = arith.constant 24 : index
    %c8_781 = arith.constant 8 : index
    %477 = vector.load %arg9[%c24_780, %c8_781] : memref<32x72xf32, #tpu.memory_space<vmem>>, vector<1x8xf32>
    tpu.vector_store %arg9[%c24_780, %c8_781], %476 {strides = array<i32>} : memref<32x72xf32, #tpu.memory_space<vmem>>, vector<1x8xf32>,
    %c142_782 = arith.constant 142 : index
    %c0_783 = arith.constant 0 : index
    %478 = vector.load %arg7[%c142_782, %c0_783] : memref<200x8xf32, #tpu.memory_space<vmem>>, vector<1x8xf32>
    %c24_784 = arith.constant 24 : index
    %c16_785 = arith.constant 16 : index
    %479 = vector.load %arg9[%c24_784, %c16_785] : memref<32x72xf32, #tpu.memory_space<vmem>>, vector<1x8xf32>
    tpu.vector_store %arg9[%c24_784, %c16_785], %478 {strides = array<i32>} : memref<32x72xf32, #tpu.memory_space<vmem>>, vector<1x8xf32>,
    %c150 = arith.constant 150 : index
    %c0_786 = arith.constant 0 : index
    %480 = vector.load %arg7[%c150, %c0_786] : memref<200x8xf32, #tpu.memory_space<vmem>>, vector<1x8xf32>
    %c24_787 = arith.constant 24 : index
    %c24_788 = arith.constant 24 : index
    %481 = vector.load %arg9[%c24_787, %c24_788] : memref<32x72xf32, #tpu.memory_space<vmem>>, vector<1x8xf32>
    tpu.vector_store %arg9[%c24_787, %c24_788], %480 {strides = array<i32>} : memref<32x72xf32, #tpu.memory_space<vmem>>, vector<1x8xf32>,
    %c151_789 = arith.constant 151 : index
    %c0_790 = arith.constant 0 : index
    %482 = vector.load %arg7[%c151_789, %c0_790] : memref<200x8xf32, #tpu.memory_space<vmem>>, vector<1x8xf32>
    %c24_791 = arith.constant 24 : index
    %c32_792 = arith.constant 32 : index
    %483 = vector.load %arg9[%c24_791, %c32_792] : memref<32x72xf32, #tpu.memory_space<vmem>>, vector<1x8xf32>
    tpu.vector_store %arg9[%c24_791, %c32_792], %482 {strides = array<i32>} : memref<32x72xf32, #tpu.memory_space<vmem>>, vector<1x8xf32>,
    %c152 = arith.constant 152 : index
    %c0_793 = arith.constant 0 : index
    %484 = vector.load %arg7[%c152, %c0_793] : memref<200x8xf32, #tpu.memory_space<vmem>>, vector<1x8xf32>
    %c24_794 = arith.constant 24 : index
    %c40_795 = arith.constant 40 : index
    %485 = vector.load %arg9[%c24_794, %c40_795] : memref<32x72xf32, #tpu.memory_space<vmem>>, vector<1x8xf32>
    tpu.vector_store %arg9[%c24_794, %c40_795], %484 {strides = array<i32>} : memref<32x72xf32, #tpu.memory_space<vmem>>, vector<1x8xf32>,
    %c160 = arith.constant 160 : index
    %c0_796 = arith.constant 0 : index
    %486 = vector.load %arg7[%c160, %c0_796] : memref<200x8xf32, #tpu.memory_space<vmem>>, vector<1x8xf32>
    %c24_797 = arith.constant 24 : index
    %c48_798 = arith.constant 48 : index
    %487 = vector.load %arg9[%c24_797, %c48_798] : memref<32x72xf32, #tpu.memory_space<vmem>>, vector<1x8xf32>
    tpu.vector_store %arg9[%c24_797, %c48_798], %486 {strides = array<i32>} : memref<32x72xf32, #tpu.memory_space<vmem>>, vector<1x8xf32>,
    %c161_799 = arith.constant 161 : index
    %c0_800 = arith.constant 0 : index
    %488 = vector.load %arg7[%c161_799, %c0_800] : memref<200x8xf32, #tpu.memory_space<vmem>>, vector<1x8xf32>
    %c24_801 = arith.constant 24 : index
    %c56_802 = arith.constant 56 : index
    %489 = vector.load %arg9[%c24_801, %c56_802] : memref<32x72xf32, #tpu.memory_space<vmem>>, vector<1x8xf32>
    tpu.vector_store %arg9[%c24_801, %c56_802], %488 {strides = array<i32>} : memref<32x72xf32, #tpu.memory_space<vmem>>, vector<1x8xf32>,
    %c162 = arith.constant 162 : index
    %c0_803 = arith.constant 0 : index
    %490 = vector.load %arg7[%c162, %c0_803] : memref<200x8xf32, #tpu.memory_space<vmem>>, vector<1x8xf32>
    %c24_804 = arith.constant 24 : index
    %c64_805 = arith.constant 64 : index
    %491 = vector.load %arg9[%c24_804, %c64_805] : memref<32x72xf32, #tpu.memory_space<vmem>>, vector<1x8xf32>
    tpu.vector_store %arg9[%c24_804, %c64_805], %490 {strides = array<i32>} : memref<32x72xf32, #tpu.memory_space<vmem>>, vector<1x8xf32>,
    %c142_806 = arith.constant 142 : index
    %c0_807 = arith.constant 0 : index
    %492 = vector.load %arg7[%c142_806, %c0_807] : memref<200x8xf32, #tpu.memory_space<vmem>>, vector<1x8xf32>
    %c25_808 = arith.constant 25 : index
    %c0_809 = arith.constant 0 : index
    %493 = vector.load %arg9[%c25_808, %c0_809] : memref<32x72xf32, #tpu.memory_space<vmem>>, vector<1x8xf32>
    tpu.vector_store %arg9[%c25_808, %c0_809], %492 {strides = array<i32>} : memref<32x72xf32, #tpu.memory_space<vmem>>, vector<1x8xf32>,
    %c143_810 = arith.constant 143 : index
    %c0_811 = arith.constant 0 : index
    %494 = vector.load %arg7[%c143_810, %c0_811] : memref<200x8xf32, #tpu.memory_space<vmem>>, vector<1x8xf32>
    %c25_812 = arith.constant 25 : index
    %c8_813 = arith.constant 8 : index
    %495 = vector.load %arg9[%c25_812, %c8_813] : memref<32x72xf32, #tpu.memory_space<vmem>>, vector<1x8xf32>
    tpu.vector_store %arg9[%c25_812, %c8_813], %494 {strides = array<i32>} : memref<32x72xf32, #tpu.memory_space<vmem>>, vector<1x8xf32>,
    %c144_814 = arith.constant 144 : index
    %c0_815 = arith.constant 0 : index
    %496 = vector.load %arg7[%c144_814, %c0_815] : memref<200x8xf32, #tpu.memory_space<vmem>>, vector<1x8xf32>
    %c25_816 = arith.constant 25 : index
    %c16_817 = arith.constant 16 : index
    %497 = vector.load %arg9[%c25_816, %c16_817] : memref<32x72xf32, #tpu.memory_space<vmem>>, vector<1x8xf32>
    tpu.vector_store %arg9[%c25_816, %c16_817], %496 {strides = array<i32>} : memref<32x72xf32, #tpu.memory_space<vmem>>, vector<1x8xf32>,
    %c152_818 = arith.constant 152 : index
    %c0_819 = arith.constant 0 : index
    %498 = vector.load %arg7[%c152_818, %c0_819] : memref<200x8xf32, #tpu.memory_space<vmem>>, vector<1x8xf32>
    %c25_820 = arith.constant 25 : index
    %c24_821 = arith.constant 24 : index
    %499 = vector.load %arg9[%c25_820, %c24_821] : memref<32x72xf32, #tpu.memory_space<vmem>>, vector<1x8xf32>
    tpu.vector_store %arg9[%c25_820, %c24_821], %498 {strides = array<i32>} : memref<32x72xf32, #tpu.memory_space<vmem>>, vector<1x8xf32>,
    %c153 = arith.constant 153 : index
    %c0_822 = arith.constant 0 : index
    %500 = vector.load %arg7[%c153, %c0_822] : memref<200x8xf32, #tpu.memory_space<vmem>>, vector<1x8xf32>
    %c25_823 = arith.constant 25 : index
    %c32_824 = arith.constant 32 : index
    %501 = vector.load %arg9[%c25_823, %c32_824] : memref<32x72xf32, #tpu.memory_space<vmem>>, vector<1x8xf32>
    tpu.vector_store %arg9[%c25_823, %c32_824], %500 {strides = array<i32>} : memref<32x72xf32, #tpu.memory_space<vmem>>, vector<1x8xf32>,
    %c154 = arith.constant 154 : index
    %c0_825 = arith.constant 0 : index
    %502 = vector.load %arg7[%c154, %c0_825] : memref<200x8xf32, #tpu.memory_space<vmem>>, vector<1x8xf32>
    %c25_826 = arith.constant 25 : index
    %c40_827 = arith.constant 40 : index
    %503 = vector.load %arg9[%c25_826, %c40_827] : memref<32x72xf32, #tpu.memory_space<vmem>>, vector<1x8xf32>
    tpu.vector_store %arg9[%c25_826, %c40_827], %502 {strides = array<i32>} : memref<32x72xf32, #tpu.memory_space<vmem>>, vector<1x8xf32>,
    %c162_828 = arith.constant 162 : index
    %c0_829 = arith.constant 0 : index
    %504 = vector.load %arg7[%c162_828, %c0_829] : memref<200x8xf32, #tpu.memory_space<vmem>>, vector<1x8xf32>
    %c25_830 = arith.constant 25 : index
    %c48_831 = arith.constant 48 : index
    %505 = vector.load %arg9[%c25_830, %c48_831] : memref<32x72xf32, #tpu.memory_space<vmem>>, vector<1x8xf32>
    tpu.vector_store %arg9[%c25_830, %c48_831], %504 {strides = array<i32>} : memref<32x72xf32, #tpu.memory_space<vmem>>, vector<1x8xf32>,
    %c163 = arith.constant 163 : index
    %c0_832 = arith.constant 0 : index
    %506 = vector.load %arg7[%c163, %c0_832] : memref<200x8xf32, #tpu.memory_space<vmem>>, vector<1x8xf32>
    %c25_833 = arith.constant 25 : index
    %c56_834 = arith.constant 56 : index
    %507 = vector.load %arg9[%c25_833, %c56_834] : memref<32x72xf32, #tpu.memory_space<vmem>>, vector<1x8xf32>
    tpu.vector_store %arg9[%c25_833, %c56_834], %506 {strides = array<i32>} : memref<32x72xf32, #tpu.memory_space<vmem>>, vector<1x8xf32>,
    %c164 = arith.constant 164 : index
    %c0_835 = arith.constant 0 : index
    %508 = vector.load %arg7[%c164, %c0_835] : memref<200x8xf32, #tpu.memory_space<vmem>>, vector<1x8xf32>
    %c25_836 = arith.constant 25 : index
    %c64_837 = arith.constant 64 : index
    %509 = vector.load %arg9[%c25_836, %c64_837] : memref<32x72xf32, #tpu.memory_space<vmem>>, vector<1x8xf32>
    tpu.vector_store %arg9[%c25_836, %c64_837], %508 {strides = array<i32>} : memref<32x72xf32, #tpu.memory_space<vmem>>, vector<1x8xf32>,
    %c144_838 = arith.constant 144 : index
    %c0_839 = arith.constant 0 : index
    %510 = vector.load %arg7[%c144_838, %c0_839] : memref<200x8xf32, #tpu.memory_space<vmem>>, vector<1x8xf32>
    %c26_840 = arith.constant 26 : index
    %c0_841 = arith.constant 0 : index
    %511 = vector.load %arg9[%c26_840, %c0_841] : memref<32x72xf32, #tpu.memory_space<vmem>>, vector<1x8xf32>
    tpu.vector_store %arg9[%c26_840, %c0_841], %510 {strides = array<i32>} : memref<32x72xf32, #tpu.memory_space<vmem>>, vector<1x8xf32>,
    %c145_842 = arith.constant 145 : index
    %c0_843 = arith.constant 0 : index
    %512 = vector.load %arg7[%c145_842, %c0_843] : memref<200x8xf32, #tpu.memory_space<vmem>>, vector<1x8xf32>
    %c26_844 = arith.constant 26 : index
    %c8_845 = arith.constant 8 : index
    %513 = vector.load %arg9[%c26_844, %c8_845] : memref<32x72xf32, #tpu.memory_space<vmem>>, vector<1x8xf32>
    tpu.vector_store %arg9[%c26_844, %c8_845], %512 {strides = array<i32>} : memref<32x72xf32, #tpu.memory_space<vmem>>, vector<1x8xf32>,
    %c146_846 = arith.constant 146 : index
    %c0_847 = arith.constant 0 : index
    %514 = vector.load %arg7[%c146_846, %c0_847] : memref<200x8xf32, #tpu.memory_space<vmem>>, vector<1x8xf32>
    %c26_848 = arith.constant 26 : index
    %c16_849 = arith.constant 16 : index
    %515 = vector.load %arg9[%c26_848, %c16_849] : memref<32x72xf32, #tpu.memory_space<vmem>>, vector<1x8xf32>
    tpu.vector_store %arg9[%c26_848, %c16_849], %514 {strides = array<i32>} : memref<32x72xf32, #tpu.memory_space<vmem>>, vector<1x8xf32>,
    %c154_850 = arith.constant 154 : index
    %c0_851 = arith.constant 0 : index
    %516 = vector.load %arg7[%c154_850, %c0_851] : memref<200x8xf32, #tpu.memory_space<vmem>>, vector<1x8xf32>
    %c26_852 = arith.constant 26 : index
    %c24_853 = arith.constant 24 : index
    %517 = vector.load %arg9[%c26_852, %c24_853] : memref<32x72xf32, #tpu.memory_space<vmem>>, vector<1x8xf32>
    tpu.vector_store %arg9[%c26_852, %c24_853], %516 {strides = array<i32>} : memref<32x72xf32, #tpu.memory_space<vmem>>, vector<1x8xf32>,
    %c155 = arith.constant 155 : index
    %c0_854 = arith.constant 0 : index
    %518 = vector.load %arg7[%c155, %c0_854] : memref<200x8xf32, #tpu.memory_space<vmem>>, vector<1x8xf32>
    %c26_855 = arith.constant 26 : index
    %c32_856 = arith.constant 32 : index
    %519 = vector.load %arg9[%c26_855, %c32_856] : memref<32x72xf32, #tpu.memory_space<vmem>>, vector<1x8xf32>
    tpu.vector_store %arg9[%c26_855, %c32_856], %518 {strides = array<i32>} : memref<32x72xf32, #tpu.memory_space<vmem>>, vector<1x8xf32>,
    %c156 = arith.constant 156 : index
    %c0_857 = arith.constant 0 : index
    %520 = vector.load %arg7[%c156, %c0_857] : memref<200x8xf32, #tpu.memory_space<vmem>>, vector<1x8xf32>
    %c26_858 = arith.constant 26 : index
    %c40_859 = arith.constant 40 : index
    %521 = vector.load %arg9[%c26_858, %c40_859] : memref<32x72xf32, #tpu.memory_space<vmem>>, vector<1x8xf32>
    tpu.vector_store %arg9[%c26_858, %c40_859], %520 {strides = array<i32>} : memref<32x72xf32, #tpu.memory_space<vmem>>, vector<1x8xf32>,
    %c164_860 = arith.constant 164 : index
    %c0_861 = arith.constant 0 : index
    %522 = vector.load %arg7[%c164_860, %c0_861] : memref<200x8xf32, #tpu.memory_space<vmem>>, vector<1x8xf32>
    %c26_862 = arith.constant 26 : index
    %c48_863 = arith.constant 48 : index
    %523 = vector.load %arg9[%c26_862, %c48_863] : memref<32x72xf32, #tpu.memory_space<vmem>>, vector<1x8xf32>
    tpu.vector_store %arg9[%c26_862, %c48_863], %522 {strides = array<i32>} : memref<32x72xf32, #tpu.memory_space<vmem>>, vector<1x8xf32>,
    %c165 = arith.constant 165 : index
    %c0_864 = arith.constant 0 : index
    %524 = vector.load %arg7[%c165, %c0_864] : memref<200x8xf32, #tpu.memory_space<vmem>>, vector<1x8xf32>
    %c26_865 = arith.constant 26 : index
    %c56_866 = arith.constant 56 : index
    %525 = vector.load %arg9[%c26_865, %c56_866] : memref<32x72xf32, #tpu.memory_space<vmem>>, vector<1x8xf32>
    tpu.vector_store %arg9[%c26_865, %c56_866], %524 {strides = array<i32>} : memref<32x72xf32, #tpu.memory_space<vmem>>, vector<1x8xf32>,
    %c166 = arith.constant 166 : index
    %c0_867 = arith.constant 0 : index
    %526 = vector.load %arg7[%c166, %c0_867] : memref<200x8xf32, #tpu.memory_space<vmem>>, vector<1x8xf32>
    %c26_868 = arith.constant 26 : index
    %c64_869 = arith.constant 64 : index
    %527 = vector.load %arg9[%c26_868, %c64_869] : memref<32x72xf32, #tpu.memory_space<vmem>>, vector<1x8xf32>
    tpu.vector_store %arg9[%c26_868, %c64_869], %526 {strides = array<i32>} : memref<32x72xf32, #tpu.memory_space<vmem>>, vector<1x8xf32>,
    %c146_870 = arith.constant 146 : index
    %c0_871 = arith.constant 0 : index
    %528 = vector.load %arg7[%c146_870, %c0_871] : memref<200x8xf32, #tpu.memory_space<vmem>>, vector<1x8xf32>
    %c27_872 = arith.constant 27 : index
    %c0_873 = arith.constant 0 : index
    %529 = vector.load %arg9[%c27_872, %c0_873] : memref<32x72xf32, #tpu.memory_space<vmem>>, vector<1x8xf32>
    tpu.vector_store %arg9[%c27_872, %c0_873], %528 {strides = array<i32>} : memref<32x72xf32, #tpu.memory_space<vmem>>, vector<1x8xf32>,
    %c147_874 = arith.constant 147 : index
    %c0_875 = arith.constant 0 : index
    %530 = vector.load %arg7[%c147_874, %c0_875] : memref<200x8xf32, #tpu.memory_space<vmem>>, vector<1x8xf32>
    %c27_876 = arith.constant 27 : index
    %c8_877 = arith.constant 8 : index
    %531 = vector.load %arg9[%c27_876, %c8_877] : memref<32x72xf32, #tpu.memory_space<vmem>>, vector<1x8xf32>
    tpu.vector_store %arg9[%c27_876, %c8_877], %530 {strides = array<i32>} : memref<32x72xf32, #tpu.memory_space<vmem>>, vector<1x8xf32>,
    %c148_878 = arith.constant 148 : index
    %c0_879 = arith.constant 0 : index
    %532 = vector.load %arg7[%c148_878, %c0_879] : memref<200x8xf32, #tpu.memory_space<vmem>>, vector<1x8xf32>
    %c27_880 = arith.constant 27 : index
    %c16_881 = arith.constant 16 : index
    %533 = vector.load %arg9[%c27_880, %c16_881] : memref<32x72xf32, #tpu.memory_space<vmem>>, vector<1x8xf32>
    tpu.vector_store %arg9[%c27_880, %c16_881], %532 {strides = array<i32>} : memref<32x72xf32, #tpu.memory_space<vmem>>, vector<1x8xf32>,
    %c156_882 = arith.constant 156 : index
    %c0_883 = arith.constant 0 : index
    %534 = vector.load %arg7[%c156_882, %c0_883] : memref<200x8xf32, #tpu.memory_space<vmem>>, vector<1x8xf32>
    %c27_884 = arith.constant 27 : index
    %c24_885 = arith.constant 24 : index
    %535 = vector.load %arg9[%c27_884, %c24_885] : memref<32x72xf32, #tpu.memory_space<vmem>>, vector<1x8xf32>
    tpu.vector_store %arg9[%c27_884, %c24_885], %534 {strides = array<i32>} : memref<32x72xf32, #tpu.memory_space<vmem>>, vector<1x8xf32>,
    %c157 = arith.constant 157 : index
    %c0_886 = arith.constant 0 : index
    %536 = vector.load %arg7[%c157, %c0_886] : memref<200x8xf32, #tpu.memory_space<vmem>>, vector<1x8xf32>
    %c27_887 = arith.constant 27 : index
    %c32_888 = arith.constant 32 : index
    %537 = vector.load %arg9[%c27_887, %c32_888] : memref<32x72xf32, #tpu.memory_space<vmem>>, vector<1x8xf32>
    tpu.vector_store %arg9[%c27_887, %c32_888], %536 {strides = array<i32>} : memref<32x72xf32, #tpu.memory_space<vmem>>, vector<1x8xf32>,
    %c158 = arith.constant 158 : index
    %c0_889 = arith.constant 0 : index
    %538 = vector.load %arg7[%c158, %c0_889] : memref<200x8xf32, #tpu.memory_space<vmem>>, vector<1x8xf32>
    %c27_890 = arith.constant 27 : index
    %c40_891 = arith.constant 40 : index
    %539 = vector.load %arg9[%c27_890, %c40_891] : memref<32x72xf32, #tpu.memory_space<vmem>>, vector<1x8xf32>
    tpu.vector_store %arg9[%c27_890, %c40_891], %538 {strides = array<i32>} : memref<32x72xf32, #tpu.memory_space<vmem>>, vector<1x8xf32>,
    %c166_892 = arith.constant 166 : index
    %c0_893 = arith.constant 0 : index
    %540 = vector.load %arg7[%c166_892, %c0_893] : memref<200x8xf32, #tpu.memory_space<vmem>>, vector<1x8xf32>
    %c27_894 = arith.constant 27 : index
    %c48_895 = arith.constant 48 : index
    %541 = vector.load %arg9[%c27_894, %c48_895] : memref<32x72xf32, #tpu.memory_space<vmem>>, vector<1x8xf32>
    tpu.vector_store %arg9[%c27_894, %c48_895], %540 {strides = array<i32>} : memref<32x72xf32, #tpu.memory_space<vmem>>, vector<1x8xf32>,
    %c167 = arith.constant 167 : index
    %c0_896 = arith.constant 0 : index
    %542 = vector.load %arg7[%c167, %c0_896] : memref<200x8xf32, #tpu.memory_space<vmem>>, vector<1x8xf32>
    %c27_897 = arith.constant 27 : index
    %c56_898 = arith.constant 56 : index
    %543 = vector.load %arg9[%c27_897, %c56_898] : memref<32x72xf32, #tpu.memory_space<vmem>>, vector<1x8xf32>
    tpu.vector_store %arg9[%c27_897, %c56_898], %542 {strides = array<i32>} : memref<32x72xf32, #tpu.memory_space<vmem>>, vector<1x8xf32>,
    %c168 = arith.constant 168 : index
    %c0_899 = arith.constant 0 : index
    %544 = vector.load %arg7[%c168, %c0_899] : memref<200x8xf32, #tpu.memory_space<vmem>>, vector<1x8xf32>
    %c27_900 = arith.constant 27 : index
    %c64_901 = arith.constant 64 : index
    %545 = vector.load %arg9[%c27_900, %c64_901] : memref<32x72xf32, #tpu.memory_space<vmem>>, vector<1x8xf32>
    tpu.vector_store %arg9[%c27_900, %c64_901], %544 {strides = array<i32>} : memref<32x72xf32, #tpu.memory_space<vmem>>, vector<1x8xf32>,
    %c160_902 = arith.constant 160 : index
    %c0_903 = arith.constant 0 : index
    %546 = vector.load %arg7[%c160_902, %c0_903] : memref<200x8xf32, #tpu.memory_space<vmem>>, vector<1x8xf32>
    %c28_904 = arith.constant 28 : index
    %c0_905 = arith.constant 0 : index
    %547 = vector.load %arg9[%c28_904, %c0_905] : memref<32x72xf32, #tpu.memory_space<vmem>>, vector<1x8xf32>
    tpu.vector_store %arg9[%c28_904, %c0_905], %546 {strides = array<i32>} : memref<32x72xf32, #tpu.memory_space<vmem>>, vector<1x8xf32>,
    %c161_906 = arith.constant 161 : index
    %c0_907 = arith.constant 0 : index
    %548 = vector.load %arg7[%c161_906, %c0_907] : memref<200x8xf32, #tpu.memory_space<vmem>>, vector<1x8xf32>
    %c28_908 = arith.constant 28 : index
    %c8_909 = arith.constant 8 : index
    %549 = vector.load %arg9[%c28_908, %c8_909] : memref<32x72xf32, #tpu.memory_space<vmem>>, vector<1x8xf32>
    tpu.vector_store %arg9[%c28_908, %c8_909], %548 {strides = array<i32>} : memref<32x72xf32, #tpu.memory_space<vmem>>, vector<1x8xf32>,
    %c162_910 = arith.constant 162 : index
    %c0_911 = arith.constant 0 : index
    %550 = vector.load %arg7[%c162_910, %c0_911] : memref<200x8xf32, #tpu.memory_space<vmem>>, vector<1x8xf32>
    %c28_912 = arith.constant 28 : index
    %c16_913 = arith.constant 16 : index
    %551 = vector.load %arg9[%c28_912, %c16_913] : memref<32x72xf32, #tpu.memory_space<vmem>>, vector<1x8xf32>
    tpu.vector_store %arg9[%c28_912, %c16_913], %550 {strides = array<i32>} : memref<32x72xf32, #tpu.memory_space<vmem>>, vector<1x8xf32>,
    %c170 = arith.constant 170 : index
    %c0_914 = arith.constant 0 : index
    %552 = vector.load %arg7[%c170, %c0_914] : memref<200x8xf32, #tpu.memory_space<vmem>>, vector<1x8xf32>
    %c28_915 = arith.constant 28 : index
    %c24_916 = arith.constant 24 : index
    %553 = vector.load %arg9[%c28_915, %c24_916] : memref<32x72xf32, #tpu.memory_space<vmem>>, vector<1x8xf32>
    tpu.vector_store %arg9[%c28_915, %c24_916], %552 {strides = array<i32>} : memref<32x72xf32, #tpu.memory_space<vmem>>, vector<1x8xf32>,
    %c171_917 = arith.constant 171 : index
    %c0_918 = arith.constant 0 : index
    %554 = vector.load %arg7[%c171_917, %c0_918] : memref<200x8xf32, #tpu.memory_space<vmem>>, vector<1x8xf32>
    %c28_919 = arith.constant 28 : index
    %c32_920 = arith.constant 32 : index
    %555 = vector.load %arg9[%c28_919, %c32_920] : memref<32x72xf32, #tpu.memory_space<vmem>>, vector<1x8xf32>
    tpu.vector_store %arg9[%c28_919, %c32_920], %554 {strides = array<i32>} : memref<32x72xf32, #tpu.memory_space<vmem>>, vector<1x8xf32>,
    %c172 = arith.constant 172 : index
    %c0_921 = arith.constant 0 : index
    %556 = vector.load %arg7[%c172, %c0_921] : memref<200x8xf32, #tpu.memory_space<vmem>>, vector<1x8xf32>
    %c28_922 = arith.constant 28 : index
    %c40_923 = arith.constant 40 : index
    %557 = vector.load %arg9[%c28_922, %c40_923] : memref<32x72xf32, #tpu.memory_space<vmem>>, vector<1x8xf32>
    tpu.vector_store %arg9[%c28_922, %c40_923], %556 {strides = array<i32>} : memref<32x72xf32, #tpu.memory_space<vmem>>, vector<1x8xf32>,
    %c180 = arith.constant 180 : index
    %c0_924 = arith.constant 0 : index
    %558 = vector.load %arg7[%c180, %c0_924] : memref<200x8xf32, #tpu.memory_space<vmem>>, vector<1x8xf32>
    %c28_925 = arith.constant 28 : index
    %c48_926 = arith.constant 48 : index
    %559 = vector.load %arg9[%c28_925, %c48_926] : memref<32x72xf32, #tpu.memory_space<vmem>>, vector<1x8xf32>
    tpu.vector_store %arg9[%c28_925, %c48_926], %558 {strides = array<i32>} : memref<32x72xf32, #tpu.memory_space<vmem>>, vector<1x8xf32>,
    %c181_927 = arith.constant 181 : index
    %c0_928 = arith.constant 0 : index
    %560 = vector.load %arg7[%c181_927, %c0_928] : memref<200x8xf32, #tpu.memory_space<vmem>>, vector<1x8xf32>
    %c28_929 = arith.constant 28 : index
    %c56_930 = arith.constant 56 : index
    %561 = vector.load %arg9[%c28_929, %c56_930] : memref<32x72xf32, #tpu.memory_space<vmem>>, vector<1x8xf32>
    tpu.vector_store %arg9[%c28_929, %c56_930], %560 {strides = array<i32>} : memref<32x72xf32, #tpu.memory_space<vmem>>, vector<1x8xf32>,
    %c182 = arith.constant 182 : index
    %c0_931 = arith.constant 0 : index
    %562 = vector.load %arg7[%c182, %c0_931] : memref<200x8xf32, #tpu.memory_space<vmem>>, vector<1x8xf32>
    %c28_932 = arith.constant 28 : index
    %c64_933 = arith.constant 64 : index
    %563 = vector.load %arg9[%c28_932, %c64_933] : memref<32x72xf32, #tpu.memory_space<vmem>>, vector<1x8xf32>
    tpu.vector_store %arg9[%c28_932, %c64_933], %562 {strides = array<i32>} : memref<32x72xf32, #tpu.memory_space<vmem>>, vector<1x8xf32>,
    %c162_934 = arith.constant 162 : index
    %c0_935 = arith.constant 0 : index
    %564 = vector.load %arg7[%c162_934, %c0_935] : memref<200x8xf32, #tpu.memory_space<vmem>>, vector<1x8xf32>
    %c29 = arith.constant 29 : index
    %c0_936 = arith.constant 0 : index
    %565 = vector.load %arg9[%c29, %c0_936] : memref<32x72xf32, #tpu.memory_space<vmem>>, vector<1x8xf32>
    tpu.vector_store %arg9[%c29, %c0_936], %564 {strides = array<i32>} : memref<32x72xf32, #tpu.memory_space<vmem>>, vector<1x8xf32>,
    %c163_937 = arith.constant 163 : index
    %c0_938 = arith.constant 0 : index
    %566 = vector.load %arg7[%c163_937, %c0_938] : memref<200x8xf32, #tpu.memory_space<vmem>>, vector<1x8xf32>
    %c29_939 = arith.constant 29 : index
    %c8_940 = arith.constant 8 : index
    %567 = vector.load %arg9[%c29_939, %c8_940] : memref<32x72xf32, #tpu.memory_space<vmem>>, vector<1x8xf32>
    tpu.vector_store %arg9[%c29_939, %c8_940], %566 {strides = array<i32>} : memref<32x72xf32, #tpu.memory_space<vmem>>, vector<1x8xf32>,
    %c164_941 = arith.constant 164 : index
    %c0_942 = arith.constant 0 : index
    %568 = vector.load %arg7[%c164_941, %c0_942] : memref<200x8xf32, #tpu.memory_space<vmem>>, vector<1x8xf32>
    %c29_943 = arith.constant 29 : index
    %c16_944 = arith.constant 16 : index
    %569 = vector.load %arg9[%c29_943, %c16_944] : memref<32x72xf32, #tpu.memory_space<vmem>>, vector<1x8xf32>
    tpu.vector_store %arg9[%c29_943, %c16_944], %568 {strides = array<i32>} : memref<32x72xf32, #tpu.memory_space<vmem>>, vector<1x8xf32>,
    %c172_945 = arith.constant 172 : index
    %c0_946 = arith.constant 0 : index
    %570 = vector.load %arg7[%c172_945, %c0_946] : memref<200x8xf32, #tpu.memory_space<vmem>>, vector<1x8xf32>
    %c29_947 = arith.constant 29 : index
    %c24_948 = arith.constant 24 : index
    %571 = vector.load %arg9[%c29_947, %c24_948] : memref<32x72xf32, #tpu.memory_space<vmem>>, vector<1x8xf32>
    tpu.vector_store %arg9[%c29_947, %c24_948], %570 {strides = array<i32>} : memref<32x72xf32, #tpu.memory_space<vmem>>, vector<1x8xf32>,
    %c173 = arith.constant 173 : index
    %c0_949 = arith.constant 0 : index
    %572 = vector.load %arg7[%c173, %c0_949] : memref<200x8xf32, #tpu.memory_space<vmem>>, vector<1x8xf32>
    %c29_950 = arith.constant 29 : index
    %c32_951 = arith.constant 32 : index
    %573 = vector.load %arg9[%c29_950, %c32_951] : memref<32x72xf32, #tpu.memory_space<vmem>>, vector<1x8xf32>
    tpu.vector_store %arg9[%c29_950, %c32_951], %572 {strides = array<i32>} : memref<32x72xf32, #tpu.memory_space<vmem>>, vector<1x8xf32>,
    %c174 = arith.constant 174 : index
    %c0_952 = arith.constant 0 : index
    %574 = vector.load %arg7[%c174, %c0_952] : memref<200x8xf32, #tpu.memory_space<vmem>>, vector<1x8xf32>
    %c29_953 = arith.constant 29 : index
    %c40_954 = arith.constant 40 : index
    %575 = vector.load %arg9[%c29_953, %c40_954] : memref<32x72xf32, #tpu.memory_space<vmem>>, vector<1x8xf32>
    tpu.vector_store %arg9[%c29_953, %c40_954], %574 {strides = array<i32>} : memref<32x72xf32, #tpu.memory_space<vmem>>, vector<1x8xf32>,
    %c182_955 = arith.constant 182 : index
    %c0_956 = arith.constant 0 : index
    %576 = vector.load %arg7[%c182_955, %c0_956] : memref<200x8xf32, #tpu.memory_space<vmem>>, vector<1x8xf32>
    %c29_957 = arith.constant 29 : index
    %c48_958 = arith.constant 48 : index
    %577 = vector.load %arg9[%c29_957, %c48_958] : memref<32x72xf32, #tpu.memory_space<vmem>>, vector<1x8xf32>
    tpu.vector_store %arg9[%c29_957, %c48_958], %576 {strides = array<i32>} : memref<32x72xf32, #tpu.memory_space<vmem>>, vector<1x8xf32>,
    %c183 = arith.constant 183 : index
    %c0_959 = arith.constant 0 : index
    %578 = vector.load %arg7[%c183, %c0_959] : memref<200x8xf32, #tpu.memory_space<vmem>>, vector<1x8xf32>
    %c29_960 = arith.constant 29 : index
    %c56_961 = arith.constant 56 : index
    %579 = vector.load %arg9[%c29_960, %c56_961] : memref<32x72xf32, #tpu.memory_space<vmem>>, vector<1x8xf32>
    tpu.vector_store %arg9[%c29_960, %c56_961], %578 {strides = array<i32>} : memref<32x72xf32, #tpu.memory_space<vmem>>, vector<1x8xf32>,
    %c184 = arith.constant 184 : index
    %c0_962 = arith.constant 0 : index
    %580 = vector.load %arg7[%c184, %c0_962] : memref<200x8xf32, #tpu.memory_space<vmem>>, vector<1x8xf32>
    %c29_963 = arith.constant 29 : index
    %c64_964 = arith.constant 64 : index
    %581 = vector.load %arg9[%c29_963, %c64_964] : memref<32x72xf32, #tpu.memory_space<vmem>>, vector<1x8xf32>
    tpu.vector_store %arg9[%c29_963, %c64_964], %580 {strides = array<i32>} : memref<32x72xf32, #tpu.memory_space<vmem>>, vector<1x8xf32>,
    %c164_965 = arith.constant 164 : index
    %c0_966 = arith.constant 0 : index
    %582 = vector.load %arg7[%c164_965, %c0_966] : memref<200x8xf32, #tpu.memory_space<vmem>>, vector<1x8xf32>
    %c30_967 = arith.constant 30 : index
    %c0_968 = arith.constant 0 : index
    %583 = vector.load %arg9[%c30_967, %c0_968] : memref<32x72xf32, #tpu.memory_space<vmem>>, vector<1x8xf32>
    tpu.vector_store %arg9[%c30_967, %c0_968], %582 {strides = array<i32>} : memref<32x72xf32, #tpu.memory_space<vmem>>, vector<1x8xf32>,
    %c165_969 = arith.constant 165 : index
    %c0_970 = arith.constant 0 : index
    %584 = vector.load %arg7[%c165_969, %c0_970] : memref<200x8xf32, #tpu.memory_space<vmem>>, vector<1x8xf32>
    %c30_971 = arith.constant 30 : index
    %c8_972 = arith.constant 8 : index
    %585 = vector.load %arg9[%c30_971, %c8_972] : memref<32x72xf32, #tpu.memory_space<vmem>>, vector<1x8xf32>
    tpu.vector_store %arg9[%c30_971, %c8_972], %584 {strides = array<i32>} : memref<32x72xf32, #tpu.memory_space<vmem>>, vector<1x8xf32>,
    %c166_973 = arith.constant 166 : index
    %c0_974 = arith.constant 0 : index
    %586 = vector.load %arg7[%c166_973, %c0_974] : memref<200x8xf32, #tpu.memory_space<vmem>>, vector<1x8xf32>
    %c30_975 = arith.constant 30 : index
    %c16_976 = arith.constant 16 : index
    %587 = vector.load %arg9[%c30_975, %c16_976] : memref<32x72xf32, #tpu.memory_space<vmem>>, vector<1x8xf32>
    tpu.vector_store %arg9[%c30_975, %c16_976], %586 {strides = array<i32>} : memref<32x72xf32, #tpu.memory_space<vmem>>, vector<1x8xf32>,
    %c174_977 = arith.constant 174 : index
    %c0_978 = arith.constant 0 : index
    %588 = vector.load %arg7[%c174_977, %c0_978] : memref<200x8xf32, #tpu.memory_space<vmem>>, vector<1x8xf32>
    %c30_979 = arith.constant 30 : index
    %c24_980 = arith.constant 24 : index
    %589 = vector.load %arg9[%c30_979, %c24_980] : memref<32x72xf32, #tpu.memory_space<vmem>>, vector<1x8xf32>
    tpu.vector_store %arg9[%c30_979, %c24_980], %588 {strides = array<i32>} : memref<32x72xf32, #tpu.memory_space<vmem>>, vector<1x8xf32>,
    %c175 = arith.constant 175 : index
    %c0_981 = arith.constant 0 : index
    %590 = vector.load %arg7[%c175, %c0_981] : memref<200x8xf32, #tpu.memory_space<vmem>>, vector<1x8xf32>
    %c30_982 = arith.constant 30 : index
    %c32_983 = arith.constant 32 : index
    %591 = vector.load %arg9[%c30_982, %c32_983] : memref<32x72xf32, #tpu.memory_space<vmem>>, vector<1x8xf32>
    tpu.vector_store %arg9[%c30_982, %c32_983], %590 {strides = array<i32>} : memref<32x72xf32, #tpu.memory_space<vmem>>, vector<1x8xf32>,
    %c176 = arith.constant 176 : index
    %c0_984 = arith.constant 0 : index
    %592 = vector.load %arg7[%c176, %c0_984] : memref<200x8xf32, #tpu.memory_space<vmem>>, vector<1x8xf32>
    %c30_985 = arith.constant 30 : index
    %c40_986 = arith.constant 40 : index
    %593 = vector.load %arg9[%c30_985, %c40_986] : memref<32x72xf32, #tpu.memory_space<vmem>>, vector<1x8xf32>
    tpu.vector_store %arg9[%c30_985, %c40_986], %592 {strides = array<i32>} : memref<32x72xf32, #tpu.memory_space<vmem>>, vector<1x8xf32>,
    %c184_987 = arith.constant 184 : index
    %c0_988 = arith.constant 0 : index
    %594 = vector.load %arg7[%c184_987, %c0_988] : memref<200x8xf32, #tpu.memory_space<vmem>>, vector<1x8xf32>
    %c30_989 = arith.constant 30 : index
    %c48_990 = arith.constant 48 : index
    %595 = vector.load %arg9[%c30_989, %c48_990] : memref<32x72xf32, #tpu.memory_space<vmem>>, vector<1x8xf32>
    tpu.vector_store %arg9[%c30_989, %c48_990], %594 {strides = array<i32>} : memref<32x72xf32, #tpu.memory_space<vmem>>, vector<1x8xf32>,
    %c185 = arith.constant 185 : index
    %c0_991 = arith.constant 0 : index
    %596 = vector.load %arg7[%c185, %c0_991] : memref<200x8xf32, #tpu.memory_space<vmem>>, vector<1x8xf32>
    %c30_992 = arith.constant 30 : index
    %c56_993 = arith.constant 56 : index
    %597 = vector.load %arg9[%c30_992, %c56_993] : memref<32x72xf32, #tpu.memory_space<vmem>>, vector<1x8xf32>
    tpu.vector_store %arg9[%c30_992, %c56_993], %596 {strides = array<i32>} : memref<32x72xf32, #tpu.memory_space<vmem>>, vector<1x8xf32>,
    %c186 = arith.constant 186 : index
    %c0_994 = arith.constant 0 : index
    %598 = vector.load %arg7[%c186, %c0_994] : memref<200x8xf32, #tpu.memory_space<vmem>>, vector<1x8xf32>
    %c30_995 = arith.constant 30 : index
    %c64_996 = arith.constant 64 : index
    %599 = vector.load %arg9[%c30_995, %c64_996] : memref<32x72xf32, #tpu.memory_space<vmem>>, vector<1x8xf32>
    tpu.vector_store %arg9[%c30_995, %c64_996], %598 {strides = array<i32>} : memref<32x72xf32, #tpu.memory_space<vmem>>, vector<1x8xf32>,
    %c166_997 = arith.constant 166 : index
    %c0_998 = arith.constant 0 : index
    %600 = vector.load %arg7[%c166_997, %c0_998] : memref<200x8xf32, #tpu.memory_space<vmem>>, vector<1x8xf32>
    %c31_999 = arith.constant 31 : index
    %c0_1000 = arith.constant 0 : index
    %601 = vector.load %arg9[%c31_999, %c0_1000] : memref<32x72xf32, #tpu.memory_space<vmem>>, vector<1x8xf32>
    tpu.vector_store %arg9[%c31_999, %c0_1000], %600 {strides = array<i32>} : memref<32x72xf32, #tpu.memory_space<vmem>>, vector<1x8xf32>,
    %c167_1001 = arith.constant 167 : index
    %c0_1002 = arith.constant 0 : index
    %602 = vector.load %arg7[%c167_1001, %c0_1002] : memref<200x8xf32, #tpu.memory_space<vmem>>, vector<1x8xf32>
    %c31_1003 = arith.constant 31 : index
    %c8_1004 = arith.constant 8 : index
    %603 = vector.load %arg9[%c31_1003, %c8_1004] : memref<32x72xf32, #tpu.memory_space<vmem>>, vector<1x8xf32>
    tpu.vector_store %arg9[%c31_1003, %c8_1004], %602 {strides = array<i32>} : memref<32x72xf32, #tpu.memory_space<vmem>>, vector<1x8xf32>,
    %c168_1005 = arith.constant 168 : index
    %c0_1006 = arith.constant 0 : index
    %604 = vector.load %arg7[%c168_1005, %c0_1006] : memref<200x8xf32, #tpu.memory_space<vmem>>, vector<1x8xf32>
    %c31_1007 = arith.constant 31 : index
    %c16_1008 = arith.constant 16 : index
    %605 = vector.load %arg9[%c31_1007, %c16_1008] : memref<32x72xf32, #tpu.memory_space<vmem>>, vector<1x8xf32>
    tpu.vector_store %arg9[%c31_1007, %c16_1008], %604 {strides = array<i32>} : memref<32x72xf32, #tpu.memory_space<vmem>>, vector<1x8xf32>,
    %c176_1009 = arith.constant 176 : index
    %c0_1010 = arith.constant 0 : index
    %606 = vector.load %arg7[%c176_1009, %c0_1010] : memref<200x8xf32, #tpu.memory_space<vmem>>, vector<1x8xf32>
    %c31_1011 = arith.constant 31 : index
    %c24_1012 = arith.constant 24 : index
    %607 = vector.load %arg9[%c31_1011, %c24_1012] : memref<32x72xf32, #tpu.memory_space<vmem>>, vector<1x8xf32>
    tpu.vector_store %arg9[%c31_1011, %c24_1012], %606 {strides = array<i32>} : memref<32x72xf32, #tpu.memory_space<vmem>>, vector<1x8xf32>,
    %c177 = arith.constant 177 : index
    %c0_1013 = arith.constant 0 : index
    %608 = vector.load %arg7[%c177, %c0_1013] : memref<200x8xf32, #tpu.memory_space<vmem>>, vector<1x8xf32>
    %c31_1014 = arith.constant 31 : index
    %c32_1015 = arith.constant 32 : index
    %609 = vector.load %arg9[%c31_1014, %c32_1015] : memref<32x72xf32, #tpu.memory_space<vmem>>, vector<1x8xf32>
    tpu.vector_store %arg9[%c31_1014, %c32_1015], %608 {strides = array<i32>} : memref<32x72xf32, #tpu.memory_space<vmem>>, vector<1x8xf32>,
    %c178 = arith.constant 178 : index
    %c0_1016 = arith.constant 0 : index
    %610 = vector.load %arg7[%c178, %c0_1016] : memref<200x8xf32, #tpu.memory_space<vmem>>, vector<1x8xf32>
    %c31_1017 = arith.constant 31 : index
    %c40_1018 = arith.constant 40 : index
    %611 = vector.load %arg9[%c31_1017, %c40_1018] : memref<32x72xf32, #tpu.memory_space<vmem>>, vector<1x8xf32>
    tpu.vector_store %arg9[%c31_1017, %c40_1018], %610 {strides = array<i32>} : memref<32x72xf32, #tpu.memory_space<vmem>>, vector<1x8xf32>,
    %c186_1019 = arith.constant 186 : index
    %c0_1020 = arith.constant 0 : index
    %612 = vector.load %arg7[%c186_1019, %c0_1020] : memref<200x8xf32, #tpu.memory_space<vmem>>, vector<1x8xf32>
    %c31_1021 = arith.constant 31 : index
    %c48_1022 = arith.constant 48 : index
    %613 = vector.load %arg9[%c31_1021, %c48_1022] : memref<32x72xf32, #tpu.memory_space<vmem>>, vector<1x8xf32>
    tpu.vector_store %arg9[%c31_1021, %c48_1022], %612 {strides = array<i32>} : memref<32x72xf32, #tpu.memory_space<vmem>>, vector<1x8xf32>,
    %c187 = arith.constant 187 : index
    %c0_1023 = arith.constant 0 : index
    %614 = vector.load %arg7[%c187, %c0_1023] : memref<200x8xf32, #tpu.memory_space<vmem>>, vector<1x8xf32>
    %c31_1024 = arith.constant 31 : index
    %c56_1025 = arith.constant 56 : index
    %615 = vector.load %arg9[%c31_1024, %c56_1025] : memref<32x72xf32, #tpu.memory_space<vmem>>, vector<1x8xf32>
    tpu.vector_store %arg9[%c31_1024, %c56_1025], %614 {strides = array<i32>} : memref<32x72xf32, #tpu.memory_space<vmem>>, vector<1x8xf32>,
    %c188 = arith.constant 188 : index
    %c0_1026 = arith.constant 0 : index
    %616 = vector.load %arg7[%c188, %c0_1026] : memref<200x8xf32, #tpu.memory_space<vmem>>, vector<1x8xf32>
    %c31_1027 = arith.constant 31 : index
    %c64_1028 = arith.constant 64 : index
    %617 = vector.load %arg9[%c31_1027, %c64_1028] : memref<32x72xf32, #tpu.memory_space<vmem>>, vector<1x8xf32>
    tpu.vector_store %arg9[%c31_1027, %c64_1028], %616 {strides = array<i32>} : memref<32x72xf32, #tpu.memory_space<vmem>>, vector<1x8xf32>,
    %c0_1029 = arith.constant 0 : index
    %c0_1030 = arith.constant 0 : index
    %618 = vector.load %arg9[%c0_1029, %c0_1030] : memref<32x72xf32, #tpu.memory_space<vmem>>, vector<32x72xf32>
    %c0_1031 = arith.constant 0 : index
    %c0_1032 = arith.constant 0 : index
    %619 = vector.load %arg2[%c0_1031, %c0_1032] : memref<72x16xf32, #tpu.memory_space<vmem>>, vector<72x16xf32>
    %cst_1033 = arith.constant dense<0.000000e+00> : vector<32x16xf32>
    %620 = tpu.matmul %618, %619, %cst_1033 {dimension_numbers = #tpu.dot_dimension_numbers<[1], [0], [0], [1], [0, 0, 1, 1], [], []>} : vector<32x72xf32>, vector<72x16xf32>, vector<32x16xf32> -> vector<32x16xf32>
    %c1_1034 = arith.constant 1 : index
    %c0_1035 = arith.constant 0 : index
    %621 = vector.load %arg5[%c1_1034, %c0_1035] : memref<4x32xf32, #tpu.memory_space<vmem>>, vector<1x16xf32>
    %622 = vector.broadcast %621 : vector<1x16xf32> to vector<32x16xf32>
    %623 = arith.addf %620, %622 : vector<32x16xf32>
    %cst_1036 = arith.constant 0.000000e+00 : f32
    %624 = vector.broadcast %cst_1036 : f32 to vector<32x16xf32>
    %625 = arith.maximumf %623, %624 : vector<32x16xf32>
    %cst_1037 = arith.constant 0.000000e+00 : f32
    %626 = vector.broadcast %cst_1037 : f32 to vector<72x16xf32>
    %c0_1038 = arith.constant 0 : index
    %c0_1039 = arith.constant 0 : index
    %627 = vector.load %arg8[%c0_1038, %c0_1039] : memref<72x16xf32, #tpu.memory_space<vmem>>, vector<72x16xf32>
    tpu.vector_store %arg8[%c0_1038, %c0_1039], %626 {strides = array<i32>} : memref<72x16xf32, #tpu.memory_space<vmem>>, vector<72x16xf32>,
    %628 = vector.extract_strided_slice %625 {offsets = [0, 0], sizes = [4, 16], strides = [1, 1]} : vector<32x16xf32> to vector<4x16xf32>
    %c7_1040 = arith.constant 7 : index
    %c0_1041 = arith.constant 0 : index
    %629 = vector.load %arg8[%c7_1040, %c0_1041] : memref<72x16xf32, #tpu.memory_space<vmem>>, vector<4x16xf32>
    tpu.vector_store %arg8[%c7_1040, %c0_1041], %628 {strides = array<i32>} : memref<72x16xf32, #tpu.memory_space<vmem>>, vector<4x16xf32>,
    %630 = vector.extract_strided_slice %625 {offsets = [4, 0], sizes = [4, 16], strides = [1, 1]} : vector<32x16xf32> to vector<4x16xf32>
    %c13_1042 = arith.constant 13 : index
    %c0_1043 = arith.constant 0 : index
    %631 = vector.load %arg8[%c13_1042, %c0_1043] : memref<72x16xf32, #tpu.memory_space<vmem>>, vector<4x16xf32>
    tpu.vector_store %arg8[%c13_1042, %c0_1043], %630 {strides = array<i32>} : memref<72x16xf32, #tpu.memory_space<vmem>>, vector<4x16xf32>,
    %632 = vector.extract_strided_slice %625 {offsets = [8, 0], sizes = [4, 16], strides = [1, 1]} : vector<32x16xf32> to vector<4x16xf32>
    %c19_1044 = arith.constant 19 : index
    %c0_1045 = arith.constant 0 : index
    %633 = vector.load %arg8[%c19_1044, %c0_1045] : memref<72x16xf32, #tpu.memory_space<vmem>>, vector<4x16xf32>
    tpu.vector_store %arg8[%c19_1044, %c0_1045], %632 {strides = array<i32>} : memref<72x16xf32, #tpu.memory_space<vmem>>, vector<4x16xf32>,
    %634 = vector.extract_strided_slice %625 {offsets = [12, 0], sizes = [4, 16], strides = [1, 1]} : vector<32x16xf32> to vector<4x16xf32>
    %c25_1046 = arith.constant 25 : index
    %c0_1047 = arith.constant 0 : index
    %635 = vector.load %arg8[%c25_1046, %c0_1047] : memref<72x16xf32, #tpu.memory_space<vmem>>, vector<4x16xf32>
    tpu.vector_store %arg8[%c25_1046, %c0_1047], %634 {strides = array<i32>} : memref<72x16xf32, #tpu.memory_space<vmem>>, vector<4x16xf32>,
    %636 = vector.extract_strided_slice %625 {offsets = [16, 0], sizes = [4, 16], strides = [1, 1]} : vector<32x16xf32> to vector<4x16xf32>
    %c43_1048 = arith.constant 43 : index
    %c0_1049 = arith.constant 0 : index
    %637 = vector.load %arg8[%c43_1048, %c0_1049] : memref<72x16xf32, #tpu.memory_space<vmem>>, vector<4x16xf32>
    tpu.vector_store %arg8[%c43_1048, %c0_1049], %636 {strides = array<i32>} : memref<72x16xf32, #tpu.memory_space<vmem>>, vector<4x16xf32>,
    %638 = vector.extract_strided_slice %625 {offsets = [20, 0], sizes = [4, 16], strides = [1, 1]} : vector<32x16xf32> to vector<4x16xf32>
    %c49 = arith.constant 49 : index
    %c0_1050 = arith.constant 0 : index
    %639 = vector.load %arg8[%c49, %c0_1050] : memref<72x16xf32, #tpu.memory_space<vmem>>, vector<4x16xf32>
    tpu.vector_store %arg8[%c49, %c0_1050], %638 {strides = array<i32>} : memref<72x16xf32, #tpu.memory_space<vmem>>, vector<4x16xf32>,
    %640 = vector.extract_strided_slice %625 {offsets = [24, 0], sizes = [4, 16], strides = [1, 1]} : vector<32x16xf32> to vector<4x16xf32>
    %c55_1051 = arith.constant 55 : index
    %c0_1052 = arith.constant 0 : index
    %641 = vector.load %arg8[%c55_1051, %c0_1052] : memref<72x16xf32, #tpu.memory_space<vmem>>, vector<4x16xf32>
    tpu.vector_store %arg8[%c55_1051, %c0_1052], %640 {strides = array<i32>} : memref<72x16xf32, #tpu.memory_space<vmem>>, vector<4x16xf32>,
    %642 = vector.extract_strided_slice %625 {offsets = [28, 0], sizes = [4, 16], strides = [1, 1]} : vector<32x16xf32> to vector<4x16xf32>
    %c61_1053 = arith.constant 61 : index
    %c0_1054 = arith.constant 0 : index
    %643 = vector.load %arg8[%c61_1053, %c0_1054] : memref<72x16xf32, #tpu.memory_space<vmem>>, vector<4x16xf32>
    tpu.vector_store %arg8[%c61_1053, %c0_1054], %642 {strides = array<i32>} : memref<72x16xf32, #tpu.memory_space<vmem>>, vector<4x16xf32>,
    %c0_1055 = arith.constant 0 : index
    %c0_1056 = arith.constant 0 : index
    %644 = vector.load %arg8[%c0_1055, %c0_1056] : memref<72x16xf32, #tpu.memory_space<vmem>>, vector<1x16xf32>
    %c0_1057 = arith.constant 0 : index
    %c0_1058 = arith.constant 0 : index
    %645 = vector.load %arg10[%c0_1057, %c0_1058] : memref<8x144xf32, #tpu.memory_space<vmem>>, vector<1x16xf32>
    tpu.vector_store %arg10[%c0_1057, %c0_1058], %644 {strides = array<i32>} : memref<8x144xf32, #tpu.memory_space<vmem>>, vector<1x16xf32>,
    %c1_1059 = arith.constant 1 : index
    %c0_1060 = arith.constant 0 : index
    %646 = vector.load %arg8[%c1_1059, %c0_1060] : memref<72x16xf32, #tpu.memory_space<vmem>>, vector<1x16xf32>
    %c0_1061 = arith.constant 0 : index
    %c16_1062 = arith.constant 16 : index
    %647 = vector.load %arg10[%c0_1061, %c16_1062] : memref<8x144xf32, #tpu.memory_space<vmem>>, vector<1x16xf32>
    tpu.vector_store %arg10[%c0_1061, %c16_1062], %646 {strides = array<i32>} : memref<8x144xf32, #tpu.memory_space<vmem>>, vector<1x16xf32>,
    %c2_1063 = arith.constant 2 : index
    %c0_1064 = arith.constant 0 : index
    %648 = vector.load %arg8[%c2_1063, %c0_1064] : memref<72x16xf32, #tpu.memory_space<vmem>>, vector<1x16xf32>
    %c0_1065 = arith.constant 0 : index
    %c32_1066 = arith.constant 32 : index
    %649 = vector.load %arg10[%c0_1065, %c32_1066] : memref<8x144xf32, #tpu.memory_space<vmem>>, vector<1x16xf32>
    tpu.vector_store %arg10[%c0_1065, %c32_1066], %648 {strides = array<i32>} : memref<8x144xf32, #tpu.memory_space<vmem>>, vector<1x16xf32>,
    %c6_1067 = arith.constant 6 : index
    %c0_1068 = arith.constant 0 : index
    %650 = vector.load %arg8[%c6_1067, %c0_1068] : memref<72x16xf32, #tpu.memory_space<vmem>>, vector<1x16xf32>
    %c0_1069 = arith.constant 0 : index
    %c48_1070 = arith.constant 48 : index
    %651 = vector.load %arg10[%c0_1069, %c48_1070] : memref<8x144xf32, #tpu.memory_space<vmem>>, vector<1x16xf32>
    tpu.vector_store %arg10[%c0_1069, %c48_1070], %650 {strides = array<i32>} : memref<8x144xf32, #tpu.memory_space<vmem>>, vector<1x16xf32>,
    %c7_1071 = arith.constant 7 : index
    %c0_1072 = arith.constant 0 : index
    %652 = vector.load %arg8[%c7_1071, %c0_1072] : memref<72x16xf32, #tpu.memory_space<vmem>>, vector<1x16xf32>
    %c0_1073 = arith.constant 0 : index
    %c64_1074 = arith.constant 64 : index
    %653 = vector.load %arg10[%c0_1073, %c64_1074] : memref<8x144xf32, #tpu.memory_space<vmem>>, vector<1x16xf32>
    tpu.vector_store %arg10[%c0_1073, %c64_1074], %652 {strides = array<i32>} : memref<8x144xf32, #tpu.memory_space<vmem>>, vector<1x16xf32>,
    %c8_1075 = arith.constant 8 : index
    %c0_1076 = arith.constant 0 : index
    %654 = vector.load %arg8[%c8_1075, %c0_1076] : memref<72x16xf32, #tpu.memory_space<vmem>>, vector<1x16xf32>
    %c0_1077 = arith.constant 0 : index
    %c80_1078 = arith.constant 80 : index
    %655 = vector.load %arg10[%c0_1077, %c80_1078] : memref<8x144xf32, #tpu.memory_space<vmem>>, vector<1x16xf32>
    tpu.vector_store %arg10[%c0_1077, %c80_1078], %654 {strides = array<i32>} : memref<8x144xf32, #tpu.memory_space<vmem>>, vector<1x16xf32>,
    %c12_1079 = arith.constant 12 : index
    %c0_1080 = arith.constant 0 : index
    %656 = vector.load %arg8[%c12_1079, %c0_1080] : memref<72x16xf32, #tpu.memory_space<vmem>>, vector<1x16xf32>
    %c0_1081 = arith.constant 0 : index
    %c96 = arith.constant 96 : index
    %657 = vector.load %arg10[%c0_1081, %c96] : memref<8x144xf32, #tpu.memory_space<vmem>>, vector<1x16xf32>
    tpu.vector_store %arg10[%c0_1081, %c96], %656 {strides = array<i32>} : memref<8x144xf32, #tpu.memory_space<vmem>>, vector<1x16xf32>,
    %c13_1082 = arith.constant 13 : index
    %c0_1083 = arith.constant 0 : index
    %658 = vector.load %arg8[%c13_1082, %c0_1083] : memref<72x16xf32, #tpu.memory_space<vmem>>, vector<1x16xf32>
    %c0_1084 = arith.constant 0 : index
    %c112_1085 = arith.constant 112 : index
    %659 = vector.load %arg10[%c0_1084, %c112_1085] : memref<8x144xf32, #tpu.memory_space<vmem>>, vector<1x16xf32>
    tpu.vector_store %arg10[%c0_1084, %c112_1085], %658 {strides = array<i32>} : memref<8x144xf32, #tpu.memory_space<vmem>>, vector<1x16xf32>,
    %c14_1086 = arith.constant 14 : index
    %c0_1087 = arith.constant 0 : index
    %660 = vector.load %arg8[%c14_1086, %c0_1087] : memref<72x16xf32, #tpu.memory_space<vmem>>, vector<1x16xf32>
    %c0_1088 = arith.constant 0 : index
    %c128_1089 = arith.constant 128 : index
    %661 = vector.load %arg10[%c0_1088, %c128_1089] : memref<8x144xf32, #tpu.memory_space<vmem>>, vector<1x16xf32>
    tpu.vector_store %arg10[%c0_1088, %c128_1089], %660 {strides = array<i32>} : memref<8x144xf32, #tpu.memory_space<vmem>>, vector<1x16xf32>,
    %c2_1090 = arith.constant 2 : index
    %c0_1091 = arith.constant 0 : index
    %662 = vector.load %arg8[%c2_1090, %c0_1091] : memref<72x16xf32, #tpu.memory_space<vmem>>, vector<1x16xf32>
    %c1_1092 = arith.constant 1 : index
    %c0_1093 = arith.constant 0 : index
    %663 = vector.load %arg10[%c1_1092, %c0_1093] : memref<8x144xf32, #tpu.memory_space<vmem>>, vector<1x16xf32>
    tpu.vector_store %arg10[%c1_1092, %c0_1093], %662 {strides = array<i32>} : memref<8x144xf32, #tpu.memory_space<vmem>>, vector<1x16xf32>,
    %c3_1094 = arith.constant 3 : index
    %c0_1095 = arith.constant 0 : index
    %664 = vector.load %arg8[%c3_1094, %c0_1095] : memref<72x16xf32, #tpu.memory_space<vmem>>, vector<1x16xf32>
    %c1_1096 = arith.constant 1 : index
    %c16_1097 = arith.constant 16 : index
    %665 = vector.load %arg10[%c1_1096, %c16_1097] : memref<8x144xf32, #tpu.memory_space<vmem>>, vector<1x16xf32>
    tpu.vector_store %arg10[%c1_1096, %c16_1097], %664 {strides = array<i32>} : memref<8x144xf32, #tpu.memory_space<vmem>>, vector<1x16xf32>,
    %c4_1098 = arith.constant 4 : index
    %c0_1099 = arith.constant 0 : index
    %666 = vector.load %arg8[%c4_1098, %c0_1099] : memref<72x16xf32, #tpu.memory_space<vmem>>, vector<1x16xf32>
    %c1_1100 = arith.constant 1 : index
    %c32_1101 = arith.constant 32 : index
    %667 = vector.load %arg10[%c1_1100, %c32_1101] : memref<8x144xf32, #tpu.memory_space<vmem>>, vector<1x16xf32>
    tpu.vector_store %arg10[%c1_1100, %c32_1101], %666 {strides = array<i32>} : memref<8x144xf32, #tpu.memory_space<vmem>>, vector<1x16xf32>,
    %c8_1102 = arith.constant 8 : index
    %c0_1103 = arith.constant 0 : index
    %668 = vector.load %arg8[%c8_1102, %c0_1103] : memref<72x16xf32, #tpu.memory_space<vmem>>, vector<1x16xf32>
    %c1_1104 = arith.constant 1 : index
    %c48_1105 = arith.constant 48 : index
    %669 = vector.load %arg10[%c1_1104, %c48_1105] : memref<8x144xf32, #tpu.memory_space<vmem>>, vector<1x16xf32>
    tpu.vector_store %arg10[%c1_1104, %c48_1105], %668 {strides = array<i32>} : memref<8x144xf32, #tpu.memory_space<vmem>>, vector<1x16xf32>,
    %c9_1106 = arith.constant 9 : index
    %c0_1107 = arith.constant 0 : index
    %670 = vector.load %arg8[%c9_1106, %c0_1107] : memref<72x16xf32, #tpu.memory_space<vmem>>, vector<1x16xf32>
    %c1_1108 = arith.constant 1 : index
    %c64_1109 = arith.constant 64 : index
    %671 = vector.load %arg10[%c1_1108, %c64_1109] : memref<8x144xf32, #tpu.memory_space<vmem>>, vector<1x16xf32>
    tpu.vector_store %arg10[%c1_1108, %c64_1109], %670 {strides = array<i32>} : memref<8x144xf32, #tpu.memory_space<vmem>>, vector<1x16xf32>,
    %c10_1110 = arith.constant 10 : index
    %c0_1111 = arith.constant 0 : index
    %672 = vector.load %arg8[%c10_1110, %c0_1111] : memref<72x16xf32, #tpu.memory_space<vmem>>, vector<1x16xf32>
    %c1_1112 = arith.constant 1 : index
    %c80_1113 = arith.constant 80 : index
    %673 = vector.load %arg10[%c1_1112, %c80_1113] : memref<8x144xf32, #tpu.memory_space<vmem>>, vector<1x16xf32>
    tpu.vector_store %arg10[%c1_1112, %c80_1113], %672 {strides = array<i32>} : memref<8x144xf32, #tpu.memory_space<vmem>>, vector<1x16xf32>,
    %c14_1114 = arith.constant 14 : index
    %c0_1115 = arith.constant 0 : index
    %674 = vector.load %arg8[%c14_1114, %c0_1115] : memref<72x16xf32, #tpu.memory_space<vmem>>, vector<1x16xf32>
    %c1_1116 = arith.constant 1 : index
    %c96_1117 = arith.constant 96 : index
    %675 = vector.load %arg10[%c1_1116, %c96_1117] : memref<8x144xf32, #tpu.memory_space<vmem>>, vector<1x16xf32>
    tpu.vector_store %arg10[%c1_1116, %c96_1117], %674 {strides = array<i32>} : memref<8x144xf32, #tpu.memory_space<vmem>>, vector<1x16xf32>,
    %c15_1118 = arith.constant 15 : index
    %c0_1119 = arith.constant 0 : index
    %676 = vector.load %arg8[%c15_1118, %c0_1119] : memref<72x16xf32, #tpu.memory_space<vmem>>, vector<1x16xf32>
    %c1_1120 = arith.constant 1 : index
    %c112_1121 = arith.constant 112 : index
    %677 = vector.load %arg10[%c1_1120, %c112_1121] : memref<8x144xf32, #tpu.memory_space<vmem>>, vector<1x16xf32>
    tpu.vector_store %arg10[%c1_1120, %c112_1121], %676 {strides = array<i32>} : memref<8x144xf32, #tpu.memory_space<vmem>>, vector<1x16xf32>,
    %c16_1122 = arith.constant 16 : index
    %c0_1123 = arith.constant 0 : index
    %678 = vector.load %arg8[%c16_1122, %c0_1123] : memref<72x16xf32, #tpu.memory_space<vmem>>, vector<1x16xf32>
    %c1_1124 = arith.constant 1 : index
    %c128_1125 = arith.constant 128 : index
    %679 = vector.load %arg10[%c1_1124, %c128_1125] : memref<8x144xf32, #tpu.memory_space<vmem>>, vector<1x16xf32>
    tpu.vector_store %arg10[%c1_1124, %c128_1125], %678 {strides = array<i32>} : memref<8x144xf32, #tpu.memory_space<vmem>>, vector<1x16xf32>,
    %c12_1126 = arith.constant 12 : index
    %c0_1127 = arith.constant 0 : index
    %680 = vector.load %arg8[%c12_1126, %c0_1127] : memref<72x16xf32, #tpu.memory_space<vmem>>, vector<1x16xf32>
    %c2_1128 = arith.constant 2 : index
    %c0_1129 = arith.constant 0 : index
    %681 = vector.load %arg10[%c2_1128, %c0_1129] : memref<8x144xf32, #tpu.memory_space<vmem>>, vector<1x16xf32>
    tpu.vector_store %arg10[%c2_1128, %c0_1129], %680 {strides = array<i32>} : memref<8x144xf32, #tpu.memory_space<vmem>>, vector<1x16xf32>,
    %c13_1130 = arith.constant 13 : index
    %c0_1131 = arith.constant 0 : index
    %682 = vector.load %arg8[%c13_1130, %c0_1131] : memref<72x16xf32, #tpu.memory_space<vmem>>, vector<1x16xf32>
    %c2_1132 = arith.constant 2 : index
    %c16_1133 = arith.constant 16 : index
    %683 = vector.load %arg10[%c2_1132, %c16_1133] : memref<8x144xf32, #tpu.memory_space<vmem>>, vector<1x16xf32>
    tpu.vector_store %arg10[%c2_1132, %c16_1133], %682 {strides = array<i32>} : memref<8x144xf32, #tpu.memory_space<vmem>>, vector<1x16xf32>,
    %c14_1134 = arith.constant 14 : index
    %c0_1135 = arith.constant 0 : index
    %684 = vector.load %arg8[%c14_1134, %c0_1135] : memref<72x16xf32, #tpu.memory_space<vmem>>, vector<1x16xf32>
    %c2_1136 = arith.constant 2 : index
    %c32_1137 = arith.constant 32 : index
    %685 = vector.load %arg10[%c2_1136, %c32_1137] : memref<8x144xf32, #tpu.memory_space<vmem>>, vector<1x16xf32>
    tpu.vector_store %arg10[%c2_1136, %c32_1137], %684 {strides = array<i32>} : memref<8x144xf32, #tpu.memory_space<vmem>>, vector<1x16xf32>,
    %c18_1138 = arith.constant 18 : index
    %c0_1139 = arith.constant 0 : index
    %686 = vector.load %arg8[%c18_1138, %c0_1139] : memref<72x16xf32, #tpu.memory_space<vmem>>, vector<1x16xf32>
    %c2_1140 = arith.constant 2 : index
    %c48_1141 = arith.constant 48 : index
    %687 = vector.load %arg10[%c2_1140, %c48_1141] : memref<8x144xf32, #tpu.memory_space<vmem>>, vector<1x16xf32>
    tpu.vector_store %arg10[%c2_1140, %c48_1141], %686 {strides = array<i32>} : memref<8x144xf32, #tpu.memory_space<vmem>>, vector<1x16xf32>,
    %c19_1142 = arith.constant 19 : index
    %c0_1143 = arith.constant 0 : index
    %688 = vector.load %arg8[%c19_1142, %c0_1143] : memref<72x16xf32, #tpu.memory_space<vmem>>, vector<1x16xf32>
    %c2_1144 = arith.constant 2 : index
    %c64_1145 = arith.constant 64 : index
    %689 = vector.load %arg10[%c2_1144, %c64_1145] : memref<8x144xf32, #tpu.memory_space<vmem>>, vector<1x16xf32>
    tpu.vector_store %arg10[%c2_1144, %c64_1145], %688 {strides = array<i32>} : memref<8x144xf32, #tpu.memory_space<vmem>>, vector<1x16xf32>,
    %c20_1146 = arith.constant 20 : index
    %c0_1147 = arith.constant 0 : index
    %690 = vector.load %arg8[%c20_1146, %c0_1147] : memref<72x16xf32, #tpu.memory_space<vmem>>, vector<1x16xf32>
    %c2_1148 = arith.constant 2 : index
    %c80_1149 = arith.constant 80 : index
    %691 = vector.load %arg10[%c2_1148, %c80_1149] : memref<8x144xf32, #tpu.memory_space<vmem>>, vector<1x16xf32>
    tpu.vector_store %arg10[%c2_1148, %c80_1149], %690 {strides = array<i32>} : memref<8x144xf32, #tpu.memory_space<vmem>>, vector<1x16xf32>,
    %c24_1150 = arith.constant 24 : index
    %c0_1151 = arith.constant 0 : index
    %692 = vector.load %arg8[%c24_1150, %c0_1151] : memref<72x16xf32, #tpu.memory_space<vmem>>, vector<1x16xf32>
    %c2_1152 = arith.constant 2 : index
    %c96_1153 = arith.constant 96 : index
    %693 = vector.load %arg10[%c2_1152, %c96_1153] : memref<8x144xf32, #tpu.memory_space<vmem>>, vector<1x16xf32>
    tpu.vector_store %arg10[%c2_1152, %c96_1153], %692 {strides = array<i32>} : memref<8x144xf32, #tpu.memory_space<vmem>>, vector<1x16xf32>,
    %c25_1154 = arith.constant 25 : index
    %c0_1155 = arith.constant 0 : index
    %694 = vector.load %arg8[%c25_1154, %c0_1155] : memref<72x16xf32, #tpu.memory_space<vmem>>, vector<1x16xf32>
    %c2_1156 = arith.constant 2 : index
    %c112_1157 = arith.constant 112 : index
    %695 = vector.load %arg10[%c2_1156, %c112_1157] : memref<8x144xf32, #tpu.memory_space<vmem>>, vector<1x16xf32>
    tpu.vector_store %arg10[%c2_1156, %c112_1157], %694 {strides = array<i32>} : memref<8x144xf32, #tpu.memory_space<vmem>>, vector<1x16xf32>,
    %c26_1158 = arith.constant 26 : index
    %c0_1159 = arith.constant 0 : index
    %696 = vector.load %arg8[%c26_1158, %c0_1159] : memref<72x16xf32, #tpu.memory_space<vmem>>, vector<1x16xf32>
    %c2_1160 = arith.constant 2 : index
    %c128_1161 = arith.constant 128 : index
    %697 = vector.load %arg10[%c2_1160, %c128_1161] : memref<8x144xf32, #tpu.memory_space<vmem>>, vector<1x16xf32>
    tpu.vector_store %arg10[%c2_1160, %c128_1161], %696 {strides = array<i32>} : memref<8x144xf32, #tpu.memory_space<vmem>>, vector<1x16xf32>,
    %c14_1162 = arith.constant 14 : index
    %c0_1163 = arith.constant 0 : index
    %698 = vector.load %arg8[%c14_1162, %c0_1163] : memref<72x16xf32, #tpu.memory_space<vmem>>, vector<1x16xf32>
    %c3_1164 = arith.constant 3 : index
    %c0_1165 = arith.constant 0 : index
    %699 = vector.load %arg10[%c3_1164, %c0_1165] : memref<8x144xf32, #tpu.memory_space<vmem>>, vector<1x16xf32>
    tpu.vector_store %arg10[%c3_1164, %c0_1165], %698 {strides = array<i32>} : memref<8x144xf32, #tpu.memory_space<vmem>>, vector<1x16xf32>,
    %c15_1166 = arith.constant 15 : index
    %c0_1167 = arith.constant 0 : index
    %700 = vector.load %arg8[%c15_1166, %c0_1167] : memref<72x16xf32, #tpu.memory_space<vmem>>, vector<1x16xf32>
    %c3_1168 = arith.constant 3 : index
    %c16_1169 = arith.constant 16 : index
    %701 = vector.load %arg10[%c3_1168, %c16_1169] : memref<8x144xf32, #tpu.memory_space<vmem>>, vector<1x16xf32>
    tpu.vector_store %arg10[%c3_1168, %c16_1169], %700 {strides = array<i32>} : memref<8x144xf32, #tpu.memory_space<vmem>>, vector<1x16xf32>,
    %c16_1170 = arith.constant 16 : index
    %c0_1171 = arith.constant 0 : index
    %702 = vector.load %arg8[%c16_1170, %c0_1171] : memref<72x16xf32, #tpu.memory_space<vmem>>, vector<1x16xf32>
    %c3_1172 = arith.constant 3 : index
    %c32_1173 = arith.constant 32 : index
    %703 = vector.load %arg10[%c3_1172, %c32_1173] : memref<8x144xf32, #tpu.memory_space<vmem>>, vector<1x16xf32>
    tpu.vector_store %arg10[%c3_1172, %c32_1173], %702 {strides = array<i32>} : memref<8x144xf32, #tpu.memory_space<vmem>>, vector<1x16xf32>,
    %c20_1174 = arith.constant 20 : index
    %c0_1175 = arith.constant 0 : index
    %704 = vector.load %arg8[%c20_1174, %c0_1175] : memref<72x16xf32, #tpu.memory_space<vmem>>, vector<1x16xf32>
    %c3_1176 = arith.constant 3 : index
    %c48_1177 = arith.constant 48 : index
    %705 = vector.load %arg10[%c3_1176, %c48_1177] : memref<8x144xf32, #tpu.memory_space<vmem>>, vector<1x16xf32>
    tpu.vector_store %arg10[%c3_1176, %c48_1177], %704 {strides = array<i32>} : memref<8x144xf32, #tpu.memory_space<vmem>>, vector<1x16xf32>,
    %c21_1178 = arith.constant 21 : index
    %c0_1179 = arith.constant 0 : index
    %706 = vector.load %arg8[%c21_1178, %c0_1179] : memref<72x16xf32, #tpu.memory_space<vmem>>, vector<1x16xf32>
    %c3_1180 = arith.constant 3 : index
    %c64_1181 = arith.constant 64 : index
    %707 = vector.load %arg10[%c3_1180, %c64_1181] : memref<8x144xf32, #tpu.memory_space<vmem>>, vector<1x16xf32>
    tpu.vector_store %arg10[%c3_1180, %c64_1181], %706 {strides = array<i32>} : memref<8x144xf32, #tpu.memory_space<vmem>>, vector<1x16xf32>,
    %c22_1182 = arith.constant 22 : index
    %c0_1183 = arith.constant 0 : index
    %708 = vector.load %arg8[%c22_1182, %c0_1183] : memref<72x16xf32, #tpu.memory_space<vmem>>, vector<1x16xf32>
    %c3_1184 = arith.constant 3 : index
    %c80_1185 = arith.constant 80 : index
    %709 = vector.load %arg10[%c3_1184, %c80_1185] : memref<8x144xf32, #tpu.memory_space<vmem>>, vector<1x16xf32>
    tpu.vector_store %arg10[%c3_1184, %c80_1185], %708 {strides = array<i32>} : memref<8x144xf32, #tpu.memory_space<vmem>>, vector<1x16xf32>,
    %c26_1186 = arith.constant 26 : index
    %c0_1187 = arith.constant 0 : index
    %710 = vector.load %arg8[%c26_1186, %c0_1187] : memref<72x16xf32, #tpu.memory_space<vmem>>, vector<1x16xf32>
    %c3_1188 = arith.constant 3 : index
    %c96_1189 = arith.constant 96 : index
    %711 = vector.load %arg10[%c3_1188, %c96_1189] : memref<8x144xf32, #tpu.memory_space<vmem>>, vector<1x16xf32>
    tpu.vector_store %arg10[%c3_1188, %c96_1189], %710 {strides = array<i32>} : memref<8x144xf32, #tpu.memory_space<vmem>>, vector<1x16xf32>,
    %c27_1190 = arith.constant 27 : index
    %c0_1191 = arith.constant 0 : index
    %712 = vector.load %arg8[%c27_1190, %c0_1191] : memref<72x16xf32, #tpu.memory_space<vmem>>, vector<1x16xf32>
    %c3_1192 = arith.constant 3 : index
    %c112_1193 = arith.constant 112 : index
    %713 = vector.load %arg10[%c3_1192, %c112_1193] : memref<8x144xf32, #tpu.memory_space<vmem>>, vector<1x16xf32>
    tpu.vector_store %arg10[%c3_1192, %c112_1193], %712 {strides = array<i32>} : memref<8x144xf32, #tpu.memory_space<vmem>>, vector<1x16xf32>,
    %c28_1194 = arith.constant 28 : index
    %c0_1195 = arith.constant 0 : index
    %714 = vector.load %arg8[%c28_1194, %c0_1195] : memref<72x16xf32, #tpu.memory_space<vmem>>, vector<1x16xf32>
    %c3_1196 = arith.constant 3 : index
    %c128_1197 = arith.constant 128 : index
    %715 = vector.load %arg10[%c3_1196, %c128_1197] : memref<8x144xf32, #tpu.memory_space<vmem>>, vector<1x16xf32>
    tpu.vector_store %arg10[%c3_1196, %c128_1197], %714 {strides = array<i32>} : memref<8x144xf32, #tpu.memory_space<vmem>>, vector<1x16xf32>,
    %c36_1198 = arith.constant 36 : index
    %c0_1199 = arith.constant 0 : index
    %716 = vector.load %arg8[%c36_1198, %c0_1199] : memref<72x16xf32, #tpu.memory_space<vmem>>, vector<1x16xf32>
    %c4_1200 = arith.constant 4 : index
    %c0_1201 = arith.constant 0 : index
    %717 = vector.load %arg10[%c4_1200, %c0_1201] : memref<8x144xf32, #tpu.memory_space<vmem>>, vector<1x16xf32>
    tpu.vector_store %arg10[%c4_1200, %c0_1201], %716 {strides = array<i32>} : memref<8x144xf32, #tpu.memory_space<vmem>>, vector<1x16xf32>,
    %c37_1202 = arith.constant 37 : index
    %c0_1203 = arith.constant 0 : index
    %718 = vector.load %arg8[%c37_1202, %c0_1203] : memref<72x16xf32, #tpu.memory_space<vmem>>, vector<1x16xf32>
    %c4_1204 = arith.constant 4 : index
    %c16_1205 = arith.constant 16 : index
    %719 = vector.load %arg10[%c4_1204, %c16_1205] : memref<8x144xf32, #tpu.memory_space<vmem>>, vector<1x16xf32>
    tpu.vector_store %arg10[%c4_1204, %c16_1205], %718 {strides = array<i32>} : memref<8x144xf32, #tpu.memory_space<vmem>>, vector<1x16xf32>,
    %c38_1206 = arith.constant 38 : index
    %c0_1207 = arith.constant 0 : index
    %720 = vector.load %arg8[%c38_1206, %c0_1207] : memref<72x16xf32, #tpu.memory_space<vmem>>, vector<1x16xf32>
    %c4_1208 = arith.constant 4 : index
    %c32_1209 = arith.constant 32 : index
    %721 = vector.load %arg10[%c4_1208, %c32_1209] : memref<8x144xf32, #tpu.memory_space<vmem>>, vector<1x16xf32>
    tpu.vector_store %arg10[%c4_1208, %c32_1209], %720 {strides = array<i32>} : memref<8x144xf32, #tpu.memory_space<vmem>>, vector<1x16xf32>,
    %c42_1210 = arith.constant 42 : index
    %c0_1211 = arith.constant 0 : index
    %722 = vector.load %arg8[%c42_1210, %c0_1211] : memref<72x16xf32, #tpu.memory_space<vmem>>, vector<1x16xf32>
    %c4_1212 = arith.constant 4 : index
    %c48_1213 = arith.constant 48 : index
    %723 = vector.load %arg10[%c4_1212, %c48_1213] : memref<8x144xf32, #tpu.memory_space<vmem>>, vector<1x16xf32>
    tpu.vector_store %arg10[%c4_1212, %c48_1213], %722 {strides = array<i32>} : memref<8x144xf32, #tpu.memory_space<vmem>>, vector<1x16xf32>,
    %c43_1214 = arith.constant 43 : index
    %c0_1215 = arith.constant 0 : index
    %724 = vector.load %arg8[%c43_1214, %c0_1215] : memref<72x16xf32, #tpu.memory_space<vmem>>, vector<1x16xf32>
    %c4_1216 = arith.constant 4 : index
    %c64_1217 = arith.constant 64 : index
    %725 = vector.load %arg10[%c4_1216, %c64_1217] : memref<8x144xf32, #tpu.memory_space<vmem>>, vector<1x16xf32>
    tpu.vector_store %arg10[%c4_1216, %c64_1217], %724 {strides = array<i32>} : memref<8x144xf32, #tpu.memory_space<vmem>>, vector<1x16xf32>,
    %c44_1218 = arith.constant 44 : index
    %c0_1219 = arith.constant 0 : index
    %726 = vector.load %arg8[%c44_1218, %c0_1219] : memref<72x16xf32, #tpu.memory_space<vmem>>, vector<1x16xf32>
    %c4_1220 = arith.constant 4 : index
    %c80_1221 = arith.constant 80 : index
    %727 = vector.load %arg10[%c4_1220, %c80_1221] : memref<8x144xf32, #tpu.memory_space<vmem>>, vector<1x16xf32>
    tpu.vector_store %arg10[%c4_1220, %c80_1221], %726 {strides = array<i32>} : memref<8x144xf32, #tpu.memory_space<vmem>>, vector<1x16xf32>,
    %c48_1222 = arith.constant 48 : index
    %c0_1223 = arith.constant 0 : index
    %728 = vector.load %arg8[%c48_1222, %c0_1223] : memref<72x16xf32, #tpu.memory_space<vmem>>, vector<1x16xf32>
    %c4_1224 = arith.constant 4 : index
    %c96_1225 = arith.constant 96 : index
    %729 = vector.load %arg10[%c4_1224, %c96_1225] : memref<8x144xf32, #tpu.memory_space<vmem>>, vector<1x16xf32>
    tpu.vector_store %arg10[%c4_1224, %c96_1225], %728 {strides = array<i32>} : memref<8x144xf32, #tpu.memory_space<vmem>>, vector<1x16xf32>,
    %c49_1226 = arith.constant 49 : index
    %c0_1227 = arith.constant 0 : index
    %730 = vector.load %arg8[%c49_1226, %c0_1227] : memref<72x16xf32, #tpu.memory_space<vmem>>, vector<1x16xf32>
    %c4_1228 = arith.constant 4 : index
    %c112_1229 = arith.constant 112 : index
    %731 = vector.load %arg10[%c4_1228, %c112_1229] : memref<8x144xf32, #tpu.memory_space<vmem>>, vector<1x16xf32>
    tpu.vector_store %arg10[%c4_1228, %c112_1229], %730 {strides = array<i32>} : memref<8x144xf32, #tpu.memory_space<vmem>>, vector<1x16xf32>,
    %c50_1230 = arith.constant 50 : index
    %c0_1231 = arith.constant 0 : index
    %732 = vector.load %arg8[%c50_1230, %c0_1231] : memref<72x16xf32, #tpu.memory_space<vmem>>, vector<1x16xf32>
    %c4_1232 = arith.constant 4 : index
    %c128_1233 = arith.constant 128 : index
    %733 = vector.load %arg10[%c4_1232, %c128_1233] : memref<8x144xf32, #tpu.memory_space<vmem>>, vector<1x16xf32>
    tpu.vector_store %arg10[%c4_1232, %c128_1233], %732 {strides = array<i32>} : memref<8x144xf32, #tpu.memory_space<vmem>>, vector<1x16xf32>,
    %c38_1234 = arith.constant 38 : index
    %c0_1235 = arith.constant 0 : index
    %734 = vector.load %arg8[%c38_1234, %c0_1235] : memref<72x16xf32, #tpu.memory_space<vmem>>, vector<1x16xf32>
    %c5_1236 = arith.constant 5 : index
    %c0_1237 = arith.constant 0 : index
    %735 = vector.load %arg10[%c5_1236, %c0_1237] : memref<8x144xf32, #tpu.memory_space<vmem>>, vector<1x16xf32>
    tpu.vector_store %arg10[%c5_1236, %c0_1237], %734 {strides = array<i32>} : memref<8x144xf32, #tpu.memory_space<vmem>>, vector<1x16xf32>,
    %c39 = arith.constant 39 : index
    %c0_1238 = arith.constant 0 : index
    %736 = vector.load %arg8[%c39, %c0_1238] : memref<72x16xf32, #tpu.memory_space<vmem>>, vector<1x16xf32>
    %c5_1239 = arith.constant 5 : index
    %c16_1240 = arith.constant 16 : index
    %737 = vector.load %arg10[%c5_1239, %c16_1240] : memref<8x144xf32, #tpu.memory_space<vmem>>, vector<1x16xf32>
    tpu.vector_store %arg10[%c5_1239, %c16_1240], %736 {strides = array<i32>} : memref<8x144xf32, #tpu.memory_space<vmem>>, vector<1x16xf32>,
    %c40_1241 = arith.constant 40 : index
    %c0_1242 = arith.constant 0 : index
    %738 = vector.load %arg8[%c40_1241, %c0_1242] : memref<72x16xf32, #tpu.memory_space<vmem>>, vector<1x16xf32>
    %c5_1243 = arith.constant 5 : index
    %c32_1244 = arith.constant 32 : index
    %739 = vector.load %arg10[%c5_1243, %c32_1244] : memref<8x144xf32, #tpu.memory_space<vmem>>, vector<1x16xf32>
    tpu.vector_store %arg10[%c5_1243, %c32_1244], %738 {strides = array<i32>} : memref<8x144xf32, #tpu.memory_space<vmem>>, vector<1x16xf32>,
    %c44_1245 = arith.constant 44 : index
    %c0_1246 = arith.constant 0 : index
    %740 = vector.load %arg8[%c44_1245, %c0_1246] : memref<72x16xf32, #tpu.memory_space<vmem>>, vector<1x16xf32>
    %c5_1247 = arith.constant 5 : index
    %c48_1248 = arith.constant 48 : index
    %741 = vector.load %arg10[%c5_1247, %c48_1248] : memref<8x144xf32, #tpu.memory_space<vmem>>, vector<1x16xf32>
    tpu.vector_store %arg10[%c5_1247, %c48_1248], %740 {strides = array<i32>} : memref<8x144xf32, #tpu.memory_space<vmem>>, vector<1x16xf32>,
    %c45_1249 = arith.constant 45 : index
    %c0_1250 = arith.constant 0 : index
    %742 = vector.load %arg8[%c45_1249, %c0_1250] : memref<72x16xf32, #tpu.memory_space<vmem>>, vector<1x16xf32>
    %c5_1251 = arith.constant 5 : index
    %c64_1252 = arith.constant 64 : index
    %743 = vector.load %arg10[%c5_1251, %c64_1252] : memref<8x144xf32, #tpu.memory_space<vmem>>, vector<1x16xf32>
    tpu.vector_store %arg10[%c5_1251, %c64_1252], %742 {strides = array<i32>} : memref<8x144xf32, #tpu.memory_space<vmem>>, vector<1x16xf32>,
    %c46_1253 = arith.constant 46 : index
    %c0_1254 = arith.constant 0 : index
    %744 = vector.load %arg8[%c46_1253, %c0_1254] : memref<72x16xf32, #tpu.memory_space<vmem>>, vector<1x16xf32>
    %c5_1255 = arith.constant 5 : index
    %c80_1256 = arith.constant 80 : index
    %745 = vector.load %arg10[%c5_1255, %c80_1256] : memref<8x144xf32, #tpu.memory_space<vmem>>, vector<1x16xf32>
    tpu.vector_store %arg10[%c5_1255, %c80_1256], %744 {strides = array<i32>} : memref<8x144xf32, #tpu.memory_space<vmem>>, vector<1x16xf32>,
    %c50_1257 = arith.constant 50 : index
    %c0_1258 = arith.constant 0 : index
    %746 = vector.load %arg8[%c50_1257, %c0_1258] : memref<72x16xf32, #tpu.memory_space<vmem>>, vector<1x16xf32>
    %c5_1259 = arith.constant 5 : index
    %c96_1260 = arith.constant 96 : index
    %747 = vector.load %arg10[%c5_1259, %c96_1260] : memref<8x144xf32, #tpu.memory_space<vmem>>, vector<1x16xf32>
    tpu.vector_store %arg10[%c5_1259, %c96_1260], %746 {strides = array<i32>} : memref<8x144xf32, #tpu.memory_space<vmem>>, vector<1x16xf32>,
    %c51_1261 = arith.constant 51 : index
    %c0_1262 = arith.constant 0 : index
    %748 = vector.load %arg8[%c51_1261, %c0_1262] : memref<72x16xf32, #tpu.memory_space<vmem>>, vector<1x16xf32>
    %c5_1263 = arith.constant 5 : index
    %c112_1264 = arith.constant 112 : index
    %749 = vector.load %arg10[%c5_1263, %c112_1264] : memref<8x144xf32, #tpu.memory_space<vmem>>, vector<1x16xf32>
    tpu.vector_store %arg10[%c5_1263, %c112_1264], %748 {strides = array<i32>} : memref<8x144xf32, #tpu.memory_space<vmem>>, vector<1x16xf32>,
    %c52_1265 = arith.constant 52 : index
    %c0_1266 = arith.constant 0 : index
    %750 = vector.load %arg8[%c52_1265, %c0_1266] : memref<72x16xf32, #tpu.memory_space<vmem>>, vector<1x16xf32>
    %c5_1267 = arith.constant 5 : index
    %c128_1268 = arith.constant 128 : index
    %751 = vector.load %arg10[%c5_1267, %c128_1268] : memref<8x144xf32, #tpu.memory_space<vmem>>, vector<1x16xf32>
    tpu.vector_store %arg10[%c5_1267, %c128_1268], %750 {strides = array<i32>} : memref<8x144xf32, #tpu.memory_space<vmem>>, vector<1x16xf32>,
    %c48_1269 = arith.constant 48 : index
    %c0_1270 = arith.constant 0 : index
    %752 = vector.load %arg8[%c48_1269, %c0_1270] : memref<72x16xf32, #tpu.memory_space<vmem>>, vector<1x16xf32>
    %c6_1271 = arith.constant 6 : index
    %c0_1272 = arith.constant 0 : index
    %753 = vector.load %arg10[%c6_1271, %c0_1272] : memref<8x144xf32, #tpu.memory_space<vmem>>, vector<1x16xf32>
    tpu.vector_store %arg10[%c6_1271, %c0_1272], %752 {strides = array<i32>} : memref<8x144xf32, #tpu.memory_space<vmem>>, vector<1x16xf32>,
    %c49_1273 = arith.constant 49 : index
    %c0_1274 = arith.constant 0 : index
    %754 = vector.load %arg8[%c49_1273, %c0_1274] : memref<72x16xf32, #tpu.memory_space<vmem>>, vector<1x16xf32>
    %c6_1275 = arith.constant 6 : index
    %c16_1276 = arith.constant 16 : index
    %755 = vector.load %arg10[%c6_1275, %c16_1276] : memref<8x144xf32, #tpu.memory_space<vmem>>, vector<1x16xf32>
    tpu.vector_store %arg10[%c6_1275, %c16_1276], %754 {strides = array<i32>} : memref<8x144xf32, #tpu.memory_space<vmem>>, vector<1x16xf32>,
    %c50_1277 = arith.constant 50 : index
    %c0_1278 = arith.constant 0 : index
    %756 = vector.load %arg8[%c50_1277, %c0_1278] : memref<72x16xf32, #tpu.memory_space<vmem>>, vector<1x16xf32>
    %c6_1279 = arith.constant 6 : index
    %c32_1280 = arith.constant 32 : index
    %757 = vector.load %arg10[%c6_1279, %c32_1280] : memref<8x144xf32, #tpu.memory_space<vmem>>, vector<1x16xf32>
    tpu.vector_store %arg10[%c6_1279, %c32_1280], %756 {strides = array<i32>} : memref<8x144xf32, #tpu.memory_space<vmem>>, vector<1x16xf32>,
    %c54_1281 = arith.constant 54 : index
    %c0_1282 = arith.constant 0 : index
    %758 = vector.load %arg8[%c54_1281, %c0_1282] : memref<72x16xf32, #tpu.memory_space<vmem>>, vector<1x16xf32>
    %c6_1283 = arith.constant 6 : index
    %c48_1284 = arith.constant 48 : index
    %759 = vector.load %arg10[%c6_1283, %c48_1284] : memref<8x144xf32, #tpu.memory_space<vmem>>, vector<1x16xf32>
    tpu.vector_store %arg10[%c6_1283, %c48_1284], %758 {strides = array<i32>} : memref<8x144xf32, #tpu.memory_space<vmem>>, vector<1x16xf32>,
    %c55_1285 = arith.constant 55 : index
    %c0_1286 = arith.constant 0 : index
    %760 = vector.load %arg8[%c55_1285, %c0_1286] : memref<72x16xf32, #tpu.memory_space<vmem>>, vector<1x16xf32>
    %c6_1287 = arith.constant 6 : index
    %c64_1288 = arith.constant 64 : index
    %761 = vector.load %arg10[%c6_1287, %c64_1288] : memref<8x144xf32, #tpu.memory_space<vmem>>, vector<1x16xf32>
    tpu.vector_store %arg10[%c6_1287, %c64_1288], %760 {strides = array<i32>} : memref<8x144xf32, #tpu.memory_space<vmem>>, vector<1x16xf32>,
    %c56_1289 = arith.constant 56 : index
    %c0_1290 = arith.constant 0 : index
    %762 = vector.load %arg8[%c56_1289, %c0_1290] : memref<72x16xf32, #tpu.memory_space<vmem>>, vector<1x16xf32>
    %c6_1291 = arith.constant 6 : index
    %c80_1292 = arith.constant 80 : index
    %763 = vector.load %arg10[%c6_1291, %c80_1292] : memref<8x144xf32, #tpu.memory_space<vmem>>, vector<1x16xf32>
    tpu.vector_store %arg10[%c6_1291, %c80_1292], %762 {strides = array<i32>} : memref<8x144xf32, #tpu.memory_space<vmem>>, vector<1x16xf32>,
    %c60_1293 = arith.constant 60 : index
    %c0_1294 = arith.constant 0 : index
    %764 = vector.load %arg8[%c60_1293, %c0_1294] : memref<72x16xf32, #tpu.memory_space<vmem>>, vector<1x16xf32>
    %c6_1295 = arith.constant 6 : index
    %c96_1296 = arith.constant 96 : index
    %765 = vector.load %arg10[%c6_1295, %c96_1296] : memref<8x144xf32, #tpu.memory_space<vmem>>, vector<1x16xf32>
    tpu.vector_store %arg10[%c6_1295, %c96_1296], %764 {strides = array<i32>} : memref<8x144xf32, #tpu.memory_space<vmem>>, vector<1x16xf32>,
    %c61_1297 = arith.constant 61 : index
    %c0_1298 = arith.constant 0 : index
    %766 = vector.load %arg8[%c61_1297, %c0_1298] : memref<72x16xf32, #tpu.memory_space<vmem>>, vector<1x16xf32>
    %c6_1299 = arith.constant 6 : index
    %c112_1300 = arith.constant 112 : index
    %767 = vector.load %arg10[%c6_1299, %c112_1300] : memref<8x144xf32, #tpu.memory_space<vmem>>, vector<1x16xf32>
    tpu.vector_store %arg10[%c6_1299, %c112_1300], %766 {strides = array<i32>} : memref<8x144xf32, #tpu.memory_space<vmem>>, vector<1x16xf32>,
    %c62_1301 = arith.constant 62 : index
    %c0_1302 = arith.constant 0 : index
    %768 = vector.load %arg8[%c62_1301, %c0_1302] : memref<72x16xf32, #tpu.memory_space<vmem>>, vector<1x16xf32>
    %c6_1303 = arith.constant 6 : index
    %c128_1304 = arith.constant 128 : index
    %769 = vector.load %arg10[%c6_1303, %c128_1304] : memref<8x144xf32, #tpu.memory_space<vmem>>, vector<1x16xf32>
    tpu.vector_store %arg10[%c6_1303, %c128_1304], %768 {strides = array<i32>} : memref<8x144xf32, #tpu.memory_space<vmem>>, vector<1x16xf32>,
    %c50_1305 = arith.constant 50 : index
    %c0_1306 = arith.constant 0 : index
    %770 = vector.load %arg8[%c50_1305, %c0_1306] : memref<72x16xf32, #tpu.memory_space<vmem>>, vector<1x16xf32>
    %c7_1307 = arith.constant 7 : index
    %c0_1308 = arith.constant 0 : index
    %771 = vector.load %arg10[%c7_1307, %c0_1308] : memref<8x144xf32, #tpu.memory_space<vmem>>, vector<1x16xf32>
    tpu.vector_store %arg10[%c7_1307, %c0_1308], %770 {strides = array<i32>} : memref<8x144xf32, #tpu.memory_space<vmem>>, vector<1x16xf32>,
    %c51_1309 = arith.constant 51 : index
    %c0_1310 = arith.constant 0 : index
    %772 = vector.load %arg8[%c51_1309, %c0_1310] : memref<72x16xf32, #tpu.memory_space<vmem>>, vector<1x16xf32>
    %c7_1311 = arith.constant 7 : index
    %c16_1312 = arith.constant 16 : index
    %773 = vector.load %arg10[%c7_1311, %c16_1312] : memref<8x144xf32, #tpu.memory_space<vmem>>, vector<1x16xf32>
    tpu.vector_store %arg10[%c7_1311, %c16_1312], %772 {strides = array<i32>} : memref<8x144xf32, #tpu.memory_space<vmem>>, vector<1x16xf32>,
    %c52_1313 = arith.constant 52 : index
    %c0_1314 = arith.constant 0 : index
    %774 = vector.load %arg8[%c52_1313, %c0_1314] : memref<72x16xf32, #tpu.memory_space<vmem>>, vector<1x16xf32>
    %c7_1315 = arith.constant 7 : index
    %c32_1316 = arith.constant 32 : index
    %775 = vector.load %arg10[%c7_1315, %c32_1316] : memref<8x144xf32, #tpu.memory_space<vmem>>, vector<1x16xf32>
    tpu.vector_store %arg10[%c7_1315, %c32_1316], %774 {strides = array<i32>} : memref<8x144xf32, #tpu.memory_space<vmem>>, vector<1x16xf32>,
    %c56_1317 = arith.constant 56 : index
    %c0_1318 = arith.constant 0 : index
    %776 = vector.load %arg8[%c56_1317, %c0_1318] : memref<72x16xf32, #tpu.memory_space<vmem>>, vector<1x16xf32>
    %c7_1319 = arith.constant 7 : index
    %c48_1320 = arith.constant 48 : index
    %777 = vector.load %arg10[%c7_1319, %c48_1320] : memref<8x144xf32, #tpu.memory_space<vmem>>, vector<1x16xf32>
    tpu.vector_store %arg10[%c7_1319, %c48_1320], %776 {strides = array<i32>} : memref<8x144xf32, #tpu.memory_space<vmem>>, vector<1x16xf32>,
    %c57_1321 = arith.constant 57 : index
    %c0_1322 = arith.constant 0 : index
    %778 = vector.load %arg8[%c57_1321, %c0_1322] : memref<72x16xf32, #tpu.memory_space<vmem>>, vector<1x16xf32>
    %c7_1323 = arith.constant 7 : index
    %c64_1324 = arith.constant 64 : index
    %779 = vector.load %arg10[%c7_1323, %c64_1324] : memref<8x144xf32, #tpu.memory_space<vmem>>, vector<1x16xf32>
    tpu.vector_store %arg10[%c7_1323, %c64_1324], %778 {strides = array<i32>} : memref<8x144xf32, #tpu.memory_space<vmem>>, vector<1x16xf32>,
    %c58_1325 = arith.constant 58 : index
    %c0_1326 = arith.constant 0 : index
    %780 = vector.load %arg8[%c58_1325, %c0_1326] : memref<72x16xf32, #tpu.memory_space<vmem>>, vector<1x16xf32>
    %c7_1327 = arith.constant 7 : index
    %c80_1328 = arith.constant 80 : index
    %781 = vector.load %arg10[%c7_1327, %c80_1328] : memref<8x144xf32, #tpu.memory_space<vmem>>, vector<1x16xf32>
    tpu.vector_store %arg10[%c7_1327, %c80_1328], %780 {strides = array<i32>} : memref<8x144xf32, #tpu.memory_space<vmem>>, vector<1x16xf32>,
    %c62_1329 = arith.constant 62 : index
    %c0_1330 = arith.constant 0 : index
    %782 = vector.load %arg8[%c62_1329, %c0_1330] : memref<72x16xf32, #tpu.memory_space<vmem>>, vector<1x16xf32>
    %c7_1331 = arith.constant 7 : index
    %c96_1332 = arith.constant 96 : index
    %783 = vector.load %arg10[%c7_1331, %c96_1332] : memref<8x144xf32, #tpu.memory_space<vmem>>, vector<1x16xf32>
    tpu.vector_store %arg10[%c7_1331, %c96_1332], %782 {strides = array<i32>} : memref<8x144xf32, #tpu.memory_space<vmem>>, vector<1x16xf32>,
    %c63_1333 = arith.constant 63 : index
    %c0_1334 = arith.constant 0 : index
    %784 = vector.load %arg8[%c63_1333, %c0_1334] : memref<72x16xf32, #tpu.memory_space<vmem>>, vector<1x16xf32>
    %c7_1335 = arith.constant 7 : index
    %c112_1336 = arith.constant 112 : index
    %785 = vector.load %arg10[%c7_1335, %c112_1336] : memref<8x144xf32, #tpu.memory_space<vmem>>, vector<1x16xf32>
    tpu.vector_store %arg10[%c7_1335, %c112_1336], %784 {strides = array<i32>} : memref<8x144xf32, #tpu.memory_space<vmem>>, vector<1x16xf32>,
    %c64_1337 = arith.constant 64 : index
    %c0_1338 = arith.constant 0 : index
    %786 = vector.load %arg8[%c64_1337, %c0_1338] : memref<72x16xf32, #tpu.memory_space<vmem>>, vector<1x16xf32>
    %c7_1339 = arith.constant 7 : index
    %c128_1340 = arith.constant 128 : index
    %787 = vector.load %arg10[%c7_1339, %c128_1340] : memref<8x144xf32, #tpu.memory_space<vmem>>, vector<1x16xf32>
    tpu.vector_store %arg10[%c7_1339, %c128_1340], %786 {strides = array<i32>} : memref<8x144xf32, #tpu.memory_space<vmem>>, vector<1x16xf32>,
    %c0_1341 = arith.constant 0 : index
    %c0_1342 = arith.constant 0 : index
    %788 = vector.load %arg10[%c0_1341, %c0_1342] : memref<8x144xf32, #tpu.memory_space<vmem>>, vector<8x144xf32>
    %c0_1343 = arith.constant 0 : index
    %c0_1344 = arith.constant 0 : index
    %789 = vector.load %arg3[%c0_1343, %c0_1344] : memref<144x32xf32, #tpu.memory_space<vmem>>, vector<144x32xf32>
    %cst_1345 = arith.constant dense<0.000000e+00> : vector<8x32xf32>
    %790 = tpu.matmul %788, %789, %cst_1345 {dimension_numbers = #tpu.dot_dimension_numbers<[1], [0], [0], [1], [0, 0, 1, 1], [], []>} : vector<8x144xf32>, vector<144x32xf32>, vector<8x32xf32> -> vector<8x32xf32>
    %c2_1346 = arith.constant 2 : index
    %c0_1347 = arith.constant 0 : index
    %791 = vector.load %arg5[%c2_1346, %c0_1347] : memref<4x32xf32, #tpu.memory_space<vmem>>, vector<1x32xf32>
    %792 = vector.broadcast %791 : vector<1x32xf32> to vector<8x32xf32>
    %793 = arith.addf %790, %792 : vector<8x32xf32>
    %cst_1348 = arith.constant 0.000000e+00 : f32
    %794 = vector.broadcast %cst_1348 : f32 to vector<8x32xf32>
    %795 = arith.maximumf %793, %794 : vector<8x32xf32>
    %796 = vector.extract_strided_slice %795 {offsets = [0, 0], sizes = [1, 32], strides = [1, 1]} : vector<8x32xf32> to vector<1x32xf32>
    %c0_1349 = arith.constant 0 : index
    %c0_1350 = arith.constant 0 : index
    %797 = vector.load %arg11[%c0_1349, %c0_1350] : memref<2x128xf32, #tpu.memory_space<vmem>>, vector<1x32xf32>
    tpu.vector_store %arg11[%c0_1349, %c0_1350], %796 {strides = array<i32>} : memref<2x128xf32, #tpu.memory_space<vmem>>, vector<1x32xf32>,
    %798 = vector.extract_strided_slice %795 {offsets = [1, 0], sizes = [1, 32], strides = [1, 1]} : vector<8x32xf32> to vector<1x32xf32>
    %c0_1351 = arith.constant 0 : index
    %c32_1352 = arith.constant 32 : index
    %799 = vector.load %arg11[%c0_1351, %c32_1352] : memref<2x128xf32, #tpu.memory_space<vmem>>, vector<1x32xf32>
    tpu.vector_store %arg11[%c0_1351, %c32_1352], %798 {strides = array<i32>} : memref<2x128xf32, #tpu.memory_space<vmem>>, vector<1x32xf32>,
    %800 = vector.extract_strided_slice %795 {offsets = [2, 0], sizes = [1, 32], strides = [1, 1]} : vector<8x32xf32> to vector<1x32xf32>
    %c0_1353 = arith.constant 0 : index
    %c64_1354 = arith.constant 64 : index
    %801 = vector.load %arg11[%c0_1353, %c64_1354] : memref<2x128xf32, #tpu.memory_space<vmem>>, vector<1x32xf32>
    tpu.vector_store %arg11[%c0_1353, %c64_1354], %800 {strides = array<i32>} : memref<2x128xf32, #tpu.memory_space<vmem>>, vector<1x32xf32>,
    %802 = vector.extract_strided_slice %795 {offsets = [3, 0], sizes = [1, 32], strides = [1, 1]} : vector<8x32xf32> to vector<1x32xf32>
    %c0_1355 = arith.constant 0 : index
    %c96_1356 = arith.constant 96 : index
    %803 = vector.load %arg11[%c0_1355, %c96_1356] : memref<2x128xf32, #tpu.memory_space<vmem>>, vector<1x32xf32>
    tpu.vector_store %arg11[%c0_1355, %c96_1356], %802 {strides = array<i32>} : memref<2x128xf32, #tpu.memory_space<vmem>>, vector<1x32xf32>,
    %804 = vector.extract_strided_slice %795 {offsets = [4, 0], sizes = [1, 32], strides = [1, 1]} : vector<8x32xf32> to vector<1x32xf32>
    %c1_1357 = arith.constant 1 : index
    %c0_1358 = arith.constant 0 : index
    %805 = vector.load %arg11[%c1_1357, %c0_1358] : memref<2x128xf32, #tpu.memory_space<vmem>>, vector<1x32xf32>
    tpu.vector_store %arg11[%c1_1357, %c0_1358], %804 {strides = array<i32>} : memref<2x128xf32, #tpu.memory_space<vmem>>, vector<1x32xf32>,
    %806 = vector.extract_strided_slice %795 {offsets = [5, 0], sizes = [1, 32], strides = [1, 1]} : vector<8x32xf32> to vector<1x32xf32>
    %c1_1359 = arith.constant 1 : index
    %c32_1360 = arith.constant 32 : index
    %807 = vector.load %arg11[%c1_1359, %c32_1360] : memref<2x128xf32, #tpu.memory_space<vmem>>, vector<1x32xf32>
    tpu.vector_store %arg11[%c1_1359, %c32_1360], %806 {strides = array<i32>} : memref<2x128xf32, #tpu.memory_space<vmem>>, vector<1x32xf32>,
    %808 = vector.extract_strided_slice %795 {offsets = [6, 0], sizes = [1, 32], strides = [1, 1]} : vector<8x32xf32> to vector<1x32xf32>
    %c1_1361 = arith.constant 1 : index
    %c64_1362 = arith.constant 64 : index
    %809 = vector.load %arg11[%c1_1361, %c64_1362] : memref<2x128xf32, #tpu.memory_space<vmem>>, vector<1x32xf32>
    tpu.vector_store %arg11[%c1_1361, %c64_1362], %808 {strides = array<i32>} : memref<2x128xf32, #tpu.memory_space<vmem>>, vector<1x32xf32>,
    %810 = vector.extract_strided_slice %795 {offsets = [7, 0], sizes = [1, 32], strides = [1, 1]} : vector<8x32xf32> to vector<1x32xf32>
    %c1_1363 = arith.constant 1 : index
    %c96_1364 = arith.constant 96 : index
    %811 = vector.load %arg11[%c1_1363, %c96_1364] : memref<2x128xf32, #tpu.memory_space<vmem>>, vector<1x32xf32>
    tpu.vector_store %arg11[%c1_1363, %c96_1364], %810 {strides = array<i32>} : memref<2x128xf32, #tpu.memory_space<vmem>>, vector<1x32xf32>,
    %c0_1365 = arith.constant 0 : index
    %c0_1366 = arith.constant 0 : index
    %812 = vector.load %arg11[%c0_1365, %c0_1366] : memref<2x128xf32, #tpu.memory_space<vmem>>, vector<2x128xf32>
    %c0_1367 = arith.constant 0 : index
    %c0_1368 = arith.constant 0 : index
    %813 = vector.load %arg4[%c0_1367, %c0_1368] : memref<128x32xf32, #tpu.memory_space<vmem>>, vector<128x32xf32>
    %cst_1369 = arith.constant dense<0.000000e+00> : vector<2x32xf32>
    %814 = tpu.matmul %812, %813, %cst_1369 {dimension_numbers = #tpu.dot_dimension_numbers<[1], [0], [0], [1], [0, 0, 1, 1], [], []>} : vector<2x128xf32>, vector<128x32xf32>, vector<2x32xf32> -> vector<2x32xf32>
    %c3_1370 = arith.constant 3 : index
    %c0_1371 = arith.constant 0 : index
    %815 = vector.load %arg5[%c3_1370, %c0_1371] : memref<4x32xf32, #tpu.memory_space<vmem>>, vector<1x32xf32>
    %816 = vector.broadcast %815 : vector<1x32xf32> to vector<2x32xf32>
    %817 = arith.addf %814, %816 : vector<2x32xf32>
    %cst_1372 = arith.constant 0.000000e+00 : f32
    %818 = vector.broadcast %cst_1372 : f32 to vector<2x32xf32>
    %819 = arith.maximumf %817, %818 : vector<2x32xf32>
    %c0_1373 = arith.constant 0 : index
    %c0_1374 = arith.constant 0 : index
    %820 = vector.load %arg6[%c0_1373, %c0_1374] : memref<2x32xf32, #tpu.memory_space<vmem>>, vector<2x32xf32>
    tpu.vector_store %arg6[%c0_1373, %c0_1374], %819 {strides = array<i32>} : memref<2x32xf32, #tpu.memory_space<vmem>>, vector<2x32xf32>,
    return
  }
}

</mosaic_0001>

<llo_original>
// kernel: convolutional_encoder.1
$region0: #{convolutional_encoder.1}
  #allocation0 [shape = 'u32[]', space=smem, size = 0x4, offset = 0x4, fixed_abs, tag = 'smem constant byte address 0x4 - core index']
  #allocation1 [shape = 'u32[144,128]{1,0:T(1,128)}', space=vmem, size = 0x12000, scoped, tag = 'internal scratch']
  #allocation2 [shape = 'f32[200,8]{1,0:T(8,128)}', space=vmem, size = 0x19000, scoped, tag = 'scratch operand']
  #allocation3 [shape = 'f32[72,16]{1,0:T(8,128)}', space=vmem, size = 0x9000, scoped, tag = 'scratch operand']
  #allocation4 [shape = 'f32[32,72]{1,0:T(8,128)}', space=vmem, size = 0x4000, scoped, tag = 'scratch operand']
  #allocation5 [shape = 'f32[8,144]{1,0:T(8,128)}', space=vmem, size = 0x2000, scoped, tag = 'scratch operand']
  #allocation6 [shape = 'f32[2,128]{1,0:T(2,128)}', space=vmem, size = 0x400, scoped, tag = 'scratch operand']
  %s0 = inlined_call_operand.vmem [shape: f32[128,36], index: 0, kind: input, shape index: {}]
  %s1 = inlined_call_operand.vmem [shape: f32[36,8], index: 1, kind: input, shape index: {}]
  %s2 = inlined_call_operand.vmem [shape: f32[72,16], index: 2, kind: input, shape index: {}]
  %s3 = inlined_call_operand.vmem [shape: f32[144,32], index: 3, kind: input, shape index: {}]
  %s4 = inlined_call_operand.vmem [shape: f32[128,32], index: 4, kind: input, shape index: {}]
  %s5 = inlined_call_operand.vmem [shape: f32[4,32], index: 5, kind: input, shape index: {}]
  %s6 = inlined_call_operand.hbm [shape: f32[2,32], index: 6, kind: output, shape index: {}]
  %s7 = sld [smem:[#allocation0]]
  $region34: #{convolutional_encoder.1} parent=0
    _
  %s9 = ssub.s32 1, %s7
  %s10 = scalar_select 0, %s9, %s7
  $region1: #{convolutional_encoder.1} parent=0
    #allocation7 [shape = 'u8[1024]{0}', space=vmem, size = 0x400, scoped, tag = 'output window, operand 0, single buffered']
    #allocation8 [shape = 's32[1]{0}', space=sflag, size = 0x4, scoped, tag = 'scoped memory for convolutional_encoder.1']
    %11 = vsyncpa [#allocation8], 0
    // Predicated region
    $region2: #{convolutional_encoder.1} parent=1 // pred_check
      _
    $region3: #{convolutional_encoder.1} parent=1 // pred_check_branch
      %13 = sbr.rel (0) target = $region5
    $region4: #{convolutional_encoder.1} parent=1 // pred_region
      _
    $region5: #{convolutional_encoder.1} parent=1 // pred_fallthru
      _
    // Predicated region
    $region6: #{convolutional_encoder.1} parent=1 // pred_check
      _
    $region7: #{convolutional_encoder.1} parent=1 // pred_check_branch
      %15 = sbr.rel (0) target = $region9
    $region8: #{convolutional_encoder.1} parent=1 // pred_region
      _
    $region9: #{convolutional_encoder.1} parent=1 // pred_fallthru
      _
    // Predicated region
    $region10: #{convolutional_encoder.1} parent=1 // pred_check
      _
    $region11: #{convolutional_encoder.1} parent=1 // pred_check_branch
      %17 = sbr.rel (0) target = $region13
    $region12: #{convolutional_encoder.1} parent=1 // pred_region
      _
    $region13: #{convolutional_encoder.1} parent=1 // pred_fallthru
      _
    // Predicated region
    $region14: #{convolutional_encoder.1} parent=1 // pred_check
      _
    $region15: #{convolutional_encoder.1} parent=1 // pred_check_branch
      %19 = sbr.rel (0) target = $region17
    $region16: #{convolutional_encoder.1} parent=1 // pred_region
      _
    $region17: #{convolutional_encoder.1} parent=1 // pred_fallthru
      _
    // Predicated region
    $region18: #{convolutional_encoder.1} parent=1 // pred_check
      _
    $region19: #{convolutional_encoder.1} parent=1 // pred_check_branch
      %21 = sbr.rel (0) target = $region21
    $region20: #{convolutional_encoder.1} parent=1 // pred_region
      _
    $region21: #{convolutional_encoder.1} parent=1 // pred_fallthru
      _
    // Predicated region
    $region22: #{convolutional_encoder.1} parent=1 // pred_check
      _
    $region23: #{convolutional_encoder.1} parent=1 // pred_check_branch
      %23 = sbr.rel (0) target = $region25
    $region24: #{convolutional_encoder.1} parent=1 // pred_region
      _
    $region25: #{convolutional_encoder.1} parent=1 // pred_fallthru
      _
    %v24 = vld [vmem:[%s0] sm:$0xff]
    %v25 = vld [vmem:[%s0 + $0x8] sm:$0xff]
    %v26 = vld [vmem:[%s0 + $0x10] sm:$0xff]
    %v27 = vld [vmem:[%s0 + $0x18] sm:$0xff]
    %v28 = vld [vmem:[%s0 + $0x20] sm:$0xff]
    %v29 = vld [vmem:[%s0 + $0x28] sm:$0xff]
    %v30 = vld [vmem:[%s0 + $0x30] sm:$0xff]
    %v31 = vld [vmem:[%s0 + $0x38] sm:$0xff]
    %v32 = vld [vmem:[%s0 + $0x40] sm:$0xff]
    %v33 = vld [vmem:[%s0 + $0x48] sm:$0xff]
    %v34 = vld [vmem:[%s0 + $0x50] sm:$0xff]
    %v35 = vld [vmem:[%s0 + $0x58] sm:$0xff]
    %v36 = vld [vmem:[%s0 + $0x60] sm:$0xff]
    %v37 = vld [vmem:[%s0 + $0x68] sm:$0xff]
    %v38 = vld [vmem:[%s0 + $0x70] sm:$0xff]
    %v39 = vld [vmem:[%s0 + $0x78] sm:$0xff]
    %v40 = vld [vmem:[%s1] sm:$0xff]
    %v41 = vld [vmem:[%s1 + $0x8] sm:$0xff]
    %v42 = vld [vmem:[%s1 + $0x10] sm:$0xff]
    %v43 = vld [vmem:[%s1 + $0x18] sm:$0xff]
    %v44 = vld [vmem:[%s1 + $0x20] sm:$0xf]
    %v45 = vld [vmem:[%s5] sm:$0x1]
    %v46 = vlaneseq
    %v47 = vshrl.u32 %v46, 7
    %v48 = vsub.s32 0, %v47
    %v49 = vrot.slane %v45, %v48
    %vm50 = vcmask 293888
    %v52 = vsel %vm50, %v24, 0
    %v55 = vsel %vm50, %v25, 0
    %v58 = vsel %vm50, %v26, 0
    %v61 = vsel %vm50, %v27, 0
    %v64 = vsel %vm50, %v28, 0
    %v67 = vsel %vm50, %v29, 0
    %v70 = vsel %vm50, %v30, 0
    %v73 = vsel %vm50, %v31, 0
    %v76 = vsel %vm50, %v32, 0
    %v79 = vsel %vm50, %v33, 0
    %v82 = vsel %vm50, %v34, 0
    %v85 = vsel %vm50, %v35, 0
    %v88 = vsel %vm50, %v36, 0
    %v91 = vsel %vm50, %v37, 0
    %v94 = vsel %vm50, %v38, 0
    %v97 = vsel %vm50, %v39, 0
    %vm99 = vcmask 1043456
    %v101 = vsel %vm99, %v44, 0
    %103 = vmatprep.subr.mxu0 0.0
    %104 = vmatpush1.msra.mxu0 0.0
    %105 = vmatprep.subr.mxu0 0.0
    %106 = vmatpush1.msra.mxu0 0.0
    %107 = vmatprep.subr.mxu0 0.0
    %108 = vmatpush1.msra.mxu0 0.0
    %109 = vmatprep.subr.mxu0 0.0
    %110 = vmatpush1.msra.mxu0 0.0
    %111 = vmatprep.subr.mxu0 0.0
    %112 = vmatpush1.msra.mxu0 0.0
    %113 = vmatprep.subr.mxu0 0.0
    %114 = vmatpush1.msra.mxu0 0.0
    %115 = vmatprep.subr.mxu0 0.0
    %116 = vmatpush1.msra.mxu0 0.0
    %117 = vmatprep.subr.mxu0 0.0
    %118 = vmatpush1.msra.mxu0 0.0
    %119 = vmatprep.subr.mxu0 0.0
    %120 = vmatpush1.msra.mxu0 0.0
    %121 = vmatprep.subr.mxu0 0.0
    %122 = vmatpush1.msra.mxu0 0.0
    %123 = vmatprep.subr.mxu0 0.0
    %124 = vmatpush1.msra.mxu0 0.0
    %125 = vmatprep.subr.mxu0 0.0
    %126 = vmatpush1.msra.mxu0 %v101
    %127 = vmatprep.subr.mxu0 0.0
    %128 = vmatpush1.msra.mxu0 %v43
    %129 = vmatprep.subr.mxu0 0.0
    %130 = vmatpush1.msra.mxu0 %v42
    %131 = vmatprep.subr.mxu0 0.0
    %132 = vmatpush1.msra.mxu0 %v41
    %133 = vmatprep.subr.mxu0 0.0
    %134 = vmatpush1.msra.mxu0 %v40
    %135 = vmatprep.subr.mxu0 0.0
    %136 = vmatpush2.msra.mxu0 0.0
    %137 = vmatprep.subr.mxu0 0.0
    %138 = vmatpush2.msra.mxu0 0.0
    %139 = vmatprep.subr.mxu0 0.0
    %140 = vmatpush2.msra.mxu0 0.0
    %141 = vmatprep.subr.mxu0 0.0
    %142 = vmatpush2.msra.mxu0 0.0
    %143 = vmatprep.subr.mxu0 0.0
    %144 = vmatpush2.msra.mxu0 0.0
    %145 = vmatprep.subr.mxu0 0.0
    %146 = vmatpush2.msra.mxu0 0.0
    %147 = vmatprep.subr.mxu0 0.0
    %148 = vmatpush2.msra.mxu0 0.0
    %149 = vmatprep.subr.mxu0 0.0
    %150 = vmatpush2.msra.mxu0 0.0
    %151 = vmatprep.subr.mxu0 0.0
    %152 = vmatpush2.msra.mxu0 0.0
    %153 = vmatprep.subr.mxu0 0.0
    %154 = vmatpush2.msra.mxu0 0.0
    %155 = vmatprep.subr.mxu0 0.0
    %156 = vmatpush2.msra.mxu0 0.0
    %157 = vmatprep.subr.mxu0 0.0
    %158 = vmatpush2.msra.mxu0 0.0
    %159 = vmatprep.subr.mxu0 0.0
    %160 = vmatpush2.msra.mxu0 0.0
    %161 = vmatprep.subr.mxu0 0.0
    %162 = vmatpush2.msra.mxu0 0.0
    %163 = vmatprep.subr.mxu0 0.0
    %164 = vmatpush2.msra.mxu0 0.0
    %165 = vmatprep.subr.mxu0 0.0
    %166 = vmatpush2.msra.mxu0 0.0
    %167 = vmatprep.mubr.f32.mxu0 0.0
    %168 = vmatmul.mubr.f32.gmra.mxu0 %v52
    %v169 = vpop.f32.mrf.mxu0
    %v170 = vadd.f32 %v49, %v169
    %v171 = vpop.f32.mrf.mxu0
    %172 = vmatprep.mubr.f32.mxu0 0.0
    %173 = vmatmul.mubr.f32.gmra.mxu0 %v55
    %v174 = vpop.f32.mrf.mxu0
    %v175 = vadd.f32 %v49, %v174
    %v176 = vpop.f32.mrf.mxu0
    %177 = vmatprep.mubr.f32.mxu0 0.0
    %178 = vmatmul.mubr.f32.gmra.mxu0 %v58
    %v179 = vpop.f32.mrf.mxu0
    %v180 = vadd.f32 %v49, %v179
    %v181 = vpop.f32.mrf.mxu0
    %182 = vmatprep.mubr.f32.mxu0 0.0
    %183 = vmatmul.mubr.f32.gmra.mxu0 %v61
    %v184 = vpop.f32.mrf.mxu0
    %v185 = vadd.f32 %v49, %v184
    %v186 = vpop.f32.mrf.mxu0
    %187 = vmatprep.mubr.f32.mxu0 0.0
    %188 = vmatmul.mubr.f32.gmra.mxu0 %v64
    %v189 = vpop.f32.mrf.mxu0
    %v190 = vadd.f32 %v49, %v189
    %v191 = vpop.f32.mrf.mxu0
    %192 = vmatprep.mubr.f32.mxu0 0.0
    %193 = vmatmul.mubr.f32.gmra.mxu0 %v67
    %v194 = vpop.f32.mrf.mxu0
    %v195 = vadd.f32 %v49, %v194
    %v196 = vpop.f32.mrf.mxu0
    %197 = vmatprep.mubr.f32.mxu0 0.0
    %198 = vmatmul.mubr.f32.gmra.mxu0 %v70
    %v199 = vpop.f32.mrf.mxu0
    %v200 = vadd.f32 %v49, %v199
    %v201 = vpop.f32.mrf.mxu0
    %202 = vmatprep.mubr.f32.mxu0 0.0
    %203 = vmatmul.mubr.f32.gmra.mxu0 %v73
    %v204 = vpop.f32.mrf.mxu0
    %v205 = vadd.f32 %v49, %v204
    %v206 = vpop.f32.mrf.mxu0
    %207 = vmatprep.mubr.f32.mxu0 0.0
    %208 = vmatmul.mubr.f32.gmra.mxu0 %v76
    %v209 = vpop.f32.mrf.mxu0
    %v210 = vadd.f32 %v49, %v209
    %v211 = vpop.f32.mrf.mxu0
    %212 = vmatprep.mubr.f32.mxu0 0.0
    %213 = vmatmul.mubr.f32.gmra.mxu0 %v79
    %v214 = vpop.f32.mrf.mxu0
    %v215 = vadd.f32 %v49, %v214
    %v216 = vpop.f32.mrf.mxu0
    %217 = vmatprep.mubr.f32.mxu0 0.0
    %218 = vmatmul.mubr.f32.gmra.mxu0 %v82
    %v219 = vpop.f32.mrf.mxu0
    %v220 = vadd.f32 %v49, %v219
    %v221 = vpop.f32.mrf.mxu0
    %222 = vmatprep.mubr.f32.mxu0 0.0
    %223 = vmatmul.mubr.f32.gmra.mxu0 %v85
    %v224 = vpop.f32.mrf.mxu0
    %v225 = vadd.f32 %v49, %v224
    %v226 = vpop.f32.mrf.mxu0
    %227 = vmatprep.mubr.f32.mxu0 0.0
    %228 = vmatmul.mubr.f32.gmra.mxu0 %v88
    %v229 = vpop.f32.mrf.mxu0
    %v230 = vadd.f32 %v49, %v229
    %v231 = vpop.f32.mrf.mxu0
    %232 = vmatprep.mubr.f32.mxu0 0.0
    %233 = vmatmul.mubr.f32.gmra.mxu0 %v91
    %v234 = vpop.f32.mrf.mxu0
    %v235 = vadd.f32 %v49, %v234
    %v236 = vpop.f32.mrf.mxu0
    %237 = vmatprep.mubr.f32.mxu0 0.0
    %238 = vmatmul.mubr.f32.gmra.mxu0 %v94
    %v239 = vpop.f32.mrf.mxu0
    %v240 = vadd.f32 %v49, %v239
    %v241 = vpop.f32.mrf.mxu0
    %242 = vmatprep.mubr.f32.mxu0 0.0
    %243 = vmatmul.mubr.f32.gmra.mxu0 %v97
    %v244 = vpop.f32.mrf.mxu0
    %v245 = vadd.f32 %v49, %v244
    %v246 = vpop.f32.mrf.mxu0
    %247 = vdwg.mxu0
    %v248 = vmax.f32 %v170, 0.0
    %v249 = vmax.f32 %v175, 0.0
    %v250 = vmax.f32 %v180, 0.0
    %v251 = vmax.f32 %v185, 0.0
    %v252 = vmax.f32 %v190, 0.0
    %v253 = vmax.f32 %v195, 0.0
    %v254 = vmax.f32 %v200, 0.0
    %v255 = vmax.f32 %v205, 0.0
    %v256 = vmax.f32 %v210, 0.0
    %v257 = vmax.f32 %v215, 0.0
    %v258 = vmax.f32 %v220, 0.0
    %v259 = vmax.f32 %v225, 0.0
    %v260 = vmax.f32 %v230, 0.0
    %v261 = vmax.f32 %v235, 0.0
    %v262 = vmax.f32 %v240, 0.0
    %v263 = vmax.f32 %v245, 0.0
    %vm264 = vcmask 64512
    %265 = vst.msk [vmem:[#allocation2] sm:$0xff] %vm264, 0.0
    %266 = vst.msk [vmem:[#allocation2 + $0x8] sm:$0xff] %vm264, 0.0
    %267 = vst.msk [vmem:[#allocation2 + $0x10] sm:$0xff] %vm264, 0.0
    %268 = vst.msk [vmem:[#allocation2 + $0x18] sm:$0xff] %vm264, 0.0
    %269 = vst.msk [vmem:[#allocation2 + $0x20] sm:$0xff] %vm264, 0.0
    %270 = vst.msk [vmem:[#allocation2 + $0x28] sm:$0xff] %vm264, 0.0
    %271 = vst.msk [vmem:[#allocation2 + $0x30] sm:$0xff] %vm264, 0.0
    %272 = vst.msk [vmem:[#allocation2 + $0x38] sm:$0xff] %vm264, 0.0
    %273 = vst.msk [vmem:[#allocation2 + $0x40] sm:$0xff] %vm264, 0.0
    %274 = vst.msk [vmem:[#allocation2 + $0x48] sm:$0xff] %vm264, 0.0
    %275 = vst.msk [vmem:[#allocation2 + $0x50] sm:$0xff] %vm264, 0.0
    %276 = vst.msk [vmem:[#allocation2 + $0x58] sm:$0xff] %vm264, 0.0
    %277 = vst.msk [vmem:[#allocation2 + $0x60] sm:$0xff] %vm264, 0.0
    %278 = vst.msk [vmem:[#allocation2 + $0x68] sm:$0xff] %vm264, 0.0
    %279 = vst.msk [vmem:[#allocation2 + $0x70] sm:$0xff] %vm264, 0.0
    %280 = vst.msk [vmem:[#allocation2 + $0x78] sm:$0xff] %vm264, 0.0
    %281 = vst.msk [vmem:[#allocation2 + $0x80] sm:$0xff] %vm264, 0.0
    %282 = vst.msk [vmem:[#allocation2 + $0x88] sm:$0xff] %vm264, 0.0
    %283 = vst.msk [vmem:[#allocation2 + $0x90] sm:$0xff] %vm264, 0.0
    %284 = vst.msk [vmem:[#allocation2 + $0x98] sm:$0xff] %vm264, 0.0
    %285 = vst.msk [vmem:[#allocation2 + $0xa0] sm:$0xff] %vm264, 0.0
    %286 = vst.msk [vmem:[#allocation2 + $0xa8] sm:$0xff] %vm264, 0.0
    %287 = vst.msk [vmem:[#allocation2 + $0xb0] sm:$0xff] %vm264, 0.0
    %288 = vst.msk [vmem:[#allocation2 + $0xb8] sm:$0xff] %vm264, 0.0
    %289 = vst.msk [vmem:[#allocation2 + $0xc0] sm:$0xff] %vm264, 0.0
    %290 = vst.msk [vmem:[#allocation2 + $0xb] sm:$0xff] %vm264, %v248
    %291 = vst.msk [vmem:[#allocation2 + $0x15] sm:$0xff] %vm264, %v249
    %292 = vst.msk [vmem:[#allocation2 + $0x1f] sm:$0xff] %vm264, %v250
    %293 = vst.msk [vmem:[#allocation2 + $0x29] sm:$0xff] %vm264, %v251
    %294 = vst.msk [vmem:[#allocation2 + $0x33] sm:$0xff] %vm264, %v252
    %295 = vst.msk [vmem:[#allocation2 + $0x3d] sm:$0xff] %vm264, %v253
    %296 = vst.msk [vmem:[#allocation2 + $0x47] sm:$0xff] %vm264, %v254
    %297 = vst.msk [vmem:[#allocation2 + $0x51] sm:$0xff] %vm264, %v255
    %298 = vst.msk [vmem:[#allocation2 + $0x6f] sm:$0xff] %vm264, %v256
    %299 = vst.msk [vmem:[#allocation2 + $0x79] sm:$0xff] %vm264, %v257
    %300 = vst.msk [vmem:[#allocation2 + $0x83] sm:$0xff] %vm264, %v258
    %301 = vst.msk [vmem:[#allocation2 + $0x8d] sm:$0xff] %vm264, %v259
    %302 = vst.msk [vmem:[#allocation2 + $0x97] sm:$0xff] %vm264, %v260
    %303 = vst.msk [vmem:[#allocation2 + $0xa1] sm:$0xff] %vm264, %v261
    %304 = vst.msk [vmem:[#allocation2 + $0xab] sm:$0xff] %vm264, %v262
    %305 = vst.msk [vmem:[#allocation2 + $0xb5] sm:$0xff] %vm264, %v263
    %v306 = vld [vmem:[#allocation2] sm:$0x1]
    %vm307 = vcmask 57344
    %308 = vst.msk [vmem:[#allocation4] sm:$0x1] %vm307, %v306
    %v309 = vld [vmem:[#allocation2 + $0x1] sm:$0x1]
    %311 = vrot.lane.b32.xlu0 %v309, 8
    %v312 = vpop.permute.xlu0 %311
    %vm314 = vcmask 122944
    %315 = vst.msk [vmem:[#allocation4] sm:$0x1] %vm314, %v312
    %v316 = vld [vmem:[#allocation2 + $0x2] sm:$0x1]
    %318 = vrot.lane.b32.xlu0 %v316, 16
    %v319 = vpop.permute.xlu0 %318
    %vm321 = vcmask 188544
    %322 = vst.msk [vmem:[#allocation4] sm:$0x1] %vm321, %v319
    %v323 = vld [vmem:[#allocation2 + $0xa] sm:$0x1]
    %325 = vrot.lane.b32.xlu0 %v323, 24
    %v326 = vpop.permute.xlu0 %325
    %vm328 = vcmask 254144
    %329 = vst.msk [vmem:[#allocation4] sm:$0x1] %vm328, %v326
    %v330 = vld [vmem:[#allocation2 + $0xb] sm:$0x1]
    %332 = vrot.lane.b32.xlu0 %v330, 32
    %v333 = vpop.permute.xlu0 %332
    %vm335 = vcmask 319744
    %336 = vst.msk [vmem:[#allocation4] sm:$0x1] %vm335, %v333
    %v337 = vld [vmem:[#allocation2 + $0xc] sm:$0x1]
    %339 = vrot.lane.b32.xlu0 %v337, 40
    %v340 = vpop.permute.xlu0 %339
    %vm342 = vcmask 385344
    %343 = vst.msk [vmem:[#allocation4] sm:$0x1] %vm342, %v340
    %v344 = vld [vmem:[#allocation2 + $0x14] sm:$0x1]
    %346 = vrot.lane.b32.xlu0 %v344, 48
    %v347 = vpop.permute.xlu0 %346
    %vm349 = vcmask 450944
    %350 = vst.msk [vmem:[#allocation4] sm:$0x1] %vm349, %v347
    %v351 = vld [vmem:[#allocation2 + $0x15] sm:$0x1]
    %353 = vrot.lane.b32.xlu0 %v351, 56
    %v354 = vpop.permute.xlu0 %353
    %vm356 = vcmask 516544
    %357 = vst.msk [vmem:[#allocation4] sm:$0x1] %vm356, %v354
    %v358 = vld [vmem:[#allocation2 + $0x16] sm:$0x1]
    %360 = vrot.lane.b32.xlu0 %v358, 64
    %v361 = vpop.permute.xlu0 %360
    %vm363 = vcmask 582144
    %364 = vst.msk [vmem:[#allocation4] sm:$0x1] %vm363, %v361
    %v365 = vld [vmem:[#allocation2 + $0x2] sm:$0x1]
    %366 = vst.msk [vmem:[#allocation4 + $0x1] sm:$0x1] %vm307, %v365
    %v367 = vld [vmem:[#allocation2 + $0x3] sm:$0x1]
    %369 = vrot.lane.b32.xlu0 %v367, 8
    %v370 = vpop.permute.xlu0 %369
    %372 = vst.msk [vmem:[#allocation4 + $0x1] sm:$0x1] %vm314, %v370
    %v373 = vld [vmem:[#allocation2 + $0x4] sm:$0x1]
    %375 = vrot.lane.b32.xlu0 %v373, 16
    %v376 = vpop.permute.xlu0 %375
    %378 = vst.msk [vmem:[#allocation4 + $0x1] sm:$0x1] %vm321, %v376
    %v379 = vld [vmem:[#allocation2 + $0xc] sm:$0x1]
    %381 = vrot.lane.b32.xlu0 %v379, 24
    %v382 = vpop.permute.xlu0 %381
    %384 = vst.msk [vmem:[#allocation4 + $0x1] sm:$0x1] %vm328, %v382
    %v385 = vld [vmem:[#allocation2 + $0xd] sm:$0x1]
    %387 = vrot.lane.b32.xlu0 %v385, 32
    %v388 = vpop.permute.xlu0 %387
    %390 = vst.msk [vmem:[#allocation4 + $0x1] sm:$0x1] %vm335, %v388
    %v391 = vld [vmem:[#allocation2 + $0xe] sm:$0x1]
    %393 = vrot.lane.b32.xlu0 %v391, 40
    %v394 = vpop.permute.xlu0 %393
    %396 = vst.msk [vmem:[#allocation4 + $0x1] sm:$0x1] %vm342, %v394
    %v397 = vld [vmem:[#allocation2 + $0x16] sm:$0x1]
    %399 = vrot.lane.b32.xlu0 %v397, 48
    %v400 = vpop.permute.xlu0 %399
    %402 = vst.msk [vmem:[#allocation4 + $0x1] sm:$0x1] %vm349, %v400
    %v403 = vld [vmem:[#allocation2 + $0x17] sm:$0x1]
    %405 = vrot.lane.b32.xlu0 %v403, 56
    %v406 = vpop.permute.xlu0 %405
    %408 = vst.msk [vmem:[#allocation4 + $0x1] sm:$0x1] %vm356, %v406
    %v409 = vld [vmem:[#allocation2 + $0x18] sm:$0x1]
    %411 = vrot.lane.b32.xlu0 %v409, 64
    %v412 = vpop.permute.xlu0 %411
    %414 = vst.msk [vmem:[#allocation4 + $0x1] sm:$0x1] %vm363, %v412
    %v415 = vld [vmem:[#allocation2 + $0x4] sm:$0x1]
    %416 = vst.msk [vmem:[#allocation4 + $0x2] sm:$0x1] %vm307, %v415
    %v417 = vld [vmem:[#allocation2 + $0x5] sm:$0x1]
    %419 = vrot.lane.b32.xlu0 %v417, 8
    %v420 = vpop.permute.xlu0 %419
    %422 = vst.msk [vmem:[#allocation4 + $0x2] sm:$0x1] %vm314, %v420
    %v423 = vld [vmem:[#allocation2 + $0x6] sm:$0x1]
    %425 = vrot.lane.b32.xlu0 %v423, 16
    %v426 = vpop.permute.xlu0 %425
    %428 = vst.msk [vmem:[#allocation4 + $0x2] sm:$0x1] %vm321, %v426
    %v429 = vld [vmem:[#allocation2 + $0xe] sm:$0x1]
    %431 = vrot.lane.b32.xlu0 %v429, 24
    %v432 = vpop.permute.xlu0 %431
    %434 = vst.msk [vmem:[#allocation4 + $0x2] sm:$0x1] %vm328, %v432
    %v435 = vld [vmem:[#allocation2 + $0xf] sm:$0x1]
    %437 = vrot.lane.b32.xlu0 %v435, 32
    %v438 = vpop.permute.xlu0 %437
    %440 = vst.msk [vmem:[#allocation4 + $0x2] sm:$0x1] %vm335, %v438
    %v441 = vld [vmem:[#allocation2 + $0x10] sm:$0x1]
    %443 = vrot.lane.b32.xlu0 %v441, 40
    %v444 = vpop.permute.xlu0 %443
    %446 = vst.msk [vmem:[#allocation4 + $0x2] sm:$0x1] %vm342, %v444
    %v447 = vld [vmem:[#allocation2 + $0x18] sm:$0x1]
    %449 = vrot.lane.b32.xlu0 %v447, 48
    %v450 = vpop.permute.xlu0 %449
    %452 = vst.msk [vmem:[#allocation4 + $0x2] sm:$0x1] %vm349, %v450
    %v453 = vld [vmem:[#allocation2 + $0x19] sm:$0x1]
    %455 = vrot.lane.b32.xlu0 %v453, 56
    %v456 = vpop.permute.xlu0 %455
    %458 = vst.msk [vmem:[#allocation4 + $0x2] sm:$0x1] %vm356, %v456
    %v459 = vld [vmem:[#allocation2 + $0x1a] sm:$0x1]
    %461 = vrot.lane.b32.xlu0 %v459, 64
    %v462 = vpop.permute.xlu0 %461
    %464 = vst.msk [vmem:[#allocation4 + $0x2] sm:$0x1] %vm363, %v462
    %v465 = vld [vmem:[#allocation2 + $0x6] sm:$0x1]
    %466 = vst.msk [vmem:[#allocation4 + $0x3] sm:$0x1] %vm307, %v465
    %v467 = vld [vmem:[#allocation2 + $0x7] sm:$0x1]
    %469 = vrot.lane.b32.xlu0 %v467, 8
    %v470 = vpop.permute.xlu0 %469
    %472 = vst.msk [vmem:[#allocation4 + $0x3] sm:$0x1] %vm314, %v470
    %v473 = vld [vmem:[#allocation2 + $0x8] sm:$0x1]
    %475 = vrot.lane.b32.xlu0 %v473, 16
    %v476 = vpop.permute.xlu0 %475
    %478 = vst.msk [vmem:[#allocation4 + $0x3] sm:$0x1] %vm321, %v476
    %v479 = vld [vmem:[#allocation2 + $0x10] sm:$0x1]
    %481 = vrot.lane.b32.xlu0 %v479, 24
    %v482 = vpop.permute.xlu0 %481
    %484 = vst.msk [vmem:[#allocation4 + $0x3] sm:$0x1] %vm328, %v482
    %v485 = vld [vmem:[#allocation2 + $0x11] sm:$0x1]
    %487 = vrot.lane.b32.xlu0 %v485, 32
    %v488 = vpop.permute.xlu0 %487
    %490 = vst.msk [vmem:[#allocation4 + $0x3] sm:$0x1] %vm335, %v488
    %v491 = vld [vmem:[#allocation2 + $0x12] sm:$0x1]
    %493 = vrot.lane.b32.xlu0 %v491, 40
    %v494 = vpop.permute.xlu0 %493
    %496 = vst.msk [vmem:[#allocation4 + $0x3] sm:$0x1] %vm342, %v494
    %v497 = vld [vmem:[#allocation2 + $0x1a] sm:$0x1]
    %499 = vrot.lane.b32.xlu0 %v497, 48
    %v500 = vpop.permute.xlu0 %499
    %502 = vst.msk [vmem:[#allocation4 + $0x3] sm:$0x1] %vm349, %v500
    %v503 = vld [vmem:[#allocation2 + $0x1b] sm:$0x1]
    %505 = vrot.lane.b32.xlu0 %v503, 56
    %v506 = vpop.permute.xlu0 %505
    %508 = vst.msk [vmem:[#allocation4 + $0x3] sm:$0x1] %vm356, %v506
    %v509 = vld [vmem:[#allocation2 + $0x1c] sm:$0x1]
    %511 = vrot.lane.b32.xlu0 %v509, 64
    %v512 = vpop.permute.xlu0 %511
    %514 = vst.msk [vmem:[#allocation4 + $0x3] sm:$0x1] %vm363, %v512
    %v515 = vld [vmem:[#allocation2 + $0x14] sm:$0x1]
    %516 = vst.msk [vmem:[#allocation4 + $0x4] sm:$0x1] %vm307, %v515
    %v517 = vld [vmem:[#allocation2 + $0x15] sm:$0x1]
    %519 = vrot.lane.b32.xlu0 %v517, 8
    %v520 = vpop.permute.xlu0 %519
    %522 = vst.msk [vmem:[#allocation4 + $0x4] sm:$0x1] %vm314, %v520
    %v523 = vld [vmem:[#allocation2 + $0x16] sm:$0x1]
    %525 = vrot.lane.b32.xlu0 %v523, 16
    %v526 = vpop.permute.xlu0 %525
    %528 = vst.msk [vmem:[#allocation4 + $0x4] sm:$0x1] %vm321, %v526
    %v529 = vld [vmem:[#allocation2 + $0x1e] sm:$0x1]
    %531 = vrot.lane.b32.xlu0 %v529, 24
    %v532 = vpop.permute.xlu0 %531
    %534 = vst.msk [vmem:[#allocation4 + $0x4] sm:$0x1] %vm328, %v532
    %v535 = vld [vmem:[#allocation2 + $0x1f] sm:$0x1]
    %537 = vrot.lane.b32.xlu0 %v535, 32
    %v538 = vpop.permute.xlu0 %537
    %540 = vst.msk [vmem:[#allocation4 + $0x4] sm:$0x1] %vm335, %v538
    %v541 = vld [vmem:[#allocation2 + $0x20] sm:$0x1]
    %543 = vrot.lane.b32.xlu0 %v541, 40
    %v544 = vpop.permute.xlu0 %543
    %546 = vst.msk [vmem:[#allocation4 + $0x4] sm:$0x1] %vm342, %v544
    %v547 = vld [vmem:[#allocation2 + $0x28] sm:$0x1]
    %549 = vrot.lane.b32.xlu0 %v547, 48
    %v550 = vpop.permute.xlu0 %549
    %552 = vst.msk [vmem:[#allocation4 + $0x4] sm:$0x1] %vm349, %v550
    %v553 = vld [vmem:[#allocation2 + $0x29] sm:$0x1]
    %555 = vrot.lane.b32.xlu0 %v553, 56
    %v556 = vpop.permute.xlu0 %555
    %558 = vst.msk [vmem:[#allocation4 + $0x4] sm:$0x1] %vm356, %v556
    %v559 = vld [vmem:[#allocation2 + $0x2a] sm:$0x1]
    %561 = vrot.lane.b32.xlu0 %v559, 64
    %v562 = vpop.permute.xlu0 %561
    %564 = vst.msk [vmem:[#allocation4 + $0x4] sm:$0x1] %vm363, %v562
    %v565 = vld [vmem:[#allocation2 + $0x16] sm:$0x1]
    %566 = vst.msk [vmem:[#allocation4 + $0x5] sm:$0x1] %vm307, %v565
    %v567 = vld [vmem:[#allocation2 + $0x17] sm:$0x1]
    %569 = vrot.lane.b32.xlu0 %v567, 8
    %v570 = vpop.permute.xlu0 %569
    %572 = vst.msk [vmem:[#allocation4 + $0x5] sm:$0x1] %vm314, %v570
    %v573 = vld [vmem:[#allocation2 + $0x18] sm:$0x1]
    %575 = vrot.lane.b32.xlu0 %v573, 16
    %v576 = vpop.permute.xlu0 %575
    %578 = vst.msk [vmem:[#allocation4 + $0x5] sm:$0x1] %vm321, %v576
    %v579 = vld [vmem:[#allocation2 + $0x20] sm:$0x1]
    %581 = vrot.lane.b32.xlu0 %v579, 24
    %v582 = vpop.permute.xlu0 %581
    %584 = vst.msk [vmem:[#allocation4 + $0x5] sm:$0x1] %vm328, %v582
    %v585 = vld [vmem:[#allocation2 + $0x21] sm:$0x1]
    %587 = vrot.lane.b32.xlu0 %v585, 32
    %v588 = vpop.permute.xlu0 %587
    %590 = vst.msk [vmem:[#allocation4 + $0x5] sm:$0x1] %vm335, %v588
    %v591 = vld [vmem:[#allocation2 + $0x22] sm:$0x1]
    %593 = vrot.lane.b32.xlu0 %v591, 40
    %v594 = vpop.permute.xlu0 %593
    %596 = vst.msk [vmem:[#allocation4 + $0x5] sm:$0x1] %vm342, %v594
    %v597 = vld [vmem:[#allocation2 + $0x2a] sm:$0x1]
    %599 = vrot.lane.b32.xlu0 %v597, 48
    %v600 = vpop.permute.xlu0 %599
    %602 = vst.msk [vmem:[#allocation4 + $0x5] sm:$0x1] %vm349, %v600
    %v603 = vld [vmem:[#allocation2 + $0x2b] sm:$0x1]
    %605 = vrot.lane.b32.xlu0 %v603, 56
    %v606 = vpop.permute.xlu0 %605
    %608 = vst.msk [vmem:[#allocation4 + $0x5] sm:$0x1] %vm356, %v606
    %v609 = vld [vmem:[#allocation2 + $0x2c] sm:$0x1]
    %611 = vrot.lane.b32.xlu0 %v609, 64
    %v612 = vpop.permute.xlu0 %611
    %614 = vst.msk [vmem:[#allocation4 + $0x5] sm:$0x1] %vm363, %v612
    %v615 = vld [vmem:[#allocation2 + $0x18] sm:$0x1]
    %616 = vst.msk [vmem:[#allocation4 + $0x6] sm:$0x1] %vm307, %v615
    %v617 = vld [vmem:[#allocation2 + $0x19] sm:$0x1]
    %619 = vrot.lane.b32.xlu0 %v617, 8
    %v620 = vpop.permute.xlu0 %619
    %622 = vst.msk [vmem:[#allocation4 + $0x6] sm:$0x1] %vm314, %v620
    %v623 = vld [vmem:[#allocation2 + $0x1a] sm:$0x1]
    %625 = vrot.lane.b32.xlu0 %v623, 16
    %v626 = vpop.permute.xlu0 %625
    %628 = vst.msk [vmem:[#allocation4 + $0x6] sm:$0x1] %vm321, %v626
    %v629 = vld [vmem:[#allocation2 + $0x22] sm:$0x1]
    %631 = vrot.lane.b32.xlu0 %v629, 24
    %v632 = vpop.permute.xlu0 %631
    %634 = vst.msk [vmem:[#allocation4 + $0x6] sm:$0x1] %vm328, %v632
    %v635 = vld [vmem:[#allocation2 + $0x23] sm:$0x1]
    %637 = vrot.lane.b32.xlu0 %v635, 32
    %v638 = vpop.permute.xlu0 %637
    %640 = vst.msk [vmem:[#allocation4 + $0x6] sm:$0x1] %vm335, %v638
    %v641 = vld [vmem:[#allocation2 + $0x24] sm:$0x1]
    %643 = vrot.lane.b32.xlu0 %v641, 40
    %v644 = vpop.permute.xlu0 %643
    %646 = vst.msk [vmem:[#allocation4 + $0x6] sm:$0x1] %vm342, %v644
    %v647 = vld [vmem:[#allocation2 + $0x2c] sm:$0x1]
    %649 = vrot.lane.b32.xlu0 %v647, 48
    %v650 = vpop.permute.xlu0 %649
    %652 = vst.msk [vmem:[#allocation4 + $0x6] sm:$0x1] %vm349, %v650
    %v653 = vld [vmem:[#allocation2 + $0x2d] sm:$0x1]
    %655 = vrot.lane.b32.xlu0 %v653, 56
    %v656 = vpop.permute.xlu0 %655
    %658 = vst.msk [vmem:[#allocation4 + $0x6] sm:$0x1] %vm356, %v656
    %v659 = vld [vmem:[#allocation2 + $0x2e] sm:$0x1]
    %661 = vrot.lane.b32.xlu0 %v659, 64
    %v662 = vpop.permute.xlu0 %661
    %664 = vst.msk [vmem:[#allocation4 + $0x6] sm:$0x1] %vm363, %v662
    %v665 = vld [vmem:[#allocation2 + $0x1a] sm:$0x1]
    %666 = vst.msk [vmem:[#allocation4 + $0x7] sm:$0x1] %vm307, %v665
    %v667 = vld [vmem:[#allocation2 + $0x1b] sm:$0x1]
    %669 = vrot.lane.b32.xlu0 %v667, 8
    %v670 = vpop.permute.xlu0 %669
    %672 = vst.msk [vmem:[#allocation4 + $0x7] sm:$0x1] %vm314, %v670
    %v673 = vld [vmem:[#allocation2 + $0x1c] sm:$0x1]
    %675 = vrot.lane.b32.xlu0 %v673, 16
    %v676 = vpop.permute.xlu0 %675
    %678 = vst.msk [vmem:[#allocation4 + $0x7] sm:$0x1] %vm321, %v676
    %v679 = vld [vmem:[#allocation2 + $0x24] sm:$0x1]
    %681 = vrot.lane.b32.xlu0 %v679, 24
    %v682 = vpop.permute.xlu0 %681
    %684 = vst.msk [vmem:[#allocation4 + $0x7] sm:$0x1] %vm328, %v682
    %v685 = vld [vmem:[#allocation2 + $0x25] sm:$0x1]
    %687 = vrot.lane.b32.xlu0 %v685, 32
    %v688 = vpop.permute.xlu0 %687
    %690 = vst.msk [vmem:[#allocation4 + $0x7] sm:$0x1] %vm335, %v688
    %v691 = vld [vmem:[#allocation2 + $0x26] sm:$0x1]
    %693 = vrot.lane.b32.xlu0 %v691, 40
    %v694 = vpop.permute.xlu0 %693
    %696 = vst.msk [vmem:[#allocation4 + $0x7] sm:$0x1] %vm342, %v694
    %v697 = vld [vmem:[#allocation2 + $0x2e] sm:$0x1]
    %699 = vrot.lane.b32.xlu0 %v697, 48
    %v700 = vpop.permute.xlu0 %699
    %702 = vst.msk [vmem:[#allocation4 + $0x7] sm:$0x1] %vm349, %v700
    %v703 = vld [vmem:[#allocation2 + $0x2f] sm:$0x1]
    %705 = vrot.lane.b32.xlu0 %v703, 56
    %v706 = vpop.permute.xlu0 %705
    %708 = vst.msk [vmem:[#allocation4 + $0x7] sm:$0x1] %vm356, %v706
    %v709 = vld [vmem:[#allocation2 + $0x30] sm:$0x1]
    %711 = vrot.lane.b32.xlu0 %v709, 64
    %v712 = vpop.permute.xlu0 %711
    %714 = vst.msk [vmem:[#allocation4 + $0x7] sm:$0x1] %vm363, %v712
    %v715 = vld [vmem:[#allocation2 + $0x28] sm:$0x1]
    %716 = vst.msk [vmem:[#allocation4 + $0x8] sm:$0x1] %vm307, %v715
    %v717 = vld [vmem:[#allocation2 + $0x29] sm:$0x1]
    %719 = vrot.lane.b32.xlu0 %v717, 8
    %v720 = vpop.permute.xlu0 %719
    %722 = vst.msk [vmem:[#allocation4 + $0x8] sm:$0x1] %vm314, %v720
    %v723 = vld [vmem:[#allocation2 + $0x2a] sm:$0x1]
    %725 = vrot.lane.b32.xlu0 %v723, 16
    %v726 = vpop.permute.xlu0 %725
    %728 = vst.msk [vmem:[#allocation4 + $0x8] sm:$0x1] %vm321, %v726
    %v729 = vld [vmem:[#allocation2 + $0x32] sm:$0x1]
    %731 = vrot.lane.b32.xlu0 %v729, 24
    %v732 = vpop.permute.xlu0 %731
    %734 = vst.msk [vmem:[#allocation4 + $0x8] sm:$0x1] %vm328, %v732
    %v735 = vld [vmem:[#allocation2 + $0x33] sm:$0x1]
    %737 = vrot.lane.b32.xlu0 %v735, 32
    %v738 = vpop.permute.xlu0 %737
    %740 = vst.msk [vmem:[#allocation4 + $0x8] sm:$0x1] %vm335, %v738
    %v741 = vld [vmem:[#allocation2 + $0x34] sm:$0x1]
    %743 = vrot.lane.b32.xlu0 %v741, 40
    %v744 = vpop.permute.xlu0 %743
    %746 = vst.msk [vmem:[#allocation4 + $0x8] sm:$0x1] %vm342, %v744
    %v747 = vld [vmem:[#allocation2 + $0x3c] sm:$0x1]
    %749 = vrot.lane.b32.xlu0 %v747, 48
    %v750 = vpop.permute.xlu0 %749
    %752 = vst.msk [vmem:[#allocation4 + $0x8] sm:$0x1] %vm349, %v750
    %v753 = vld [vmem:[#allocation2 + $0x3d] sm:$0x1]
    %755 = vrot.lane.b32.xlu0 %v753, 56
    %v756 = vpop.permute.xlu0 %755
    %758 = vst.msk [vmem:[#allocation4 + $0x8] sm:$0x1] %vm356, %v756
    %v759 = vld [vmem:[#allocation2 + $0x3e] sm:$0x1]
    %761 = vrot.lane.b32.xlu0 %v759, 64
    %v762 = vpop.permute.xlu0 %761
    %764 = vst.msk [vmem:[#allocation4 + $0x8] sm:$0x1] %vm363, %v762
    %v765 = vld [vmem:[#allocation2 + $0x2a] sm:$0x1]
    %766 = vst.msk [vmem:[#allocation4 + $0x9] sm:$0x1] %vm307, %v765
    %v767 = vld [vmem:[#allocation2 + $0x2b] sm:$0x1]
    %769 = vrot.lane.b32.xlu0 %v767, 8
    %v770 = vpop.permute.xlu0 %769
    %772 = vst.msk [vmem:[#allocation4 + $0x9] sm:$0x1] %vm314, %v770
    %v773 = vld [vmem:[#allocation2 + $0x2c] sm:$0x1]
    %775 = vrot.lane.b32.xlu0 %v773, 16
    %v776 = vpop.permute.xlu0 %775
    %778 = vst.msk [vmem:[#allocation4 + $0x9] sm:$0x1] %vm321, %v776
    %v779 = vld [vmem:[#allocation2 + $0x34] sm:$0x1]
    %781 = vrot.lane.b32.xlu0 %v779, 24
    %v782 = vpop.permute.xlu0 %781
    %784 = vst.msk [vmem:[#allocation4 + $0x9] sm:$0x1] %vm328, %v782
    %v785 = vld [vmem:[#allocation2 + $0x35] sm:$0x1]
    %787 = vrot.lane.b32.xlu0 %v785, 32
    %v788 = vpop.permute.xlu0 %787
    %790 = vst.msk [vmem:[#allocation4 + $0x9] sm:$0x1] %vm335, %v788
    %v791 = vld [vmem:[#allocation2 + $0x36] sm:$0x1]
    %793 = vrot.lane.b32.xlu0 %v791, 40
    %v794 = vpop.permute.xlu0 %793
    %796 = vst.msk [vmem:[#allocation4 + $0x9] sm:$0x1] %vm342, %v794
    %v797 = vld [vmem:[#allocation2 + $0x3e] sm:$0x1]
    %799 = vrot.lane.b32.xlu0 %v797, 48
    %v800 = vpop.permute.xlu0 %799
    %802 = vst.msk [vmem:[#allocation4 + $0x9] sm:$0x1] %vm349, %v800
    %v803 = vld [vmem:[#allocation2 + $0x3f] sm:$0x1]
    %805 = vrot.lane.b32.xlu0 %v803, 56
    %v806 = vpop.permute.xlu0 %805
    %808 = vst.msk [vmem:[#allocation4 + $0x9] sm:$0x1] %vm356, %v806
    %v809 = vld [vmem:[#allocation2 + $0x40] sm:$0x1]
    %811 = vrot.lane.b32.xlu0 %v809, 64
    %v812 = vpop.permute.xlu0 %811
    %814 = vst.msk [vmem:[#allocation4 + $0x9] sm:$0x1] %vm363, %v812
    %v815 = vld [vmem:[#allocation2 + $0x2c] sm:$0x1]
    %816 = vst.msk [vmem:[#allocation4 + $0xa] sm:$0x1] %vm307, %v815
    %v817 = vld [vmem:[#allocation2 + $0x2d] sm:$0x1]
    %819 = vrot.lane.b32.xlu0 %v817, 8
    %v820 = vpop.permute.xlu0 %819
    %822 = vst.msk [vmem:[#allocation4 + $0xa] sm:$0x1] %vm314, %v820
    %v823 = vld [vmem:[#allocation2 + $0x2e] sm:$0x1]
    %825 = vrot.lane.b32.xlu0 %v823, 16
    %v826 = vpop.permute.xlu0 %825
    %828 = vst.msk [vmem:[#allocation4 + $0xa] sm:$0x1] %vm321, %v826
    %v829 = vld [vmem:[#allocation2 + $0x36] sm:$0x1]
    %831 = vrot.lane.b32.xlu0 %v829, 24
    %v832 = vpop.permute.xlu0 %831
    %834 = vst.msk [vmem:[#allocation4 + $0xa] sm:$0x1] %vm328, %v832
    %v835 = vld [vmem:[#allocation2 + $0x37] sm:$0x1]
    %837 = vrot.lane.b32.xlu0 %v835, 32
    %v838 = vpop.permute.xlu0 %837
    %840 = vst.msk [vmem:[#allocation4 + $0xa] sm:$0x1] %vm335, %v838
    %v841 = vld [vmem:[#allocation2 + $0x38] sm:$0x1]
    %843 = vrot.lane.b32.xlu0 %v841, 40
    %v844 = vpop.permute.xlu0 %843
    %846 = vst.msk [vmem:[#allocation4 + $0xa] sm:$0x1] %vm342, %v844
    %v847 = vld [vmem:[#allocation2 + $0x40] sm:$0x1]
    %849 = vrot.lane.b32.xlu0 %v847, 48
    %v850 = vpop.permute.xlu0 %849
    %852 = vst.msk [vmem:[#allocation4 + $0xa] sm:$0x1] %vm349, %v850
    %v853 = vld [vmem:[#allocation2 + $0x41] sm:$0x1]
    %855 = vrot.lane.b32.xlu0 %v853, 56
    %v856 = vpop.permute.xlu0 %855
    %858 = vst.msk [vmem:[#allocation4 + $0xa] sm:$0x1] %vm356, %v856
    %v859 = vld [vmem:[#allocation2 + $0x42] sm:$0x1]
    %861 = vrot.lane.b32.xlu0 %v859, 64
    %v862 = vpop.permute.xlu0 %861
    %864 = vst.msk [vmem:[#allocation4 + $0xa] sm:$0x1] %vm363, %v862
    %v865 = vld [vmem:[#allocation2 + $0x2e] sm:$0x1]
    %866 = vst.msk [vmem:[#allocation4 + $0xb] sm:$0x1] %vm307, %v865
    %v867 = vld [vmem:[#allocation2 + $0x2f] sm:$0x1]
    %869 = vrot.lane.b32.xlu0 %v867, 8
    %v870 = vpop.permute.xlu0 %869
    %872 = vst.msk [vmem:[#allocation4 + $0xb] sm:$0x1] %vm314, %v870
    %v873 = vld [vmem:[#allocation2 + $0x30] sm:$0x1]
    %875 = vrot.lane.b32.xlu0 %v873, 16
    %v876 = vpop.permute.xlu0 %875
    %878 = vst.msk [vmem:[#allocation4 + $0xb] sm:$0x1] %vm321, %v876
    %v879 = vld [vmem:[#allocation2 + $0x38] sm:$0x1]
    %881 = vrot.lane.b32.xlu0 %v879, 24
    %v882 = vpop.permute.xlu0 %881
    %884 = vst.msk [vmem:[#allocation4 + $0xb] sm:$0x1] %vm328, %v882
    %v885 = vld [vmem:[#allocation2 + $0x39] sm:$0x1]
    %887 = vrot.lane.b32.xlu0 %v885, 32
    %v888 = vpop.permute.xlu0 %887
    %890 = vst.msk [vmem:[#allocation4 + $0xb] sm:$0x1] %vm335, %v888
    %v891 = vld [vmem:[#allocation2 + $0x3a] sm:$0x1]
    %893 = vrot.lane.b32.xlu0 %v891, 40
    %v894 = vpop.permute.xlu0 %893
    %896 = vst.msk [vmem:[#allocation4 + $0xb] sm:$0x1] %vm342, %v894
    %v897 = vld [vmem:[#allocation2 + $0x42] sm:$0x1]
    %899 = vrot.lane.b32.xlu0 %v897, 48
    %v900 = vpop.permute.xlu0 %899
    %902 = vst.msk [vmem:[#allocation4 + $0xb] sm:$0x1] %vm349, %v900
    %v903 = vld [vmem:[#allocation2 + $0x43] sm:$0x1]
    %905 = vrot.lane.b32.xlu0 %v903, 56
    %v906 = vpop.permute.xlu0 %905
    %908 = vst.msk [vmem:[#allocation4 + $0xb] sm:$0x1] %vm356, %v906
    %v909 = vld [vmem:[#allocation2 + $0x44] sm:$0x1]
    %911 = vrot.lane.b32.xlu0 %v909, 64
    %v912 = vpop.permute.xlu0 %911
    %914 = vst.msk [vmem:[#allocation4 + $0xb] sm:$0x1] %vm363, %v912
    %v915 = vld [vmem:[#allocation2 + $0x3c] sm:$0x1]
    %916 = vst.msk [vmem:[#allocation4 + $0xc] sm:$0x1] %vm307, %v915
    %v917 = vld [vmem:[#allocation2 + $0x3d] sm:$0x1]
    %919 = vrot.lane.b32.xlu0 %v917, 8
    %v920 = vpop.permute.xlu0 %919
    %922 = vst.msk [vmem:[#allocation4 + $0xc] sm:$0x1] %vm314, %v920
    %v923 = vld [vmem:[#allocation2 + $0x3e] sm:$0x1]
    %925 = vrot.lane.b32.xlu0 %v923, 16
    %v926 = vpop.permute.xlu0 %925
    %928 = vst.msk [vmem:[#allocation4 + $0xc] sm:$0x1] %vm321, %v926
    %v929 = vld [vmem:[#allocation2 + $0x46] sm:$0x1]
    %931 = vrot.lane.b32.xlu0 %v929, 24
    %v932 = vpop.permute.xlu0 %931
    %934 = vst.msk [vmem:[#allocation4 + $0xc] sm:$0x1] %vm328, %v932
    %v935 = vld [vmem:[#allocation2 + $0x47] sm:$0x1]
    %937 = vrot.lane.b32.xlu0 %v935, 32
    %v938 = vpop.permute.xlu0 %937
    %940 = vst.msk [vmem:[#allocation4 + $0xc] sm:$0x1] %vm335, %v938
    %v941 = vld [vmem:[#allocation2 + $0x48] sm:$0x1]
    %943 = vrot.lane.b32.xlu0 %v941, 40
    %v944 = vpop.permute.xlu0 %943
    %946 = vst.msk [vmem:[#allocation4 + $0xc] sm:$0x1] %vm342, %v944
    %v947 = vld [vmem:[#allocation2 + $0x50] sm:$0x1]
    %949 = vrot.lane.b32.xlu0 %v947, 48
    %v950 = vpop.permute.xlu0 %949
    %952 = vst.msk [vmem:[#allocation4 + $0xc] sm:$0x1] %vm349, %v950
    %v953 = vld [vmem:[#allocation2 + $0x51] sm:$0x1]
    %955 = vrot.lane.b32.xlu0 %v953, 56
    %v956 = vpop.permute.xlu0 %955
    %958 = vst.msk [vmem:[#allocation4 + $0xc] sm:$0x1] %vm356, %v956
    %v959 = vld [vmem:[#allocation2 + $0x52] sm:$0x1]
    %961 = vrot.lane.b32.xlu0 %v959, 64
    %v962 = vpop.permute.xlu0 %961
    %964 = vst.msk [vmem:[#allocation4 + $0xc] sm:$0x1] %vm363, %v962
    %v965 = vld [vmem:[#allocation2 + $0x3e] sm:$0x1]
    %966 = vst.msk [vmem:[#allocation4 + $0xd] sm:$0x1] %vm307, %v965
    %v967 = vld [vmem:[#allocation2 + $0x3f] sm:$0x1]
    %969 = vrot.lane.b32.xlu0 %v967, 8
    %v970 = vpop.permute.xlu0 %969
    %972 = vst.msk [vmem:[#allocation4 + $0xd] sm:$0x1] %vm314, %v970
    %v973 = vld [vmem:[#allocation2 + $0x40] sm:$0x1]
    %975 = vrot.lane.b32.xlu0 %v973, 16
    %v976 = vpop.permute.xlu0 %975
    %978 = vst.msk [vmem:[#allocation4 + $0xd] sm:$0x1] %vm321, %v976
    %v979 = vld [vmem:[#allocation2 + $0x48] sm:$0x1]
    %981 = vrot.lane.b32.xlu0 %v979, 24
    %v982 = vpop.permute.xlu0 %981
    %984 = vst.msk [vmem:[#allocation4 + $0xd] sm:$0x1] %vm328, %v982
    %v985 = vld [vmem:[#allocation2 + $0x49] sm:$0x1]
    %987 = vrot.lane.b32.xlu0 %v985, 32
    %v988 = vpop.permute.xlu0 %987
    %990 = vst.msk [vmem:[#allocation4 + $0xd] sm:$0x1] %vm335, %v988
    %v991 = vld [vmem:[#allocation2 + $0x4a] sm:$0x1]
    %993 = vrot.lane.b32.xlu0 %v991, 40
    %v994 = vpop.permute.xlu0 %993
    %996 = vst.msk [vmem:[#allocation4 + $0xd] sm:$0x1] %vm342, %v994
    %v997 = vld [vmem:[#allocation2 + $0x52] sm:$0x1]
    %999 = vrot.lane.b32.xlu0 %v997, 48
    %v1000 = vpop.permute.xlu0 %999
    %1002 = vst.msk [vmem:[#allocation4 + $0xd] sm:$0x1] %vm349, %v1000
    %v1003 = vld [vmem:[#allocation2 + $0x53] sm:$0x1]
    %1005 = vrot.lane.b32.xlu0 %v1003, 56
    %v1006 = vpop.permute.xlu0 %1005
    %1008 = vst.msk [vmem:[#allocation4 + $0xd] sm:$0x1] %vm356, %v1006
    %v1009 = vld [vmem:[#allocation2 + $0x54] sm:$0x1]
    %1011 = vrot.lane.b32.xlu0 %v1009, 64
    %v1012 = vpop.permute.xlu0 %1011
    %1014 = vst.msk [vmem:[#allocation4 + $0xd] sm:$0x1] %vm363, %v1012
    %v1015 = vld [vmem:[#allocation2 + $0x40] sm:$0x1]
    %1016 = vst.msk [vmem:[#allocation4 + $0xe] sm:$0x1] %vm307, %v1015
    %v1017 = vld [vmem:[#allocation2 + $0x41] sm:$0x1]
    %1019 = vrot.lane.b32.xlu0 %v1017, 8
    %v1020 = vpop.permute.xlu0 %1019
    %1022 = vst.msk [vmem:[#allocation4 + $0xe] sm:$0x1] %vm314, %v1020
    %v1023 = vld [vmem:[#allocation2 + $0x42] sm:$0x1]
    %1025 = vrot.lane.b32.xlu0 %v1023, 16
    %v1026 = vpop.permute.xlu0 %1025
    %1028 = vst.msk [vmem:[#allocation4 + $0xe] sm:$0x1] %vm321, %v1026
    %v1029 = vld [vmem:[#allocation2 + $0x4a] sm:$0x1]
    %1031 = vrot.lane.b32.xlu0 %v1029, 24
    %v1032 = vpop.permute.xlu0 %1031
    %1034 = vst.msk [vmem:[#allocation4 + $0xe] sm:$0x1] %vm328, %v1032
    %v1035 = vld [vmem:[#allocation2 + $0x4b] sm:$0x1]
    %1037 = vrot.lane.b32.xlu0 %v1035, 32
    %v1038 = vpop.permute.xlu0 %1037
    %1040 = vst.msk [vmem:[#allocation4 + $0xe] sm:$0x1] %vm335, %v1038
    %v1041 = vld [vmem:[#allocation2 + $0x4c] sm:$0x1]
    %1043 = vrot.lane.b32.xlu0 %v1041, 40
    %v1044 = vpop.permute.xlu0 %1043
    %1046 = vst.msk [vmem:[#allocation4 + $0xe] sm:$0x1] %vm342, %v1044
    %v1047 = vld [vmem:[#allocation2 + $0x54] sm:$0x1]
    %1049 = vrot.lane.b32.xlu0 %v1047, 48
    %v1050 = vpop.permute.xlu0 %1049
    %1052 = vst.msk [vmem:[#allocation4 + $0xe] sm:$0x1] %vm349, %v1050
    %v1053 = vld [vmem:[#allocation2 + $0x55] sm:$0x1]
    %1055 = vrot.lane.b32.xlu0 %v1053, 56
    %v1056 = vpop.permute.xlu0 %1055
    %1058 = vst.msk [vmem:[#allocation4 + $0xe] sm:$0x1] %vm356, %v1056
    %v1059 = vld [vmem:[#allocation2 + $0x56] sm:$0x1]
    %1061 = vrot.lane.b32.xlu0 %v1059, 64
    %v1062 = vpop.permute.xlu0 %1061
    %1064 = vst.msk [vmem:[#allocation4 + $0xe] sm:$0x1] %vm363, %v1062
    %v1065 = vld [vmem:[#allocation2 + $0x42] sm:$0x1]
    %1066 = vst.msk [vmem:[#allocation4 + $0xf] sm:$0x1] %vm307, %v1065
    %v1067 = vld [vmem:[#allocation2 + $0x43] sm:$0x1]
    %1069 = vrot.lane.b32.xlu0 %v1067, 8
    %v1070 = vpop.permute.xlu0 %1069
    %1072 = vst.msk [vmem:[#allocation4 + $0xf] sm:$0x1] %vm314, %v1070
    %v1073 = vld [vmem:[#allocation2 + $0x44] sm:$0x1]
    %1075 = vrot.lane.b32.xlu0 %v1073, 16
    %v1076 = vpop.permute.xlu0 %1075
    %1078 = vst.msk [vmem:[#allocation4 + $0xf] sm:$0x1] %vm321, %v1076
    %v1079 = vld [vmem:[#allocation2 + $0x4c] sm:$0x1]
    %1081 = vrot.lane.b32.xlu0 %v1079, 24
    %v1082 = vpop.permute.xlu0 %1081
    %1084 = vst.msk [vmem:[#allocation4 + $0xf] sm:$0x1] %vm328, %v1082
    %v1085 = vld [vmem:[#allocation2 + $0x4d] sm:$0x1]
    %1087 = vrot.lane.b32.xlu0 %v1085, 32
    %v1088 = vpop.permute.xlu0 %1087
    %1090 = vst.msk [vmem:[#allocation4 + $0xf] sm:$0x1] %vm335, %v1088
    %v1091 = vld [vmem:[#allocation2 + $0x4e] sm:$0x1]
    %1093 = vrot.lane.b32.xlu0 %v1091, 40
    %v1094 = vpop.permute.xlu0 %1093
    %1096 = vst.msk [vmem:[#allocation4 + $0xf] sm:$0x1] %vm342, %v1094
    %v1097 = vld [vmem:[#allocation2 + $0x56] sm:$0x1]
    %1099 = vrot.lane.b32.xlu0 %v1097, 48
    %v1100 = vpop.permute.xlu0 %1099
    %1102 = vst.msk [vmem:[#allocation4 + $0xf] sm:$0x1] %vm349, %v1100
    %v1103 = vld [vmem:[#allocation2 + $0x57] sm:$0x1]
    %1105 = vrot.lane.b32.xlu0 %v1103, 56
    %v1106 = vpop.permute.xlu0 %1105
    %1108 = vst.msk [vmem:[#allocation4 + $0xf] sm:$0x1] %vm356, %v1106
    %v1109 = vld [vmem:[#allocation2 + $0x58] sm:$0x1]
    %1111 = vrot.lane.b32.xlu0 %v1109, 64
    %v1112 = vpop.permute.xlu0 %1111
    %1114 = vst.msk [vmem:[#allocation4 + $0xf] sm:$0x1] %vm363, %v1112
    %v1115 = vld [vmem:[#allocation2 + $0x64] sm:$0x1]
    %1116 = vst.msk [vmem:[#allocation4 + $0x10] sm:$0x1] %vm307, %v1115
    %v1117 = vld [vmem:[#allocation2 + $0x65] sm:$0x1]
    %1119 = vrot.lane.b32.xlu0 %v1117, 8
    %v1120 = vpop.permute.xlu0 %1119
    %1122 = vst.msk [vmem:[#allocation4 + $0x10] sm:$0x1] %vm314, %v1120
    %v1123 = vld [vmem:[#allocation2 + $0x66] sm:$0x1]
    %1125 = vrot.lane.b32.xlu0 %v1123, 16
    %v1126 = vpop.permute.xlu0 %1125
    %1128 = vst.msk [vmem:[#allocation4 + $0x10] sm:$0x1] %vm321, %v1126
    %v1129 = vld [vmem:[#allocation2 + $0x6e] sm:$0x1]
    %1131 = vrot.lane.b32.xlu0 %v1129, 24
    %v1132 = vpop.permute.xlu0 %1131
    %1134 = vst.msk [vmem:[#allocation4 + $0x10] sm:$0x1] %vm328, %v1132
    %v1135 = vld [vmem:[#allocation2 + $0x6f] sm:$0x1]
    %1137 = vrot.lane.b32.xlu0 %v1135, 32
    %v1138 = vpop.permute.xlu0 %1137
    %1140 = vst.msk [vmem:[#allocation4 + $0x10] sm:$0x1] %vm335, %v1138
    %v1141 = vld [vmem:[#allocation2 + $0x70] sm:$0x1]
    %1143 = vrot.lane.b32.xlu0 %v1141, 40
    %v1144 = vpop.permute.xlu0 %1143
    %1146 = vst.msk [vmem:[#allocation4 + $0x10] sm:$0x1] %vm342, %v1144
    %v1147 = vld [vmem:[#allocation2 + $0x78] sm:$0x1]
    %1149 = vrot.lane.b32.xlu0 %v1147, 48
    %v1150 = vpop.permute.xlu0 %1149
    %1152 = vst.msk [vmem:[#allocation4 + $0x10] sm:$0x1] %vm349, %v1150
    %v1153 = vld [vmem:[#allocation2 + $0x79] sm:$0x1]
    %1155 = vrot.lane.b32.xlu0 %v1153, 56
    %v1156 = vpop.permute.xlu0 %1155
    %1158 = vst.msk [vmem:[#allocation4 + $0x10] sm:$0x1] %vm356, %v1156
    %v1159 = vld [vmem:[#allocation2 + $0x7a] sm:$0x1]
    %1161 = vrot.lane.b32.xlu0 %v1159, 64
    %v1162 = vpop.permute.xlu0 %1161
    %1164 = vst.msk [vmem:[#allocation4 + $0x10] sm:$0x1] %vm363, %v1162
    %v1165 = vld [vmem:[#allocation2 + $0x66] sm:$0x1]
    %1166 = vst.msk [vmem:[#allocation4 + $0x11] sm:$0x1] %vm307, %v1165
    %v1167 = vld [vmem:[#allocation2 + $0x67] sm:$0x1]
    %1169 = vrot.lane.b32.xlu0 %v1167, 8
    %v1170 = vpop.permute.xlu0 %1169
    %1172 = vst.msk [vmem:[#allocation4 + $0x11] sm:$0x1] %vm314, %v1170
    %v1173 = vld [vmem:[#allocation2 + $0x68] sm:$0x1]
    %1175 = vrot.lane.b32.xlu0 %v1173, 16
    %v1176 = vpop.permute.xlu0 %1175
    %1178 = vst.msk [vmem:[#allocation4 + $0x11] sm:$0x1] %vm321, %v1176
    %v1179 = vld [vmem:[#allocation2 + $0x70] sm:$0x1]
    %1181 = vrot.lane.b32.xlu0 %v1179, 24
    %v1182 = vpop.permute.xlu0 %1181
    %1184 = vst.msk [vmem:[#allocation4 + $0x11] sm:$0x1] %vm328, %v1182
    %v1185 = vld [vmem:[#allocation2 + $0x71] sm:$0x1]
    %1187 = vrot.lane.b32.xlu0 %v1185, 32
    %v1188 = vpop.permute.xlu0 %1187
    %1190 = vst.msk [vmem:[#allocation4 + $0x11] sm:$0x1] %vm335, %v1188
    %v1191 = vld [vmem:[#allocation2 + $0x72] sm:$0x1]
    %1193 = vrot.lane.b32.xlu0 %v1191, 40
    %v1194 = vpop.permute.xlu0 %1193
    %1196 = vst.msk [vmem:[#allocation4 + $0x11] sm:$0x1] %vm342, %v1194
    %v1197 = vld [vmem:[#allocation2 + $0x7a] sm:$0x1]
    %1199 = vrot.lane.b32.xlu0 %v1197, 48
    %v1200 = vpop.permute.xlu0 %1199
    %1202 = vst.msk [vmem:[#allocation4 + $0x11] sm:$0x1] %vm349, %v1200
    %v1203 = vld [vmem:[#allocation2 + $0x7b] sm:$0x1]
    %1205 = vrot.lane.b32.xlu0 %v1203, 56
    %v1206 = vpop.permute.xlu0 %1205
    %1208 = vst.msk [vmem:[#allocation4 + $0x11] sm:$0x1] %vm356, %v1206
    %v1209 = vld [vmem:[#allocation2 + $0x7c] sm:$0x1]
    %1211 = vrot.lane.b32.xlu0 %v1209, 64
    %v1212 = vpop.permute.xlu0 %1211
    %1214 = vst.msk [vmem:[#allocation4 + $0x11] sm:$0x1] %vm363, %v1212
    %v1215 = vld [vmem:[#allocation2 + $0x68] sm:$0x1]
    %1216 = vst.msk [vmem:[#allocation4 + $0x12] sm:$0x1] %vm307, %v1215
    %v1217 = vld [vmem:[#allocation2 + $0x69] sm:$0x1]
    %1219 = vrot.lane.b32.xlu0 %v1217, 8
    %v1220 = vpop.permute.xlu0 %1219
    %1222 = vst.msk [vmem:[#allocation4 + $0x12] sm:$0x1] %vm314, %v1220
    %v1223 = vld [vmem:[#allocation2 + $0x6a] sm:$0x1]
    %1225 = vrot.lane.b32.xlu0 %v1223, 16
    %v1226 = vpop.permute.xlu0 %1225
    %1228 = vst.msk [vmem:[#allocation4 + $0x12] sm:$0x1] %vm321, %v1226
    %v1229 = vld [vmem:[#allocation2 + $0x72] sm:$0x1]
    %1231 = vrot.lane.b32.xlu0 %v1229, 24
    %v1232 = vpop.permute.xlu0 %1231
    %1234 = vst.msk [vmem:[#allocation4 + $0x12] sm:$0x1] %vm328, %v1232
    %v1235 = vld [vmem:[#allocation2 + $0x73] sm:$0x1]
    %1237 = vrot.lane.b32.xlu0 %v1235, 32
    %v1238 = vpop.permute.xlu0 %1237
    %1240 = vst.msk [vmem:[#allocation4 + $0x12] sm:$0x1] %vm335, %v1238
    %v1241 = vld [vmem:[#allocation2 + $0x74] sm:$0x1]
    %1243 = vrot.lane.b32.xlu0 %v1241, 40
    %v1244 = vpop.permute.xlu0 %1243
    %1246 = vst.msk [vmem:[#allocation4 + $0x12] sm:$0x1] %vm342, %v1244
    %v1247 = vld [vmem:[#allocation2 + $0x7c] sm:$0x1]
    %1249 = vrot.lane.b32.xlu0 %v1247, 48
    %v1250 = vpop.permute.xlu0 %1249
    %1252 = vst.msk [vmem:[#allocation4 + $0x12] sm:$0x1] %vm349, %v1250
    %v1253 = vld [vmem:[#allocation2 + $0x7d] sm:$0x1]
    %1255 = vrot.lane.b32.xlu0 %v1253, 56
    %v1256 = vpop.permute.xlu0 %1255
    %1258 = vst.msk [vmem:[#allocation4 + $0x12] sm:$0x1] %vm356, %v1256
    %v1259 = vld [vmem:[#allocation2 + $0x7e] sm:$0x1]
    %1261 = vrot.lane.b32.xlu0 %v1259, 64
    %v1262 = vpop.permute.xlu0 %1261
    %1264 = vst.msk [vmem:[#allocation4 + $0x12] sm:$0x1] %vm363, %v1262
    %v1265 = vld [vmem:[#allocation2 + $0x6a] sm:$0x1]
    %1266 = vst.msk [vmem:[#allocation4 + $0x13] sm:$0x1] %vm307, %v1265
    %v1267 = vld [vmem:[#allocation2 + $0x6b] sm:$0x1]
    %1269 = vrot.lane.b32.xlu0 %v1267, 8
    %v1270 = vpop.permute.xlu0 %1269
    %1272 = vst.msk [vmem:[#allocation4 + $0x13] sm:$0x1] %vm314, %v1270
    %v1273 = vld [vmem:[#allocation2 + $0x6c] sm:$0x1]
    %1275 = vrot.lane.b32.xlu0 %v1273, 16
    %v1276 = vpop.permute.xlu0 %1275
    %1278 = vst.msk [vmem:[#allocation4 + $0x13] sm:$0x1] %vm321, %v1276
    %v1279 = vld [vmem:[#allocation2 + $0x74] sm:$0x1]
    %1281 = vrot.lane.b32.xlu0 %v1279, 24
    %v1282 = vpop.permute.xlu0 %1281
    %1284 = vst.msk [vmem:[#allocation4 + $0x13] sm:$0x1] %vm328, %v1282
    %v1285 = vld [vmem:[#allocation2 + $0x75] sm:$0x1]
    %1287 = vrot.lane.b32.xlu0 %v1285, 32
    %v1288 = vpop.permute.xlu0 %1287
    %1290 = vst.msk [vmem:[#allocation4 + $0x13] sm:$0x1] %vm335, %v1288
    %v1291 = vld [vmem:[#allocation2 + $0x76] sm:$0x1]
    %1293 = vrot.lane.b32.xlu0 %v1291, 40
    %v1294 = vpop.permute.xlu0 %1293
    %1296 = vst.msk [vmem:[#allocation4 + $0x13] sm:$0x1] %vm342, %v1294
    %v1297 = vld [vmem:[#allocation2 + $0x7e] sm:$0x1]
    %1299 = vrot.lane.b32.xlu0 %v1297, 48
    %v1300 = vpop.permute.xlu0 %1299
    %1302 = vst.msk [vmem:[#allocation4 + $0x13] sm:$0x1] %vm349, %v1300
    %v1303 = vld [vmem:[#allocation2 + $0x7f] sm:$0x1]
    %1305 = vrot.lane.b32.xlu0 %v1303, 56
    %v1306 = vpop.permute.xlu0 %1305
    %1308 = vst.msk [vmem:[#allocation4 + $0x13] sm:$0x1] %vm356, %v1306
    %v1309 = vld [vmem:[#allocation2 + $0x80] sm:$0x1]
    %1311 = vrot.lane.b32.xlu0 %v1309, 64
    %v1312 = vpop.permute.xlu0 %1311
    %1314 = vst.msk [vmem:[#allocation4 + $0x13] sm:$0x1] %vm363, %v1312
    %v1315 = vld [vmem:[#allocation2 + $0x78] sm:$0x1]
    %1316 = vst.msk [vmem:[#allocation4 + $0x14] sm:$0x1] %vm307, %v1315
    %v1317 = vld [vmem:[#allocation2 + $0x79] sm:$0x1]
    %1319 = vrot.lane.b32.xlu0 %v1317, 8
    %v1320 = vpop.permute.xlu0 %1319
    %1322 = vst.msk [vmem:[#allocation4 + $0x14] sm:$0x1] %vm314, %v1320
    %v1323 = vld [vmem:[#allocation2 + $0x7a] sm:$0x1]
    %1325 = vrot.lane.b32.xlu0 %v1323, 16
    %v1326 = vpop.permute.xlu0 %1325
    %1328 = vst.msk [vmem:[#allocation4 + $0x14] sm:$0x1] %vm321, %v1326
    %v1329 = vld [vmem:[#allocation2 + $0x82] sm:$0x1]
    %1331 = vrot.lane.b32.xlu0 %v1329, 24
    %v1332 = vpop.permute.xlu0 %1331
    %1334 = vst.msk [vmem:[#allocation4 + $0x14] sm:$0x1] %vm328, %v1332
    %v1335 = vld [vmem:[#allocation2 + $0x83] sm:$0x1]
    %1337 = vrot.lane.b32.xlu0 %v1335, 32
    %v1338 = vpop.permute.xlu0 %1337
    %1340 = vst.msk [vmem:[#allocation4 + $0x14] sm:$0x1] %vm335, %v1338
    %v1341 = vld [vmem:[#allocation2 + $0x84] sm:$0x1]
    %1343 = vrot.lane.b32.xlu0 %v1341, 40
    %v1344 = vpop.permute.xlu0 %1343
    %1346 = vst.msk [vmem:[#allocation4 + $0x14] sm:$0x1] %vm342, %v1344
    %v1347 = vld [vmem:[#allocation2 + $0x8c] sm:$0x1]
    %1349 = vrot.lane.b32.xlu0 %v1347, 48
    %v1350 = vpop.permute.xlu0 %1349
    %1352 = vst.msk [vmem:[#allocation4 + $0x14] sm:$0x1] %vm349, %v1350
    %v1353 = vld [vmem:[#allocation2 + $0x8d] sm:$0x1]
    %1355 = vrot.lane.b32.xlu0 %v1353, 56
    %v1356 = vpop.permute.xlu0 %1355
    %1358 = vst.msk [vmem:[#allocation4 + $0x14] sm:$0x1] %vm356, %v1356
    %v1359 = vld [vmem:[#allocation2 + $0x8e] sm:$0x1]
    %1361 = vrot.lane.b32.xlu0 %v1359, 64
    %v1362 = vpop.permute.xlu0 %1361
    %1364 = vst.msk [vmem:[#allocation4 + $0x14] sm:$0x1] %vm363, %v1362
    %v1365 = vld [vmem:[#allocation2 + $0x7a] sm:$0x1]
    %1366 = vst.msk [vmem:[#allocation4 + $0x15] sm:$0x1] %vm307, %v1365
    %v1367 = vld [vmem:[#allocation2 + $0x7b] sm:$0x1]
    %1369 = vrot.lane.b32.xlu0 %v1367, 8
    %v1370 = vpop.permute.xlu0 %1369
    %1372 = vst.msk [vmem:[#allocation4 + $0x15] sm:$0x1] %vm314, %v1370
    %v1373 = vld [vmem:[#allocation2 + $0x7c] sm:$0x1]
    %1375 = vrot.lane.b32.xlu0 %v1373, 16
    %v1376 = vpop.permute.xlu0 %1375
    %1378 = vst.msk [vmem:[#allocation4 + $0x15] sm:$0x1] %vm321, %v1376
    %v1379 = vld [vmem:[#allocation2 + $0x84] sm:$0x1]
    %1381 = vrot.lane.b32.xlu0 %v1379, 24
    %v1382 = vpop.permute.xlu0 %1381
    %1384 = vst.msk [vmem:[#allocation4 + $0x15] sm:$0x1] %vm328, %v1382
    %v1385 = vld [vmem:[#allocation2 + $0x85] sm:$0x1]
    %1387 = vrot.lane.b32.xlu0 %v1385, 32
    %v1388 = vpop.permute.xlu0 %1387
    %1390 = vst.msk [vmem:[#allocation4 + $0x15] sm:$0x1] %vm335, %v1388
    %v1391 = vld [vmem:[#allocation2 + $0x86] sm:$0x1]
    %1393 = vrot.lane.b32.xlu0 %v1391, 40
    %v1394 = vpop.permute.xlu0 %1393
    %1396 = vst.msk [vmem:[#allocation4 + $0x15] sm:$0x1] %vm342, %v1394
    %v1397 = vld [vmem:[#allocation2 + $0x8e] sm:$0x1]
    %1399 = vrot.lane.b32.xlu0 %v1397, 48
    %v1400 = vpop.permute.xlu0 %1399
    %1402 = vst.msk [vmem:[#allocation4 + $0x15] sm:$0x1] %vm349, %v1400
    %v1403 = vld [vmem:[#allocation2 + $0x8f] sm:$0x1]
    %1405 = vrot.lane.b32.xlu0 %v1403, 56
    %v1406 = vpop.permute.xlu0 %1405
    %1408 = vst.msk [vmem:[#allocation4 + $0x15] sm:$0x1] %vm356, %v1406
    %v1409 = vld [vmem:[#allocation2 + $0x90] sm:$0x1]
    %1411 = vrot.lane.b32.xlu0 %v1409, 64
    %v1412 = vpop.permute.xlu0 %1411
    %1414 = vst.msk [vmem:[#allocation4 + $0x15] sm:$0x1] %vm363, %v1412
    %v1415 = vld [vmem:[#allocation2 + $0x7c] sm:$0x1]
    %1416 = vst.msk [vmem:[#allocation4 + $0x16] sm:$0x1] %vm307, %v1415
    %v1417 = vld [vmem:[#allocation2 + $0x7d] sm:$0x1]
    %1419 = vrot.lane.b32.xlu0 %v1417, 8
    %v1420 = vpop.permute.xlu0 %1419
    %1422 = vst.msk [vmem:[#allocation4 + $0x16] sm:$0x1] %vm314, %v1420
    %v1423 = vld [vmem:[#allocation2 + $0x7e] sm:$0x1]
    %1425 = vrot.lane.b32.xlu0 %v1423, 16
    %v1426 = vpop.permute.xlu0 %1425
    %1428 = vst.msk [vmem:[#allocation4 + $0x16] sm:$0x1] %vm321, %v1426
    %v1429 = vld [vmem:[#allocation2 + $0x86] sm:$0x1]
    %1431 = vrot.lane.b32.xlu0 %v1429, 24
    %v1432 = vpop.permute.xlu0 %1431
    %1434 = vst.msk [vmem:[#allocation4 + $0x16] sm:$0x1] %vm328, %v1432
    %v1435 = vld [vmem:[#allocation2 + $0x87] sm:$0x1]
    %1437 = vrot.lane.b32.xlu0 %v1435, 32
    %v1438 = vpop.permute.xlu0 %1437
    %1440 = vst.msk [vmem:[#allocation4 + $0x16] sm:$0x1] %vm335, %v1438
    %v1441 = vld [vmem:[#allocation2 + $0x88] sm:$0x1]
    %1443 = vrot.lane.b32.xlu0 %v1441, 40
    %v1444 = vpop.permute.xlu0 %1443
    %1446 = vst.msk [vmem:[#allocation4 + $0x16] sm:$0x1] %vm342, %v1444
    %v1447 = vld [vmem:[#allocation2 + $0x90] sm:$0x1]
    %1449 = vrot.lane.b32.xlu0 %v1447, 48
    %v1450 = vpop.permute.xlu0 %1449
    %1452 = vst.msk [vmem:[#allocation4 + $0x16] sm:$0x1] %vm349, %v1450
    %v1453 = vld [vmem:[#allocation2 + $0x91] sm:$0x1]
    %1455 = vrot.lane.b32.xlu0 %v1453, 56
    %v1456 = vpop.permute.xlu0 %1455
    %1458 = vst.msk [vmem:[#allocation4 + $0x16] sm:$0x1] %vm356, %v1456
    %v1459 = vld [vmem:[#allocation2 + $0x92] sm:$0x1]
    %1461 = vrot.lane.b32.xlu0 %v1459, 64
    %v1462 = vpop.permute.xlu0 %1461
    %1464 = vst.msk [vmem:[#allocation4 + $0x16] sm:$0x1] %vm363, %v1462
    %v1465 = vld [vmem:[#allocation2 + $0x7e] sm:$0x1]
    %1466 = vst.msk [vmem:[#allocation4 + $0x17] sm:$0x1] %vm307, %v1465
    %v1467 = vld [vmem:[#allocation2 + $0x7f] sm:$0x1]
    %1469 = vrot.lane.b32.xlu0 %v1467, 8
    %v1470 = vpop.permute.xlu0 %1469
    %1472 = vst.msk [vmem:[#allocation4 + $0x17] sm:$0x1] %vm314, %v1470
    %v1473 = vld [vmem:[#allocation2 + $0x80] sm:$0x1]
    %1475 = vrot.lane.b32.xlu0 %v1473, 16
    %v1476 = vpop.permute.xlu0 %1475
    %1478 = vst.msk [vmem:[#allocation4 + $0x17] sm:$0x1] %vm321, %v1476
    %v1479 = vld [vmem:[#allocation2 + $0x88] sm:$0x1]
    %1481 = vrot.lane.b32.xlu0 %v1479, 24
    %v1482 = vpop.permute.xlu0 %1481
    %1484 = vst.msk [vmem:[#allocation4 + $0x17] sm:$0x1] %vm328, %v1482
    %v1485 = vld [vmem:[#allocation2 + $0x89] sm:$0x1]
    %1487 = vrot.lane.b32.xlu0 %v1485, 32
    %v1488 = vpop.permute.xlu0 %1487
    %1490 = vst.msk [vmem:[#allocation4 + $0x17] sm:$0x1] %vm335, %v1488
    %v1491 = vld [vmem:[#allocation2 + $0x8a] sm:$0x1]
    %1493 = vrot.lane.b32.xlu0 %v1491, 40
    %v1494 = vpop.permute.xlu0 %1493
    %1496 = vst.msk [vmem:[#allocation4 + $0x17] sm:$0x1] %vm342, %v1494
    %v1497 = vld [vmem:[#allocation2 + $0x92] sm:$0x1]
    %1499 = vrot.lane.b32.xlu0 %v1497, 48
    %v1500 = vpop.permute.xlu0 %1499
    %1502 = vst.msk [vmem:[#allocation4 + $0x17] sm:$0x1] %vm349, %v1500
    %v1503 = vld [vmem:[#allocation2 + $0x93] sm:$0x1]
    %1505 = vrot.lane.b32.xlu0 %v1503, 56
    %v1506 = vpop.permute.xlu0 %1505
    %1508 = vst.msk [vmem:[#allocation4 + $0x17] sm:$0x1] %vm356, %v1506
    %v1509 = vld [vmem:[#allocation2 + $0x94] sm:$0x1]
    %1511 = vrot.lane.b32.xlu0 %v1509, 64
    %v1512 = vpop.permute.xlu0 %1511
    %1514 = vst.msk [vmem:[#allocation4 + $0x17] sm:$0x1] %vm363, %v1512
    %v1515 = vld [vmem:[#allocation2 + $0x8c] sm:$0x1]
    %1516 = vst.msk [vmem:[#allocation4 + $0x18] sm:$0x1] %vm307, %v1515
    %v1517 = vld [vmem:[#allocation2 + $0x8d] sm:$0x1]
    %1519 = vrot.lane.b32.xlu0 %v1517, 8
    %v1520 = vpop.permute.xlu0 %1519
    %1522 = vst.msk [vmem:[#allocation4 + $0x18] sm:$0x1] %vm314, %v1520
    %v1523 = vld [vmem:[#allocation2 + $0x8e] sm:$0x1]
    %1525 = vrot.lane.b32.xlu0 %v1523, 16
    %v1526 = vpop.permute.xlu0 %1525
    %1528 = vst.msk [vmem:[#allocation4 + $0x18] sm:$0x1] %vm321, %v1526
    %v1529 = vld [vmem:[#allocation2 + $0x96] sm:$0x1]
    %1531 = vrot.lane.b32.xlu0 %v1529, 24
    %v1532 = vpop.permute.xlu0 %1531
    %1534 = vst.msk [vmem:[#allocation4 + $0x18] sm:$0x1] %vm328, %v1532
    %v1535 = vld [vmem:[#allocation2 + $0x97] sm:$0x1]
    %1537 = vrot.lane.b32.xlu0 %v1535, 32
    %v1538 = vpop.permute.xlu0 %1537
    %1540 = vst.msk [vmem:[#allocation4 + $0x18] sm:$0x1] %vm335, %v1538
    %v1541 = vld [vmem:[#allocation2 + $0x98] sm:$0x1]
    %1543 = vrot.lane.b32.xlu0 %v1541, 40
    %v1544 = vpop.permute.xlu0 %1543
    %1546 = vst.msk [vmem:[#allocation4 + $0x18] sm:$0x1] %vm342, %v1544
    %v1547 = vld [vmem:[#allocation2 + $0xa0] sm:$0x1]
    %1549 = vrot.lane.b32.xlu0 %v1547, 48
    %v1550 = vpop.permute.xlu0 %1549
    %1552 = vst.msk [vmem:[#allocation4 + $0x18] sm:$0x1] %vm349, %v1550
    %v1553 = vld [vmem:[#allocation2 + $0xa1] sm:$0x1]
    %1555 = vrot.lane.b32.xlu0 %v1553, 56
    %v1556 = vpop.permute.xlu0 %1555
    %1558 = vst.msk [vmem:[#allocation4 + $0x18] sm:$0x1] %vm356, %v1556
    %v1559 = vld [vmem:[#allocation2 + $0xa2] sm:$0x1]
    %1561 = vrot.lane.b32.xlu0 %v1559, 64
    %v1562 = vpop.permute.xlu0 %1561
    %1564 = vst.msk [vmem:[#allocation4 + $0x18] sm:$0x1] %vm363, %v1562
    %v1565 = vld [vmem:[#allocation2 + $0x8e] sm:$0x1]
    %1566 = vst.msk [vmem:[#allocation4 + $0x19] sm:$0x1] %vm307, %v1565
    %v1567 = vld [vmem:[#allocation2 + $0x8f] sm:$0x1]
    %1569 = vrot.lane.b32.xlu0 %v1567, 8
    %v1570 = vpop.permute.xlu0 %1569
    %1572 = vst.msk [vmem:[#allocation4 + $0x19] sm:$0x1] %vm314, %v1570
    %v1573 = vld [vmem:[#allocation2 + $0x90] sm:$0x1]
    %1575 = vrot.lane.b32.xlu0 %v1573, 16
    %v1576 = vpop.permute.xlu0 %1575
    %1578 = vst.msk [vmem:[#allocation4 + $0x19] sm:$0x1] %vm321, %v1576
    %v1579 = vld [vmem:[#allocation2 + $0x98] sm:$0x1]
    %1581 = vrot.lane.b32.xlu0 %v1579, 24
    %v1582 = vpop.permute.xlu0 %1581
    %1584 = vst.msk [vmem:[#allocation4 + $0x19] sm:$0x1] %vm328, %v1582
    %v1585 = vld [vmem:[#allocation2 + $0x99] sm:$0x1]
    %1587 = vrot.lane.b32.xlu0 %v1585, 32
    %v1588 = vpop.permute.xlu0 %1587
    %1590 = vst.msk [vmem:[#allocation4 + $0x19] sm:$0x1] %vm335, %v1588
    %v1591 = vld [vmem:[#allocation2 + $0x9a] sm:$0x1]
    %1593 = vrot.lane.b32.xlu0 %v1591, 40
    %v1594 = vpop.permute.xlu0 %1593
    %1596 = vst.msk [vmem:[#allocation4 + $0x19] sm:$0x1] %vm342, %v1594
    %v1597 = vld [vmem:[#allocation2 + $0xa2] sm:$0x1]
    %1599 = vrot.lane.b32.xlu0 %v1597, 48
    %v1600 = vpop.permute.xlu0 %1599
    %1602 = vst.msk [vmem:[#allocation4 + $0x19] sm:$0x1] %vm349, %v1600
    %v1603 = vld [vmem:[#allocation2 + $0xa3] sm:$0x1]
    %1605 = vrot.lane.b32.xlu0 %v1603, 56
    %v1606 = vpop.permute.xlu0 %1605
    %1608 = vst.msk [vmem:[#allocation4 + $0x19] sm:$0x1] %vm356, %v1606
    %v1609 = vld [vmem:[#allocation2 + $0xa4] sm:$0x1]
    %1611 = vrot.lane.b32.xlu0 %v1609, 64
    %v1612 = vpop.permute.xlu0 %1611
    %1614 = vst.msk [vmem:[#allocation4 + $0x19] sm:$0x1] %vm363, %v1612
    %v1615 = vld [vmem:[#allocation2 + $0x90] sm:$0x1]
    %1616 = vst.msk [vmem:[#allocation4 + $0x1a] sm:$0x1] %vm307, %v1615
    %v1617 = vld [vmem:[#allocation2 + $0x91] sm:$0x1]
    %1619 = vrot.lane.b32.xlu0 %v1617, 8
    %v1620 = vpop.permute.xlu0 %1619
    %1622 = vst.msk [vmem:[#allocation4 + $0x1a] sm:$0x1] %vm314, %v1620
    %v1623 = vld [vmem:[#allocation2 + $0x92] sm:$0x1]
    %1625 = vrot.lane.b32.xlu0 %v1623, 16
    %v1626 = vpop.permute.xlu0 %1625
    %1628 = vst.msk [vmem:[#allocation4 + $0x1a] sm:$0x1] %vm321, %v1626
    %v1629 = vld [vmem:[#allocation2 + $0x9a] sm:$0x1]
    %1631 = vrot.lane.b32.xlu0 %v1629, 24
    %v1632 = vpop.permute.xlu0 %1631
    %1634 = vst.msk [vmem:[#allocation4 + $0x1a] sm:$0x1] %vm328, %v1632
    %v1635 = vld [vmem:[#allocation2 + $0x9b] sm:$0x1]
    %1637 = vrot.lane.b32.xlu0 %v1635, 32
    %v1638 = vpop.permute.xlu0 %1637
    %1640 = vst.msk [vmem:[#allocation4 + $0x1a] sm:$0x1] %vm335, %v1638
    %v1641 = vld [vmem:[#allocation2 + $0x9c] sm:$0x1]
    %1643 = vrot.lane.b32.xlu0 %v1641, 40
    %v1644 = vpop.permute.xlu0 %1643
    %1646 = vst.msk [vmem:[#allocation4 + $0x1a] sm:$0x1] %vm342, %v1644
    %v1647 = vld [vmem:[#allocation2 + $0xa4] sm:$0x1]
    %1649 = vrot.lane.b32.xlu0 %v1647, 48
    %v1650 = vpop.permute.xlu0 %1649
    %1652 = vst.msk [vmem:[#allocation4 + $0x1a] sm:$0x1] %vm349, %v1650
    %v1653 = vld [vmem:[#allocation2 + $0xa5] sm:$0x1]
    %1655 = vrot.lane.b32.xlu0 %v1653, 56
    %v1656 = vpop.permute.xlu0 %1655
    %1658 = vst.msk [vmem:[#allocation4 + $0x1a] sm:$0x1] %vm356, %v1656
    %v1659 = vld [vmem:[#allocation2 + $0xa6] sm:$0x1]
    %1661 = vrot.lane.b32.xlu0 %v1659, 64
    %v1662 = vpop.permute.xlu0 %1661
    %1664 = vst.msk [vmem:[#allocation4 + $0x1a] sm:$0x1] %vm363, %v1662
    %v1665 = vld [vmem:[#allocation2 + $0x92] sm:$0x1]
    %1666 = vst.msk [vmem:[#allocation4 + $0x1b] sm:$0x1] %vm307, %v1665
    %v1667 = vld [vmem:[#allocation2 + $0x93] sm:$0x1]
    %1669 = vrot.lane.b32.xlu0 %v1667, 8
    %v1670 = vpop.permute.xlu0 %1669
    %1672 = vst.msk [vmem:[#allocation4 + $0x1b] sm:$0x1] %vm314, %v1670
    %v1673 = vld [vmem:[#allocation2 + $0x94] sm:$0x1]
    %1675 = vrot.lane.b32.xlu0 %v1673, 16
    %v1676 = vpop.permute.xlu0 %1675
    %1678 = vst.msk [vmem:[#allocation4 + $0x1b] sm:$0x1] %vm321, %v1676
    %v1679 = vld [vmem:[#allocation2 + $0x9c] sm:$0x1]
    %1681 = vrot.lane.b32.xlu0 %v1679, 24
    %v1682 = vpop.permute.xlu0 %1681
    %1684 = vst.msk [vmem:[#allocation4 + $0x1b] sm:$0x1] %vm328, %v1682
    %v1685 = vld [vmem:[#allocation2 + $0x9d] sm:$0x1]
    %1687 = vrot.lane.b32.xlu0 %v1685, 32
    %v1688 = vpop.permute.xlu0 %1687
    %1690 = vst.msk [vmem:[#allocation4 + $0x1b] sm:$0x1] %vm335, %v1688
    %v1691 = vld [vmem:[#allocation2 + $0x9e] sm:$0x1]
    %1693 = vrot.lane.b32.xlu0 %v1691, 40
    %v1694 = vpop.permute.xlu0 %1693
    %1696 = vst.msk [vmem:[#allocation4 + $0x1b] sm:$0x1] %vm342, %v1694
    %v1697 = vld [vmem:[#allocation2 + $0xa6] sm:$0x1]
    %1699 = vrot.lane.b32.xlu0 %v1697, 48
    %v1700 = vpop.permute.xlu0 %1699
    %1702 = vst.msk [vmem:[#allocation4 + $0x1b] sm:$0x1] %vm349, %v1700
    %v1703 = vld [vmem:[#allocation2 + $0xa7] sm:$0x1]
    %1705 = vrot.lane.b32.xlu0 %v1703, 56
    %v1706 = vpop.permute.xlu0 %1705
    %1708 = vst.msk [vmem:[#allocation4 + $0x1b] sm:$0x1] %vm356, %v1706
    %v1709 = vld [vmem:[#allocation2 + $0xa8] sm:$0x1]
    %1711 = vrot.lane.b32.xlu0 %v1709, 64
    %v1712 = vpop.permute.xlu0 %1711
    %1714 = vst.msk [vmem:[#allocation4 + $0x1b] sm:$0x1] %vm363, %v1712
    %v1715 = vld [vmem:[#allocation2 + $0xa0] sm:$0x1]
    %1716 = vst.msk [vmem:[#allocation4 + $0x1c] sm:$0x1] %vm307, %v1715
    %v1717 = vld [vmem:[#allocation2 + $0xa1] sm:$0x1]
    %1719 = vrot.lane.b32.xlu0 %v1717, 8
    %v1720 = vpop.permute.xlu0 %1719
    %1722 = vst.msk [vmem:[#allocation4 + $0x1c] sm:$0x1] %vm314, %v1720
    %v1723 = vld [vmem:[#allocation2 + $0xa2] sm:$0x1]
    %1725 = vrot.lane.b32.xlu0 %v1723, 16
    %v1726 = vpop.permute.xlu0 %1725
    %1728 = vst.msk [vmem:[#allocation4 + $0x1c] sm:$0x1] %vm321, %v1726
    %v1729 = vld [vmem:[#allocation2 + $0xaa] sm:$0x1]
    %1731 = vrot.lane.b32.xlu0 %v1729, 24
    %v1732 = vpop.permute.xlu0 %1731
    %1734 = vst.msk [vmem:[#allocation4 + $0x1c] sm:$0x1] %vm328, %v1732
    %v1735 = vld [vmem:[#allocation2 + $0xab] sm:$0x1]
    %1737 = vrot.lane.b32.xlu0 %v1735, 32
    %v1738 = vpop.permute.xlu0 %1737
    %1740 = vst.msk [vmem:[#allocation4 + $0x1c] sm:$0x1] %vm335, %v1738
    %v1741 = vld [vmem:[#allocation2 + $0xac] sm:$0x1]
    %1743 = vrot.lane.b32.xlu0 %v1741, 40
    %v1744 = vpop.permute.xlu0 %1743
    %1746 = vst.msk [vmem:[#allocation4 + $0x1c] sm:$0x1] %vm342, %v1744
    %v1747 = vld [vmem:[#allocation2 + $0xb4] sm:$0x1]
    %1749 = vrot.lane.b32.xlu0 %v1747, 48
    %v1750 = vpop.permute.xlu0 %1749
    %1752 = vst.msk [vmem:[#allocation4 + $0x1c] sm:$0x1] %vm349, %v1750
    %v1753 = vld [vmem:[#allocation2 + $0xb5] sm:$0x1]
    %1755 = vrot.lane.b32.xlu0 %v1753, 56
    %v1756 = vpop.permute.xlu0 %1755
    %1758 = vst.msk [vmem:[#allocation4 + $0x1c] sm:$0x1] %vm356, %v1756
    %v1759 = vld [vmem:[#allocation2 + $0xb6] sm:$0x1]
    %1761 = vrot.lane.b32.xlu0 %v1759, 64
    %v1762 = vpop.permute.xlu0 %1761
    %1764 = vst.msk [vmem:[#allocation4 + $0x1c] sm:$0x1] %vm363, %v1762
    %v1765 = vld [vmem:[#allocation2 + $0xa2] sm:$0x1]
    %1766 = vst.msk [vmem:[#allocation4 + $0x1d] sm:$0x1] %vm307, %v1765
    %v1767 = vld [vmem:[#allocation2 + $0xa3] sm:$0x1]
    %1769 = vrot.lane.b32.xlu0 %v1767, 8
    %v1770 = vpop.permute.xlu0 %1769
    %1772 = vst.msk [vmem:[#allocation4 + $0x1d] sm:$0x1] %vm314, %v1770
    %v1773 = vld [vmem:[#allocation2 + $0xa4] sm:$0x1]
    %1775 = vrot.lane.b32.xlu0 %v1773, 16
    %v1776 = vpop.permute.xlu0 %1775
    %1778 = vst.msk [vmem:[#allocation4 + $0x1d] sm:$0x1] %vm321, %v1776
    %v1779 = vld [vmem:[#allocation2 + $0xac] sm:$0x1]
    %1781 = vrot.lane.b32.xlu0 %v1779, 24
    %v1782 = vpop.permute.xlu0 %1781
    %1784 = vst.msk [vmem:[#allocation4 + $0x1d] sm:$0x1] %vm328, %v1782
    %v1785 = vld [vmem:[#allocation2 + $0xad] sm:$0x1]
    %1787 = vrot.lane.b32.xlu0 %v1785, 32
    %v1788 = vpop.permute.xlu0 %1787
    %1790 = vst.msk [vmem:[#allocation4 + $0x1d] sm:$0x1] %vm335, %v1788
    %v1791 = vld [vmem:[#allocation2 + $0xae] sm:$0x1]
    %1793 = vrot.lane.b32.xlu0 %v1791, 40
    %v1794 = vpop.permute.xlu0 %1793
    %1796 = vst.msk [vmem:[#allocation4 + $0x1d] sm:$0x1] %vm342, %v1794
    %v1797 = vld [vmem:[#allocation2 + $0xb6] sm:$0x1]
    %1799 = vrot.lane.b32.xlu0 %v1797, 48
    %v1800 = vpop.permute.xlu0 %1799
    %1802 = vst.msk [vmem:[#allocation4 + $0x1d] sm:$0x1] %vm349, %v1800
    %v1803 = vld [vmem:[#allocation2 + $0xb7] sm:$0x1]
    %1805 = vrot.lane.b32.xlu0 %v1803, 56
    %v1806 = vpop.permute.xlu0 %1805
    %1808 = vst.msk [vmem:[#allocation4 + $0x1d] sm:$0x1] %vm356, %v1806
    %v1809 = vld [vmem:[#allocation2 + $0xb8] sm:$0x1]
    %1811 = vrot.lane.b32.xlu0 %v1809, 64
    %v1812 = vpop.permute.xlu0 %1811
    %1814 = vst.msk [vmem:[#allocation4 + $0x1d] sm:$0x1] %vm363, %v1812
    %v1815 = vld [vmem:[#allocation2 + $0xa4] sm:$0x1]
    %1816 = vst.msk [vmem:[#allocation4 + $0x1e] sm:$0x1] %vm307, %v1815
    %v1817 = vld [vmem:[#allocation2 + $0xa5] sm:$0x1]
    %1819 = vrot.lane.b32.xlu0 %v1817, 8
    %v1820 = vpop.permute.xlu0 %1819
    %1822 = vst.msk [vmem:[#allocation4 + $0x1e] sm:$0x1] %vm314, %v1820
    %v1823 = vld [vmem:[#allocation2 + $0xa6] sm:$0x1]
    %1825 = vrot.lane.b32.xlu0 %v1823, 16
    %v1826 = vpop.permute.xlu0 %1825
    %1828 = vst.msk [vmem:[#allocation4 + $0x1e] sm:$0x1] %vm321, %v1826
    %v1829 = vld [vmem:[#allocation2 + $0xae] sm:$0x1]
    %1831 = vrot.lane.b32.xlu0 %v1829, 24
    %v1832 = vpop.permute.xlu0 %1831
    %1834 = vst.msk [vmem:[#allocation4 + $0x1e] sm:$0x1] %vm328, %v1832
    %v1835 = vld [vmem:[#allocation2 + $0xaf] sm:$0x1]
    %1837 = vrot.lane.b32.xlu0 %v1835, 32
    %v1838 = vpop.permute.xlu0 %1837
    %1840 = vst.msk [vmem:[#allocation4 + $0x1e] sm:$0x1] %vm335, %v1838
    %v1841 = vld [vmem:[#allocation2 + $0xb0] sm:$0x1]
    %1843 = vrot.lane.b32.xlu0 %v1841, 40
    %v1844 = vpop.permute.xlu0 %1843
    %1846 = vst.msk [vmem:[#allocation4 + $0x1e] sm:$0x1] %vm342, %v1844
    %v1847 = vld [vmem:[#allocation2 + $0xb8] sm:$0x1]
    %1849 = vrot.lane.b32.xlu0 %v1847, 48
    %v1850 = vpop.permute.xlu0 %1849
    %1852 = vst.msk [vmem:[#allocation4 + $0x1e] sm:$0x1] %vm349, %v1850
    %v1853 = vld [vmem:[#allocation2 + $0xb9] sm:$0x1]
    %1855 = vrot.lane.b32.xlu0 %v1853, 56
    %v1856 = vpop.permute.xlu0 %1855
    %1858 = vst.msk [vmem:[#allocation4 + $0x1e] sm:$0x1] %vm356, %v1856
    %v1859 = vld [vmem:[#allocation2 + $0xba] sm:$0x1]
    %1861 = vrot.lane.b32.xlu0 %v1859, 64
    %v1862 = vpop.permute.xlu0 %1861
    %1864 = vst.msk [vmem:[#allocation4 + $0x1e] sm:$0x1] %vm363, %v1862
    %v1865 = vld [vmem:[#allocation2 + $0xa6] sm:$0x1]
    %1866 = vst.msk [vmem:[#allocation4 + $0x1f] sm:$0x1] %vm307, %v1865
    %v1867 = vld [vmem:[#allocation2 + $0xa7] sm:$0x1]
    %1869 = vrot.lane.b32.xlu0 %v1867, 8
    %v1870 = vpop.permute.xlu0 %1869
    %1872 = vst.msk [vmem:[#allocation4 + $0x1f] sm:$0x1] %vm314, %v1870
    %v1873 = vld [vmem:[#allocation2 + $0xa8] sm:$0x1]
    %1875 = vrot.lane.b32.xlu0 %v1873, 16
    %v1876 = vpop.permute.xlu0 %1875
    %1878 = vst.msk [vmem:[#allocation4 + $0x1f] sm:$0x1] %vm321, %v1876
    %v1879 = vld [vmem:[#allocation2 + $0xb0] sm:$0x1]
    %1881 = vrot.lane.b32.xlu0 %v1879, 24
    %v1882 = vpop.permute.xlu0 %1881
    %1884 = vst.msk [vmem:[#allocation4 + $0x1f] sm:$0x1] %vm328, %v1882
    %v1885 = vld [vmem:[#allocation2 + $0xb1] sm:$0x1]
    %1887 = vrot.lane.b32.xlu0 %v1885, 32
    %v1888 = vpop.permute.xlu0 %1887
    %1890 = vst.msk [vmem:[#allocation4 + $0x1f] sm:$0x1] %vm335, %v1888
    %v1891 = vld [vmem:[#allocation2 + $0xb2] sm:$0x1]
    %1893 = vrot.lane.b32.xlu0 %v1891, 40
    %v1894 = vpop.permute.xlu0 %1893
    %1896 = vst.msk [vmem:[#allocation4 + $0x1f] sm:$0x1] %vm342, %v1894
    %v1897 = vld [vmem:[#allocation2 + $0xba] sm:$0x1]
    %1899 = vrot.lane.b32.xlu0 %v1897, 48
    %v1900 = vpop.permute.xlu0 %1899
    %1902 = vst.msk [vmem:[#allocation4 + $0x1f] sm:$0x1] %vm349, %v1900
    %v1903 = vld [vmem:[#allocation2 + $0xbb] sm:$0x1]
    %1905 = vrot.lane.b32.xlu0 %v1903, 56
    %v1906 = vpop.permute.xlu0 %1905
    %1908 = vst.msk [vmem:[#allocation4 + $0x1f] sm:$0x1] %vm356, %v1906
    %v1909 = vld [vmem:[#allocation2 + $0xbc] sm:$0x1]
    %1911 = vrot.lane.b32.xlu0 %v1909, 64
    %v1912 = vpop.permute.xlu0 %1911
    %1914 = vst.msk [vmem:[#allocation4 + $0x1f] sm:$0x1] %vm363, %v1912
    %v1915 = vld [vmem:[#allocation4] sm:$0xff]
    %v1916 = vld [vmem:[#allocation4 + $0x8] sm:$0xff]
    %v1917 = vld [vmem:[#allocation4 + $0x10] sm:$0xff]
    %v1918 = vld [vmem:[#allocation4 + $0x18] sm:$0xff]
    %v1919 = vld [vmem:[%s2] sm:$0xff]
    %v1920 = vld [vmem:[%s2 + $0x8] sm:$0xff]
    %v1921 = vld [vmem:[%s2 + $0x10] sm:$0xff]
    %v1922 = vld [vmem:[%s2 + $0x18] sm:$0xff]
    %v1923 = vld [vmem:[%s2 + $0x20] sm:$0xff]
    %v1924 = vld [vmem:[%s2 + $0x28] sm:$0xff]
    %v1925 = vld [vmem:[%s2 + $0x30] sm:$0xff]
    %v1926 = vld [vmem:[%s2 + $0x38] sm:$0xff]
    %v1927 = vld [vmem:[%s2 + $0x40] sm:$0xff]
    %v1928 = vld [vmem:[%s5 + $0x1] sm:$0x1]
    %v1929 = vlaneseq
    %v1930 = vshrl.u32 %v1929, 7
    %v1931 = vsub.s32 0, %v1930
    %v1932 = vrot.slane %v1928, %v1931
    %vm1933 = vcmask 588800
    %v1935 = vsel %vm1933, %v1915, 0
    %v1938 = vsel %vm1933, %v1916, 0
    %v1941 = vsel %vm1933, %v1917, 0
    %v1944 = vsel %vm1933, %v1918, 0
    %1946 = vmatprep.subr.mxu0 0.0
    %1947 = vmatpush1.msra.mxu0 0.0
    %1948 = vmatprep.subr.mxu0 0.0
    %1949 = vmatpush1.msra.mxu0 0.0
    %1950 = vmatprep.subr.mxu0 0.0
    %1951 = vmatpush1.msra.mxu0 0.0
    %1952 = vmatprep.subr.mxu0 0.0
    %1953 = vmatpush1.msra.mxu0 0.0
    %1954 = vmatprep.subr.mxu0 0.0
    %1955 = vmatpush1.msra.mxu0 0.0
    %1956 = vmatprep.subr.mxu0 0.0
    %1957 = vmatpush1.msra.mxu0 0.0
    %1958 = vmatprep.subr.mxu0 0.0
    %1959 = vmatpush1.msra.mxu0 0.0
    %1960 = vmatprep.subr.mxu0 0.0
    %1961 = vmatpush1.msra.mxu0 %v1927
    %1962 = vmatprep.subr.mxu0 0.0
    %1963 = vmatpush1.msra.mxu0 %v1926
    %1964 = vmatprep.subr.mxu0 0.0
    %1965 = vmatpush1.msra.mxu0 %v1925
    %1966 = vmatprep.subr.mxu0 0.0
    %1967 = vmatpush1.msra.mxu0 %v1924
    %1968 = vmatprep.subr.mxu0 0.0
    %1969 = vmatpush1.msra.mxu0 %v1923
    %1970 = vmatprep.subr.mxu0 0.0
    %1971 = vmatpush1.msra.mxu0 %v1922
    %1972 = vmatprep.subr.mxu0 0.0
    %1973 = vmatpush1.msra.mxu0 %v1921
    %1974 = vmatprep.subr.mxu0 0.0
    %1975 = vmatpush1.msra.mxu0 %v1920
    %1976 = vmatprep.subr.mxu0 0.0
    %1977 = vmatpush1.msra.mxu0 %v1919
    %1978 = vmatprep.subr.mxu0 0.0
    %1979 = vmatpush2.msra.mxu0 0.0
    %1980 = vmatprep.subr.mxu0 0.0
    %1981 = vmatpush2.msra.mxu0 0.0
    %1982 = vmatprep.subr.mxu0 0.0
    %1983 = vmatpush2.msra.mxu0 0.0
    %1984 = vmatprep.subr.mxu0 0.0
    %1985 = vmatpush2.msra.mxu0 0.0
    %1986 = vmatprep.subr.mxu0 0.0
    %1987 = vmatpush2.msra.mxu0 0.0
    %1988 = vmatprep.subr.mxu0 0.0
    %1989 = vmatpush2.msra.mxu0 0.0
    %1990 = vmatprep.subr.mxu0 0.0
    %1991 = vmatpush2.msra.mxu0 0.0
    %1992 = vmatprep.subr.mxu0 0.0
    %1993 = vmatpush2.msra.mxu0 0.0
    %1994 = vmatprep.subr.mxu0 0.0
    %1995 = vmatpush2.msra.mxu0 0.0
    %1996 = vmatprep.subr.mxu0 0.0
    %1997 = vmatpush2.msra.mxu0 0.0
    %1998 = vmatprep.subr.mxu0 0.0
    %1999 = vmatpush2.msra.mxu0 0.0
    %2000 = vmatprep.subr.mxu0 0.0
    %2001 = vmatpush2.msra.mxu0 0.0
    %2002 = vmatprep.subr.mxu0 0.0
    %2003 = vmatpush2.msra.mxu0 0.0
    %2004 = vmatprep.subr.mxu0 0.0
    %2005 = vmatpush2.msra.mxu0 0.0
    %2006 = vmatprep.subr.mxu0 0.0
    %2007 = vmatpush2.msra.mxu0 0.0
    %2008 = vmatprep.subr.mxu0 0.0
    %2009 = vmatpush2.msra.mxu0 0.0
    %2010 = vmatprep.mubr.f32.mxu0 0.0
    %2011 = vmatmul.mubr.f32.gmra.mxu0 %v1935
    %v2012 = vpop.f32.mrf.mxu0
    %v2013 = vadd.f32 %v1932, %v2012
    %v2014 = vpop.f32.mrf.mxu0
    %2015 = vmatprep.mubr.f32.mxu0 0.0
    %2016 = vmatmul.mubr.f32.gmra.mxu0 %v1938
    %v2017 = vpop.f32.mrf.mxu0
    %v2018 = vadd.f32 %v1932, %v2017
    %v2019 = vpop.f32.mrf.mxu0
    %2020 = vmatprep.mubr.f32.mxu0 0.0
    %2021 = vmatmul.mubr.f32.gmra.mxu0 %v1941
    %v2022 = vpop.f32.mrf.mxu0
    %v2023 = vadd.f32 %v1932, %v2022
    %v2024 = vpop.f32.mrf.mxu0
    %2025 = vmatprep.mubr.f32.mxu0 0.0
    %2026 = vmatmul.mubr.f32.gmra.mxu0 %v1944
    %v2027 = vpop.f32.mrf.mxu0
    %v2028 = vadd.f32 %v1932, %v2027
    %v2029 = vpop.f32.mrf.mxu0
    %2030 = vdwg.mxu0
    %v2031 = vmax.f32 %v2013, 0.0
    %v2032 = vmax.f32 %v2018, 0.0
    %v2033 = vmax.f32 %v2023, 0.0
    %v2034 = vmax.f32 %v2028, 0.0
    %vm2035 = vcmask 130048
    %2036 = vst.msk [vmem:[#allocation3] sm:$0xff] %vm2035, 0.0
    %2037 = vst.msk [vmem:[#allocation3 + $0x8] sm:$0xff] %vm2035, 0.0
    %2038 = vst.msk [vmem:[#allocation3 + $0x10] sm:$0xff] %vm2035, 0.0
    %2039 = vst.msk [vmem:[#allocation3 + $0x18] sm:$0xff] %vm2035, 0.0
    %2040 = vst.msk [vmem:[#allocation3 + $0x20] sm:$0xff] %vm2035, 0.0
    %2041 = vst.msk [vmem:[#allocation3 + $0x28] sm:$0xff] %vm2035, 0.0
    %2042 = vst.msk [vmem:[#allocation3 + $0x30] sm:$0xff] %vm2035, 0.0
    %2043 = vst.msk [vmem:[#allocation3 + $0x38] sm:$0xff] %vm2035, 0.0
    %2044 = vst.msk [vmem:[#allocation3 + $0x40] sm:$0xff] %vm2035, 0.0
    %vm2045 = vcmask 125952
    %2046 = vst.msk [vmem:[#allocation3 + $0x7] sm:$0xf] %vm2045, %v2031
    %vm2047 = vcmask 130052
    %2048 = vst.msk [vmem:[#allocation3 + $0x9] sm:$0xf0] %vm2047, %v2031
    %2049 = vst.msk [vmem:[#allocation3 + $0x13] sm:$0xf] %vm2045, %v2032
    %2050 = vst.msk [vmem:[#allocation3 + $0x15] sm:$0xf0] %vm2047, %v2032
    %2051 = vst.msk [vmem:[#allocation3 + $0x2b] sm:$0xf] %vm2045, %v2033
    %2052 = vst.msk [vmem:[#allocation3 + $0x2d] sm:$0xf0] %vm2047, %v2033
    %2053 = vst.msk [vmem:[#allocation3 + $0x37] sm:$0xf] %vm2045, %v2034
    %2054 = vst.msk [vmem:[#allocation3 + $0x39] sm:$0xf0] %vm2047, %v2034
    %v2055 = vld [vmem:[#allocation3] sm:$0x1]
    %vm2056 = vcmask 122880
    %2057 = vst.msk [vmem:[#allocation5] sm:$0x1] %vm2056, %v2055
    %v2058 = vld [vmem:[#allocation3 + $0x1] sm:$0x1]
    %2060 = vrot.lane.b32.xlu0 %v2058, 16
    %v2061 = vpop.permute.xlu0 %2060
    %vm2063 = vcmask 254080
    %2064 = vst.msk [vmem:[#allocation5] sm:$0x1] %vm2063, %v2061
    %v2065 = vld [vmem:[#allocation3 + $0x2] sm:$0x1]
    %2067 = vrot.lane.b32.xlu0 %v2065, 32
    %v2068 = vpop.permute.xlu0 %2067
    %vm2070 = vcmask 385280
    %2071 = vst.msk [vmem:[#allocation5] sm:$0x1] %vm2070, %v2068
    %v2072 = vld [vmem:[#allocation3 + $0x6] sm:$0x1]
    %2074 = vrot.lane.b32.xlu0 %v2072, 48
    %v2075 = vpop.permute.xlu0 %2074
    %vm2077 = vcmask 516480
    %2078 = vst.msk [vmem:[#allocation5] sm:$0x1] %vm2077, %v2075
    %v2079 = vld [vmem:[#allocation3 + $0x7] sm:$0x1]
    %2081 = vrot.lane.b32.xlu0 %v2079, 64
    %v2082 = vpop.permute.xlu0 %2081
    %vm2084 = vcmask 647680
    %2085 = vst.msk [vmem:[#allocation5] sm:$0x1] %vm2084, %v2082
    %v2086 = vld [vmem:[#allocation3 + $0x8] sm:$0x1]
    %2088 = vrot.lane.b32.xlu0 %v2086, 80
    %v2089 = vpop.permute.xlu0 %2088
    %vm2091 = vcmask 778880
    %2092 = vst.msk [vmem:[#allocation5] sm:$0x1] %vm2091, %v2089
    %v2093 = vld [vmem:[#allocation3 + $0xc] sm:$0x1]
    %2095 = vrot.lane.b32.xlu0 %v2093, 96
    %v2096 = vpop.permute.xlu0 %2095
    %vm2098 = vcmask 910080
    %2099 = vst.msk [vmem:[#allocation5] sm:$0x1] %vm2098, %v2096
    %v2100 = vld [vmem:[#allocation3 + $0xd] sm:$0x1]
    %2102 = vrot.lane.b32.xlu0 %v2100, 112
    %v2103 = vpop.permute.xlu0 %2102
    %vm2105 = vcmask 1041280
    %2106 = vst.msk [vmem:[#allocation5] sm:$0x1] %vm2105, %v2103
    %v2107 = vld [vmem:[#allocation3 + $0xe] sm:$0x1]
    %2108 = vst.msk [vmem:[#allocation5 + $0x8] sm:$0x1] %vm2056, %v2107
    %v2109 = vld [vmem:[#allocation3 + $0x2] sm:$0x1]
    %2110 = vst.msk [vmem:[#allocation5 + $0x1] sm:$0x1] %vm2056, %v2109
    %v2111 = vld [vmem:[#allocation3 + $0x3] sm:$0x1]
    %2113 = vrot.lane.b32.xlu0 %v2111, 16
    %v2114 = vpop.permute.xlu0 %2113
    %2116 = vst.msk [vmem:[#allocation5 + $0x1] sm:$0x1] %vm2063, %v2114
    %v2117 = vld [vmem:[#allocation3 + $0x4] sm:$0x1]
    %2119 = vrot.lane.b32.xlu0 %v2117, 32
    %v2120 = vpop.permute.xlu0 %2119
    %2122 = vst.msk [vmem:[#allocation5 + $0x1] sm:$0x1] %vm2070, %v2120
    %v2123 = vld [vmem:[#allocation3 + $0x8] sm:$0x1]
    %2125 = vrot.lane.b32.xlu0 %v2123, 48
    %v2126 = vpop.permute.xlu0 %2125
    %2128 = vst.msk [vmem:[#allocation5 + $0x1] sm:$0x1] %vm2077, %v2126
    %v2129 = vld [vmem:[#allocation3 + $0x9] sm:$0x1]
    %2131 = vrot.lane.b32.xlu0 %v2129, 64
    %v2132 = vpop.permute.xlu0 %2131
    %2134 = vst.msk [vmem:[#allocation5 + $0x1] sm:$0x1] %vm2084, %v2132
    %v2135 = vld [vmem:[#allocation3 + $0xa] sm:$0x1]
    %2137 = vrot.lane.b32.xlu0 %v2135, 80
    %v2138 = vpop.permute.xlu0 %2137
    %2140 = vst.msk [vmem:[#allocation5 + $0x1] sm:$0x1] %vm2091, %v2138
    %v2141 = vld [vmem:[#allocation3 + $0xe] sm:$0x1]
    %2143 = vrot.lane.b32.xlu0 %v2141, 96
    %v2144 = vpop.permute.xlu0 %2143
    %2146 = vst.msk [vmem:[#allocation5 + $0x1] sm:$0x1] %vm2098, %v2144
    %v2147 = vld [vmem:[#allocation3 + $0xf] sm:$0x1]
    %2149 = vrot.lane.b32.xlu0 %v2147, 112
    %v2150 = vpop.permute.xlu0 %2149
    %2152 = vst.msk [vmem:[#allocation5 + $0x1] sm:$0x1] %vm2105, %v2150
    %v2153 = vld [vmem:[#allocation3 + $0x10] sm:$0x1]
    %2154 = vst.msk [vmem:[#allocation5 + $0x9] sm:$0x1] %vm2056, %v2153
    %v2155 = vld [vmem:[#allocation3 + $0xc] sm:$0x1]
    %2156 = vst.msk [vmem:[#allocation5 + $0x2] sm:$0x1] %vm2056, %v2155
    %v2157 = vld [vmem:[#allocation3 + $0xd] sm:$0x1]
    %2159 = vrot.lane.b32.xlu0 %v2157, 16
    %v2160 = vpop.permute.xlu0 %2159
    %2162 = vst.msk [vmem:[#allocation5 + $0x2] sm:$0x1] %vm2063, %v2160
    %v2163 = vld [vmem:[#allocation3 + $0xe] sm:$0x1]
    %2165 = vrot.lane.b32.xlu0 %v2163, 32
    %v2166 = vpop.permute.xlu0 %2165
    %2168 = vst.msk [vmem:[#allocation5 + $0x2] sm:$0x1] %vm2070, %v2166
    %v2169 = vld [vmem:[#allocation3 + $0x12] sm:$0x1]
    %2171 = vrot.lane.b32.xlu0 %v2169, 48
    %v2172 = vpop.permute.xlu0 %2171
    %2174 = vst.msk [vmem:[#allocation5 + $0x2] sm:$0x1] %vm2077, %v2172
    %v2175 = vld [vmem:[#allocation3 + $0x13] sm:$0x1]
    %2177 = vrot.lane.b32.xlu0 %v2175, 64
    %v2178 = vpop.permute.xlu0 %2177
    %2180 = vst.msk [vmem:[#allocation5 + $0x2] sm:$0x1] %vm2084, %v2178
    %v2181 = vld [vmem:[#allocation3 + $0x14] sm:$0x1]
    %2183 = vrot.lane.b32.xlu0 %v2181, 80
    %v2184 = vpop.permute.xlu0 %2183
    %2186 = vst.msk [vmem:[#allocation5 + $0x2] sm:$0x1] %vm2091, %v2184
    %v2187 = vld [vmem:[#allocation3 + $0x18] sm:$0x1]
    %2189 = vrot.lane.b32.xlu0 %v2187, 96
    %v2190 = vpop.permute.xlu0 %2189
    %2192 = vst.msk [vmem:[#allocation5 + $0x2] sm:$0x1] %vm2098, %v2190
    %v2193 = vld [vmem:[#allocation3 + $0x19] sm:$0x1]
    %2195 = vrot.lane.b32.xlu0 %v2193, 112
    %v2196 = vpop.permute.xlu0 %2195
    %2198 = vst.msk [vmem:[#allocation5 + $0x2] sm:$0x1] %vm2105, %v2196
    %v2199 = vld [vmem:[#allocation3 + $0x1a] sm:$0x1]
    %2200 = vst.msk [vmem:[#allocation5 + $0xa] sm:$0x1] %vm2056, %v2199
    %v2201 = vld [vmem:[#allocation3 + $0xe] sm:$0x1]
    %2202 = vst.msk [vmem:[#allocation5 + $0x3] sm:$0x1] %vm2056, %v2201
    %v2203 = vld [vmem:[#allocation3 + $0xf] sm:$0x1]
    %2205 = vrot.lane.b32.xlu0 %v2203, 16
    %v2206 = vpop.permute.xlu0 %2205
    %2208 = vst.msk [vmem:[#allocation5 + $0x3] sm:$0x1] %vm2063, %v2206
    %v2209 = vld [vmem:[#allocation3 + $0x10] sm:$0x1]
    %2211 = vrot.lane.b32.xlu0 %v2209, 32
    %v2212 = vpop.permute.xlu0 %2211
    %2214 = vst.msk [vmem:[#allocation5 + $0x3] sm:$0x1] %vm2070, %v2212
    %v2215 = vld [vmem:[#allocation3 + $0x14] sm:$0x1]
    %2217 = vrot.lane.b32.xlu0 %v2215, 48
    %v2218 = vpop.permute.xlu0 %2217
    %2220 = vst.msk [vmem:[#allocation5 + $0x3] sm:$0x1] %vm2077, %v2218
    %v2221 = vld [vmem:[#allocation3 + $0x15] sm:$0x1]
    %2223 = vrot.lane.b32.xlu0 %v2221, 64
    %v2224 = vpop.permute.xlu0 %2223
    %2226 = vst.msk [vmem:[#allocation5 + $0x3] sm:$0x1] %vm2084, %v2224
    %v2227 = vld [vmem:[#allocation3 + $0x16] sm:$0x1]
    %2229 = vrot.lane.b32.xlu0 %v2227, 80
    %v2230 = vpop.permute.xlu0 %2229
    %2232 = vst.msk [vmem:[#allocation5 + $0x3] sm:$0x1] %vm2091, %v2230
    %v2233 = vld [vmem:[#allocation3 + $0x1a] sm:$0x1]
    %2235 = vrot.lane.b32.xlu0 %v2233, 96
    %v2236 = vpop.permute.xlu0 %2235
    %2238 = vst.msk [vmem:[#allocation5 + $0x3] sm:$0x1] %vm2098, %v2236
    %v2239 = vld [vmem:[#allocation3 + $0x1b] sm:$0x1]
    %2241 = vrot.lane.b32.xlu0 %v2239, 112
    %v2242 = vpop.permute.xlu0 %2241
    %2244 = vst.msk [vmem:[#allocation5 + $0x3] sm:$0x1] %vm2105, %v2242
    %v2245 = vld [vmem:[#allocation3 + $0x1c] sm:$0x1]
    %2246 = vst.msk [vmem:[#allocation5 + $0xb] sm:$0x1] %vm2056, %v2245
    %v2247 = vld [vmem:[#allocation3 + $0x24] sm:$0x1]
    %2248 = vst.msk [vmem:[#allocation5 + $0x4] sm:$0x1] %vm2056, %v2247
    %v2249 = vld [vmem:[#allocation3 + $0x25] sm:$0x1]
    %2251 = vrot.lane.b32.xlu0 %v2249, 16
    %v2252 = vpop.permute.xlu0 %2251
    %2254 = vst.msk [vmem:[#allocation5 + $0x4] sm:$0x1] %vm2063, %v2252
    %v2255 = vld [vmem:[#allocation3 + $0x26] sm:$0x1]
    %2257 = vrot.lane.b32.xlu0 %v2255, 32
    %v2258 = vpop.permute.xlu0 %2257
    %2260 = vst.msk [vmem:[#allocation5 + $0x4] sm:$0x1] %vm2070, %v2258
    %v2261 = vld [vmem:[#allocation3 + $0x2a] sm:$0x1]
    %2263 = vrot.lane.b32.xlu0 %v2261, 48
    %v2264 = vpop.permute.xlu0 %2263
    %2266 = vst.msk [vmem:[#allocation5 + $0x4] sm:$0x1] %vm2077, %v2264
    %v2267 = vld [vmem:[#allocation3 + $0x2b] sm:$0x1]
    %2269 = vrot.lane.b32.xlu0 %v2267, 64
    %v2270 = vpop.permute.xlu0 %2269
    %2272 = vst.msk [vmem:[#allocation5 + $0x4] sm:$0x1] %vm2084, %v2270
    %v2273 = vld [vmem:[#allocation3 + $0x2c] sm:$0x1]
    %2275 = vrot.lane.b32.xlu0 %v2273, 80
    %v2276 = vpop.permute.xlu0 %2275
    %2278 = vst.msk [vmem:[#allocation5 + $0x4] sm:$0x1] %vm2091, %v2276
    %v2279 = vld [vmem:[#allocation3 + $0x30] sm:$0x1]
    %2281 = vrot.lane.b32.xlu0 %v2279, 96
    %v2282 = vpop.permute.xlu0 %2281
    %2284 = vst.msk [vmem:[#allocation5 + $0x4] sm:$0x1] %vm2098, %v2282
    %v2285 = vld [vmem:[#allocation3 + $0x31] sm:$0x1]
    %2287 = vrot.lane.b32.xlu0 %v2285, 112
    %v2288 = vpop.permute.xlu0 %2287
    %2290 = vst.msk [vmem:[#allocation5 + $0x4] sm:$0x1] %vm2105, %v2288
    %v2291 = vld [vmem:[#allocation3 + $0x32] sm:$0x1]
    %2292 = vst.msk [vmem:[#allocation5 + $0xc] sm:$0x1] %vm2056, %v2291
    %v2293 = vld [vmem:[#allocation3 + $0x26] sm:$0x1]
    %2294 = vst.msk [vmem:[#allocation5 + $0x5] sm:$0x1] %vm2056, %v2293
    %v2295 = vld [vmem:[#allocation3 + $0x27] sm:$0x1]
    %2297 = vrot.lane.b32.xlu0 %v2295, 16
    %v2298 = vpop.permute.xlu0 %2297
    %2300 = vst.msk [vmem:[#allocation5 + $0x5] sm:$0x1] %vm2063, %v2298
    %v2301 = vld [vmem:[#allocation3 + $0x28] sm:$0x1]
    %2303 = vrot.lane.b32.xlu0 %v2301, 32
    %v2304 = vpop.permute.xlu0 %2303
    %2306 = vst.msk [vmem:[#allocation5 + $0x5] sm:$0x1] %vm2070, %v2304
    %v2307 = vld [vmem:[#allocation3 + $0x2c] sm:$0x1]
    %2309 = vrot.lane.b32.xlu0 %v2307, 48
    %v2310 = vpop.permute.xlu0 %2309
    %2312 = vst.msk [vmem:[#allocation5 + $0x5] sm:$0x1] %vm2077, %v2310
    %v2313 = vld [vmem:[#allocation3 + $0x2d] sm:$0x1]
    %2315 = vrot.lane.b32.xlu0 %v2313, 64
    %v2316 = vpop.permute.xlu0 %2315
    %2318 = vst.msk [vmem:[#allocation5 + $0x5] sm:$0x1] %vm2084, %v2316
    %v2319 = vld [vmem:[#allocation3 + $0x2e] sm:$0x1]
    %2321 = vrot.lane.b32.xlu0 %v2319, 80
    %v2322 = vpop.permute.xlu0 %2321
    %2324 = vst.msk [vmem:[#allocation5 + $0x5] sm:$0x1] %vm2091, %v2322
    %v2325 = vld [vmem:[#allocation3 + $0x32] sm:$0x1]
    %2327 = vrot.lane.b32.xlu0 %v2325, 96
    %v2328 = vpop.permute.xlu0 %2327
    %2330 = vst.msk [vmem:[#allocation5 + $0x5] sm:$0x1] %vm2098, %v2328
    %v2331 = vld [vmem:[#allocation3 + $0x33] sm:$0x1]
    %2333 = vrot.lane.b32.xlu0 %v2331, 112
    %v2334 = vpop.permute.xlu0 %2333
    %2336 = vst.msk [vmem:[#allocation5 + $0x5] sm:$0x1] %vm2105, %v2334
    %v2337 = vld [vmem:[#allocation3 + $0x34] sm:$0x1]
    %2338 = vst.msk [vmem:[#allocation5 + $0xd] sm:$0x1] %vm2056, %v2337
    %v2339 = vld [vmem:[#allocation3 + $0x30] sm:$0x1]
    %2340 = vst.msk [vmem:[#allocation5 + $0x6] sm:$0x1] %vm2056, %v2339
    %v2341 = vld [vmem:[#allocation3 + $0x31] sm:$0x1]
    %2343 = vrot.lane.b32.xlu0 %v2341, 16
    %v2344 = vpop.permute.xlu0 %2343
    %2346 = vst.msk [vmem:[#allocation5 + $0x6] sm:$0x1] %vm2063, %v2344
    %v2347 = vld [vmem:[#allocation3 + $0x32] sm:$0x1]
    %2349 = vrot.lane.b32.xlu0 %v2347, 32
    %v2350 = vpop.permute.xlu0 %2349
    %2352 = vst.msk [vmem:[#allocation5 + $0x6] sm:$0x1] %vm2070, %v2350
    %v2353 = vld [vmem:[#allocation3 + $0x36] sm:$0x1]
    %2355 = vrot.lane.b32.xlu0 %v2353, 48
    %v2356 = vpop.permute.xlu0 %2355
    %2358 = vst.msk [vmem:[#allocation5 + $0x6] sm:$0x1] %vm2077, %v2356
    %v2359 = vld [vmem:[#allocation3 + $0x37] sm:$0x1]
    %2361 = vrot.lane.b32.xlu0 %v2359, 64
    %v2362 = vpop.permute.xlu0 %2361
    %2364 = vst.msk [vmem:[#allocation5 + $0x6] sm:$0x1] %vm2084, %v2362
    %v2365 = vld [vmem:[#allocation3 + $0x38] sm:$0x1]
    %2367 = vrot.lane.b32.xlu0 %v2365, 80
    %v2368 = vpop.permute.xlu0 %2367
    %2370 = vst.msk [vmem:[#allocation5 + $0x6] sm:$0x1] %vm2091, %v2368
    %v2371 = vld [vmem:[#allocation3 + $0x3c] sm:$0x1]
    %2373 = vrot.lane.b32.xlu0 %v2371, 96
    %v2374 = vpop.permute.xlu0 %2373
    %2376 = vst.msk [vmem:[#allocation5 + $0x6] sm:$0x1] %vm2098, %v2374
    %v2377 = vld [vmem:[#allocation3 + $0x3d] sm:$0x1]
    %2379 = vrot.lane.b32.xlu0 %v2377, 112
    %v2380 = vpop.permute.xlu0 %2379
    %2382 = vst.msk [vmem:[#allocation5 + $0x6] sm:$0x1] %vm2105, %v2380
    %v2383 = vld [vmem:[#allocation3 + $0x3e] sm:$0x1]
    %2384 = vst.msk [vmem:[#allocation5 + $0xe] sm:$0x1] %vm2056, %v2383
    %v2385 = vld [vmem:[#allocation3 + $0x32] sm:$0x1]
    %2386 = vst.msk [vmem:[#allocation5 + $0x7] sm:$0x1] %vm2056, %v2385
    %v2387 = vld [vmem:[#allocation3 + $0x33] sm:$0x1]
    %2389 = vrot.lane.b32.xlu0 %v2387, 16
    %v2390 = vpop.permute.xlu0 %2389
    %2392 = vst.msk [vmem:[#allocation5 + $0x7] sm:$0x1] %vm2063, %v2390
    %v2393 = vld [vmem:[#allocation3 + $0x34] sm:$0x1]
    %2395 = vrot.lane.b32.xlu0 %v2393, 32
    %v2396 = vpop.permute.xlu0 %2395
    %2398 = vst.msk [vmem:[#allocation5 + $0x7] sm:$0x1] %vm2070, %v2396
    %v2399 = vld [vmem:[#allocation3 + $0x38] sm:$0x1]
    %2401 = vrot.lane.b32.xlu0 %v2399, 48
    %v2402 = vpop.permute.xlu0 %2401
    %2404 = vst.msk [vmem:[#allocation5 + $0x7] sm:$0x1] %vm2077, %v2402
    %v2405 = vld [vmem:[#allocation3 + $0x39] sm:$0x1]
    %2407 = vrot.lane.b32.xlu0 %v2405, 64
    %v2408 = vpop.permute.xlu0 %2407
    %2410 = vst.msk [vmem:[#allocation5 + $0x7] sm:$0x1] %vm2084, %v2408
    %v2411 = vld [vmem:[#allocation3 + $0x3a] sm:$0x1]
    %2413 = vrot.lane.b32.xlu0 %v2411, 80
    %v2414 = vpop.permute.xlu0 %2413
    %2416 = vst.msk [vmem:[#allocation5 + $0x7] sm:$0x1] %vm2091, %v2414
    %v2417 = vld [vmem:[#allocation3 + $0x3e] sm:$0x1]
    %2419 = vrot.lane.b32.xlu0 %v2417, 96
    %v2420 = vpop.permute.xlu0 %2419
    %2422 = vst.msk [vmem:[#allocation5 + $0x7] sm:$0x1] %vm2098, %v2420
    %v2423 = vld [vmem:[#allocation3 + $0x3f] sm:$0x1]
    %2425 = vrot.lane.b32.xlu0 %v2423, 112
    %v2426 = vpop.permute.xlu0 %2425
    %2428 = vst.msk [vmem:[#allocation5 + $0x7] sm:$0x1] %vm2105, %v2426
    %v2429 = vld [vmem:[#allocation3 + $0x40] sm:$0x1]
    %2430 = vst.msk [vmem:[#allocation5 + $0xf] sm:$0x1] %vm2056, %v2429
    %v2431 = vld [vmem:[#allocation5] sm:$0xff]
    %v2432 = vld [vmem:[#allocation5 + $0x8] sm:$0xff]
    %v2433 = vld [vmem:[%s3] sm:$0xff]
    %v2434 = vld [vmem:[%s3 + $0x8] sm:$0xff]
    %v2435 = vld [vmem:[%s3 + $0x10] sm:$0xff]
    %v2436 = vld [vmem:[%s3 + $0x18] sm:$0xff]
    %v2437 = vld [vmem:[%s3 + $0x20] sm:$0xff]
    %v2438 = vld [vmem:[%s3 + $0x28] sm:$0xff]
    %v2439 = vld [vmem:[%s3 + $0x30] sm:$0xff]
    %v2440 = vld [vmem:[%s3 + $0x38] sm:$0xff]
    %v2441 = vld [vmem:[%s3 + $0x40] sm:$0xff]
    %v2442 = vld [vmem:[%s3 + $0x48] sm:$0xff]
    %v2443 = vld [vmem:[%s3 + $0x50] sm:$0xff]
    %v2444 = vld [vmem:[%s3 + $0x58] sm:$0xff]
    %v2445 = vld [vmem:[%s3 + $0x60] sm:$0xff]
    %v2446 = vld [vmem:[%s3 + $0x68] sm:$0xff]
    %v2447 = vld [vmem:[%s3 + $0x70] sm:$0xff]
    %v2448 = vld [vmem:[%s3 + $0x78] sm:$0xff]
    %v2449 = vld [vmem:[%s3 + $0x80] sm:$0xff]
    %v2450 = vld [vmem:[%s3 + $0x88] sm:$0xff]
    %v2451 = vld [vmem:[%s5 + $0x2] sm:$0x1]
    %v2452 = vlaneseq
    %v2453 = vshrl.u32 %v2452, 7
    %v2454 = vsub.s32 0, %v2453
    %v2455 = vrot.slane %v2451, %v2454
    %v2457 = vsel %vm2035, %v2432, 0
    %2459 = vmatprep.subr.mxu0 0.0
    %2460 = vmatpush1.msra.mxu0 %v2448
    %2461 = vmatprep.subr.mxu0 0.0
    %2462 = vmatpush1.msra.mxu0 %v2447
    %2463 = vmatprep.subr.mxu0 0.0
    %2464 = vmatpush1.msra.mxu0 %v2446
    %2465 = vmatprep.subr.mxu0 0.0
    %2466 = vmatpush1.msra.mxu0 %v2445
    %2467 = vmatprep.subr.mxu0 0.0
    %2468 = vmatpush1.msra.mxu0 %v2444
    %2469 = vmatprep.subr.mxu0 0.0
    %2470 = vmatpush1.msra.mxu0 %v2443
    %2471 = vmatprep.subr.mxu0 0.0
    %2472 = vmatpush1.msra.mxu0 %v2442
    %2473 = vmatprep.subr.mxu0 0.0
    %2474 = vmatpush1.msra.mxu0 %v2441
    %2475 = vmatprep.subr.mxu0 0.0
    %2476 = vmatpush1.msra.mxu0 %v2440
    %2477 = vmatprep.subr.mxu0 0.0
    %2478 = vmatpush1.msra.mxu0 %v2439
    %2479 = vmatprep.subr.mxu0 0.0
    %2480 = vmatpush1.msra.mxu0 %v2438
    %2481 = vmatprep.subr.mxu0 0.0
    %2482 = vmatpush1.msra.mxu0 %v2437
    %2483 = vmatprep.subr.mxu0 0.0
    %2484 = vmatpush1.msra.mxu0 %v2436
    %2485 = vmatprep.subr.mxu0 0.0
    %2486 = vmatpush1.msra.mxu0 %v2435
    %2487 = vmatprep.subr.mxu0 0.0
    %2488 = vmatpush1.msra.mxu0 %v2434
    %2489 = vmatprep.subr.mxu0 0.0
    %2490 = vmatpush1.msra.mxu0 %v2433
    %2491 = vmatprep.subr.mxu0 0.0
    %2492 = vmatpush2.msra.mxu0 0.0
    %2493 = vmatprep.subr.mxu0 0.0
    %2494 = vmatpush2.msra.mxu0 0.0
    %2495 = vmatprep.subr.mxu0 0.0
    %2496 = vmatpush2.msra.mxu0 0.0
    %2497 = vmatprep.subr.mxu0 0.0
    %2498 = vmatpush2.msra.mxu0 0.0
    %2499 = vmatprep.subr.mxu0 0.0
    %2500 = vmatpush2.msra.mxu0 0.0
    %2501 = vmatprep.subr.mxu0 0.0
    %2502 = vmatpush2.msra.mxu0 0.0
    %2503 = vmatprep.subr.mxu0 0.0
    %2504 = vmatpush2.msra.mxu0 0.0
    %2505 = vmatprep.subr.mxu0 0.0
    %2506 = vmatpush2.msra.mxu0 0.0
    %2507 = vmatprep.subr.mxu0 0.0
    %2508 = vmatpush2.msra.mxu0 0.0
    %2509 = vmatprep.subr.mxu0 0.0
    %2510 = vmatpush2.msra.mxu0 0.0
    %2511 = vmatprep.subr.mxu0 0.0
    %2512 = vmatpush2.msra.mxu0 0.0
    %2513 = vmatprep.subr.mxu0 0.0
    %2514 = vmatpush2.msra.mxu0 0.0
    %2515 = vmatprep.subr.mxu0 0.0
    %2516 = vmatpush2.msra.mxu0 0.0
    %2517 = vmatprep.subr.mxu0 0.0
    %2518 = vmatpush2.msra.mxu0 0.0
    %2519 = vmatprep.subr.mxu0 0.0
    %2520 = vmatpush2.msra.mxu0 %v2450
    %2521 = vmatprep.subr.mxu0 0.0
    %2522 = vmatpush2.msra.mxu0 %v2449
    %2523 = vmatprep.mubr.f32.mxu0 %v2457
    %2524 = vmatmul.mubr.f32.gmra.mxu0 %v2431
    %v2525 = vpop.f32.mrf.mxu0
    %v2526 = vadd.f32 %v2455, %v2525
    %v2527 = vpop.f32.mrf.mxu0
    %2528 = vdwg.mxu0
    %v2529 = vmax.f32 %v2526, 0.0
    %vm2530 = vcmask 253952
    %2531 = vst.msk [vmem:[#allocation6] sm:$0x1] %vm2530, %v2529
    %2533 = vrot.lane.b32.xlu0 %v2529, 32
    %v2534 = vpop.permute.xlu0 %2533
    %vm2536 = vcmask 517377
    %2537 = vst.msk [vmem:[#allocation6 - $0x1] sm:$0x2] %vm2536, %v2534
    %2538 = vrot.lane.b32.xlu0 %v2529, 64
    %v2539 = vpop.permute.xlu0 %2538
    %vm2541 = vcmask 780802
    %2542 = vst.msk [vmem:[#allocation6 - $0x2] sm:$0x4] %vm2541, %v2539
    %2543 = vrot.lane.b32.xlu0 %v2529, 96
    %v2544 = vpop.permute.xlu0 %2543
    %vm2546 = vcmask 1044227
    %2547 = vst.msk [vmem:[#allocation6 - $0x3] sm:$0x8] %vm2546, %v2544
    %vm2548 = vcmask 258052
    %2549 = vst.msk [vmem:[#allocation6 - $0x3] sm:$0x10] %vm2548, %v2529
    %vm2550 = vcmask 521477
    %2551 = vst.msk [vmem:[#allocation6 - $0x4] sm:$0x20] %vm2550, %v2534
    %vm2552 = vcmask 784902
    %2553 = vst.msk [vmem:[#allocation6 - $0x5] sm:$0x40] %vm2552, %v2539
    %vm2554 = vcmask 1048327
    %2555 = vst.msk [vmem:[#allocation6 - $0x6] sm:$0x80] %vm2554, %v2544
    %v2556 = vld [vmem:[#allocation6] sm:$0x3]
    %v2557 = vld [vmem:[%s4] sm:$0xff]
    %v2558 = vld [vmem:[%s4 + $0x8] sm:$0xff]
    %v2559 = vld [vmem:[%s4 + $0x10] sm:$0xff]
    %v2560 = vld [vmem:[%s4 + $0x18] sm:$0xff]
    %v2561 = vld [vmem:[%s4 + $0x20] sm:$0xff]
    %v2562 = vld [vmem:[%s4 + $0x28] sm:$0xff]
    %v2563 = vld [vmem:[%s4 + $0x30] sm:$0xff]
    %v2564 = vld [vmem:[%s4 + $0x38] sm:$0xff]
    %v2565 = vld [vmem:[%s4 + $0x40] sm:$0xff]
    %v2566 = vld [vmem:[%s4 + $0x48] sm:$0xff]
    %v2567 = vld [vmem:[%s4 + $0x50] sm:$0xff]
    %v2568 = vld [vmem:[%s4 + $0x58] sm:$0xff]
    %v2569 = vld [vmem:[%s4 + $0x60] sm:$0xff]
    %v2570 = vld [vmem:[%s4 + $0x68] sm:$0xff]
    %v2571 = vld [vmem:[%s4 + $0x70] sm:$0xff]
    %v2572 = vld [vmem:[%s4 + $0x78] sm:$0xff]
    %v2573 = vld [vmem:[%s5 + $0x3] sm:$0x1]
    %v2574 = vlaneseq
    %v2575 = vshrl.u32 %v2574, 7
    %v2576 = vsub.s32 0, %v2575
    %v2577 = vrot.slane %v2573, %v2576
    %2578 = vmatprep.subr.mxu0 0.0
    %2579 = vmatpush1.msra.mxu0 %v2572
    %2580 = vmatprep.subr.mxu0 0.0
    %2581 = vmatpush1.msra.mxu0 %v2571
    %2582 = vmatprep.subr.mxu0 0.0
    %2583 = vmatpush1.msra.mxu0 %v2570
    %2584 = vmatprep.subr.mxu0 0.0
    %2585 = vmatpush1.msra.mxu0 %v2569
    %2586 = vmatprep.subr.mxu0 0.0
    %2587 = vmatpush1.msra.mxu0 %v2568
    %2588 = vmatprep.subr.mxu0 0.0
    %2589 = vmatpush1.msra.mxu0 %v2567
    %2590 = vmatprep.subr.mxu0 0.0
    %2591 = vmatpush1.msra.mxu0 %v2566
    %2592 = vmatprep.subr.mxu0 0.0
    %2593 = vmatpush1.msra.mxu0 %v2565
    %2594 = vmatprep.subr.mxu0 0.0
    %2595 = vmatpush1.msra.mxu0 %v2564
    %2596 = vmatprep.subr.mxu0 0.0
    %2597 = vmatpush1.msra.mxu0 %v2563
    %2598 = vmatprep.subr.mxu0 0.0
    %2599 = vmatpush1.msra.mxu0 %v2562
    %2600 = vmatprep.subr.mxu0 0.0
    %2601 = vmatpush1.msra.mxu0 %v2561
    %2602 = vmatprep.subr.mxu0 0.0
    %2603 = vmatpush1.msra.mxu0 %v2560
    %2604 = vmatprep.subr.mxu0 0.0
    %2605 = vmatpush1.msra.mxu0 %v2559
    %2606 = vmatprep.subr.mxu0 0.0
    %2607 = vmatpush1.msra.mxu0 %v2558
    %2608 = vmatprep.subr.mxu0 0.0
    %2609 = vmatpush1.msra.mxu0 %v2557
    %2610 = vmatprep.subr.mxu0 0.0
    %2611 = vmatpush2.msra.mxu0 0.0
    %2612 = vmatprep.subr.mxu0 0.0
    %2613 = vmatpush2.msra.mxu0 0.0
    %2614 = vmatprep.subr.mxu0 0.0
    %2615 = vmatpush2.msra.mxu0 0.0
    %2616 = vmatprep.subr.mxu0 0.0
    %2617 = vmatpush2.msra.mxu0 0.0
    %2618 = vmatprep.subr.mxu0 0.0
    %2619 = vmatpush2.msra.mxu0 0.0
    %2620 = vmatprep.subr.mxu0 0.0
    %2621 = vmatpush2.msra.mxu0 0.0
    %2622 = vmatprep.subr.mxu0 0.0
    %2623 = vmatpush2.msra.mxu0 0.0
    %2624 = vmatprep.subr.mxu0 0.0
    %2625 = vmatpush2.msra.mxu0 0.0
    %2626 = vmatprep.subr.mxu0 0.0
    %2627 = vmatpush2.msra.mxu0 0.0
    %2628 = vmatprep.subr.mxu0 0.0
    %2629 = vmatpush2.msra.mxu0 0.0
    %2630 = vmatprep.subr.mxu0 0.0
    %2631 = vmatpush2.msra.mxu0 0.0
    %2632 = vmatprep.subr.mxu0 0.0
    %2633 = vmatpush2.msra.mxu0 0.0
    %2634 = vmatprep.subr.mxu0 0.0
    %2635 = vmatpush2.msra.mxu0 0.0
    %2636 = vmatprep.subr.mxu0 0.0
    %2637 = vmatpush2.msra.mxu0 0.0
    %2638 = vmatprep.subr.mxu0 0.0
    %2639 = vmatpush2.msra.mxu0 0.0
    %2640 = vmatprep.subr.mxu0 0.0
    %2641 = vmatpush2.msra.mxu0 0.0
    %2642 = vmatprep.mubr.f32.mxu0 0.0
    %2643 = vmatmul.mubr.f32.gmra.mxu0 %v2556
    %v2644 = vpop.f32.mrf.mxu0
    %v2645 = vadd.f32 %v2577, %v2644
    %v2646 = vpop.f32.mrf.mxu0
    %2647 = vdwg.mxu0
    %v2648 = vmax.f32 %v2645, 0.0
    %vm2649 = vcmask 254976
    %2650 = vst.msk [vmem:[#allocation7] sm:$0x3] %vm2649, %v2648
    // Predicated region
    $region26: #{convolutional_encoder.1} parent=1 // pred_check
      _
    $region27: #{convolutional_encoder.1} parent=1 // pred_check_branch
      %2652 = sbr.rel (0) target = $region29
    $region28: #{convolutional_encoder.1} parent=1 // pred_region
      %s2654 = ssub.s32 32, 32
      %2655 = vsyncadd [#allocation8], %s2654
      %s2657 = sshll.u32 [#allocation7], 4
      %s2658 = int_to_ptr.vmem [resolvable:$true] %s2657
      %2660 = dma.vmem_to_hbm [thread:$0]  %s2658, 32, %s6, [#allocation8]
    $region29: #{convolutional_encoder.1} parent=1 // pred_fallthru
      _
    // Predicated region
    $region30: #{convolutional_encoder.1} parent=1 // pred_check
      _
    $region31: #{convolutional_encoder.1} parent=1 // pred_check_branch
      %2662 = sbr.rel (0) target = $region33
    $region32: #{convolutional_encoder.1} parent=1 // pred_region
      %2663 = dma.done [#allocation8], 32
    $region33: #{convolutional_encoder.1} parent=1 // pred_fallthru
      _
    %2664 = vsyncpa [#allocation8], 1

</llo_original>
